<compile_context>
chip_gen: v7x
topology: tpu7x:2x2x1
jax: 0.10.0
libtpu: 0.0.40
codegen_flags: <defaults>
</compile_context>

<pallas_src>
import math
from collections import namedtuple
from functools import partial

import numpy as np
import jax
import jax.numpy as jnp
from jax import lax
from jax.experimental import pallas as pl
from jax.experimental.pallas import tpu as pltpu


Cfg = namedtuple("Cfg", ["na", "no", "strides"])


# ---------------------------------------------------------------------------
# Kernel 1: fused Conv(3x3, stride 2, pad 1) + BatchNorm + SiLU  (YOLOv5 `Conv`)
# ---------------------------------------------------------------------------

def _conv3x3_s2_kernel(z_ref, w_ref, s_ref, b_ref, o_ref, *, Ho, Wo):
    # z_ref : (Hz, Wz, 4*Cin)  space-to-depth'd padded input, one image   (f32)
    # w_ref : (4, 4*Cin, Cout) fused 2x2-tap weights                      (bf16)
    # s_ref / b_ref : (1, Cout) folded BN scale / bias                    (f32)
    # o_ref : (Ho, Wo, Cout)                                              (f32)
    z = z_ref[...]
    w = w_ref[...]
    scale = s_ref[...]
    bias = b_ref[...]
    for i in range(Ho):                      # static unroll; Ho <= 8 at these sizes
        r0 = z[i]                            # (Wz, 4*Cin)
        r1 = z[i + 1]
        acc = jnp.dot(r0[0:Wo].astype(jnp.bfloat16), w[0],
                      preferred_element_type=jnp.float32)
        acc += jnp.dot(r0[1:Wo + 1].astype(jnp.bfloat16), w[1],
                       preferred_element_type=jnp.float32)
        acc += jnp.dot(r1[0:Wo].astype(jnp.bfloat16), w[2],
                       preferred_element_type=jnp.float32)
        acc += jnp.dot(r1[1:Wo + 1].astype(jnp.bfloat16), w[3],
                       preferred_element_type=jnp.float32)
        y = acc * scale + bias               # BatchNorm (folded), f32
        y = y * jax.nn.sigmoid(y)            # SiLU
        o_ref[i] = y


def conv3x3_s2_bn_silu(z, wf, scale, bias):
    B, Hz, Wz, C4 = z.shape
    Cout = wf.shape[-1]
    Ho, Wo = Hz - 1, Wz - 1
    return pl.pallas_call(
        partial(_conv3x3_s2_kernel, Ho=Ho, Wo=Wo),
        out_shape=jax.ShapeDtypeStruct((B, Ho, Wo, Cout), jnp.float32),
        grid=(B,),
        in_specs=[
            pl.BlockSpec((None, Hz, Wz, C4), lambda b: (b, 0, 0, 0)),
            pl.BlockSpec((4, C4, Cout), lambda b: (0, 0, 0)),
            pl.BlockSpec((1, Cout), lambda b: (0, 0)),
            pl.BlockSpec((1, Cout), lambda b: (0, 0)),
        ],
        out_specs=pl.BlockSpec((None, Ho, Wo, Cout), lambda b: (b, 0, 0, 0)),
        compiler_params=pltpu.CompilerParams(dimension_semantics=("parallel",)),
    )(z, wf, scale, bias)


def _space_to_depth_pad(x_nhwc):
    """pad=1 then pixel-unshuffle by 2: (B,H,W,C) -> (B, H/2+1, W/2+1, 4C).
    A 1x relayout (no duplication) replacing the old 9x im2col materialization."""
    B, H, W, C = x_nhwc.shape
    assert H % 2 == 0 and W % 2 == 0
    xp = jnp.pad(x_nhwc, ((0, 0), (1, 1), (1, 1), (0, 0)))
    Hz, Wz = (H + 2) // 2, (W + 2) // 2
    z = xp.reshape(B, Hz, 2, Wz, 2, C).transpose(0, 1, 3, 2, 4, 5)
    return z.reshape(B, Hz, Wz, 4 * C)


def _fuse_conv_weight(w_oihw):
    """(Cout,Cin,3,3) OIHW -> (4, 4*Cin, Cout) bf16 weights of the equivalent
    2x2 stride-1 conv over the space-to-depth input (7 of 16 slots are zero)."""
    Cout, Cin, kh, kw = w_oihw.shape
    w4 = jnp.zeros((2, 2, 2, 2, Cin, Cout), jnp.float32)   # [sy, sx, ry, rx, ci, co]
    for dy in range(kh):
        for dx in range(kw):
            sy, ry, sx, rx = dy // 2, dy % 2, dx // 2, dx % 2
            w4 = w4.at[sy, sx, ry, rx].set(w_oihw[:, :, dy, dx].T)
    return w4.reshape(4, 4 * Cin, Cout).astype(jnp.bfloat16)


# ---------------------------------------------------------------------------
# Kernel 2: fused Detect head (1x1 conv + bias + sigmoid + box decode)
# ---------------------------------------------------------------------------

def _detect_decode_kernel(x_ref, w_ref, meta_ref, raw_ref, z_ref, *, nx, ny, stride):
    # x_ref : (tm, Cin) feature rows, global row r = (b*ny + gy)*nx + gx   (f32)
    # w_ref : (Cin, na*no) 1x1-conv weight                                 (bf16)
    # meta_ref : (5, na*no) rows = [bias, is_x, is_y, is_wh, anchor_grid]  (f32)
    # raw_ref / z_ref : (tm, na*no) raw logits / decoded predictions       (f32)
    y = jnp.dot(x_ref[...].astype(jnp.bfloat16), w_ref[...],
                preferred_element_type=jnp.float32)
    y = y + meta_ref[0:1, :]
    raw_ref[...] = y
    s = jax.nn.sigmoid(y)

    tm = y.shape[0]
    r = lax.broadcasted_iota(jnp.int32, (tm, 1), 0) + pl.program_id(0) * tm
    r = r & (nx * ny - 1)                           # spatial index within one image
    gx = (r & (nx - 1)).astype(jnp.float32)
    gy = (r >> (nx.bit_length() - 1)).astype(jnp.float32)

    is_x = meta_ref[1:2, :]
    is_y = meta_ref[2:3, :]
    is_wh = meta_ref[3:4, :]
    anc = meta_ref[4:5, :]
    is_xy = is_x + is_y
    grid_add = is_x * gx + is_y * gy - 0.5 * is_xy  # _make_grid: (xv, yv) - 0.5
    xy = (s * 2.0 + grid_add) * stride
    wh = (s * 2.0) ** 2 * anc
    z_ref[...] = jnp.where(is_xy > 0.5, xy, jnp.where(is_wh > 0.5, wh, s))


def detect_level(f2d, w, meta, *, nx, ny, stride, tm=64):
    M, Cin = f2d.shape
    N = w.shape[1]
    # TODO(synk): non power-of-two feature maps would need grid coords passed in (or an
    #             in-kernel integer div); YOLO strides keep nx, ny powers of two here.
    assert nx & (nx - 1) == 0 and ny & (ny - 1) == 0
    tm = min(tm, M)
    return pl.pallas_call(
        partial(_detect_decode_kernel, nx=nx, ny=ny, stride=float(stride)),
        out_shape=(jax.ShapeDtypeStruct((M, N), jnp.float32),
                   jax.ShapeDtypeStruct((M, N), jnp.float32)),
        grid=(pl.cdiv(M, tm),),
        in_specs=[
            pl.BlockSpec((tm, Cin), lambda m: (m, 0)),
            pl.BlockSpec((Cin, N), lambda m: (0, 0)),
            pl.BlockSpec((5, N), lambda m: (0, 0)),
        ],
        out_specs=(
            pl.BlockSpec((tm, N), lambda m: (m, 0)),
            pl.BlockSpec((tm, N), lambda m: (m, 0)),
        ),
        compiler_params=pltpu.CompilerParams(dimension_semantics=("parallel",)),
    )(f2d, w, meta)


# ---------------------------------------------------------------------------
# Parameters (deterministic hard-coded "yaml": 3x Conv backbone + Detect head)
# ---------------------------------------------------------------------------

def init_params(key, ch_in=4, nc=4):
    na, nl = 3, 3
    no = nc + 5
    widths = [8, 16, 32]
    strides = [2.0, 4.0, 8.0]           # s / feature.shape[-2], as in Model.__init__
    anchors = jnp.array([[10., 13., 16., 30., 33., 23.],
                         [30., 61., 62., 45., 59., 119.],
                         [116., 90., 156., 198., 373., 326.]], jnp.float32)
    # Model.__init__: m.anchors /= m.stride.view(-1, 1, 1)
    anchors_buf = anchors.reshape(nl, na, 2) / jnp.array(strides).reshape(nl, 1, 1)

    keys = jax.random.split(key, 8)
    ki = 0
    backbone = []
    c_prev = ch_in
    for c in widths:
        w = jax.random.normal(keys[ki], (c, c_prev, 3, 3), jnp.float32) / math.sqrt(c_prev * 9)
        ki += 1
        gamma = 1.0 + 0.1 * jnp.cos(jnp.arange(c, dtype=jnp.float32))
        beta = 0.05 * jnp.sin(jnp.arange(c, dtype=jnp.float32))
        mean = 0.02 * jnp.arange(c, dtype=jnp.float32)
        var = 1.0 + 0.01 * jnp.arange(c, dtype=jnp.float32)
        scale = gamma / jnp.sqrt(var + 1e-3)
        bias = beta - mean * scale
        backbone.append(dict(w=w, scale=scale, bias=bias))
        c_prev = c

    dws, dbs = [], []
    for i, c in enumerate(widths):
        w = jax.random.normal(keys[ki], (c, na * no), jnp.float32) / math.sqrt(c)
        ki += 1
        b = jnp.zeros((na, no), jnp.float32)
        # Model._initialize_biases
        b = b.at[:, 4].add(math.log(8.0 / (640.0 / strides[i]) ** 2))
        b = b.at[:, 5:].add(math.log(0.6 / (nc - 0.99)))
        dws.append(w)
        dbs.append(b.reshape(-1))

    return dict(backbone=backbone,
                detect=dict(w=dws, b=dbs, anchors=anchors_buf),
                na=na, no=no, nc=nc, strides=strides)


def prepare_params(params):
    """Precompute kernel-friendly parameters (fused conv weights, detect lane table)."""
    backbone = []
    for layer in params["backbone"]:
        backbone.append(dict(
            wf=_fuse_conv_weight(layer["w"]),
            scale=layer["scale"].reshape(1, -1).astype(jnp.float32),
            bias=layer["bias"].reshape(1, -1).astype(jnp.float32),
        ))

    na, no = params["na"], params["no"]
    N = na * no
    det_w, det_meta = [], []
    for i, w in enumerate(params["detect"]["w"]):
        stride = params["strides"][i]
        bias = np.asarray(params["detect"]["b"][i], np.float32)
        is_x = np.zeros((N,), np.float32)
        is_y = np.zeros((N,), np.float32)
        is_wh = np.zeros((N,), np.float32)
        anc = np.ones((N,), np.float32)
        ag = np.asarray(params["detect"]["anchors"][i], np.float32) * stride  # anchor_grid
        for a in range(na):
            is_x[a * no + 0] = 1.0
            is_y[a * no + 1] = 1.0
            is_wh[a * no + 2] = 1.0
            is_wh[a * no + 3] = 1.0
            anc[a * no + 2] = ag[a, 0]
            anc[a * no + 3] = ag[a, 1]
        det_w.append(w.astype(jnp.bfloat16))
        det_meta.append(jnp.asarray(np.stack([bias, is_x, is_y, is_wh, anc]), jnp.float32))

    prep = dict(backbone=backbone, detect_w=det_w, detect_meta=det_meta)
    cfg = Cfg(na=na, no=no, strides=tuple(float(s) for s in params["strides"]))
    return prep, cfg


# ---------------------------------------------------------------------------
# Forward (Pallas)  and  pure-JAX reference
# ---------------------------------------------------------------------------

def forward_pallas(prep, x_nchw, cfg):
    """Model.forward_once (inference): returns (cat(z, 1), [per-level raw tensors])."""
    x = jnp.transpose(x_nchw, (0, 2, 3, 1)).astype(jnp.float32)   # NCHW -> NHWC
    feats = []
    for layer in prep["backbone"]:
        z = _space_to_depth_pad(x)
        x = conv3x3_s2_bn_silu(z, layer["wf"], layer["scale"], layer["bias"])
        feats.append(x)

    na, no = cfg.na, cfg.no
    zs, raws = [], []
    for i, f in enumerate(feats):
        B, ny, nx, Cin = f.shape
        raw2d, dec2d = detect_level(f.reshape(B * ny * nx, Cin),
                                    prep["detect_w"][i], prep["detect_meta"][i],
                                    nx=nx, ny=ny, stride=cfg.strides[i])
        # match x.view(bs, na, no, ny, nx).permute(0, 1, 3, 4, 2); the decode itself no
        # longer depends on this relayout, it is only for the returned tensors.
        raws.append(raw2d.reshape(B, ny, nx, na, no).transpose(0, 3, 1, 2, 4))
        zs.append(dec2d.reshape(B, ny, nx, na, no).transpose(0, 3, 1, 2, 4)
                  .reshape(B, na * ny * nx, no))
    return jnp.concatenate(zs, axis=1), raws


def _ref_conv_bn_silu(x_nhwc, w_oihw, scale, bias):
    B, H, W, Cin = x_nhwc.shape
    Cout = w_oihw.shape[0]
    Ho, Wo = H // 2, W // 2
    xp = jnp.pad(x_nhwc, ((0, 0), (1, 1), (1, 1), (0, 0)))
    cols = []
    for dy in range(3):
        for dx in range(3):
            cols.append(xp[:, dy:dy + 2 * Ho:2, dx:dx + 2 * Wo:2, :])
    patches = jnp.stack(cols, axis=3).reshape(B * Ho * Wo, 9 * Cin)
    w2 = jnp.transpose(w_oihw, (2, 3, 1, 0)).reshape(9 * Cin, Cout)
    y = jnp.dot(patches.astype(jnp.bfloat16), w2.astype(jnp.bfloat16),
                preferred_element_type=jnp.float32)
    y = y * scale + bias
    y = y * jax.nn.sigmoid(y)
    return y.reshape(B, Ho, Wo, Cout)


def _ref_detect(f, w, b, anchors_i, stride, na, no):
    B, ny, nx, Cin = f.shape
    y = jnp.dot(f.reshape(-1, Cin).astype(jnp.bfloat16), w.astype(jnp.bfloat16),
                preferred_element_type=jnp.float32) + b
    y = y.reshape(B, ny, nx, na, no).transpose(0, 3, 1, 2, 4)   # (B, na, ny, nx, no)
    s = jax.nn.sigmoid(y)
    yv, xv = jnp.meshgrid(jnp.arange(ny, dtype=jnp.float32),
                          jnp.arange(nx, dtype=jnp.float32), indexing="ij")
    grid = jnp.stack((xv, yv), axis=-1) - 0.5
    anc = (anchors_i * stride).reshape(1, na, 1, 1, 2)
    xy = (s[..., :2] * 2.0 + grid[None, None]) * stride
    wh = (s[..., 2:4] * 2.0) ** 2 * anc
    dec = jnp.concatenate([xy, wh, s[..., 4:]], axis=-1)
    return y, dec.reshape(B, na * ny * nx, no)


def forward_ref(params, x_nchw):
    x = jnp.transpose(x_nchw, (0, 2, 3, 1)).astype(jnp.float32)
    feats = []
    for layer in params["backbone"]:
        x = _ref_conv_bn_silu(x, layer["w"], layer["scale"], layer["bias"])
        feats.append(x)
    na, no = params["na"], params["no"]
    zs, raws = [], []
    for i, f in enumerate(feats):
        y, dec = _ref_detect(f, params["detect"]["w"][i], params["detect"]["b"][i],
                             params["detect"]["anchors"][i], params["strides"][i], na, no)
        raws.append(y)
        zs.append(dec)
    return jnp.concatenate(zs, axis=1), raws


# ---------------------------------------------------------------------------
# main
# ---------------------------------------------------------------------------

if __name__ == "__main__":
    key = jax.random.PRNGKey(0)
    pkey, xkey = jax.random.split(key)
    params = init_params(pkey, ch_in=4, nc=4)
    prep, cfg = prepare_params(params)
    x = jax.random.normal(xkey, (2, 4, 16, 16), jnp.float32)   # NCHW, like PyTorch

    fwd = jax.jit(partial(forward_pallas, cfg=cfg))
    z, raw = fwd(prep, x)
    z = jax.block_until_ready(z)

    z_ref, raw_ref = forward_ref(params, x)
    assert z.shape == (2, 3 * (8 * 8 + 4 * 4 + 2 * 2), 9)
    np.testing.assert_allclose(np.asarray(z), np.asarray(z_ref), atol=2e-2, rtol=2e-2)
    for a, b in zip(raw, raw_ref):
        np.testing.assert_allclose(np.asarray(a), np.asarray(b), atol=2e-2, rtol=2e-2)

    print("KERNEL_OK")
</pallas_src>

<mosaic_0001>
module attributes {stable_mosaic.version = 11 : i64} {
  func.func @_conv3x3_s2_kernel(%arg0: i32, %arg1: memref<1x9x9x16xf32, #tpu.memory_space<vmem>>, %arg2: memref<4x16x8xbf16, #tpu.memory_space<vmem>>, %arg3: memref<1x8xf32, #tpu.memory_space<vmem>>, %arg4: memref<1x8xf32, #tpu.memory_space<vmem>>, %arg5: memref<1x8x8x8xf32, #tpu.memory_space<vmem>>) attributes {dimension_semantics = [#tpu.dimension_semantics<parallel>], iteration_bounds = array<i64: 2>, scalar_prefetch = 0 : i64, scratch_operands = 0 : i64, tpu.core_type = #tpu.core_type<tc>, window_params = [{transform_indices = @transform_0, window_bounds = array<i64: 1, 9, 9, 16>}, {pipeline_mode = #tpu.pipeline_mode<synchronous>, transform_indices = @transform_1, window_bounds = array<i64: 4, 16, 8>}, {pipeline_mode = #tpu.pipeline_mode<synchronous>, transform_indices = @transform_2, window_bounds = array<i64: 1, 8>}, {pipeline_mode = #tpu.pipeline_mode<synchronous>, transform_indices = @transform_3, window_bounds = array<i64: 1, 8>}, {transform_indices = @transform_4, window_bounds = array<i64: 1, 8, 8, 8>}]} {
    %c0 = arith.constant 0 : index
    %c0_0 = arith.constant 0 : index
    %c0_1 = arith.constant 0 : index
    %c0_2 = arith.constant 0 : index
    %0 = vector.load %arg1[%c0, %c0_0, %c0_1, %c0_2] : memref<1x9x9x16xf32, #tpu.memory_space<vmem>>, vector<1x9x9x16xf32>
    %1 = vector.shape_cast %0 : vector<1x9x9x16xf32> to vector<9x9x16xf32>
    %c0_3 = arith.constant 0 : index
    %c0_4 = arith.constant 0 : index
    %c0_5 = arith.constant 0 : index
    %2 = vector.load %arg2[%c0_3, %c0_4, %c0_5] : memref<4x16x8xbf16, #tpu.memory_space<vmem>>, vector<4x16x8xbf16>
    %c0_6 = arith.constant 0 : index
    %c0_7 = arith.constant 0 : index
    %3 = vector.load %arg3[%c0_6, %c0_7] : memref<1x8xf32, #tpu.memory_space<vmem>>, vector<1x8xf32>
    %c0_8 = arith.constant 0 : index
    %c0_9 = arith.constant 0 : index
    %4 = vector.load %arg4[%c0_8, %c0_9] : memref<1x8xf32, #tpu.memory_space<vmem>>, vector<1x8xf32>
    %5 = vector.extract_strided_slice %1 {offsets = [0, 0, 0], sizes = [1, 9, 16], strides = [1, 1, 1]} : vector<9x9x16xf32> to vector<1x9x16xf32>
    %6 = vector.shape_cast %5 : vector<1x9x16xf32> to vector<9x16xf32>
    %7 = vector.extract_strided_slice %1 {offsets = [1, 0, 0], sizes = [1, 9, 16], strides = [1, 1, 1]} : vector<9x9x16xf32> to vector<1x9x16xf32>
    %8 = vector.shape_cast %7 : vector<1x9x16xf32> to vector<9x16xf32>
    %9 = vector.extract_strided_slice %6 {offsets = [0, 0], sizes = [8, 16], strides = [1, 1]} : vector<9x16xf32> to vector<8x16xf32>
    %10 = arith.truncf %9 : vector<8x16xf32> to vector<8x16xbf16>
    %11 = vector.extract_strided_slice %2 {offsets = [0, 0, 0], sizes = [1, 16, 8], strides = [1, 1, 1]} : vector<4x16x8xbf16> to vector<1x16x8xbf16>
    %12 = vector.shape_cast %11 : vector<1x16x8xbf16> to vector<16x8xbf16>
    %cst = arith.constant dense<0.000000e+00> : vector<8x8xf32>
    %13 = tpu.matmul %10, %12, %cst {dimension_numbers = #tpu.dot_dimension_numbers<[1], [0], [0], [1], [0, 0, 1, 1], [], []>} : vector<8x16xbf16>, vector<16x8xbf16>, vector<8x8xf32> -> vector<8x8xf32>
    %14 = vector.extract_strided_slice %6 {offsets = [1, 0], sizes = [8, 16], strides = [1, 1]} : vector<9x16xf32> to vector<8x16xf32>
    %15 = arith.truncf %14 : vector<8x16xf32> to vector<8x16xbf16>
    %16 = vector.extract_strided_slice %2 {offsets = [1, 0, 0], sizes = [1, 16, 8], strides = [1, 1, 1]} : vector<4x16x8xbf16> to vector<1x16x8xbf16>
    %17 = vector.shape_cast %16 : vector<1x16x8xbf16> to vector<16x8xbf16>
    %cst_10 = arith.constant dense<0.000000e+00> : vector<8x8xf32>
    %18 = tpu.matmul %15, %17, %cst_10 {dimension_numbers = #tpu.dot_dimension_numbers<[1], [0], [0], [1], [0, 0, 1, 1], [], []>} : vector<8x16xbf16>, vector<16x8xbf16>, vector<8x8xf32> -> vector<8x8xf32>
    %19 = arith.addf %13, %18 : vector<8x8xf32>
    %20 = vector.extract_strided_slice %8 {offsets = [0, 0], sizes = [8, 16], strides = [1, 1]} : vector<9x16xf32> to vector<8x16xf32>
    %21 = arith.truncf %20 : vector<8x16xf32> to vector<8x16xbf16>
    %22 = vector.extract_strided_slice %2 {offsets = [2, 0, 0], sizes = [1, 16, 8], strides = [1, 1, 1]} : vector<4x16x8xbf16> to vector<1x16x8xbf16>
    %23 = vector.shape_cast %22 : vector<1x16x8xbf16> to vector<16x8xbf16>
    %cst_11 = arith.constant dense<0.000000e+00> : vector<8x8xf32>
    %24 = tpu.matmul %21, %23, %cst_11 {dimension_numbers = #tpu.dot_dimension_numbers<[1], [0], [0], [1], [0, 0, 1, 1], [], []>} : vector<8x16xbf16>, vector<16x8xbf16>, vector<8x8xf32> -> vector<8x8xf32>
    %25 = arith.addf %19, %24 : vector<8x8xf32>
    %26 = vector.extract_strided_slice %8 {offsets = [1, 0], sizes = [8, 16], strides = [1, 1]} : vector<9x16xf32> to vector<8x16xf32>
    %27 = arith.truncf %26 : vector<8x16xf32> to vector<8x16xbf16>
    %28 = vector.extract_strided_slice %2 {offsets = [3, 0, 0], sizes = [1, 16, 8], strides = [1, 1, 1]} : vector<4x16x8xbf16> to vector<1x16x8xbf16>
    %29 = vector.shape_cast %28 : vector<1x16x8xbf16> to vector<16x8xbf16>
    %cst_12 = arith.constant dense<0.000000e+00> : vector<8x8xf32>
    %30 = tpu.matmul %27, %29, %cst_12 {dimension_numbers = #tpu.dot_dimension_numbers<[1], [0], [0], [1], [0, 0, 1, 1], [], []>} : vector<8x16xbf16>, vector<16x8xbf16>, vector<8x8xf32> -> vector<8x8xf32>
    %31 = arith.addf %25, %30 : vector<8x8xf32>
    %32 = vector.broadcast %3 : vector<1x8xf32> to vector<8x8xf32>
    %33 = arith.mulf %31, %32 : vector<8x8xf32>
    %34 = vector.broadcast %4 : vector<1x8xf32> to vector<8x8xf32>
    %35 = arith.addf %33, %34 : vector<8x8xf32>
    %36 = arith.negf %35 : vector<8x8xf32>
    %37 = math.exp %36 : vector<8x8xf32>
    %cst_13 = arith.constant 1.000000e+00 : f32
    %38 = vector.broadcast %cst_13 : f32 to vector<8x8xf32>
    %39 = arith.addf %38, %37 : vector<8x8xf32>
    %40 = arith.divf %38, %39 : vector<8x8xf32>
    %41 = arith.mulf %35, %40 : vector<8x8xf32>
    %c0_14 = arith.constant 0 : index
    %c0_15 = arith.constant 0 : index
    %c0_16 = arith.constant 0 : index
    %c0_17 = arith.constant 0 : index
    %42 = vector.load %arg5[%c0_14, %c0_15, %c0_16, %c0_17] : memref<1x8x8x8xf32, #tpu.memory_space<vmem>>, vector<1x1x8x8xf32>
    %43 = vector.shape_cast %42 : vector<1x1x8x8xf32> to vector<8x8xf32>
    %44 = vector.shape_cast %41 : vector<8x8xf32> to vector<1x1x8x8xf32>
    tpu.vector_store %arg5[%c0_14, %c0_15, %c0_16, %c0_17], %44 {strides = array<i32>} : memref<1x8x8x8xf32, #tpu.memory_space<vmem>>, vector<1x1x8x8xf32>,
    %45 = vector.extract_strided_slice %1 {offsets = [1, 0, 0], sizes = [1, 9, 16], strides = [1, 1, 1]} : vector<9x9x16xf32> to vector<1x9x16xf32>
    %46 = vector.shape_cast %45 : vector<1x9x16xf32> to vector<9x16xf32>
    %47 = vector.extract_strided_slice %1 {offsets = [2, 0, 0], sizes = [1, 9, 16], strides = [1, 1, 1]} : vector<9x9x16xf32> to vector<1x9x16xf32>
    %48 = vector.shape_cast %47 : vector<1x9x16xf32> to vector<9x16xf32>
    %49 = vector.extract_strided_slice %46 {offsets = [0, 0], sizes = [8, 16], strides = [1, 1]} : vector<9x16xf32> to vector<8x16xf32>
    %50 = arith.truncf %49 : vector<8x16xf32> to vector<8x16xbf16>
    %51 = vector.extract_strided_slice %2 {offsets = [0, 0, 0], sizes = [1, 16, 8], strides = [1, 1, 1]} : vector<4x16x8xbf16> to vector<1x16x8xbf16>
    %52 = vector.shape_cast %51 : vector<1x16x8xbf16> to vector<16x8xbf16>
    %cst_18 = arith.constant dense<0.000000e+00> : vector<8x8xf32>
    %53 = tpu.matmul %50, %52, %cst_18 {dimension_numbers = #tpu.dot_dimension_numbers<[1], [0], [0], [1], [0, 0, 1, 1], [], []>} : vector<8x16xbf16>, vector<16x8xbf16>, vector<8x8xf32> -> vector<8x8xf32>
    %54 = vector.extract_strided_slice %46 {offsets = [1, 0], sizes = [8, 16], strides = [1, 1]} : vector<9x16xf32> to vector<8x16xf32>
    %55 = arith.truncf %54 : vector<8x16xf32> to vector<8x16xbf16>
    %56 = vector.extract_strided_slice %2 {offsets = [1, 0, 0], sizes = [1, 16, 8], strides = [1, 1, 1]} : vector<4x16x8xbf16> to vector<1x16x8xbf16>
    %57 = vector.shape_cast %56 : vector<1x16x8xbf16> to vector<16x8xbf16>
    %cst_19 = arith.constant dense<0.000000e+00> : vector<8x8xf32>
    %58 = tpu.matmul %55, %57, %cst_19 {dimension_numbers = #tpu.dot_dimension_numbers<[1], [0], [0], [1], [0, 0, 1, 1], [], []>} : vector<8x16xbf16>, vector<16x8xbf16>, vector<8x8xf32> -> vector<8x8xf32>
    %59 = arith.addf %53, %58 : vector<8x8xf32>
    %60 = vector.extract_strided_slice %48 {offsets = [0, 0], sizes = [8, 16], strides = [1, 1]} : vector<9x16xf32> to vector<8x16xf32>
    %61 = arith.truncf %60 : vector<8x16xf32> to vector<8x16xbf16>
    %62 = vector.extract_strided_slice %2 {offsets = [2, 0, 0], sizes = [1, 16, 8], strides = [1, 1, 1]} : vector<4x16x8xbf16> to vector<1x16x8xbf16>
    %63 = vector.shape_cast %62 : vector<1x16x8xbf16> to vector<16x8xbf16>
    %cst_20 = arith.constant dense<0.000000e+00> : vector<8x8xf32>
    %64 = tpu.matmul %61, %63, %cst_20 {dimension_numbers = #tpu.dot_dimension_numbers<[1], [0], [0], [1], [0, 0, 1, 1], [], []>} : vector<8x16xbf16>, vector<16x8xbf16>, vector<8x8xf32> -> vector<8x8xf32>
    %65 = arith.addf %59, %64 : vector<8x8xf32>
    %66 = vector.extract_strided_slice %48 {offsets = [1, 0], sizes = [8, 16], strides = [1, 1]} : vector<9x16xf32> to vector<8x16xf32>
    %67 = arith.truncf %66 : vector<8x16xf32> to vector<8x16xbf16>
    %68 = vector.extract_strided_slice %2 {offsets = [3, 0, 0], sizes = [1, 16, 8], strides = [1, 1, 1]} : vector<4x16x8xbf16> to vector<1x16x8xbf16>
    %69 = vector.shape_cast %68 : vector<1x16x8xbf16> to vector<16x8xbf16>
    %cst_21 = arith.constant dense<0.000000e+00> : vector<8x8xf32>
    %70 = tpu.matmul %67, %69, %cst_21 {dimension_numbers = #tpu.dot_dimension_numbers<[1], [0], [0], [1], [0, 0, 1, 1], [], []>} : vector<8x16xbf16>, vector<16x8xbf16>, vector<8x8xf32> -> vector<8x8xf32>
    %71 = arith.addf %65, %70 : vector<8x8xf32>
    %72 = vector.broadcast %3 : vector<1x8xf32> to vector<8x8xf32>
    %73 = arith.mulf %71, %72 : vector<8x8xf32>
    %74 = vector.broadcast %4 : vector<1x8xf32> to vector<8x8xf32>
    %75 = arith.addf %73, %74 : vector<8x8xf32>
    %76 = arith.negf %75 : vector<8x8xf32>
    %77 = math.exp %76 : vector<8x8xf32>
    %cst_22 = arith.constant 1.000000e+00 : f32
    %78 = vector.broadcast %cst_22 : f32 to vector<8x8xf32>
    %79 = arith.addf %78, %77 : vector<8x8xf32>
    %80 = arith.divf %78, %79 : vector<8x8xf32>
    %81 = arith.mulf %75, %80 : vector<8x8xf32>
    %c0_23 = arith.constant 0 : index
    %c1 = arith.constant 1 : index
    %c0_24 = arith.constant 0 : index
    %c0_25 = arith.constant 0 : index
    %82 = vector.load %arg5[%c0_23, %c1, %c0_24, %c0_25] : memref<1x8x8x8xf32, #tpu.memory_space<vmem>>, vector<1x1x8x8xf32>
    %83 = vector.shape_cast %82 : vector<1x1x8x8xf32> to vector<8x8xf32>
    %84 = vector.shape_cast %81 : vector<8x8xf32> to vector<1x1x8x8xf32>
    tpu.vector_store %arg5[%c0_23, %c1, %c0_24, %c0_25], %84 {strides = array<i32>} : memref<1x8x8x8xf32, #tpu.memory_space<vmem>>, vector<1x1x8x8xf32>,
    %85 = vector.extract_strided_slice %1 {offsets = [2, 0, 0], sizes = [1, 9, 16], strides = [1, 1, 1]} : vector<9x9x16xf32> to vector<1x9x16xf32>
    %86 = vector.shape_cast %85 : vector<1x9x16xf32> to vector<9x16xf32>
    %87 = vector.extract_strided_slice %1 {offsets = [3, 0, 0], sizes = [1, 9, 16], strides = [1, 1, 1]} : vector<9x9x16xf32> to vector<1x9x16xf32>
    %88 = vector.shape_cast %87 : vector<1x9x16xf32> to vector<9x16xf32>
    %89 = vector.extract_strided_slice %86 {offsets = [0, 0], sizes = [8, 16], strides = [1, 1]} : vector<9x16xf32> to vector<8x16xf32>
    %90 = arith.truncf %89 : vector<8x16xf32> to vector<8x16xbf16>
    %91 = vector.extract_strided_slice %2 {offsets = [0, 0, 0], sizes = [1, 16, 8], strides = [1, 1, 1]} : vector<4x16x8xbf16> to vector<1x16x8xbf16>
    %92 = vector.shape_cast %91 : vector<1x16x8xbf16> to vector<16x8xbf16>
    %cst_26 = arith.constant dense<0.000000e+00> : vector<8x8xf32>
    %93 = tpu.matmul %90, %92, %cst_26 {dimension_numbers = #tpu.dot_dimension_numbers<[1], [0], [0], [1], [0, 0, 1, 1], [], []>} : vector<8x16xbf16>, vector<16x8xbf16>, vector<8x8xf32> -> vector<8x8xf32>
    %94 = vector.extract_strided_slice %86 {offsets = [1, 0], sizes = [8, 16], strides = [1, 1]} : vector<9x16xf32> to vector<8x16xf32>
    %95 = arith.truncf %94 : vector<8x16xf32> to vector<8x16xbf16>
    %96 = vector.extract_strided_slice %2 {offsets = [1, 0, 0], sizes = [1, 16, 8], strides = [1, 1, 1]} : vector<4x16x8xbf16> to vector<1x16x8xbf16>
    %97 = vector.shape_cast %96 : vector<1x16x8xbf16> to vector<16x8xbf16>
    %cst_27 = arith.constant dense<0.000000e+00> : vector<8x8xf32>
    %98 = tpu.matmul %95, %97, %cst_27 {dimension_numbers = #tpu.dot_dimension_numbers<[1], [0], [0], [1], [0, 0, 1, 1], [], []>} : vector<8x16xbf16>, vector<16x8xbf16>, vector<8x8xf32> -> vector<8x8xf32>
    %99 = arith.addf %93, %98 : vector<8x8xf32>
    %100 = vector.extract_strided_slice %88 {offsets = [0, 0], sizes = [8, 16], strides = [1, 1]} : vector<9x16xf32> to vector<8x16xf32>
    %101 = arith.truncf %100 : vector<8x16xf32> to vector<8x16xbf16>
    %102 = vector.extract_strided_slice %2 {offsets = [2, 0, 0], sizes = [1, 16, 8], strides = [1, 1, 1]} : vector<4x16x8xbf16> to vector<1x16x8xbf16>
    %103 = vector.shape_cast %102 : vector<1x16x8xbf16> to vector<16x8xbf16>
    %cst_28 = arith.constant dense<0.000000e+00> : vector<8x8xf32>
    %104 = tpu.matmul %101, %103, %cst_28 {dimension_numbers = #tpu.dot_dimension_numbers<[1], [0], [0], [1], [0, 0, 1, 1], [], []>} : vector<8x16xbf16>, vector<16x8xbf16>, vector<8x8xf32> -> vector<8x8xf32>
    %105 = arith.addf %99, %104 : vector<8x8xf32>
    %106 = vector.extract_strided_slice %88 {offsets = [1, 0], sizes = [8, 16], strides = [1, 1]} : vector<9x16xf32> to vector<8x16xf32>
    %107 = arith.truncf %106 : vector<8x16xf32> to vector<8x16xbf16>
    %108 = vector.extract_strided_slice %2 {offsets = [3, 0, 0], sizes = [1, 16, 8], strides = [1, 1, 1]} : vector<4x16x8xbf16> to vector<1x16x8xbf16>
    %109 = vector.shape_cast %108 : vector<1x16x8xbf16> to vector<16x8xbf16>
    %cst_29 = arith.constant dense<0.000000e+00> : vector<8x8xf32>
    %110 = tpu.matmul %107, %109, %cst_29 {dimension_numbers = #tpu.dot_dimension_numbers<[1], [0], [0], [1], [0, 0, 1, 1], [], []>} : vector<8x16xbf16>, vector<16x8xbf16>, vector<8x8xf32> -> vector<8x8xf32>
    %111 = arith.addf %105, %110 : vector<8x8xf32>
    %112 = vector.broadcast %3 : vector<1x8xf32> to vector<8x8xf32>
    %113 = arith.mulf %111, %112 : vector<8x8xf32>
    %114 = vector.broadcast %4 : vector<1x8xf32> to vector<8x8xf32>
    %115 = arith.addf %113, %114 : vector<8x8xf32>
    %116 = arith.negf %115 : vector<8x8xf32>
    %117 = math.exp %116 : vector<8x8xf32>
    %cst_30 = arith.constant 1.000000e+00 : f32
    %118 = vector.broadcast %cst_30 : f32 to vector<8x8xf32>
    %119 = arith.addf %118, %117 : vector<8x8xf32>
    %120 = arith.divf %118, %119 : vector<8x8xf32>
    %121 = arith.mulf %115, %120 : vector<8x8xf32>
    %c0_31 = arith.constant 0 : index
    %c2 = arith.constant 2 : index
    %c0_32 = arith.constant 0 : index
    %c0_33 = arith.constant 0 : index
    %122 = vector.load %arg5[%c0_31, %c2, %c0_32, %c0_33] : memref<1x8x8x8xf32, #tpu.memory_space<vmem>>, vector<1x1x8x8xf32>
    %123 = vector.shape_cast %122 : vector<1x1x8x8xf32> to vector<8x8xf32>
    %124 = vector.shape_cast %121 : vector<8x8xf32> to vector<1x1x8x8xf32>
    tpu.vector_store %arg5[%c0_31, %c2, %c0_32, %c0_33], %124 {strides = array<i32>} : memref<1x8x8x8xf32, #tpu.memory_space<vmem>>, vector<1x1x8x8xf32>,
    %125 = vector.extract_strided_slice %1 {offsets = [3, 0, 0], sizes = [1, 9, 16], strides = [1, 1, 1]} : vector<9x9x16xf32> to vector<1x9x16xf32>
    %126 = vector.shape_cast %125 : vector<1x9x16xf32> to vector<9x16xf32>
    %127 = vector.extract_strided_slice %1 {offsets = [4, 0, 0], sizes = [1, 9, 16], strides = [1, 1, 1]} : vector<9x9x16xf32> to vector<1x9x16xf32>
    %128 = vector.shape_cast %127 : vector<1x9x16xf32> to vector<9x16xf32>
    %129 = vector.extract_strided_slice %126 {offsets = [0, 0], sizes = [8, 16], strides = [1, 1]} : vector<9x16xf32> to vector<8x16xf32>
    %130 = arith.truncf %129 : vector<8x16xf32> to vector<8x16xbf16>
    %131 = vector.extract_strided_slice %2 {offsets = [0, 0, 0], sizes = [1, 16, 8], strides = [1, 1, 1]} : vector<4x16x8xbf16> to vector<1x16x8xbf16>
    %132 = vector.shape_cast %131 : vector<1x16x8xbf16> to vector<16x8xbf16>
    %cst_34 = arith.constant dense<0.000000e+00> : vector<8x8xf32>
    %133 = tpu.matmul %130, %132, %cst_34 {dimension_numbers = #tpu.dot_dimension_numbers<[1], [0], [0], [1], [0, 0, 1, 1], [], []>} : vector<8x16xbf16>, vector<16x8xbf16>, vector<8x8xf32> -> vector<8x8xf32>
    %134 = vector.extract_strided_slice %126 {offsets = [1, 0], sizes = [8, 16], strides = [1, 1]} : vector<9x16xf32> to vector<8x16xf32>
    %135 = arith.truncf %134 : vector<8x16xf32> to vector<8x16xbf16>
    %136 = vector.extract_strided_slice %2 {offsets = [1, 0, 0], sizes = [1, 16, 8], strides = [1, 1, 1]} : vector<4x16x8xbf16> to vector<1x16x8xbf16>
    %137 = vector.shape_cast %136 : vector<1x16x8xbf16> to vector<16x8xbf16>
    %cst_35 = arith.constant dense<0.000000e+00> : vector<8x8xf32>
    %138 = tpu.matmul %135, %137, %cst_35 {dimension_numbers = #tpu.dot_dimension_numbers<[1], [0], [0], [1], [0, 0, 1, 1], [], []>} : vector<8x16xbf16>, vector<16x8xbf16>, vector<8x8xf32> -> vector<8x8xf32>
    %139 = arith.addf %133, %138 : vector<8x8xf32>
    %140 = vector.extract_strided_slice %128 {offsets = [0, 0], sizes = [8, 16], strides = [1, 1]} : vector<9x16xf32> to vector<8x16xf32>
    %141 = arith.truncf %140 : vector<8x16xf32> to vector<8x16xbf16>
    %142 = vector.extract_strided_slice %2 {offsets = [2, 0, 0], sizes = [1, 16, 8], strides = [1, 1, 1]} : vector<4x16x8xbf16> to vector<1x16x8xbf16>
    %143 = vector.shape_cast %142 : vector<1x16x8xbf16> to vector<16x8xbf16>
    %cst_36 = arith.constant dense<0.000000e+00> : vector<8x8xf32>
    %144 = tpu.matmul %141, %143, %cst_36 {dimension_numbers = #tpu.dot_dimension_numbers<[1], [0], [0], [1], [0, 0, 1, 1], [], []>} : vector<8x16xbf16>, vector<16x8xbf16>, vector<8x8xf32> -> vector<8x8xf32>
    %145 = arith.addf %139, %144 : vector<8x8xf32>
    %146 = vector.extract_strided_slice %128 {offsets = [1, 0], sizes = [8, 16], strides = [1, 1]} : vector<9x16xf32> to vector<8x16xf32>
    %147 = arith.truncf %146 : vector<8x16xf32> to vector<8x16xbf16>
    %148 = vector.extract_strided_slice %2 {offsets = [3, 0, 0], sizes = [1, 16, 8], strides = [1, 1, 1]} : vector<4x16x8xbf16> to vector<1x16x8xbf16>
    %149 = vector.shape_cast %148 : vector<1x16x8xbf16> to vector<16x8xbf16>
    %cst_37 = arith.constant dense<0.000000e+00> : vector<8x8xf32>
    %150 = tpu.matmul %147, %149, %cst_37 {dimension_numbers = #tpu.dot_dimension_numbers<[1], [0], [0], [1], [0, 0, 1, 1], [], []>} : vector<8x16xbf16>, vector<16x8xbf16>, vector<8x8xf32> -> vector<8x8xf32>
    %151 = arith.addf %145, %150 : vector<8x8xf32>
    %152 = vector.broadcast %3 : vector<1x8xf32> to vector<8x8xf32>
    %153 = arith.mulf %151, %152 : vector<8x8xf32>
    %154 = vector.broadcast %4 : vector<1x8xf32> to vector<8x8xf32>
    %155 = arith.addf %153, %154 : vector<8x8xf32>
    %156 = arith.negf %155 : vector<8x8xf32>
    %157 = math.exp %156 : vector<8x8xf32>
    %cst_38 = arith.constant 1.000000e+00 : f32
    %158 = vector.broadcast %cst_38 : f32 to vector<8x8xf32>
    %159 = arith.addf %158, %157 : vector<8x8xf32>
    %160 = arith.divf %158, %159 : vector<8x8xf32>
    %161 = arith.mulf %155, %160 : vector<8x8xf32>
    %c0_39 = arith.constant 0 : index
    %c3 = arith.constant 3 : index
    %c0_40 = arith.constant 0 : index
    %c0_41 = arith.constant 0 : index
    %162 = vector.load %arg5[%c0_39, %c3, %c0_40, %c0_41] : memref<1x8x8x8xf32, #tpu.memory_space<vmem>>, vector<1x1x8x8xf32>
    %163 = vector.shape_cast %162 : vector<1x1x8x8xf32> to vector<8x8xf32>
    %164 = vector.shape_cast %161 : vector<8x8xf32> to vector<1x1x8x8xf32>
    tpu.vector_store %arg5[%c0_39, %c3, %c0_40, %c0_41], %164 {strides = array<i32>} : memref<1x8x8x8xf32, #tpu.memory_space<vmem>>, vector<1x1x8x8xf32>,
    %165 = vector.extract_strided_slice %1 {offsets = [4, 0, 0], sizes = [1, 9, 16], strides = [1, 1, 1]} : vector<9x9x16xf32> to vector<1x9x16xf32>
    %166 = vector.shape_cast %165 : vector<1x9x16xf32> to vector<9x16xf32>
    %167 = vector.extract_strided_slice %1 {offsets = [5, 0, 0], sizes = [1, 9, 16], strides = [1, 1, 1]} : vector<9x9x16xf32> to vector<1x9x16xf32>
    %168 = vector.shape_cast %167 : vector<1x9x16xf32> to vector<9x16xf32>
    %169 = vector.extract_strided_slice %166 {offsets = [0, 0], sizes = [8, 16], strides = [1, 1]} : vector<9x16xf32> to vector<8x16xf32>
    %170 = arith.truncf %169 : vector<8x16xf32> to vector<8x16xbf16>
    %171 = vector.extract_strided_slice %2 {offsets = [0, 0, 0], sizes = [1, 16, 8], strides = [1, 1, 1]} : vector<4x16x8xbf16> to vector<1x16x8xbf16>
    %172 = vector.shape_cast %171 : vector<1x16x8xbf16> to vector<16x8xbf16>
    %cst_42 = arith.constant dense<0.000000e+00> : vector<8x8xf32>
    %173 = tpu.matmul %170, %172, %cst_42 {dimension_numbers = #tpu.dot_dimension_numbers<[1], [0], [0], [1], [0, 0, 1, 1], [], []>} : vector<8x16xbf16>, vector<16x8xbf16>, vector<8x8xf32> -> vector<8x8xf32>
    %174 = vector.extract_strided_slice %166 {offsets = [1, 0], sizes = [8, 16], strides = [1, 1]} : vector<9x16xf32> to vector<8x16xf32>
    %175 = arith.truncf %174 : vector<8x16xf32> to vector<8x16xbf16>
    %176 = vector.extract_strided_slice %2 {offsets = [1, 0, 0], sizes = [1, 16, 8], strides = [1, 1, 1]} : vector<4x16x8xbf16> to vector<1x16x8xbf16>
    %177 = vector.shape_cast %176 : vector<1x16x8xbf16> to vector<16x8xbf16>
    %cst_43 = arith.constant dense<0.000000e+00> : vector<8x8xf32>
    %178 = tpu.matmul %175, %177, %cst_43 {dimension_numbers = #tpu.dot_dimension_numbers<[1], [0], [0], [1], [0, 0, 1, 1], [], []>} : vector<8x16xbf16>, vector<16x8xbf16>, vector<8x8xf32> -> vector<8x8xf32>
    %179 = arith.addf %173, %178 : vector<8x8xf32>
    %180 = vector.extract_strided_slice %168 {offsets = [0, 0], sizes = [8, 16], strides = [1, 1]} : vector<9x16xf32> to vector<8x16xf32>
    %181 = arith.truncf %180 : vector<8x16xf32> to vector<8x16xbf16>
    %182 = vector.extract_strided_slice %2 {offsets = [2, 0, 0], sizes = [1, 16, 8], strides = [1, 1, 1]} : vector<4x16x8xbf16> to vector<1x16x8xbf16>
    %183 = vector.shape_cast %182 : vector<1x16x8xbf16> to vector<16x8xbf16>
    %cst_44 = arith.constant dense<0.000000e+00> : vector<8x8xf32>
    %184 = tpu.matmul %181, %183, %cst_44 {dimension_numbers = #tpu.dot_dimension_numbers<[1], [0], [0], [1], [0, 0, 1, 1], [], []>} : vector<8x16xbf16>, vector<16x8xbf16>, vector<8x8xf32> -> vector<8x8xf32>
    %185 = arith.addf %179, %184 : vector<8x8xf32>
    %186 = vector.extract_strided_slice %168 {offsets = [1, 0], sizes = [8, 16], strides = [1, 1]} : vector<9x16xf32> to vector<8x16xf32>
    %187 = arith.truncf %186 : vector<8x16xf32> to vector<8x16xbf16>
    %188 = vector.extract_strided_slice %2 {offsets = [3, 0, 0], sizes = [1, 16, 8], strides = [1, 1, 1]} : vector<4x16x8xbf16> to vector<1x16x8xbf16>
    %189 = vector.shape_cast %188 : vector<1x16x8xbf16> to vector<16x8xbf16>
    %cst_45 = arith.constant dense<0.000000e+00> : vector<8x8xf32>
    %190 = tpu.matmul %187, %189, %cst_45 {dimension_numbers = #tpu.dot_dimension_numbers<[1], [0], [0], [1], [0, 0, 1, 1], [], []>} : vector<8x16xbf16>, vector<16x8xbf16>, vector<8x8xf32> -> vector<8x8xf32>
    %191 = arith.addf %185, %190 : vector<8x8xf32>
    %192 = vector.broadcast %3 : vector<1x8xf32> to vector<8x8xf32>
    %193 = arith.mulf %191, %192 : vector<8x8xf32>
    %194 = vector.broadcast %4 : vector<1x8xf32> to vector<8x8xf32>
    %195 = arith.addf %193, %194 : vector<8x8xf32>
    %196 = arith.negf %195 : vector<8x8xf32>
    %197 = math.exp %196 : vector<8x8xf32>
    %cst_46 = arith.constant 1.000000e+00 : f32
    %198 = vector.broadcast %cst_46 : f32 to vector<8x8xf32>
    %199 = arith.addf %198, %197 : vector<8x8xf32>
    %200 = arith.divf %198, %199 : vector<8x8xf32>
    %201 = arith.mulf %195, %200 : vector<8x8xf32>
    %c0_47 = arith.constant 0 : index
    %c4 = arith.constant 4 : index
    %c0_48 = arith.constant 0 : index
    %c0_49 = arith.constant 0 : index
    %202 = vector.load %arg5[%c0_47, %c4, %c0_48, %c0_49] : memref<1x8x8x8xf32, #tpu.memory_space<vmem>>, vector<1x1x8x8xf32>
    %203 = vector.shape_cast %202 : vector<1x1x8x8xf32> to vector<8x8xf32>
    %204 = vector.shape_cast %201 : vector<8x8xf32> to vector<1x1x8x8xf32>
    tpu.vector_store %arg5[%c0_47, %c4, %c0_48, %c0_49], %204 {strides = array<i32>} : memref<1x8x8x8xf32, #tpu.memory_space<vmem>>, vector<1x1x8x8xf32>,
    %205 = vector.extract_strided_slice %1 {offsets = [5, 0, 0], sizes = [1, 9, 16], strides = [1, 1, 1]} : vector<9x9x16xf32> to vector<1x9x16xf32>
    %206 = vector.shape_cast %205 : vector<1x9x16xf32> to vector<9x16xf32>
    %207 = vector.extract_strided_slice %1 {offsets = [6, 0, 0], sizes = [1, 9, 16], strides = [1, 1, 1]} : vector<9x9x16xf32> to vector<1x9x16xf32>
    %208 = vector.shape_cast %207 : vector<1x9x16xf32> to vector<9x16xf32>
    %209 = vector.extract_strided_slice %206 {offsets = [0, 0], sizes = [8, 16], strides = [1, 1]} : vector<9x16xf32> to vector<8x16xf32>
    %210 = arith.truncf %209 : vector<8x16xf32> to vector<8x16xbf16>
    %211 = vector.extract_strided_slice %2 {offsets = [0, 0, 0], sizes = [1, 16, 8], strides = [1, 1, 1]} : vector<4x16x8xbf16> to vector<1x16x8xbf16>
    %212 = vector.shape_cast %211 : vector<1x16x8xbf16> to vector<16x8xbf16>
    %cst_50 = arith.constant dense<0.000000e+00> : vector<8x8xf32>
    %213 = tpu.matmul %210, %212, %cst_50 {dimension_numbers = #tpu.dot_dimension_numbers<[1], [0], [0], [1], [0, 0, 1, 1], [], []>} : vector<8x16xbf16>, vector<16x8xbf16>, vector<8x8xf32> -> vector<8x8xf32>
    %214 = vector.extract_strided_slice %206 {offsets = [1, 0], sizes = [8, 16], strides = [1, 1]} : vector<9x16xf32> to vector<8x16xf32>
    %215 = arith.truncf %214 : vector<8x16xf32> to vector<8x16xbf16>
    %216 = vector.extract_strided_slice %2 {offsets = [1, 0, 0], sizes = [1, 16, 8], strides = [1, 1, 1]} : vector<4x16x8xbf16> to vector<1x16x8xbf16>
    %217 = vector.shape_cast %216 : vector<1x16x8xbf16> to vector<16x8xbf16>
    %cst_51 = arith.constant dense<0.000000e+00> : vector<8x8xf32>
    %218 = tpu.matmul %215, %217, %cst_51 {dimension_numbers = #tpu.dot_dimension_numbers<[1], [0], [0], [1], [0, 0, 1, 1], [], []>} : vector<8x16xbf16>, vector<16x8xbf16>, vector<8x8xf32> -> vector<8x8xf32>
    %219 = arith.addf %213, %218 : vector<8x8xf32>
    %220 = vector.extract_strided_slice %208 {offsets = [0, 0], sizes = [8, 16], strides = [1, 1]} : vector<9x16xf32> to vector<8x16xf32>
    %221 = arith.truncf %220 : vector<8x16xf32> to vector<8x16xbf16>
    %222 = vector.extract_strided_slice %2 {offsets = [2, 0, 0], sizes = [1, 16, 8], strides = [1, 1, 1]} : vector<4x16x8xbf16> to vector<1x16x8xbf16>
    %223 = vector.shape_cast %222 : vector<1x16x8xbf16> to vector<16x8xbf16>
    %cst_52 = arith.constant dense<0.000000e+00> : vector<8x8xf32>
    %224 = tpu.matmul %221, %223, %cst_52 {dimension_numbers = #tpu.dot_dimension_numbers<[1], [0], [0], [1], [0, 0, 1, 1], [], []>} : vector<8x16xbf16>, vector<16x8xbf16>, vector<8x8xf32> -> vector<8x8xf32>
    %225 = arith.addf %219, %224 : vector<8x8xf32>
    %226 = vector.extract_strided_slice %208 {offsets = [1, 0], sizes = [8, 16], strides = [1, 1]} : vector<9x16xf32> to vector<8x16xf32>
    %227 = arith.truncf %226 : vector<8x16xf32> to vector<8x16xbf16>
    %228 = vector.extract_strided_slice %2 {offsets = [3, 0, 0], sizes = [1, 16, 8], strides = [1, 1, 1]} : vector<4x16x8xbf16> to vector<1x16x8xbf16>
    %229 = vector.shape_cast %228 : vector<1x16x8xbf16> to vector<16x8xbf16>
    %cst_53 = arith.constant dense<0.000000e+00> : vector<8x8xf32>
    %230 = tpu.matmul %227, %229, %cst_53 {dimension_numbers = #tpu.dot_dimension_numbers<[1], [0], [0], [1], [0, 0, 1, 1], [], []>} : vector<8x16xbf16>, vector<16x8xbf16>, vector<8x8xf32> -> vector<8x8xf32>
    %231 = arith.addf %225, %230 : vector<8x8xf32>
    %232 = vector.broadcast %3 : vector<1x8xf32> to vector<8x8xf32>
    %233 = arith.mulf %231, %232 : vector<8x8xf32>
    %234 = vector.broadcast %4 : vector<1x8xf32> to vector<8x8xf32>
    %235 = arith.addf %233, %234 : vector<8x8xf32>
    %236 = arith.negf %235 : vector<8x8xf32>
    %237 = math.exp %236 : vector<8x8xf32>
    %cst_54 = arith.constant 1.000000e+00 : f32
    %238 = vector.broadcast %cst_54 : f32 to vector<8x8xf32>
    %239 = arith.addf %238, %237 : vector<8x8xf32>
    %240 = arith.divf %238, %239 : vector<8x8xf32>
    %241 = arith.mulf %235, %240 : vector<8x8xf32>
    %c0_55 = arith.constant 0 : index
    %c5 = arith.constant 5 : index
    %c0_56 = arith.constant 0 : index
    %c0_57 = arith.constant 0 : index
    %242 = vector.load %arg5[%c0_55, %c5, %c0_56, %c0_57] : memref<1x8x8x8xf32, #tpu.memory_space<vmem>>, vector<1x1x8x8xf32>
    %243 = vector.shape_cast %242 : vector<1x1x8x8xf32> to vector<8x8xf32>
    %244 = vector.shape_cast %241 : vector<8x8xf32> to vector<1x1x8x8xf32>
    tpu.vector_store %arg5[%c0_55, %c5, %c0_56, %c0_57], %244 {strides = array<i32>} : memref<1x8x8x8xf32, #tpu.memory_space<vmem>>, vector<1x1x8x8xf32>,
    %245 = vector.extract_strided_slice %1 {offsets = [6, 0, 0], sizes = [1, 9, 16], strides = [1, 1, 1]} : vector<9x9x16xf32> to vector<1x9x16xf32>
    %246 = vector.shape_cast %245 : vector<1x9x16xf32> to vector<9x16xf32>
    %247 = vector.extract_strided_slice %1 {offsets = [7, 0, 0], sizes = [1, 9, 16], strides = [1, 1, 1]} : vector<9x9x16xf32> to vector<1x9x16xf32>
    %248 = vector.shape_cast %247 : vector<1x9x16xf32> to vector<9x16xf32>
    %249 = vector.extract_strided_slice %246 {offsets = [0, 0], sizes = [8, 16], strides = [1, 1]} : vector<9x16xf32> to vector<8x16xf32>
    %250 = arith.truncf %249 : vector<8x16xf32> to vector<8x16xbf16>
    %251 = vector.extract_strided_slice %2 {offsets = [0, 0, 0], sizes = [1, 16, 8], strides = [1, 1, 1]} : vector<4x16x8xbf16> to vector<1x16x8xbf16>
    %252 = vector.shape_cast %251 : vector<1x16x8xbf16> to vector<16x8xbf16>
    %cst_58 = arith.constant dense<0.000000e+00> : vector<8x8xf32>
    %253 = tpu.matmul %250, %252, %cst_58 {dimension_numbers = #tpu.dot_dimension_numbers<[1], [0], [0], [1], [0, 0, 1, 1], [], []>} : vector<8x16xbf16>, vector<16x8xbf16>, vector<8x8xf32> -> vector<8x8xf32>
    %254 = vector.extract_strided_slice %246 {offsets = [1, 0], sizes = [8, 16], strides = [1, 1]} : vector<9x16xf32> to vector<8x16xf32>
    %255 = arith.truncf %254 : vector<8x16xf32> to vector<8x16xbf16>
    %256 = vector.extract_strided_slice %2 {offsets = [1, 0, 0], sizes = [1, 16, 8], strides = [1, 1, 1]} : vector<4x16x8xbf16> to vector<1x16x8xbf16>
    %257 = vector.shape_cast %256 : vector<1x16x8xbf16> to vector<16x8xbf16>
    %cst_59 = arith.constant dense<0.000000e+00> : vector<8x8xf32>
    %258 = tpu.matmul %255, %257, %cst_59 {dimension_numbers = #tpu.dot_dimension_numbers<[1], [0], [0], [1], [0, 0, 1, 1], [], []>} : vector<8x16xbf16>, vector<16x8xbf16>, vector<8x8xf32> -> vector<8x8xf32>
    %259 = arith.addf %253, %258 : vector<8x8xf32>
    %260 = vector.extract_strided_slice %248 {offsets = [0, 0], sizes = [8, 16], strides = [1, 1]} : vector<9x16xf32> to vector<8x16xf32>
    %261 = arith.truncf %260 : vector<8x16xf32> to vector<8x16xbf16>
    %262 = vector.extract_strided_slice %2 {offsets = [2, 0, 0], sizes = [1, 16, 8], strides = [1, 1, 1]} : vector<4x16x8xbf16> to vector<1x16x8xbf16>
    %263 = vector.shape_cast %262 : vector<1x16x8xbf16> to vector<16x8xbf16>
    %cst_60 = arith.constant dense<0.000000e+00> : vector<8x8xf32>
    %264 = tpu.matmul %261, %263, %cst_60 {dimension_numbers = #tpu.dot_dimension_numbers<[1], [0], [0], [1], [0, 0, 1, 1], [], []>} : vector<8x16xbf16>, vector<16x8xbf16>, vector<8x8xf32> -> vector<8x8xf32>
    %265 = arith.addf %259, %264 : vector<8x8xf32>
    %266 = vector.extract_strided_slice %248 {offsets = [1, 0], sizes = [8, 16], strides = [1, 1]} : vector<9x16xf32> to vector<8x16xf32>
    %267 = arith.truncf %266 : vector<8x16xf32> to vector<8x16xbf16>
    %268 = vector.extract_strided_slice %2 {offsets = [3, 0, 0], sizes = [1, 16, 8], strides = [1, 1, 1]} : vector<4x16x8xbf16> to vector<1x16x8xbf16>
    %269 = vector.shape_cast %268 : vector<1x16x8xbf16> to vector<16x8xbf16>
    %cst_61 = arith.constant dense<0.000000e+00> : vector<8x8xf32>
    %270 = tpu.matmul %267, %269, %cst_61 {dimension_numbers = #tpu.dot_dimension_numbers<[1], [0], [0], [1], [0, 0, 1, 1], [], []>} : vector<8x16xbf16>, vector<16x8xbf16>, vector<8x8xf32> -> vector<8x8xf32>
    %271 = arith.addf %265, %270 : vector<8x8xf32>
    %272 = vector.broadcast %3 : vector<1x8xf32> to vector<8x8xf32>
    %273 = arith.mulf %271, %272 : vector<8x8xf32>
    %274 = vector.broadcast %4 : vector<1x8xf32> to vector<8x8xf32>
    %275 = arith.addf %273, %274 : vector<8x8xf32>
    %276 = arith.negf %275 : vector<8x8xf32>
    %277 = math.exp %276 : vector<8x8xf32>
    %cst_62 = arith.constant 1.000000e+00 : f32
    %278 = vector.broadcast %cst_62 : f32 to vector<8x8xf32>
    %279 = arith.addf %278, %277 : vector<8x8xf32>
    %280 = arith.divf %278, %279 : vector<8x8xf32>
    %281 = arith.mulf %275, %280 : vector<8x8xf32>
    %c0_63 = arith.constant 0 : index
    %c6 = arith.constant 6 : index
    %c0_64 = arith.constant 0 : index
    %c0_65 = arith.constant 0 : index
    %282 = vector.load %arg5[%c0_63, %c6, %c0_64, %c0_65] : memref<1x8x8x8xf32, #tpu.memory_space<vmem>>, vector<1x1x8x8xf32>
    %283 = vector.shape_cast %282 : vector<1x1x8x8xf32> to vector<8x8xf32>
    %284 = vector.shape_cast %281 : vector<8x8xf32> to vector<1x1x8x8xf32>
    tpu.vector_store %arg5[%c0_63, %c6, %c0_64, %c0_65], %284 {strides = array<i32>} : memref<1x8x8x8xf32, #tpu.memory_space<vmem>>, vector<1x1x8x8xf32>,
    %285 = vector.extract_strided_slice %1 {offsets = [7, 0, 0], sizes = [1, 9, 16], strides = [1, 1, 1]} : vector<9x9x16xf32> to vector<1x9x16xf32>
    %286 = vector.shape_cast %285 : vector<1x9x16xf32> to vector<9x16xf32>
    %287 = vector.extract_strided_slice %1 {offsets = [8, 0, 0], sizes = [1, 9, 16], strides = [1, 1, 1]} : vector<9x9x16xf32> to vector<1x9x16xf32>
    %288 = vector.shape_cast %287 : vector<1x9x16xf32> to vector<9x16xf32>
    %289 = vector.extract_strided_slice %286 {offsets = [0, 0], sizes = [8, 16], strides = [1, 1]} : vector<9x16xf32> to vector<8x16xf32>
    %290 = arith.truncf %289 : vector<8x16xf32> to vector<8x16xbf16>
    %291 = vector.extract_strided_slice %2 {offsets = [0, 0, 0], sizes = [1, 16, 8], strides = [1, 1, 1]} : vector<4x16x8xbf16> to vector<1x16x8xbf16>
    %292 = vector.shape_cast %291 : vector<1x16x8xbf16> to vector<16x8xbf16>
    %cst_66 = arith.constant dense<0.000000e+00> : vector<8x8xf32>
    %293 = tpu.matmul %290, %292, %cst_66 {dimension_numbers = #tpu.dot_dimension_numbers<[1], [0], [0], [1], [0, 0, 1, 1], [], []>} : vector<8x16xbf16>, vector<16x8xbf16>, vector<8x8xf32> -> vector<8x8xf32>
    %294 = vector.extract_strided_slice %286 {offsets = [1, 0], sizes = [8, 16], strides = [1, 1]} : vector<9x16xf32> to vector<8x16xf32>
    %295 = arith.truncf %294 : vector<8x16xf32> to vector<8x16xbf16>
    %296 = vector.extract_strided_slice %2 {offsets = [1, 0, 0], sizes = [1, 16, 8], strides = [1, 1, 1]} : vector<4x16x8xbf16> to vector<1x16x8xbf16>
    %297 = vector.shape_cast %296 : vector<1x16x8xbf16> to vector<16x8xbf16>
    %cst_67 = arith.constant dense<0.000000e+00> : vector<8x8xf32>
    %298 = tpu.matmul %295, %297, %cst_67 {dimension_numbers = #tpu.dot_dimension_numbers<[1], [0], [0], [1], [0, 0, 1, 1], [], []>} : vector<8x16xbf16>, vector<16x8xbf16>, vector<8x8xf32> -> vector<8x8xf32>
    %299 = arith.addf %293, %298 : vector<8x8xf32>
    %300 = vector.extract_strided_slice %288 {offsets = [0, 0], sizes = [8, 16], strides = [1, 1]} : vector<9x16xf32> to vector<8x16xf32>
    %301 = arith.truncf %300 : vector<8x16xf32> to vector<8x16xbf16>
    %302 = vector.extract_strided_slice %2 {offsets = [2, 0, 0], sizes = [1, 16, 8], strides = [1, 1, 1]} : vector<4x16x8xbf16> to vector<1x16x8xbf16>
    %303 = vector.shape_cast %302 : vector<1x16x8xbf16> to vector<16x8xbf16>
    %cst_68 = arith.constant dense<0.000000e+00> : vector<8x8xf32>
    %304 = tpu.matmul %301, %303, %cst_68 {dimension_numbers = #tpu.dot_dimension_numbers<[1], [0], [0], [1], [0, 0, 1, 1], [], []>} : vector<8x16xbf16>, vector<16x8xbf16>, vector<8x8xf32> -> vector<8x8xf32>
    %305 = arith.addf %299, %304 : vector<8x8xf32>
    %306 = vector.extract_strided_slice %288 {offsets = [1, 0], sizes = [8, 16], strides = [1, 1]} : vector<9x16xf32> to vector<8x16xf32>
    %307 = arith.truncf %306 : vector<8x16xf32> to vector<8x16xbf16>
    %308 = vector.extract_strided_slice %2 {offsets = [3, 0, 0], sizes = [1, 16, 8], strides = [1, 1, 1]} : vector<4x16x8xbf16> to vector<1x16x8xbf16>
    %309 = vector.shape_cast %308 : vector<1x16x8xbf16> to vector<16x8xbf16>
    %cst_69 = arith.constant dense<0.000000e+00> : vector<8x8xf32>
    %310 = tpu.matmul %307, %309, %cst_69 {dimension_numbers = #tpu.dot_dimension_numbers<[1], [0], [0], [1], [0, 0, 1, 1], [], []>} : vector<8x16xbf16>, vector<16x8xbf16>, vector<8x8xf32> -> vector<8x8xf32>
    %311 = arith.addf %305, %310 : vector<8x8xf32>
    %312 = vector.broadcast %3 : vector<1x8xf32> to vector<8x8xf32>
    %313 = arith.mulf %311, %312 : vector<8x8xf32>
    %314 = vector.broadcast %4 : vector<1x8xf32> to vector<8x8xf32>
    %315 = arith.addf %313, %314 : vector<8x8xf32>
    %316 = arith.negf %315 : vector<8x8xf32>
    %317 = math.exp %316 : vector<8x8xf32>
    %cst_70 = arith.constant 1.000000e+00 : f32
    %318 = vector.broadcast %cst_70 : f32 to vector<8x8xf32>
    %319 = arith.addf %318, %317 : vector<8x8xf32>
    %320 = arith.divf %318, %319 : vector<8x8xf32>
    %321 = arith.mulf %315, %320 : vector<8x8xf32>
    %c0_71 = arith.constant 0 : index
    %c7 = arith.constant 7 : index
    %c0_72 = arith.constant 0 : index
    %c0_73 = arith.constant 0 : index
    %322 = vector.load %arg5[%c0_71, %c7, %c0_72, %c0_73] : memref<1x8x8x8xf32, #tpu.memory_space<vmem>>, vector<1x1x8x8xf32>
    %323 = vector.shape_cast %322 : vector<1x1x8x8xf32> to vector<8x8xf32>
    %324 = vector.shape_cast %321 : vector<8x8xf32> to vector<1x1x8x8xf32>
    tpu.vector_store %arg5[%c0_71, %c7, %c0_72, %c0_73], %324 {strides = array<i32>} : memref<1x8x8x8xf32, #tpu.memory_space<vmem>>, vector<1x1x8x8xf32>,
    return
  }
  func.func @transform_0(%arg0: i32) -> (i32, i32, i32, i32) {
    %c0_i32 = arith.constant 0 : i32
    %c0_i32_0 = arith.constant 0 : i32
    %c0_i32_1 = arith.constant 0 : i32
    %c0_i32_2 = arith.constant 0 : i32
    return %arg0, %c0_i32, %c0_i32_0, %c0_i32_1 : i32, i32, i32, i32
  }
  func.func @transform_1(%arg0: i32) -> (i32, i32, i32) {
    %c0_i32 = arith.constant 0 : i32
    %c0_i32_0 = arith.constant 0 : i32
    %c0_i32_1 = arith.constant 0 : i32
    %c0_i32_2 = arith.constant 0 : i32
    return %c0_i32, %c0_i32_0, %c0_i32_1 : i32, i32, i32
  }
  func.func @transform_2(%arg0: i32) -> (i32, i32) {
    %c0_i32 = arith.constant 0 : i32
    %c0_i32_0 = arith.constant 0 : i32
    %c0_i32_1 = arith.constant 0 : i32
    return %c0_i32, %c0_i32_0 : i32, i32
  }
  func.func @transform_3(%arg0: i32) -> (i32, i32) {
    %c0_i32 = arith.constant 0 : i32
    %c0_i32_0 = arith.constant 0 : i32
    %c0_i32_1 = arith.constant 0 : i32
    return %c0_i32, %c0_i32_0 : i32, i32
  }
  func.func @transform_4(%arg0: i32) -> (i32, i32, i32, i32) {
    %c0_i32 = arith.constant 0 : i32
    %c0_i32_0 = arith.constant 0 : i32
    %c0_i32_1 = arith.constant 0 : i32
    %c0_i32_2 = arith.constant 0 : i32
    return %arg0, %c0_i32, %c0_i32_0, %c0_i32_1 : i32, i32, i32, i32
  }
}

module attributes {stable_mosaic.version = 11 : i64} {
  func.func @_conv3x3_s2_kernel(%arg0: i32, %arg1: memref<1x5x5x32xf32, #tpu.memory_space<vmem>>, %arg2: memref<4x32x16xbf16, #tpu.memory_space<vmem>>, %arg3: memref<1x16xf32, #tpu.memory_space<vmem>>, %arg4: memref<1x16xf32, #tpu.memory_space<vmem>>, %arg5: memref<1x4x4x16xf32, #tpu.memory_space<vmem>>) attributes {dimension_semantics = [#tpu.dimension_semantics<parallel>], iteration_bounds = array<i64: 2>, scalar_prefetch = 0 : i64, scratch_operands = 0 : i64, tpu.core_type = #tpu.core_type<tc>, window_params = [{transform_indices = @transform_0, window_bounds = array<i64: 1, 5, 5, 32>}, {pipeline_mode = #tpu.pipeline_mode<synchronous>, transform_indices = @transform_1, window_bounds = array<i64: 4, 32, 16>}, {pipeline_mode = #tpu.pipeline_mode<synchronous>, transform_indices = @transform_2, window_bounds = array<i64: 1, 16>}, {pipeline_mode = #tpu.pipeline_mode<synchronous>, transform_indices = @transform_3, window_bounds = array<i64: 1, 16>}, {transform_indices = @transform_4, window_bounds = array<i64: 1, 4, 4, 16>}]} {
    %c0 = arith.constant 0 : index
    %c0_0 = arith.constant 0 : index
    %c0_1 = arith.constant 0 : index
    %c0_2 = arith.constant 0 : index
    %0 = vector.load %arg1[%c0, %c0_0, %c0_1, %c0_2] : memref<1x5x5x32xf32, #tpu.memory_space<vmem>>, vector<1x5x5x32xf32>
    %1 = vector.shape_cast %0 : vector<1x5x5x32xf32> to vector<5x5x32xf32>
    %c0_3 = arith.constant 0 : index
    %c0_4 = arith.constant 0 : index
    %c0_5 = arith.constant 0 : index
    %2 = vector.load %arg2[%c0_3, %c0_4, %c0_5] : memref<4x32x16xbf16, #tpu.memory_space<vmem>>, vector<4x32x16xbf16>
    %c0_6 = arith.constant 0 : index
    %c0_7 = arith.constant 0 : index
    %3 = vector.load %arg3[%c0_6, %c0_7] : memref<1x16xf32, #tpu.memory_space<vmem>>, vector<1x16xf32>
    %c0_8 = arith.constant 0 : index
    %c0_9 = arith.constant 0 : index
    %4 = vector.load %arg4[%c0_8, %c0_9] : memref<1x16xf32, #tpu.memory_space<vmem>>, vector<1x16xf32>
    %5 = vector.extract_strided_slice %1 {offsets = [0, 0, 0], sizes = [1, 5, 32], strides = [1, 1, 1]} : vector<5x5x32xf32> to vector<1x5x32xf32>
    %6 = vector.shape_cast %5 : vector<1x5x32xf32> to vector<5x32xf32>
    %7 = vector.extract_strided_slice %1 {offsets = [1, 0, 0], sizes = [1, 5, 32], strides = [1, 1, 1]} : vector<5x5x32xf32> to vector<1x5x32xf32>
    %8 = vector.shape_cast %7 : vector<1x5x32xf32> to vector<5x32xf32>
    %9 = vector.extract_strided_slice %6 {offsets = [0, 0], sizes = [4, 32], strides = [1, 1]} : vector<5x32xf32> to vector<4x32xf32>
    %10 = arith.truncf %9 : vector<4x32xf32> to vector<4x32xbf16>
    %11 = vector.extract_strided_slice %2 {offsets = [0, 0, 0], sizes = [1, 32, 16], strides = [1, 1, 1]} : vector<4x32x16xbf16> to vector<1x32x16xbf16>
    %12 = vector.shape_cast %11 : vector<1x32x16xbf16> to vector<32x16xbf16>
    %cst = arith.constant dense<0.000000e+00> : vector<4x16xf32>
    %13 = tpu.matmul %10, %12, %cst {dimension_numbers = #tpu.dot_dimension_numbers<[1], [0], [0], [1], [0, 0, 1, 1], [], []>} : vector<4x32xbf16>, vector<32x16xbf16>, vector<4x16xf32> -> vector<4x16xf32>
    %14 = vector.extract_strided_slice %6 {offsets = [1, 0], sizes = [4, 32], strides = [1, 1]} : vector<5x32xf32> to vector<4x32xf32>
    %15 = arith.truncf %14 : vector<4x32xf32> to vector<4x32xbf16>
    %16 = vector.extract_strided_slice %2 {offsets = [1, 0, 0], sizes = [1, 32, 16], strides = [1, 1, 1]} : vector<4x32x16xbf16> to vector<1x32x16xbf16>
    %17 = vector.shape_cast %16 : vector<1x32x16xbf16> to vector<32x16xbf16>
    %cst_10 = arith.constant dense<0.000000e+00> : vector<4x16xf32>
    %18 = tpu.matmul %15, %17, %cst_10 {dimension_numbers = #tpu.dot_dimension_numbers<[1], [0], [0], [1], [0, 0, 1, 1], [], []>} : vector<4x32xbf16>, vector<32x16xbf16>, vector<4x16xf32> -> vector<4x16xf32>
    %19 = arith.addf %13, %18 : vector<4x16xf32>
    %20 = vector.extract_strided_slice %8 {offsets = [0, 0], sizes = [4, 32], strides = [1, 1]} : vector<5x32xf32> to vector<4x32xf32>
    %21 = arith.truncf %20 : vector<4x32xf32> to vector<4x32xbf16>
    %22 = vector.extract_strided_slice %2 {offsets = [2, 0, 0], sizes = [1, 32, 16], strides = [1, 1, 1]} : vector<4x32x16xbf16> to vector<1x32x16xbf16>
    %23 = vector.shape_cast %22 : vector<1x32x16xbf16> to vector<32x16xbf16>
    %cst_11 = arith.constant dense<0.000000e+00> : vector<4x16xf32>
    %24 = tpu.matmul %21, %23, %cst_11 {dimension_numbers = #tpu.dot_dimension_numbers<[1], [0], [0], [1], [0, 0, 1, 1], [], []>} : vector<4x32xbf16>, vector<32x16xbf16>, vector<4x16xf32> -> vector<4x16xf32>
    %25 = arith.addf %19, %24 : vector<4x16xf32>
    %26 = vector.extract_strided_slice %8 {offsets = [1, 0], sizes = [4, 32], strides = [1, 1]} : vector<5x32xf32> to vector<4x32xf32>
    %27 = arith.truncf %26 : vector<4x32xf32> to vector<4x32xbf16>
    %28 = vector.extract_strided_slice %2 {offsets = [3, 0, 0], sizes = [1, 32, 16], strides = [1, 1, 1]} : vector<4x32x16xbf16> to vector<1x32x16xbf16>
    %29 = vector.shape_cast %28 : vector<1x32x16xbf16> to vector<32x16xbf16>
    %cst_12 = arith.constant dense<0.000000e+00> : vector<4x16xf32>
    %30 = tpu.matmul %27, %29, %cst_12 {dimension_numbers = #tpu.dot_dimension_numbers<[1], [0], [0], [1], [0, 0, 1, 1], [], []>} : vector<4x32xbf16>, vector<32x16xbf16>, vector<4x16xf32> -> vector<4x16xf32>
    %31 = arith.addf %25, %30 : vector<4x16xf32>
    %32 = vector.broadcast %3 : vector<1x16xf32> to vector<4x16xf32>
    %33 = arith.mulf %31, %32 : vector<4x16xf32>
    %34 = vector.broadcast %4 : vector<1x16xf32> to vector<4x16xf32>
    %35 = arith.addf %33, %34 : vector<4x16xf32>
    %36 = arith.negf %35 : vector<4x16xf32>
    %37 = math.exp %36 : vector<4x16xf32>
    %cst_13 = arith.constant 1.000000e+00 : f32
    %38 = vector.broadcast %cst_13 : f32 to vector<4x16xf32>
    %39 = arith.addf %38, %37 : vector<4x16xf32>
    %40 = arith.divf %38, %39 : vector<4x16xf32>
    %41 = arith.mulf %35, %40 : vector<4x16xf32>
    %c0_14 = arith.constant 0 : index
    %c0_15 = arith.constant 0 : index
    %c0_16 = arith.constant 0 : index
    %c0_17 = arith.constant 0 : index
    %42 = vector.load %arg5[%c0_14, %c0_15, %c0_16, %c0_17] : memref<1x4x4x16xf32, #tpu.memory_space<vmem>>, vector<1x1x4x16xf32>
    %43 = vector.shape_cast %42 : vector<1x1x4x16xf32> to vector<4x16xf32>
    %44 = vector.shape_cast %41 : vector<4x16xf32> to vector<1x1x4x16xf32>
    tpu.vector_store %arg5[%c0_14, %c0_15, %c0_16, %c0_17], %44 {strides = array<i32>} : memref<1x4x4x16xf32, #tpu.memory_space<vmem>>, vector<1x1x4x16xf32>,
    %45 = vector.extract_strided_slice %1 {offsets = [1, 0, 0], sizes = [1, 5, 32], strides = [1, 1, 1]} : vector<5x5x32xf32> to vector<1x5x32xf32>
    %46 = vector.shape_cast %45 : vector<1x5x32xf32> to vector<5x32xf32>
    %47 = vector.extract_strided_slice %1 {offsets = [2, 0, 0], sizes = [1, 5, 32], strides = [1, 1, 1]} : vector<5x5x32xf32> to vector<1x5x32xf32>
    %48 = vector.shape_cast %47 : vector<1x5x32xf32> to vector<5x32xf32>
    %49 = vector.extract_strided_slice %46 {offsets = [0, 0], sizes = [4, 32], strides = [1, 1]} : vector<5x32xf32> to vector<4x32xf32>
    %50 = arith.truncf %49 : vector<4x32xf32> to vector<4x32xbf16>
    %51 = vector.extract_strided_slice %2 {offsets = [0, 0, 0], sizes = [1, 32, 16], strides = [1, 1, 1]} : vector<4x32x16xbf16> to vector<1x32x16xbf16>
    %52 = vector.shape_cast %51 : vector<1x32x16xbf16> to vector<32x16xbf16>
    %cst_18 = arith.constant dense<0.000000e+00> : vector<4x16xf32>
    %53 = tpu.matmul %50, %52, %cst_18 {dimension_numbers = #tpu.dot_dimension_numbers<[1], [0], [0], [1], [0, 0, 1, 1], [], []>} : vector<4x32xbf16>, vector<32x16xbf16>, vector<4x16xf32> -> vector<4x16xf32>
    %54 = vector.extract_strided_slice %46 {offsets = [1, 0], sizes = [4, 32], strides = [1, 1]} : vector<5x32xf32> to vector<4x32xf32>
    %55 = arith.truncf %54 : vector<4x32xf32> to vector<4x32xbf16>
    %56 = vector.extract_strided_slice %2 {offsets = [1, 0, 0], sizes = [1, 32, 16], strides = [1, 1, 1]} : vector<4x32x16xbf16> to vector<1x32x16xbf16>
    %57 = vector.shape_cast %56 : vector<1x32x16xbf16> to vector<32x16xbf16>
    %cst_19 = arith.constant dense<0.000000e+00> : vector<4x16xf32>
    %58 = tpu.matmul %55, %57, %cst_19 {dimension_numbers = #tpu.dot_dimension_numbers<[1], [0], [0], [1], [0, 0, 1, 1], [], []>} : vector<4x32xbf16>, vector<32x16xbf16>, vector<4x16xf32> -> vector<4x16xf32>
    %59 = arith.addf %53, %58 : vector<4x16xf32>
    %60 = vector.extract_strided_slice %48 {offsets = [0, 0], sizes = [4, 32], strides = [1, 1]} : vector<5x32xf32> to vector<4x32xf32>
    %61 = arith.truncf %60 : vector<4x32xf32> to vector<4x32xbf16>
    %62 = vector.extract_strided_slice %2 {offsets = [2, 0, 0], sizes = [1, 32, 16], strides = [1, 1, 1]} : vector<4x32x16xbf16> to vector<1x32x16xbf16>
    %63 = vector.shape_cast %62 : vector<1x32x16xbf16> to vector<32x16xbf16>
    %cst_20 = arith.constant dense<0.000000e+00> : vector<4x16xf32>
    %64 = tpu.matmul %61, %63, %cst_20 {dimension_numbers = #tpu.dot_dimension_numbers<[1], [0], [0], [1], [0, 0, 1, 1], [], []>} : vector<4x32xbf16>, vector<32x16xbf16>, vector<4x16xf32> -> vector<4x16xf32>
    %65 = arith.addf %59, %64 : vector<4x16xf32>
    %66 = vector.extract_strided_slice %48 {offsets = [1, 0], sizes = [4, 32], strides = [1, 1]} : vector<5x32xf32> to vector<4x32xf32>
    %67 = arith.truncf %66 : vector<4x32xf32> to vector<4x32xbf16>
    %68 = vector.extract_strided_slice %2 {offsets = [3, 0, 0], sizes = [1, 32, 16], strides = [1, 1, 1]} : vector<4x32x16xbf16> to vector<1x32x16xbf16>
    %69 = vector.shape_cast %68 : vector<1x32x16xbf16> to vector<32x16xbf16>
    %cst_21 = arith.constant dense<0.000000e+00> : vector<4x16xf32>
    %70 = tpu.matmul %67, %69, %cst_21 {dimension_numbers = #tpu.dot_dimension_numbers<[1], [0], [0], [1], [0, 0, 1, 1], [], []>} : vector<4x32xbf16>, vector<32x16xbf16>, vector<4x16xf32> -> vector<4x16xf32>
    %71 = arith.addf %65, %70 : vector<4x16xf32>
    %72 = vector.broadcast %3 : vector<1x16xf32> to vector<4x16xf32>
    %73 = arith.mulf %71, %72 : vector<4x16xf32>
    %74 = vector.broadcast %4 : vector<1x16xf32> to vector<4x16xf32>
    %75 = arith.addf %73, %74 : vector<4x16xf32>
    %76 = arith.negf %75 : vector<4x16xf32>
    %77 = math.exp %76 : vector<4x16xf32>
    %cst_22 = arith.constant 1.000000e+00 : f32
    %78 = vector.broadcast %cst_22 : f32 to vector<4x16xf32>
    %79 = arith.addf %78, %77 : vector<4x16xf32>
    %80 = arith.divf %78, %79 : vector<4x16xf32>
    %81 = arith.mulf %75, %80 : vector<4x16xf32>
    %c0_23 = arith.constant 0 : index
    %c1 = arith.constant 1 : index
    %c0_24 = arith.constant 0 : index
    %c0_25 = arith.constant 0 : index
    %82 = vector.load %arg5[%c0_23, %c1, %c0_24, %c0_25] : memref<1x4x4x16xf32, #tpu.memory_space<vmem>>, vector<1x1x4x16xf32>
    %83 = vector.shape_cast %82 : vector<1x1x4x16xf32> to vector<4x16xf32>
    %84 = vector.shape_cast %81 : vector<4x16xf32> to vector<1x1x4x16xf32>
    tpu.vector_store %arg5[%c0_23, %c1, %c0_24, %c0_25], %84 {strides = array<i32>} : memref<1x4x4x16xf32, #tpu.memory_space<vmem>>, vector<1x1x4x16xf32>,
    %85 = vector.extract_strided_slice %1 {offsets = [2, 0, 0], sizes = [1, 5, 32], strides = [1, 1, 1]} : vector<5x5x32xf32> to vector<1x5x32xf32>
    %86 = vector.shape_cast %85 : vector<1x5x32xf32> to vector<5x32xf32>
    %87 = vector.extract_strided_slice %1 {offsets = [3, 0, 0], sizes = [1, 5, 32], strides = [1, 1, 1]} : vector<5x5x32xf32> to vector<1x5x32xf32>
    %88 = vector.shape_cast %87 : vector<1x5x32xf32> to vector<5x32xf32>
    %89 = vector.extract_strided_slice %86 {offsets = [0, 0], sizes = [4, 32], strides = [1, 1]} : vector<5x32xf32> to vector<4x32xf32>
    %90 = arith.truncf %89 : vector<4x32xf32> to vector<4x32xbf16>
    %91 = vector.extract_strided_slice %2 {offsets = [0, 0, 0], sizes = [1, 32, 16], strides = [1, 1, 1]} : vector<4x32x16xbf16> to vector<1x32x16xbf16>
    %92 = vector.shape_cast %91 : vector<1x32x16xbf16> to vector<32x16xbf16>
    %cst_26 = arith.constant dense<0.000000e+00> : vector<4x16xf32>
    %93 = tpu.matmul %90, %92, %cst_26 {dimension_numbers = #tpu.dot_dimension_numbers<[1], [0], [0], [1], [0, 0, 1, 1], [], []>} : vector<4x32xbf16>, vector<32x16xbf16>, vector<4x16xf32> -> vector<4x16xf32>
    %94 = vector.extract_strided_slice %86 {offsets = [1, 0], sizes = [4, 32], strides = [1, 1]} : vector<5x32xf32> to vector<4x32xf32>
    %95 = arith.truncf %94 : vector<4x32xf32> to vector<4x32xbf16>
    %96 = vector.extract_strided_slice %2 {offsets = [1, 0, 0], sizes = [1, 32, 16], strides = [1, 1, 1]} : vector<4x32x16xbf16> to vector<1x32x16xbf16>
    %97 = vector.shape_cast %96 : vector<1x32x16xbf16> to vector<32x16xbf16>
    %cst_27 = arith.constant dense<0.000000e+00> : vector<4x16xf32>
    %98 = tpu.matmul %95, %97, %cst_27 {dimension_numbers = #tpu.dot_dimension_numbers<[1], [0], [0], [1], [0, 0, 1, 1], [], []>} : vector<4x32xbf16>, vector<32x16xbf16>, vector<4x16xf32> -> vector<4x16xf32>
    %99 = arith.addf %93, %98 : vector<4x16xf32>
    %100 = vector.extract_strided_slice %88 {offsets = [0, 0], sizes = [4, 32], strides = [1, 1]} : vector<5x32xf32> to vector<4x32xf32>
    %101 = arith.truncf %100 : vector<4x32xf32> to vector<4x32xbf16>
    %102 = vector.extract_strided_slice %2 {offsets = [2, 0, 0], sizes = [1, 32, 16], strides = [1, 1, 1]} : vector<4x32x16xbf16> to vector<1x32x16xbf16>
    %103 = vector.shape_cast %102 : vector<1x32x16xbf16> to vector<32x16xbf16>
    %cst_28 = arith.constant dense<0.000000e+00> : vector<4x16xf32>
    %104 = tpu.matmul %101, %103, %cst_28 {dimension_numbers = #tpu.dot_dimension_numbers<[1], [0], [0], [1], [0, 0, 1, 1], [], []>} : vector<4x32xbf16>, vector<32x16xbf16>, vector<4x16xf32> -> vector<4x16xf32>
    %105 = arith.addf %99, %104 : vector<4x16xf32>
    %106 = vector.extract_strided_slice %88 {offsets = [1, 0], sizes = [4, 32], strides = [1, 1]} : vector<5x32xf32> to vector<4x32xf32>
    %107 = arith.truncf %106 : vector<4x32xf32> to vector<4x32xbf16>
    %108 = vector.extract_strided_slice %2 {offsets = [3, 0, 0], sizes = [1, 32, 16], strides = [1, 1, 1]} : vector<4x32x16xbf16> to vector<1x32x16xbf16>
    %109 = vector.shape_cast %108 : vector<1x32x16xbf16> to vector<32x16xbf16>
    %cst_29 = arith.constant dense<0.000000e+00> : vector<4x16xf32>
    %110 = tpu.matmul %107, %109, %cst_29 {dimension_numbers = #tpu.dot_dimension_numbers<[1], [0], [0], [1], [0, 0, 1, 1], [], []>} : vector<4x32xbf16>, vector<32x16xbf16>, vector<4x16xf32> -> vector<4x16xf32>
    %111 = arith.addf %105, %110 : vector<4x16xf32>
    %112 = vector.broadcast %3 : vector<1x16xf32> to vector<4x16xf32>
    %113 = arith.mulf %111, %112 : vector<4x16xf32>
    %114 = vector.broadcast %4 : vector<1x16xf32> to vector<4x16xf32>
    %115 = arith.addf %113, %114 : vector<4x16xf32>
    %116 = arith.negf %115 : vector<4x16xf32>
    %117 = math.exp %116 : vector<4x16xf32>
    %cst_30 = arith.constant 1.000000e+00 : f32
    %118 = vector.broadcast %cst_30 : f32 to vector<4x16xf32>
    %119 = arith.addf %118, %117 : vector<4x16xf32>
    %120 = arith.divf %118, %119 : vector<4x16xf32>
    %121 = arith.mulf %115, %120 : vector<4x16xf32>
    %c0_31 = arith.constant 0 : index
    %c2 = arith.constant 2 : index
    %c0_32 = arith.constant 0 : index
    %c0_33 = arith.constant 0 : index
    %122 = vector.load %arg5[%c0_31, %c2, %c0_32, %c0_33] : memref<1x4x4x16xf32, #tpu.memory_space<vmem>>, vector<1x1x4x16xf32>
    %123 = vector.shape_cast %122 : vector<1x1x4x16xf32> to vector<4x16xf32>
    %124 = vector.shape_cast %121 : vector<4x16xf32> to vector<1x1x4x16xf32>
    tpu.vector_store %arg5[%c0_31, %c2, %c0_32, %c0_33], %124 {strides = array<i32>} : memref<1x4x4x16xf32, #tpu.memory_space<vmem>>, vector<1x1x4x16xf32>,
    %125 = vector.extract_strided_slice %1 {offsets = [3, 0, 0], sizes = [1, 5, 32], strides = [1, 1, 1]} : vector<5x5x32xf32> to vector<1x5x32xf32>
    %126 = vector.shape_cast %125 : vector<1x5x32xf32> to vector<5x32xf32>
    %127 = vector.extract_strided_slice %1 {offsets = [4, 0, 0], sizes = [1, 5, 32], strides = [1, 1, 1]} : vector<5x5x32xf32> to vector<1x5x32xf32>
    %128 = vector.shape_cast %127 : vector<1x5x32xf32> to vector<5x32xf32>
    %129 = vector.extract_strided_slice %126 {offsets = [0, 0], sizes = [4, 32], strides = [1, 1]} : vector<5x32xf32> to vector<4x32xf32>
    %130 = arith.truncf %129 : vector<4x32xf32> to vector<4x32xbf16>
    %131 = vector.extract_strided_slice %2 {offsets = [0, 0, 0], sizes = [1, 32, 16], strides = [1, 1, 1]} : vector<4x32x16xbf16> to vector<1x32x16xbf16>
    %132 = vector.shape_cast %131 : vector<1x32x16xbf16> to vector<32x16xbf16>
    %cst_34 = arith.constant dense<0.000000e+00> : vector<4x16xf32>
    %133 = tpu.matmul %130, %132, %cst_34 {dimension_numbers = #tpu.dot_dimension_numbers<[1], [0], [0], [1], [0, 0, 1, 1], [], []>} : vector<4x32xbf16>, vector<32x16xbf16>, vector<4x16xf32> -> vector<4x16xf32>
    %134 = vector.extract_strided_slice %126 {offsets = [1, 0], sizes = [4, 32], strides = [1, 1]} : vector<5x32xf32> to vector<4x32xf32>
    %135 = arith.truncf %134 : vector<4x32xf32> to vector<4x32xbf16>
    %136 = vector.extract_strided_slice %2 {offsets = [1, 0, 0], sizes = [1, 32, 16], strides = [1, 1, 1]} : vector<4x32x16xbf16> to vector<1x32x16xbf16>
    %137 = vector.shape_cast %136 : vector<1x32x16xbf16> to vector<32x16xbf16>
    %cst_35 = arith.constant dense<0.000000e+00> : vector<4x16xf32>
    %138 = tpu.matmul %135, %137, %cst_35 {dimension_numbers = #tpu.dot_dimension_numbers<[1], [0], [0], [1], [0, 0, 1, 1], [], []>} : vector<4x32xbf16>, vector<32x16xbf16>, vector<4x16xf32> -> vector<4x16xf32>
    %139 = arith.addf %133, %138 : vector<4x16xf32>
    %140 = vector.extract_strided_slice %128 {offsets = [0, 0], sizes = [4, 32], strides = [1, 1]} : vector<5x32xf32> to vector<4x32xf32>
    %141 = arith.truncf %140 : vector<4x32xf32> to vector<4x32xbf16>
    %142 = vector.extract_strided_slice %2 {offsets = [2, 0, 0], sizes = [1, 32, 16], strides = [1, 1, 1]} : vector<4x32x16xbf16> to vector<1x32x16xbf16>
    %143 = vector.shape_cast %142 : vector<1x32x16xbf16> to vector<32x16xbf16>
    %cst_36 = arith.constant dense<0.000000e+00> : vector<4x16xf32>
    %144 = tpu.matmul %141, %143, %cst_36 {dimension_numbers = #tpu.dot_dimension_numbers<[1], [0], [0], [1], [0, 0, 1, 1], [], []>} : vector<4x32xbf16>, vector<32x16xbf16>, vector<4x16xf32> -> vector<4x16xf32>
    %145 = arith.addf %139, %144 : vector<4x16xf32>
    %146 = vector.extract_strided_slice %128 {offsets = [1, 0], sizes = [4, 32], strides = [1, 1]} : vector<5x32xf32> to vector<4x32xf32>
    %147 = arith.truncf %146 : vector<4x32xf32> to vector<4x32xbf16>
    %148 = vector.extract_strided_slice %2 {offsets = [3, 0, 0], sizes = [1, 32, 16], strides = [1, 1, 1]} : vector<4x32x16xbf16> to vector<1x32x16xbf16>
    %149 = vector.shape_cast %148 : vector<1x32x16xbf16> to vector<32x16xbf16>
    %cst_37 = arith.constant dense<0.000000e+00> : vector<4x16xf32>
    %150 = tpu.matmul %147, %149, %cst_37 {dimension_numbers = #tpu.dot_dimension_numbers<[1], [0], [0], [1], [0, 0, 1, 1], [], []>} : vector<4x32xbf16>, vector<32x16xbf16>, vector<4x16xf32> -> vector<4x16xf32>
    %151 = arith.addf %145, %150 : vector<4x16xf32>
    %152 = vector.broadcast %3 : vector<1x16xf32> to vector<4x16xf32>
    %153 = arith.mulf %151, %152 : vector<4x16xf32>
    %154 = vector.broadcast %4 : vector<1x16xf32> to vector<4x16xf32>
    %155 = arith.addf %153, %154 : vector<4x16xf32>
    %156 = arith.negf %155 : vector<4x16xf32>
    %157 = math.exp %156 : vector<4x16xf32>
    %cst_38 = arith.constant 1.000000e+00 : f32
    %158 = vector.broadcast %cst_38 : f32 to vector<4x16xf32>
    %159 = arith.addf %158, %157 : vector<4x16xf32>
    %160 = arith.divf %158, %159 : vector<4x16xf32>
    %161 = arith.mulf %155, %160 : vector<4x16xf32>
    %c0_39 = arith.constant 0 : index
    %c3 = arith.constant 3 : index
    %c0_40 = arith.constant 0 : index
    %c0_41 = arith.constant 0 : index
    %162 = vector.load %arg5[%c0_39, %c3, %c0_40, %c0_41] : memref<1x4x4x16xf32, #tpu.memory_space<vmem>>, vector<1x1x4x16xf32>
    %163 = vector.shape_cast %162 : vector<1x1x4x16xf32> to vector<4x16xf32>
    %164 = vector.shape_cast %161 : vector<4x16xf32> to vector<1x1x4x16xf32>
    tpu.vector_store %arg5[%c0_39, %c3, %c0_40, %c0_41], %164 {strides = array<i32>} : memref<1x4x4x16xf32, #tpu.memory_space<vmem>>, vector<1x1x4x16xf32>,
    return
  }
  func.func @transform_0(%arg0: i32) -> (i32, i32, i32, i32) {
    %c0_i32 = arith.constant 0 : i32
    %c0_i32_0 = arith.constant 0 : i32
    %c0_i32_1 = arith.constant 0 : i32
    %c0_i32_2 = arith.constant 0 : i32
    return %arg0, %c0_i32, %c0_i32_0, %c0_i32_1 : i32, i32, i32, i32
  }
  func.func @transform_1(%arg0: i32) -> (i32, i32, i32) {
    %c0_i32 = arith.constant 0 : i32
    %c0_i32_0 = arith.constant 0 : i32
    %c0_i32_1 = arith.constant 0 : i32
    %c0_i32_2 = arith.constant 0 : i32
    return %c0_i32, %c0_i32_0, %c0_i32_1 : i32, i32, i32
  }
  func.func @transform_2(%arg0: i32) -> (i32, i32) {
    %c0_i32 = arith.constant 0 : i32
    %c0_i32_0 = arith.constant 0 : i32
    %c0_i32_1 = arith.constant 0 : i32
    return %c0_i32, %c0_i32_0 : i32, i32
  }
  func.func @transform_3(%arg0: i32) -> (i32, i32) {
    %c0_i32 = arith.constant 0 : i32
    %c0_i32_0 = arith.constant 0 : i32
    %c0_i32_1 = arith.constant 0 : i32
    return %c0_i32, %c0_i32_0 : i32, i32
  }
  func.func @transform_4(%arg0: i32) -> (i32, i32, i32, i32) {
    %c0_i32 = arith.constant 0 : i32
    %c0_i32_0 = arith.constant 0 : i32
    %c0_i32_1 = arith.constant 0 : i32
    %c0_i32_2 = arith.constant 0 : i32
    return %arg0, %c0_i32, %c0_i32_0, %c0_i32_1 : i32, i32, i32, i32
  }
}

module attributes {stable_mosaic.version = 11 : i64} {
  func.func @_conv3x3_s2_kernel(%arg0: i32, %arg1: memref<1x3x3x64xf32, #tpu.memory_space<vmem>>, %arg2: memref<4x64x32xbf16, #tpu.memory_space<vmem>>, %arg3: memref<1x32xf32, #tpu.memory_space<vmem>>, %arg4: memref<1x32xf32, #tpu.memory_space<vmem>>, %arg5: memref<1x2x2x32xf32, #tpu.memory_space<vmem>>) attributes {dimension_semantics = [#tpu.dimension_semantics<parallel>], iteration_bounds = array<i64: 2>, scalar_prefetch = 0 : i64, scratch_operands = 0 : i64, tpu.core_type = #tpu.core_type<tc>, window_params = [{transform_indices = @transform_0, window_bounds = array<i64: 1, 3, 3, 64>}, {pipeline_mode = #tpu.pipeline_mode<synchronous>, transform_indices = @transform_1, window_bounds = array<i64: 4, 64, 32>}, {pipeline_mode = #tpu.pipeline_mode<synchronous>, transform_indices = @transform_2, window_bounds = array<i64: 1, 32>}, {pipeline_mode = #tpu.pipeline_mode<synchronous>, transform_indices = @transform_3, window_bounds = array<i64: 1, 32>}, {transform_indices = @transform_4, window_bounds = array<i64: 1, 2, 2, 32>}]} {
    %c0 = arith.constant 0 : index
    %c0_0 = arith.constant 0 : index
    %c0_1 = arith.constant 0 : index
    %c0_2 = arith.constant 0 : index
    %0 = vector.load %arg1[%c0, %c0_0, %c0_1, %c0_2] : memref<1x3x3x64xf32, #tpu.memory_space<vmem>>, vector<1x3x3x64xf32>
    %1 = vector.shape_cast %0 : vector<1x3x3x64xf32> to vector<3x3x64xf32>
    %c0_3 = arith.constant 0 : index
    %c0_4 = arith.constant 0 : index
    %c0_5 = arith.constant 0 : index
    %2 = vector.load %arg2[%c0_3, %c0_4, %c0_5] : memref<4x64x32xbf16, #tpu.memory_space<vmem>>, vector<4x64x32xbf16>
    %c0_6 = arith.constant 0 : index
    %c0_7 = arith.constant 0 : index
    %3 = vector.load %arg3[%c0_6, %c0_7] : memref<1x32xf32, #tpu.memory_space<vmem>>, vector<1x32xf32>
    %c0_8 = arith.constant 0 : index
    %c0_9 = arith.constant 0 : index
    %4 = vector.load %arg4[%c0_8, %c0_9] : memref<1x32xf32, #tpu.memory_space<vmem>>, vector<1x32xf32>
    %5 = vector.extract_strided_slice %1 {offsets = [0, 0, 0], sizes = [1, 3, 64], strides = [1, 1, 1]} : vector<3x3x64xf32> to vector<1x3x64xf32>
    %6 = vector.shape_cast %5 : vector<1x3x64xf32> to vector<3x64xf32>
    %7 = vector.extract_strided_slice %1 {offsets = [1, 0, 0], sizes = [1, 3, 64], strides = [1, 1, 1]} : vector<3x3x64xf32> to vector<1x3x64xf32>
    %8 = vector.shape_cast %7 : vector<1x3x64xf32> to vector<3x64xf32>
    %9 = vector.extract_strided_slice %6 {offsets = [0, 0], sizes = [2, 64], strides = [1, 1]} : vector<3x64xf32> to vector<2x64xf32>
    %10 = arith.truncf %9 : vector<2x64xf32> to vector<2x64xbf16>
    %11 = vector.extract_strided_slice %2 {offsets = [0, 0, 0], sizes = [1, 64, 32], strides = [1, 1, 1]} : vector<4x64x32xbf16> to vector<1x64x32xbf16>
    %12 = vector.shape_cast %11 : vector<1x64x32xbf16> to vector<64x32xbf16>
    %cst = arith.constant dense<0.000000e+00> : vector<2x32xf32>
    %13 = tpu.matmul %10, %12, %cst {dimension_numbers = #tpu.dot_dimension_numbers<[1], [0], [0], [1], [0, 0, 1, 1], [], []>} : vector<2x64xbf16>, vector<64x32xbf16>, vector<2x32xf32> -> vector<2x32xf32>
    %14 = vector.extract_strided_slice %6 {offsets = [1, 0], sizes = [2, 64], strides = [1, 1]} : vector<3x64xf32> to vector<2x64xf32>
    %15 = arith.truncf %14 : vector<2x64xf32> to vector<2x64xbf16>
    %16 = vector.extract_strided_slice %2 {offsets = [1, 0, 0], sizes = [1, 64, 32], strides = [1, 1, 1]} : vector<4x64x32xbf16> to vector<1x64x32xbf16>
    %17 = vector.shape_cast %16 : vector<1x64x32xbf16> to vector<64x32xbf16>
    %cst_10 = arith.constant dense<0.000000e+00> : vector<2x32xf32>
    %18 = tpu.matmul %15, %17, %cst_10 {dimension_numbers = #tpu.dot_dimension_numbers<[1], [0], [0], [1], [0, 0, 1, 1], [], []>} : vector<2x64xbf16>, vector<64x32xbf16>, vector<2x32xf32> -> vector<2x32xf32>
    %19 = arith.addf %13, %18 : vector<2x32xf32>
    %20 = vector.extract_strided_slice %8 {offsets = [0, 0], sizes = [2, 64], strides = [1, 1]} : vector<3x64xf32> to vector<2x64xf32>
    %21 = arith.truncf %20 : vector<2x64xf32> to vector<2x64xbf16>
    %22 = vector.extract_strided_slice %2 {offsets = [2, 0, 0], sizes = [1, 64, 32], strides = [1, 1, 1]} : vector<4x64x32xbf16> to vector<1x64x32xbf16>
    %23 = vector.shape_cast %22 : vector<1x64x32xbf16> to vector<64x32xbf16>
    %cst_11 = arith.constant dense<0.000000e+00> : vector<2x32xf32>
    %24 = tpu.matmul %21, %23, %cst_11 {dimension_numbers = #tpu.dot_dimension_numbers<[1], [0], [0], [1], [0, 0, 1, 1], [], []>} : vector<2x64xbf16>, vector<64x32xbf16>, vector<2x32xf32> -> vector<2x32xf32>
    %25 = arith.addf %19, %24 : vector<2x32xf32>
    %26 = vector.extract_strided_slice %8 {offsets = [1, 0], sizes = [2, 64], strides = [1, 1]} : vector<3x64xf32> to vector<2x64xf32>
    %27 = arith.truncf %26 : vector<2x64xf32> to vector<2x64xbf16>
    %28 = vector.extract_strided_slice %2 {offsets = [3, 0, 0], sizes = [1, 64, 32], strides = [1, 1, 1]} : vector<4x64x32xbf16> to vector<1x64x32xbf16>
    %29 = vector.shape_cast %28 : vector<1x64x32xbf16> to vector<64x32xbf16>
    %cst_12 = arith.constant dense<0.000000e+00> : vector<2x32xf32>
    %30 = tpu.matmul %27, %29, %cst_12 {dimension_numbers = #tpu.dot_dimension_numbers<[1], [0], [0], [1], [0, 0, 1, 1], [], []>} : vector<2x64xbf16>, vector<64x32xbf16>, vector<2x32xf32> -> vector<2x32xf32>
    %31 = arith.addf %25, %30 : vector<2x32xf32>
    %32 = vector.broadcast %3 : vector<1x32xf32> to vector<2x32xf32>
    %33 = arith.mulf %31, %32 : vector<2x32xf32>
    %34 = vector.broadcast %4 : vector<1x32xf32> to vector<2x32xf32>
    %35 = arith.addf %33, %34 : vector<2x32xf32>
    %36 = arith.negf %35 : vector<2x32xf32>
    %37 = math.exp %36 : vector<2x32xf32>
    %cst_13 = arith.constant 1.000000e+00 : f32
    %38 = vector.broadcast %cst_13 : f32 to vector<2x32xf32>
    %39 = arith.addf %38, %37 : vector<2x32xf32>
    %40 = arith.divf %38, %39 : vector<2x32xf32>
    %41 = arith.mulf %35, %40 : vector<2x32xf32>
    %c0_14 = arith.constant 0 : index
    %c0_15 = arith.constant 0 : index
    %c0_16 = arith.constant 0 : index
    %c0_17 = arith.constant 0 : index
    %42 = vector.load %arg5[%c0_14, %c0_15, %c0_16, %c0_17] : memref<1x2x2x32xf32, #tpu.memory_space<vmem>>, vector<1x1x2x32xf32>
    %43 = vector.shape_cast %42 : vector<1x1x2x32xf32> to vector<2x32xf32>
    %44 = vector.shape_cast %41 : vector<2x32xf32> to vector<1x1x2x32xf32>
    tpu.vector_store %arg5[%c0_14, %c0_15, %c0_16, %c0_17], %44 {strides = array<i32>} : memref<1x2x2x32xf32, #tpu.memory_space<vmem>>, vector<1x1x2x32xf32>,
    %45 = vector.extract_strided_slice %1 {offsets = [1, 0, 0], sizes = [1, 3, 64], strides = [1, 1, 1]} : vector<3x3x64xf32> to vector<1x3x64xf32>
    %46 = vector.shape_cast %45 : vector<1x3x64xf32> to vector<3x64xf32>
    %47 = vector.extract_strided_slice %1 {offsets = [2, 0, 0], sizes = [1, 3, 64], strides = [1, 1, 1]} : vector<3x3x64xf32> to vector<1x3x64xf32>
    %48 = vector.shape_cast %47 : vector<1x3x64xf32> to vector<3x64xf32>
    %49 = vector.extract_strided_slice %46 {offsets = [0, 0], sizes = [2, 64], strides = [1, 1]} : vector<3x64xf32> to vector<2x64xf32>
    %50 = arith.truncf %49 : vector<2x64xf32> to vector<2x64xbf16>
    %51 = vector.extract_strided_slice %2 {offsets = [0, 0, 0], sizes = [1, 64, 32], strides = [1, 1, 1]} : vector<4x64x32xbf16> to vector<1x64x32xbf16>
    %52 = vector.shape_cast %51 : vector<1x64x32xbf16> to vector<64x32xbf16>
    %cst_18 = arith.constant dense<0.000000e+00> : vector<2x32xf32>
    %53 = tpu.matmul %50, %52, %cst_18 {dimension_numbers = #tpu.dot_dimension_numbers<[1], [0], [0], [1], [0, 0, 1, 1], [], []>} : vector<2x64xbf16>, vector<64x32xbf16>, vector<2x32xf32> -> vector<2x32xf32>
    %54 = vector.extract_strided_slice %46 {offsets = [1, 0], sizes = [2, 64], strides = [1, 1]} : vector<3x64xf32> to vector<2x64xf32>
    %55 = arith.truncf %54 : vector<2x64xf32> to vector<2x64xbf16>
    %56 = vector.extract_strided_slice %2 {offsets = [1, 0, 0], sizes = [1, 64, 32], strides = [1, 1, 1]} : vector<4x64x32xbf16> to vector<1x64x32xbf16>
    %57 = vector.shape_cast %56 : vector<1x64x32xbf16> to vector<64x32xbf16>
    %cst_19 = arith.constant dense<0.000000e+00> : vector<2x32xf32>
    %58 = tpu.matmul %55, %57, %cst_19 {dimension_numbers = #tpu.dot_dimension_numbers<[1], [0], [0], [1], [0, 0, 1, 1], [], []>} : vector<2x64xbf16>, vector<64x32xbf16>, vector<2x32xf32> -> vector<2x32xf32>
    %59 = arith.addf %53, %58 : vector<2x32xf32>
    %60 = vector.extract_strided_slice %48 {offsets = [0, 0], sizes = [2, 64], strides = [1, 1]} : vector<3x64xf32> to vector<2x64xf32>
    %61 = arith.truncf %60 : vector<2x64xf32> to vector<2x64xbf16>
    %62 = vector.extract_strided_slice %2 {offsets = [2, 0, 0], sizes = [1, 64, 32], strides = [1, 1, 1]} : vector<4x64x32xbf16> to vector<1x64x32xbf16>
    %63 = vector.shape_cast %62 : vector<1x64x32xbf16> to vector<64x32xbf16>
    %cst_20 = arith.constant dense<0.000000e+00> : vector<2x32xf32>
    %64 = tpu.matmul %61, %63, %cst_20 {dimension_numbers = #tpu.dot_dimension_numbers<[1], [0], [0], [1], [0, 0, 1, 1], [], []>} : vector<2x64xbf16>, vector<64x32xbf16>, vector<2x32xf32> -> vector<2x32xf32>
    %65 = arith.addf %59, %64 : vector<2x32xf32>
    %66 = vector.extract_strided_slice %48 {offsets = [1, 0], sizes = [2, 64], strides = [1, 1]} : vector<3x64xf32> to vector<2x64xf32>
    %67 = arith.truncf %66 : vector<2x64xf32> to vector<2x64xbf16>
    %68 = vector.extract_strided_slice %2 {offsets = [3, 0, 0], sizes = [1, 64, 32], strides = [1, 1, 1]} : vector<4x64x32xbf16> to vector<1x64x32xbf16>
    %69 = vector.shape_cast %68 : vector<1x64x32xbf16> to vector<64x32xbf16>
    %cst_21 = arith.constant dense<0.000000e+00> : vector<2x32xf32>
    %70 = tpu.matmul %67, %69, %cst_21 {dimension_numbers = #tpu.dot_dimension_numbers<[1], [0], [0], [1], [0, 0, 1, 1], [], []>} : vector<2x64xbf16>, vector<64x32xbf16>, vector<2x32xf32> -> vector<2x32xf32>
    %71 = arith.addf %65, %70 : vector<2x32xf32>
    %72 = vector.broadcast %3 : vector<1x32xf32> to vector<2x32xf32>
    %73 = arith.mulf %71, %72 : vector<2x32xf32>
    %74 = vector.broadcast %4 : vector<1x32xf32> to vector<2x32xf32>
    %75 = arith.addf %73, %74 : vector<2x32xf32>
    %76 = arith.negf %75 : vector<2x32xf32>
    %77 = math.exp %76 : vector<2x32xf32>
    %cst_22 = arith.constant 1.000000e+00 : f32
    %78 = vector.broadcast %cst_22 : f32 to vector<2x32xf32>
    %79 = arith.addf %78, %77 : vector<2x32xf32>
    %80 = arith.divf %78, %79 : vector<2x32xf32>
    %81 = arith.mulf %75, %80 : vector<2x32xf32>
    %c0_23 = arith.constant 0 : index
    %c1 = arith.constant 1 : index
    %c0_24 = arith.constant 0 : index
    %c0_25 = arith.constant 0 : index
    %82 = vector.load %arg5[%c0_23, %c1, %c0_24, %c0_25] : memref<1x2x2x32xf32, #tpu.memory_space<vmem>>, vector<1x1x2x32xf32>
    %83 = vector.shape_cast %82 : vector<1x1x2x32xf32> to vector<2x32xf32>
    %84 = vector.shape_cast %81 : vector<2x32xf32> to vector<1x1x2x32xf32>
    tpu.vector_store %arg5[%c0_23, %c1, %c0_24, %c0_25], %84 {strides = array<i32>} : memref<1x2x2x32xf32, #tpu.memory_space<vmem>>, vector<1x1x2x32xf32>,
    return
  }
  func.func @transform_0(%arg0: i32) -> (i32, i32, i32, i32) {
    %c0_i32 = arith.constant 0 : i32
    %c0_i32_0 = arith.constant 0 : i32
    %c0_i32_1 = arith.constant 0 : i32
    %c0_i32_2 = arith.constant 0 : i32
    return %arg0, %c0_i32, %c0_i32_0, %c0_i32_1 : i32, i32, i32, i32
  }
  func.func @transform_1(%arg0: i32) -> (i32, i32, i32) {
    %c0_i32 = arith.constant 0 : i32
    %c0_i32_0 = arith.constant 0 : i32
    %c0_i32_1 = arith.constant 0 : i32
    %c0_i32_2 = arith.constant 0 : i32
    return %c0_i32, %c0_i32_0, %c0_i32_1 : i32, i32, i32
  }
  func.func @transform_2(%arg0: i32) -> (i32, i32) {
    %c0_i32 = arith.constant 0 : i32
    %c0_i32_0 = arith.constant 0 : i32
    %c0_i32_1 = arith.constant 0 : i32
    return %c0_i32, %c0_i32_0 : i32, i32
  }
  func.func @transform_3(%arg0: i32) -> (i32, i32) {
    %c0_i32 = arith.constant 0 : i32
    %c0_i32_0 = arith.constant 0 : i32
    %c0_i32_1 = arith.constant 0 : i32
    return %c0_i32, %c0_i32_0 : i32, i32
  }
  func.func @transform_4(%arg0: i32) -> (i32, i32, i32, i32) {
    %c0_i32 = arith.constant 0 : i32
    %c0_i32_0 = arith.constant 0 : i32
    %c0_i32_1 = arith.constant 0 : i32
    %c0_i32_2 = arith.constant 0 : i32
    return %arg0, %c0_i32, %c0_i32_0, %c0_i32_1 : i32, i32, i32, i32
  }
}

module attributes {stable_mosaic.version = 11 : i64} {
  func.func @_detect_decode_kernel(%arg0: i32, %arg1: memref<8x32xf32, #tpu.memory_space<vmem>>, %arg2: memref<32x27xbf16, #tpu.memory_space<vmem>>, %arg3: memref<5x27xf32, #tpu.memory_space<vmem>>, %arg4: memref<8x27xf32, #tpu.memory_space<vmem>>, %arg5: memref<8x27xf32, #tpu.memory_space<vmem>>) attributes {dimension_semantics = [#tpu.dimension_semantics<parallel>], iteration_bounds = array<i64: 1>, scalar_prefetch = 0 : i64, scratch_operands = 0 : i64, tpu.core_type = #tpu.core_type<tc>, window_params = [{transform_indices = @transform_0, window_bounds = array<i64: 8, 32>}, {pipeline_mode = #tpu.pipeline_mode<synchronous>, transform_indices = @transform_1, window_bounds = array<i64: 32, 27>}, {pipeline_mode = #tpu.pipeline_mode<synchronous>, transform_indices = @transform_2, window_bounds = array<i64: 5, 27>}, {transform_indices = @transform_3, window_bounds = array<i64: 8, 27>}, {transform_indices = @transform_4, window_bounds = array<i64: 8, 27>}]} {
    %c0 = arith.constant 0 : index
    %c0_0 = arith.constant 0 : index
    %0 = vector.load %arg1[%c0, %c0_0] : memref<8x32xf32, #tpu.memory_space<vmem>>, vector<8x32xf32>
    %1 = arith.truncf %0 : vector<8x32xf32> to vector<8x32xbf16>
    %c0_1 = arith.constant 0 : index
    %c0_2 = arith.constant 0 : index
    %2 = vector.load %arg2[%c0_1, %c0_2] : memref<32x27xbf16, #tpu.memory_space<vmem>>, vector<32x27xbf16>
    %cst = arith.constant dense<0.000000e+00> : vector<8x27xf32>
    %3 = tpu.matmul %1, %2, %cst {dimension_numbers = #tpu.dot_dimension_numbers<[1], [0], [0], [1], [0, 0, 1, 1], [], []>} : vector<8x32xbf16>, vector<32x27xbf16>, vector<8x27xf32> -> vector<8x27xf32>
    %c0_3 = arith.constant 0 : index
    %c0_4 = arith.constant 0 : index
    %4 = vector.load %arg3[%c0_3, %c0_4] : memref<5x27xf32, #tpu.memory_space<vmem>>, vector<1x27xf32>
    %5 = vector.broadcast %4 : vector<1x27xf32> to vector<8x27xf32>
    %6 = arith.addf %3, %5 : vector<8x27xf32>
    %c0_5 = arith.constant 0 : index
    %c0_6 = arith.constant 0 : index
    %7 = vector.load %arg4[%c0_5, %c0_6] : memref<8x27xf32, #tpu.memory_space<vmem>>, vector<8x27xf32>
    tpu.vector_store %arg4[%c0_5, %c0_6], %6 {strides = array<i32>} : memref<8x27xf32, #tpu.memory_space<vmem>>, vector<8x27xf32>,
    %8 = arith.negf %6 : vector<8x27xf32>
    %9 = math.exp %8 : vector<8x27xf32>
    %cst_7 = arith.constant 1.000000e+00 : f32
    %10 = vector.broadcast %cst_7 : f32 to vector<8x27xf32>
    %11 = arith.addf %10, %9 : vector<8x27xf32>
    %12 = arith.divf %10, %11 : vector<8x27xf32>
    %13 = tpu.iota {dimensions = array<i32: 0>} : vector<8x1xi32>
    %c8_i32 = arith.constant 8 : i32
    %14 = arith.muli %arg0, %c8_i32 : i32
    %15 = vector.broadcast %14 : i32 to vector<8x1xi32>
    %16 = arith.addi %13, %15 : vector<8x1xi32>
    %c3_i32 = arith.constant 3 : i32
    %17 = vector.broadcast %c3_i32 : i32 to vector<8x1xi32>
    %18 = arith.andi %16, %17 : vector<8x1xi32>
    %c1_i32 = arith.constant 1 : i32
    %19 = vector.broadcast %c1_i32 : i32 to vector<8x1xi32>
    %20 = arith.andi %18, %19 : vector<8x1xi32>
    %21 = arith.sitofp %20 : vector<8x1xi32> to vector<8x1xf32>
    %c1_i32_8 = arith.constant 1 : i32
    %22 = vector.broadcast %c1_i32_8 : i32 to vector<8x1xi32>
    %23 = arith.shrsi %18, %22 : vector<8x1xi32>
    %24 = arith.sitofp %23 : vector<8x1xi32> to vector<8x1xf32>
    %c1 = arith.constant 1 : index
    %c0_9 = arith.constant 0 : index
    %25 = vector.load %arg3[%c1, %c0_9] : memref<5x27xf32, #tpu.memory_space<vmem>>, vector<1x27xf32>
    %c2 = arith.constant 2 : index
    %c0_10 = arith.constant 0 : index
    %26 = vector.load %arg3[%c2, %c0_10] : memref<5x27xf32, #tpu.memory_space<vmem>>, vector<1x27xf32>
    %c3 = arith.constant 3 : index
    %c0_11 = arith.constant 0 : index
    %27 = vector.load %arg3[%c3, %c0_11] : memref<5x27xf32, #tpu.memory_space<vmem>>, vector<1x27xf32>
    %c4 = arith.constant 4 : index
    %c0_12 = arith.constant 0 : index
    %28 = vector.load %arg3[%c4, %c0_12] : memref<5x27xf32, #tpu.memory_space<vmem>>, vector<1x27xf32>
    %29 = arith.addf %25, %26 : vector<1x27xf32>
    %30 = vector.broadcast %25 : vector<1x27xf32> to vector<8x27xf32>
    %31 = vector.broadcast %21 : vector<8x1xf32> to vector<8x27xf32>
    %32 = arith.mulf %30, %31 : vector<8x27xf32>
    %33 = vector.broadcast %26 : vector<1x27xf32> to vector<8x27xf32>
    %34 = vector.broadcast %24 : vector<8x1xf32> to vector<8x27xf32>
    %35 = arith.mulf %33, %34 : vector<8x27xf32>
    %36 = arith.addf %32, %35 : vector<8x27xf32>
    %cst_13 = arith.constant 5.000000e-01 : f32
    %37 = vector.broadcast %cst_13 : f32 to vector<1x27xf32>
    %38 = arith.mulf %37, %29 : vector<1x27xf32>
    %39 = vector.broadcast %38 : vector<1x27xf32> to vector<8x27xf32>
    %40 = arith.subf %36, %39 : vector<8x27xf32>
    %cst_14 = arith.constant 2.000000e+00 : f32
    %41 = vector.broadcast %cst_14 : f32 to vector<8x27xf32>
    %42 = arith.mulf %12, %41 : vector<8x27xf32>
    %43 = arith.addf %42, %40 : vector<8x27xf32>
    %cst_15 = arith.constant 8.000000e+00 : f32
    %44 = vector.broadcast %cst_15 : f32 to vector<8x27xf32>
    %45 = arith.mulf %43, %44 : vector<8x27xf32>
    %cst_16 = arith.constant 2.000000e+00 : f32
    %46 = vector.broadcast %cst_16 : f32 to vector<8x27xf32>
    %47 = arith.mulf %12, %46 : vector<8x27xf32>
    %48 = arith.mulf %47, %47 : vector<8x27xf32>
    %49 = vector.broadcast %28 : vector<1x27xf32> to vector<8x27xf32>
    %50 = arith.mulf %48, %49 : vector<8x27xf32>
    %cst_17 = arith.constant 5.000000e-01 : f32
    %51 = vector.broadcast %cst_17 : f32 to vector<1x27xf32>
    %52 = arith.cmpf ogt, %29, %51 : vector<1x27xf32>
    %cst_18 = arith.constant 5.000000e-01 : f32
    %53 = vector.broadcast %cst_18 : f32 to vector<1x27xf32>
    %54 = arith.cmpf ogt, %27, %53 : vector<1x27xf32>
    %55 = vector.shape_cast %54 : vector<1x27xi1> to vector<1x27xi1>
    %56 = vector.broadcast %55 : vector<1x27xi1> to vector<8x27xi1>
    %57 = arith.select %56, %50, %12 : vector<8x27xi1>, vector<8x27xf32>
    %58 = vector.shape_cast %52 : vector<1x27xi1> to vector<1x27xi1>
    %59 = vector.broadcast %58 : vector<1x27xi1> to vector<8x27xi1>
    %60 = arith.select %59, %45, %57 : vector<8x27xi1>, vector<8x27xf32>
    %c0_19 = arith.constant 0 : index
    %c0_20 = arith.constant 0 : index
    %61 = vector.load %arg5[%c0_19, %c0_20] : memref<8x27xf32, #tpu.memory_space<vmem>>, vector<8x27xf32>
    tpu.vector_store %arg5[%c0_19, %c0_20], %60 {strides = array<i32>} : memref<8x27xf32, #tpu.memory_space<vmem>>, vector<8x27xf32>,
    return
  }
  func.func @transform_0(%arg0: i32) -> (i32, i32) {
    %c0_i32 = arith.constant 0 : i32
    %c0_i32_0 = arith.constant 0 : i32
    return %arg0, %c0_i32 : i32, i32
  }
  func.func @transform_1(%arg0: i32) -> (i32, i32) {
    %c0_i32 = arith.constant 0 : i32
    %c0_i32_0 = arith.constant 0 : i32
    %c0_i32_1 = arith.constant 0 : i32
    return %c0_i32, %c0_i32_0 : i32, i32
  }
  func.func @transform_2(%arg0: i32) -> (i32, i32) {
    %c0_i32 = arith.constant 0 : i32
    %c0_i32_0 = arith.constant 0 : i32
    %c0_i32_1 = arith.constant 0 : i32
    return %c0_i32, %c0_i32_0 : i32, i32
  }
  func.func @transform_3(%arg0: i32) -> (i32, i32) {
    %c0_i32 = arith.constant 0 : i32
    %c0_i32_0 = arith.constant 0 : i32
    return %arg0, %c0_i32 : i32, i32
  }
  func.func @transform_4(%arg0: i32) -> (i32, i32) {
    %c0_i32 = arith.constant 0 : i32
    %c0_i32_0 = arith.constant 0 : i32
    return %arg0, %c0_i32 : i32, i32
  }
}

module attributes {stable_mosaic.version = 11 : i64} {
  func.func @_detect_decode_kernel(%arg0: i32, %arg1: memref<32x16xf32, #tpu.memory_space<vmem>>, %arg2: memref<16x27xbf16, #tpu.memory_space<vmem>>, %arg3: memref<5x27xf32, #tpu.memory_space<vmem>>, %arg4: memref<32x27xf32, #tpu.memory_space<vmem>>, %arg5: memref<32x27xf32, #tpu.memory_space<vmem>>) attributes {dimension_semantics = [#tpu.dimension_semantics<parallel>], iteration_bounds = array<i64: 1>, scalar_prefetch = 0 : i64, scratch_operands = 0 : i64, tpu.core_type = #tpu.core_type<tc>, window_params = [{transform_indices = @transform_0, window_bounds = array<i64: 32, 16>}, {pipeline_mode = #tpu.pipeline_mode<synchronous>, transform_indices = @transform_1, window_bounds = array<i64: 16, 27>}, {pipeline_mode = #tpu.pipeline_mode<synchronous>, transform_indices = @transform_2, window_bounds = array<i64: 5, 27>}, {transform_indices = @transform_3, window_bounds = array<i64: 32, 27>}, {transform_indices = @transform_4, window_bounds = array<i64: 32, 27>}]} {
    %c0 = arith.constant 0 : index
    %c0_0 = arith.constant 0 : index
    %0 = vector.load %arg1[%c0, %c0_0] : memref<32x16xf32, #tpu.memory_space<vmem>>, vector<32x16xf32>
    %1 = arith.truncf %0 : vector<32x16xf32> to vector<32x16xbf16>
    %c0_1 = arith.constant 0 : index
    %c0_2 = arith.constant 0 : index
    %2 = vector.load %arg2[%c0_1, %c0_2] : memref<16x27xbf16, #tpu.memory_space<vmem>>, vector<16x27xbf16>
    %cst = arith.constant dense<0.000000e+00> : vector<32x27xf32>
    %3 = tpu.matmul %1, %2, %cst {dimension_numbers = #tpu.dot_dimension_numbers<[1], [0], [0], [1], [0, 0, 1, 1], [], []>} : vector<32x16xbf16>, vector<16x27xbf16>, vector<32x27xf32> -> vector<32x27xf32>
    %c0_3 = arith.constant 0 : index
    %c0_4 = arith.constant 0 : index
    %4 = vector.load %arg3[%c0_3, %c0_4] : memref<5x27xf32, #tpu.memory_space<vmem>>, vector<1x27xf32>
    %5 = vector.broadcast %4 : vector<1x27xf32> to vector<32x27xf32>
    %6 = arith.addf %3, %5 : vector<32x27xf32>
    %c0_5 = arith.constant 0 : index
    %c0_6 = arith.constant 0 : index
    %7 = vector.load %arg4[%c0_5, %c0_6] : memref<32x27xf32, #tpu.memory_space<vmem>>, vector<32x27xf32>
    tpu.vector_store %arg4[%c0_5, %c0_6], %6 {strides = array<i32>} : memref<32x27xf32, #tpu.memory_space<vmem>>, vector<32x27xf32>,
    %8 = arith.negf %6 : vector<32x27xf32>
    %9 = math.exp %8 : vector<32x27xf32>
    %cst_7 = arith.constant 1.000000e+00 : f32
    %10 = vector.broadcast %cst_7 : f32 to vector<32x27xf32>
    %11 = arith.addf %10, %9 : vector<32x27xf32>
    %12 = arith.divf %10, %11 : vector<32x27xf32>
    %13 = tpu.iota {dimensions = array<i32: 0>} : vector<32x1xi32>
    %c32_i32 = arith.constant 32 : i32
    %14 = arith.muli %arg0, %c32_i32 : i32
    %15 = vector.broadcast %14 : i32 to vector<32x1xi32>
    %16 = arith.addi %13, %15 : vector<32x1xi32>
    %c15_i32 = arith.constant 15 : i32
    %17 = vector.broadcast %c15_i32 : i32 to vector<32x1xi32>
    %18 = arith.andi %16, %17 : vector<32x1xi32>
    %c3_i32 = arith.constant 3 : i32
    %19 = vector.broadcast %c3_i32 : i32 to vector<32x1xi32>
    %20 = arith.andi %18, %19 : vector<32x1xi32>
    %21 = arith.sitofp %20 : vector<32x1xi32> to vector<32x1xf32>
    %c2_i32 = arith.constant 2 : i32
    %22 = vector.broadcast %c2_i32 : i32 to vector<32x1xi32>
    %23 = arith.shrsi %18, %22 : vector<32x1xi32>
    %24 = arith.sitofp %23 : vector<32x1xi32> to vector<32x1xf32>
    %c1 = arith.constant 1 : index
    %c0_8 = arith.constant 0 : index
    %25 = vector.load %arg3[%c1, %c0_8] : memref<5x27xf32, #tpu.memory_space<vmem>>, vector<1x27xf32>
    %c2 = arith.constant 2 : index
    %c0_9 = arith.constant 0 : index
    %26 = vector.load %arg3[%c2, %c0_9] : memref<5x27xf32, #tpu.memory_space<vmem>>, vector<1x27xf32>
    %c3 = arith.constant 3 : index
    %c0_10 = arith.constant 0 : index
    %27 = vector.load %arg3[%c3, %c0_10] : memref<5x27xf32, #tpu.memory_space<vmem>>, vector<1x27xf32>
    %c4 = arith.constant 4 : index
    %c0_11 = arith.constant 0 : index
    %28 = vector.load %arg3[%c4, %c0_11] : memref<5x27xf32, #tpu.memory_space<vmem>>, vector<1x27xf32>
    %29 = arith.addf %25, %26 : vector<1x27xf32>
    %30 = vector.broadcast %25 : vector<1x27xf32> to vector<32x27xf32>
    %31 = vector.broadcast %21 : vector<32x1xf32> to vector<32x27xf32>
    %32 = arith.mulf %30, %31 : vector<32x27xf32>
    %33 = vector.broadcast %26 : vector<1x27xf32> to vector<32x27xf32>
    %34 = vector.broadcast %24 : vector<32x1xf32> to vector<32x27xf32>
    %35 = arith.mulf %33, %34 : vector<32x27xf32>
    %36 = arith.addf %32, %35 : vector<32x27xf32>
    %cst_12 = arith.constant 5.000000e-01 : f32
    %37 = vector.broadcast %cst_12 : f32 to vector<1x27xf32>
    %38 = arith.mulf %37, %29 : vector<1x27xf32>
    %39 = vector.broadcast %38 : vector<1x27xf32> to vector<32x27xf32>
    %40 = arith.subf %36, %39 : vector<32x27xf32>
    %cst_13 = arith.constant 2.000000e+00 : f32
    %41 = vector.broadcast %cst_13 : f32 to vector<32x27xf32>
    %42 = arith.mulf %12, %41 : vector<32x27xf32>
    %43 = arith.addf %42, %40 : vector<32x27xf32>
    %cst_14 = arith.constant 4.000000e+00 : f32
    %44 = vector.broadcast %cst_14 : f32 to vector<32x27xf32>
    %45 = arith.mulf %43, %44 : vector<32x27xf32>
    %cst_15 = arith.constant 2.000000e+00 : f32
    %46 = vector.broadcast %cst_15 : f32 to vector<32x27xf32>
    %47 = arith.mulf %12, %46 : vector<32x27xf32>
    %48 = arith.mulf %47, %47 : vector<32x27xf32>
    %49 = vector.broadcast %28 : vector<1x27xf32> to vector<32x27xf32>
    %50 = arith.mulf %48, %49 : vector<32x27xf32>
    %cst_16 = arith.constant 5.000000e-01 : f32
    %51 = vector.broadcast %cst_16 : f32 to vector<1x27xf32>
    %52 = arith.cmpf ogt, %29, %51 : vector<1x27xf32>
    %cst_17 = arith.constant 5.000000e-01 : f32
    %53 = vector.broadcast %cst_17 : f32 to vector<1x27xf32>
    %54 = arith.cmpf ogt, %27, %53 : vector<1x27xf32>
    %55 = vector.shape_cast %54 : vector<1x27xi1> to vector<1x27xi1>
    %56 = vector.broadcast %55 : vector<1x27xi1> to vector<32x27xi1>
    %57 = arith.select %56, %50, %12 : vector<32x27xi1>, vector<32x27xf32>
    %58 = vector.shape_cast %52 : vector<1x27xi1> to vector<1x27xi1>
    %59 = vector.broadcast %58 : vector<1x27xi1> to vector<32x27xi1>
    %60 = arith.select %59, %45, %57 : vector<32x27xi1>, vector<32x27xf32>
    %c0_18 = arith.constant 0 : index
    %c0_19 = arith.constant 0 : index
    %61 = vector.load %arg5[%c0_18, %c0_19] : memref<32x27xf32, #tpu.memory_space<vmem>>, vector<32x27xf32>
    tpu.vector_store %arg5[%c0_18, %c0_19], %60 {strides = array<i32>} : memref<32x27xf32, #tpu.memory_space<vmem>>, vector<32x27xf32>,
    return
  }
  func.func @transform_0(%arg0: i32) -> (i32, i32) {
    %c0_i32 = arith.constant 0 : i32
    %c0_i32_0 = arith.constant 0 : i32
    return %arg0, %c0_i32 : i32, i32
  }
  func.func @transform_1(%arg0: i32) -> (i32, i32) {
    %c0_i32 = arith.constant 0 : i32
    %c0_i32_0 = arith.constant 0 : i32
    %c0_i32_1 = arith.constant 0 : i32
    return %c0_i32, %c0_i32_0 : i32, i32
  }
  func.func @transform_2(%arg0: i32) -> (i32, i32) {
    %c0_i32 = arith.constant 0 : i32
    %c0_i32_0 = arith.constant 0 : i32
    %c0_i32_1 = arith.constant 0 : i32
    return %c0_i32, %c0_i32_0 : i32, i32
  }
  func.func @transform_3(%arg0: i32) -> (i32, i32) {
    %c0_i32 = arith.constant 0 : i32
    %c0_i32_0 = arith.constant 0 : i32
    return %arg0, %c0_i32 : i32, i32
  }
  func.func @transform_4(%arg0: i32) -> (i32, i32) {
    %c0_i32 = arith.constant 0 : i32
    %c0_i32_0 = arith.constant 0 : i32
    return %arg0, %c0_i32 : i32, i32
  }
}

module attributes {stable_mosaic.version = 11 : i64} {
  func.func @_detect_decode_kernel(%arg0: i32, %arg1: memref<64x8xf32, #tpu.memory_space<vmem>>, %arg2: memref<8x27xbf16, #tpu.memory_space<vmem>>, %arg3: memref<5x27xf32, #tpu.memory_space<vmem>>, %arg4: memref<64x27xf32, #tpu.memory_space<vmem>>, %arg5: memref<64x27xf32, #tpu.memory_space<vmem>>) attributes {dimension_semantics = [#tpu.dimension_semantics<parallel>], iteration_bounds = array<i64: 2>, scalar_prefetch = 0 : i64, scratch_operands = 0 : i64, tpu.core_type = #tpu.core_type<tc>, window_params = [{transform_indices = @transform_0, window_bounds = array<i64: 64, 8>}, {pipeline_mode = #tpu.pipeline_mode<synchronous>, transform_indices = @transform_1, window_bounds = array<i64: 8, 27>}, {pipeline_mode = #tpu.pipeline_mode<synchronous>, transform_indices = @transform_2, window_bounds = array<i64: 5, 27>}, {transform_indices = @transform_3, window_bounds = array<i64: 64, 27>}, {transform_indices = @transform_4, window_bounds = array<i64: 64, 27>}]} {
    %c0 = arith.constant 0 : index
    %c0_0 = arith.constant 0 : index
    %0 = vector.load %arg1[%c0, %c0_0] : memref<64x8xf32, #tpu.memory_space<vmem>>, vector<64x8xf32>
    %1 = arith.truncf %0 : vector<64x8xf32> to vector<64x8xbf16>
    %c0_1 = arith.constant 0 : index
    %c0_2 = arith.constant 0 : index
    %2 = vector.load %arg2[%c0_1, %c0_2] : memref<8x27xbf16, #tpu.memory_space<vmem>>, vector<8x27xbf16>
    %cst = arith.constant dense<0.000000e+00> : vector<64x27xf32>
    %3 = tpu.matmul %1, %2, %cst {dimension_numbers = #tpu.dot_dimension_numbers<[1], [0], [0], [1], [0, 0, 1, 1], [], []>} : vector<64x8xbf16>, vector<8x27xbf16>, vector<64x27xf32> -> vector<64x27xf32>
    %c0_3 = arith.constant 0 : index
    %c0_4 = arith.constant 0 : index
    %4 = vector.load %arg3[%c0_3, %c0_4] : memref<5x27xf32, #tpu.memory_space<vmem>>, vector<1x27xf32>
    %5 = vector.broadcast %4 : vector<1x27xf32> to vector<64x27xf32>
    %6 = arith.addf %3, %5 : vector<64x27xf32>
    %c0_5 = arith.constant 0 : index
    %c0_6 = arith.constant 0 : index
    %7 = vector.load %arg4[%c0_5, %c0_6] : memref<64x27xf32, #tpu.memory_space<vmem>>, vector<64x27xf32>
    tpu.vector_store %arg4[%c0_5, %c0_6], %6 {strides = array<i32>} : memref<64x27xf32, #tpu.memory_space<vmem>>, vector<64x27xf32>,
    %8 = arith.negf %6 : vector<64x27xf32>
    %9 = math.exp %8 : vector<64x27xf32>
    %cst_7 = arith.constant 1.000000e+00 : f32
    %10 = vector.broadcast %cst_7 : f32 to vector<64x27xf32>
    %11 = arith.addf %10, %9 : vector<64x27xf32>
    %12 = arith.divf %10, %11 : vector<64x27xf32>
    %13 = tpu.iota {dimensions = array<i32: 0>} : vector<64x1xi32>
    %c64_i32 = arith.constant 64 : i32
    %14 = arith.muli %arg0, %c64_i32 : i32
    %15 = vector.broadcast %14 : i32 to vector<64x1xi32>
    %16 = arith.addi %13, %15 : vector<64x1xi32>
    %c63_i32 = arith.constant 63 : i32
    %17 = vector.broadcast %c63_i32 : i32 to vector<64x1xi32>
    %18 = arith.andi %16, %17 : vector<64x1xi32>
    %c7_i32 = arith.constant 7 : i32
    %19 = vector.broadcast %c7_i32 : i32 to vector<64x1xi32>
    %20 = arith.andi %18, %19 : vector<64x1xi32>
    %21 = arith.sitofp %20 : vector<64x1xi32> to vector<64x1xf32>
    %c3_i32 = arith.constant 3 : i32
    %22 = vector.broadcast %c3_i32 : i32 to vector<64x1xi32>
    %23 = arith.shrsi %18, %22 : vector<64x1xi32>
    %24 = arith.sitofp %23 : vector<64x1xi32> to vector<64x1xf32>
    %c1 = arith.constant 1 : index
    %c0_8 = arith.constant 0 : index
    %25 = vector.load %arg3[%c1, %c0_8] : memref<5x27xf32, #tpu.memory_space<vmem>>, vector<1x27xf32>
    %c2 = arith.constant 2 : index
    %c0_9 = arith.constant 0 : index
    %26 = vector.load %arg3[%c2, %c0_9] : memref<5x27xf32, #tpu.memory_space<vmem>>, vector<1x27xf32>
    %c3 = arith.constant 3 : index
    %c0_10 = arith.constant 0 : index
    %27 = vector.load %arg3[%c3, %c0_10] : memref<5x27xf32, #tpu.memory_space<vmem>>, vector<1x27xf32>
    %c4 = arith.constant 4 : index
    %c0_11 = arith.constant 0 : index
    %28 = vector.load %arg3[%c4, %c0_11] : memref<5x27xf32, #tpu.memory_space<vmem>>, vector<1x27xf32>
    %29 = arith.addf %25, %26 : vector<1x27xf32>
    %30 = vector.broadcast %25 : vector<1x27xf32> to vector<64x27xf32>
    %31 = vector.broadcast %21 : vector<64x1xf32> to vector<64x27xf32>
    %32 = arith.mulf %30, %31 : vector<64x27xf32>
    %33 = vector.broadcast %26 : vector<1x27xf32> to vector<64x27xf32>
    %34 = vector.broadcast %24 : vector<64x1xf32> to vector<64x27xf32>
    %35 = arith.mulf %33, %34 : vector<64x27xf32>
    %36 = arith.addf %32, %35 : vector<64x27xf32>
    %cst_12 = arith.constant 5.000000e-01 : f32
    %37 = vector.broadcast %cst_12 : f32 to vector<1x27xf32>
    %38 = arith.mulf %37, %29 : vector<1x27xf32>
    %39 = vector.broadcast %38 : vector<1x27xf32> to vector<64x27xf32>
    %40 = arith.subf %36, %39 : vector<64x27xf32>
    %cst_13 = arith.constant 2.000000e+00 : f32
    %41 = vector.broadcast %cst_13 : f32 to vector<64x27xf32>
    %42 = arith.mulf %12, %41 : vector<64x27xf32>
    %43 = arith.addf %42, %40 : vector<64x27xf32>
    %cst_14 = arith.constant 2.000000e+00 : f32
    %44 = vector.broadcast %cst_14 : f32 to vector<64x27xf32>
    %45 = arith.mulf %43, %44 : vector<64x27xf32>
    %cst_15 = arith.constant 2.000000e+00 : f32
    %46 = vector.broadcast %cst_15 : f32 to vector<64x27xf32>
    %47 = arith.mulf %12, %46 : vector<64x27xf32>
    %48 = arith.mulf %47, %47 : vector<64x27xf32>
    %49 = vector.broadcast %28 : vector<1x27xf32> to vector<64x27xf32>
    %50 = arith.mulf %48, %49 : vector<64x27xf32>
    %cst_16 = arith.constant 5.000000e-01 : f32
    %51 = vector.broadcast %cst_16 : f32 to vector<1x27xf32>
    %52 = arith.cmpf ogt, %29, %51 : vector<1x27xf32>
    %cst_17 = arith.constant 5.000000e-01 : f32
    %53 = vector.broadcast %cst_17 : f32 to vector<1x27xf32>
    %54 = arith.cmpf ogt, %27, %53 : vector<1x27xf32>
    %55 = vector.shape_cast %54 : vector<1x27xi1> to vector<1x27xi1>
    %56 = vector.broadcast %55 : vector<1x27xi1> to vector<64x27xi1>
    %57 = arith.select %56, %50, %12 : vector<64x27xi1>, vector<64x27xf32>
    %58 = vector.shape_cast %52 : vector<1x27xi1> to vector<1x27xi1>
    %59 = vector.broadcast %58 : vector<1x27xi1> to vector<64x27xi1>
    %60 = arith.select %59, %45, %57 : vector<64x27xi1>, vector<64x27xf32>
    %c0_18 = arith.constant 0 : index
    %c0_19 = arith.constant 0 : index
    %61 = vector.load %arg5[%c0_18, %c0_19] : memref<64x27xf32, #tpu.memory_space<vmem>>, vector<64x27xf32>
    tpu.vector_store %arg5[%c0_18, %c0_19], %60 {strides = array<i32>} : memref<64x27xf32, #tpu.memory_space<vmem>>, vector<64x27xf32>,
    return
  }
  func.func @transform_0(%arg0: i32) -> (i32, i32) {
    %c0_i32 = arith.constant 0 : i32
    %c0_i32_0 = arith.constant 0 : i32
    return %arg0, %c0_i32 : i32, i32
  }
  func.func @transform_1(%arg0: i32) -> (i32, i32) {
    %c0_i32 = arith.constant 0 : i32
    %c0_i32_0 = arith.constant 0 : i32
    %c0_i32_1 = arith.constant 0 : i32
    return %c0_i32, %c0_i32_0 : i32, i32
  }
  func.func @transform_2(%arg0: i32) -> (i32, i32) {
    %c0_i32 = arith.constant 0 : i32
    %c0_i32_0 = arith.constant 0 : i32
    %c0_i32_1 = arith.constant 0 : i32
    return %c0_i32, %c0_i32_0 : i32, i32
  }
  func.func @transform_3(%arg0: i32) -> (i32, i32) {
    %c0_i32 = arith.constant 0 : i32
    %c0_i32_0 = arith.constant 0 : i32
    return %arg0, %c0_i32 : i32, i32
  }
  func.func @transform_4(%arg0: i32) -> (i32, i32) {
    %c0_i32 = arith.constant 0 : i32
    %c0_i32_0 = arith.constant 0 : i32
    return %arg0, %c0_i32 : i32, i32
  }
}

</mosaic_0001>

<llo_original>
// kernel: forward_pallas.7
$region0: #{forward_pallas.7}
  #allocation0 [shape = 'u32[]', space=smem, size = 0x4, offset = 0x4, fixed_abs, tag = 'smem constant byte address 0x4 - core index']
  #allocation1 [shape = 'u32[144,128]{1,0:T(1,128)}', space=vmem, size = 0x12000, scoped, tag = 'internal scratch']
  %s0 = inlined_call_operand.vmem [shape: f32[2,5,5,32], index: 0, kind: input, shape index: {}]
  %s1 = inlined_call_operand.vmem [shape: bf16[4,32,16], index: 1, kind: input, shape index: {}]
  %s2 = inlined_call_operand.vmem [shape: f32[1,16], index: 2, kind: input, shape index: {}]
  %s3 = inlined_call_operand.vmem [shape: f32[1,16], index: 3, kind: input, shape index: {}]
  %s4 = inlined_call_operand.vmem [shape: f32[2,4,4,16], index: 4, kind: output, shape index: {}]
  %s5 = sld [smem:[#allocation0]]
  $region49: #{forward_pallas.7} parent=0
    _
  %s7 = ssub.s32 1, %s5
  %s8 = scalar_select 0, %s7, %s5
  loop: start=0, step=1, limit=4
  $region2: #{forward_pallas.7} parent=0 // loop_pre_header
    _
  $region3: #{forward_pallas.7} parent=0 // loop_header
    %s10 = sphi 0, %s14
    %p11 = scmp.ge.s32.totalorder %s10, 4
    %s20 = sphi 0, %s22
    %s23 = sphi 0, %s20
    %s24 = sphi 0, %s23
    %s40 = sphi 0, %s24
    %s44 = sphi 0, %s44
    %s46 = sphi 0, %s44
    %s47 = sphi 0, %s46
    %s61 = sphi 0, %s47
    %s65 = sphi 0, %s65
    %s67 = sphi 0, %s65
    %s68 = sphi 0, %s67
    %s82 = sphi 0, %s68
    %s86 = sphi 0, %s86
    %s88 = sphi 0, %s86
    %s89 = sphi 0, %s88
    %s103 = sphi 0, %s89
    %s109 = sphi 0, %s111
    %s112 = sphi 0, %s109
    %s113 = sphi 0, %s112
    %s129 = sphi 0, %s113
  $region4: #{forward_pallas.7} parent=0 // loop_header_branch
    %13 = sbr.rel (%p11) target = $region8
  $region5: #{forward_pallas.7} parent=0 // loop_body
    %s15 = ssub.s32 %s10, 1
    %s16 = ssub.s32 %s10, 2
    %s17 = sadd.s32 %s10, 1
    %s18 = ssub.s32 %s10, %s17
    %p19 = scmp.eq.s32.totalorder %s18, 0
    %s21 = sadd.s32 %s20, 1
    %s22 = scalar_select %p19, %s20, %s21
    %p25 = pneg %p19
    %p26 = scmp.eq.s32.totalorder %s10, 1
    %p27 = por %p25, %p26
    %p28 = scmp.ne.s32.totalorder %s20, %s23
    %p29 = scmp.eq.s32.totalorder %s10, 0
    %p30 = por %p28, %p29
    %p31 = scmp.ne.s32.totalorder %s20, %s23
    %p32 = scmp.eq.s32.totalorder %s15, 1
    %p33 = por %p31, %p32
    %p34 = scmp.ne.s32.totalorder %s23, %s24
    %p35 = scmp.eq.s32.totalorder %s15, 0
    %p36 = por %p34, %p35
    %p37 = scmp.ne.s32.totalorder %s23, %s24
    %p38 = scmp.eq.s32.totalorder %s16, 1
    %p39 = por %p37, %p38
    %p41 = scmp.ne.s32.totalorder %s24, %s40
    %p42 = scmp.eq.s32.totalorder %s16, 0
    %p43 = por %p41, %p42
    %s45 = sadd.s32 %s44, 1
    %p48 = scmp.eq.s32.totalorder %s10, 1
    %p49 = scmp.ne.s32.totalorder %s44, %s46
    %p50 = scmp.eq.s32.totalorder %s10, 0
    %p51 = por %p49, %p50
    %p52 = scmp.ne.s32.totalorder %s44, %s46
    %p53 = scmp.eq.s32.totalorder %s15, 1
    %p54 = por %p52, %p53
    %p55 = scmp.ne.s32.totalorder %s46, %s47
    %p56 = scmp.eq.s32.totalorder %s15, 0
    %p57 = por %p55, %p56
    %p58 = scmp.ne.s32.totalorder %s46, %s47
    %p59 = scmp.eq.s32.totalorder %s16, 1
    %p60 = por %p58, %p59
    %p62 = scmp.ne.s32.totalorder %s47, %s61
    %p63 = scmp.eq.s32.totalorder %s16, 0
    %p64 = por %p62, %p63
    %s66 = sadd.s32 %s65, 1
    %p69 = scmp.eq.s32.totalorder %s10, 1
    %p70 = scmp.ne.s32.totalorder %s65, %s67
    %p71 = scmp.eq.s32.totalorder %s10, 0
    %p72 = por %p70, %p71
    %p73 = scmp.ne.s32.totalorder %s65, %s67
    %p74 = scmp.eq.s32.totalorder %s15, 1
    %p75 = por %p73, %p74
    %p76 = scmp.ne.s32.totalorder %s67, %s68
    %p77 = scmp.eq.s32.totalorder %s15, 0
    %p78 = por %p76, %p77
    %p79 = scmp.ne.s32.totalorder %s67, %s68
    %p80 = scmp.eq.s32.totalorder %s16, 1
    %p81 = por %p79, %p80
    %p83 = scmp.ne.s32.totalorder %s68, %s82
    %p84 = scmp.eq.s32.totalorder %s16, 0
    %p85 = por %p83, %p84
    %s87 = sadd.s32 %s86, 1
    %p90 = scmp.eq.s32.totalorder %s10, 1
    %p91 = scmp.ne.s32.totalorder %s86, %s88
    %p92 = scmp.eq.s32.totalorder %s10, 0
    %p93 = por %p91, %p92
    %p94 = scmp.ne.s32.totalorder %s86, %s88
    %p95 = scmp.eq.s32.totalorder %s15, 1
    %p96 = por %p94, %p95
    %p97 = scmp.ne.s32.totalorder %s88, %s89
    %p98 = scmp.eq.s32.totalorder %s15, 0
    %p99 = por %p97, %p98
    %p100 = scmp.ne.s32.totalorder %s88, %s89
    %p101 = scmp.eq.s32.totalorder %s16, 1
    %p102 = por %p100, %p101
    %p104 = scmp.ne.s32.totalorder %s89, %s103
    %p105 = scmp.eq.s32.totalorder %s16, 0
    %p106 = por %p104, %p105
    %s107 = ssub.s32 %s10, %s17
    %p108 = scmp.eq.s32.totalorder %s107, 0
    %s110 = sadd.s32 %s109, 1
    %s111 = scalar_select %p108, %s109, %s110
    %p114 = pneg %p108
    %p115 = scmp.eq.s32.totalorder %s10, 1
    %p116 = por %p114, %p115
    %p117 = scmp.ne.s32.totalorder %s109, %s112
    %p118 = scmp.eq.s32.totalorder %s10, 0
    %p119 = por %p117, %p118
    %p120 = scmp.ne.s32.totalorder %s109, %s112
    %p121 = scmp.eq.s32.totalorder %s15, 1
    %p122 = por %p120, %p121
    %p123 = scmp.ne.s32.totalorder %s112, %s113
    %p124 = scmp.eq.s32.totalorder %s15, 0
    %p125 = por %p123, %p124
    %p126 = scmp.ne.s32.totalorder %s112, %s113
    %p127 = scmp.eq.s32.totalorder %s16, 1
    %p128 = por %p126, %p127
    %p130 = scmp.ne.s32.totalorder %s113, %s129
    %p131 = scmp.eq.s32.totalorder %s16, 0
    %p132 = por %p130, %p131
    %p133 = scmp.le.s32.totalorder 1, %s10
    %p134 = scmp.lt.s32.totalorder %s10, 3
    %p135 = pnand %p133, %p134
    %p136 = pneg %p135
    // Predicated region
    $region9: #{forward_pallas.7} parent=5 // pred_check
      _
    $region10: #{forward_pallas.7} parent=5 // pred_check_branch
      %138 = sbr.rel (%p135) target = $region12
    $region11: #{forward_pallas.7} parent=5 // pred_region
      %s139 = ssub.s32 %s10, 1
      // Predicated region
      $region13: #{forward_pallas.7} parent=11 // pred_check
        %p140 = pneg %p57
      $region14: #{forward_pallas.7} parent=11 // pred_check_branch
        %142 = sbr.rel (%p140) target = $region16
      $region15: #{forward_pallas.7} parent=11 // pred_region
        _
      $region16: #{forward_pallas.7} parent=11 // pred_fallthru
        _
      // Predicated region
      $region17: #{forward_pallas.7} parent=11 // pred_check
        %p143 = pneg %p78
      $region18: #{forward_pallas.7} parent=11 // pred_check_branch
        %145 = sbr.rel (%p143) target = $region20
      $region19: #{forward_pallas.7} parent=11 // pred_region
        _
      $region20: #{forward_pallas.7} parent=11 // pred_fallthru
        _
      // Predicated region
      $region21: #{forward_pallas.7} parent=11 // pred_check
        %p146 = pneg %p99
      $region22: #{forward_pallas.7} parent=11 // pred_check_branch
        %148 = sbr.rel (%p146) target = $region24
      $region23: #{forward_pallas.7} parent=11 // pred_region
        _
      $region24: #{forward_pallas.7} parent=11 // pred_fallthru
        _
    $region12: #{forward_pallas.7} parent=5 // pred_fallthru
      _
    %p149 = scmp.lt.s32.totalorder %s10, 2
    // Predicated region
    $region25: #{forward_pallas.7} parent=5 // pred_check
      %p150 = pneg %p149
    $region26: #{forward_pallas.7} parent=5 // pred_check_branch
      %152 = sbr.rel (%p150) target = $region28
    $region27: #{forward_pallas.7} parent=5 // pred_region
      // Predicated region
      $region29: #{forward_pallas.7} parent=27 // pred_check
        %p153 = pneg %p30
      $region30: #{forward_pallas.7} parent=27 // pred_check_branch
        %155 = sbr.rel (%p153) target = $region32
      $region31: #{forward_pallas.7} parent=27 // pred_region
        %p156 = scmp.lt.s32.totalorder %s10, 1
        %s157 = scalar_select %p156, %s10, 1
        %s158 = smul.addr %s157, 5
        %s159 = smul.addr %s158, 8
        %s160 = scalar_lea.vmem %s0, %s159
      $region32: #{forward_pallas.7} parent=27 // pred_fallthru
        _
    $region28: #{forward_pallas.7} parent=5 // pred_fallthru
      _
    %p161 = scmp.le.s32.totalorder 1, %s10
    %p162 = scmp.lt.s32.totalorder %s10, 3
    %p163 = pnand %p161, %p162
    %p164 = pneg %p163
    // Predicated region
    $region33: #{forward_pallas.7} parent=5 // pred_check
      _
    $region34: #{forward_pallas.7} parent=5 // pred_check_branch
      %166 = sbr.rel (%p163) target = $region36
    $region35: #{forward_pallas.7} parent=5 // pred_region
      %s167 = ssub.s32 %s10, 1
      %p168 = scmp.lt.s32.totalorder %s15, 1
      %s169 = scalar_select %p168, %s15, 1
      %s170 = smul.addr %s169, 5
      %s171 = smul.addr %s170, 8
      %s172 = scalar_lea.vmem %s0, %s171
      %p173 = pneg %p36
      %p174 = pneg %p33
      %p175 = pneg %p57
      %p176 = pneg %p54
      %p177 = pneg %p78
      %p178 = pneg %p75
      %p179 = pneg %p99
      %p180 = pneg %p96
      %p181 = pneg %p125
      %p182 = pneg %p122
      %p183 = scmp.lt.s32.totalorder %s15, 1
      %s184 = scalar_select %p183, %s15, 1
      %s185 = smul.addr %s184, 4
      %s186 = smul.addr %s185, 4
      %s187 = scalar_lea.vmem %s4, %s186
      %p188 = scmp.lt.s32.totalorder %s15, 1
      %s189 = scalar_select %p188, %s15, 1
      %s190 = smul.addr %s189, 5
      %s191 = smul.addr %s190, 8
      %s192 = scalar_lea.vmem %s0, %s191
      %p193 = scmp.lt.s32.totalorder %s15, 1
      %s194 = scalar_select %p193, %s15, 1
      %s195 = smul.addr %s194, 4
      %s196 = smul.addr %s195, 4
      %s197 = scalar_lea.vmem %s4, %s196
      %v199 = vld [vmem:[%s192] sm:$0x1f]
      %v200 = vld [vmem:[%s192 + $0x8] sm:$0x1f]
      %v201 = vld [vmem:[%s192 + $0x10] sm:$0x1f]
      %v202 = vld [vmem:[%s192 + $0x18] sm:$0x1f]
      %v203 = vld [vmem:[%s192 + $0x20] sm:$0x1f]
      %v204 = vld [vmem:[%s1] sm:$0xf]
      %v205 = vld [vmem:[%s1 + $0x4] sm:$0xf]
      %v206 = vld [vmem:[%s1 + $0x8] sm:$0xf]
      %v207 = vld [vmem:[%s1 + $0xc] sm:$0xf]
      %v208 = vld [vmem:[%s1 + $0x10] sm:$0xf]
      %v209 = vld [vmem:[%s1 + $0x14] sm:$0xf]
      %v210 = vld [vmem:[%s1 + $0x18] sm:$0xf]
      %v211 = vld [vmem:[%s1 + $0x1c] sm:$0xf]
      %v212 = vld [vmem:[%s1 + $0x20] sm:$0xf]
      %v213 = vld [vmem:[%s1 + $0x24] sm:$0xf]
      %v214 = vld [vmem:[%s1 + $0x28] sm:$0xf]
      %v215 = vld [vmem:[%s1 + $0x2c] sm:$0xf]
      %v216 = vld [vmem:[%s1 + $0x30] sm:$0xf]
      %v217 = vld [vmem:[%s1 + $0x34] sm:$0xf]
      %v218 = vld [vmem:[%s1 + $0x38] sm:$0xf]
      %v219 = vld [vmem:[%s1 + $0x3c] sm:$0xf]
      %v220 = vld [vmem:[%s2] sm:$0x1]
      %v221 = vld [vmem:[%s3] sm:$0x1]
      %v222 = vpack.c.bf16 %v199, %v199
      %v224 = vshrl.u32 %v222, 16
      %v226 = vshll.u32 %v222, 16
      %v228 = vrot.slane %v226, 1
      %v229 = vor.u32 %v224, %v228
      %v234 = vunpack.c.l.b16 %v208
      %v235 = vunpack.c.l.b16 %v209
      %v236 = vunpack.c.l.b16 %v210
      %v237 = vunpack.c.l.b16 %v211
      %v238 = vpack.c.b16 %v235, %v234
      %v239 = vpack.c.b16 %v237, %v236
      %vm242 = vcmask 261120
      %v244 = vsel %vm242, %v229, 0
      %246 = vmatprep.subr.bf16.mxu0 0
      %247 = vmatpush1.bf16.msra.mxu0 %v238
      %248 = vmatprep.subr.bf16.mxu0 0
      %249 = vmatpush1.bf16.msra.mxu0 %v239
      %250 = vmatprep.subr.bf16.mxu0 0
      %251 = vmatpush1.bf16.msra.mxu0 0
      %252 = vmatprep.subr.bf16.mxu0 0
      %253 = vmatpush1.bf16.msra.mxu0 0
      %254 = vmatprep.subr.bf16.mxu0 0
      %255 = vmatpush1.bf16.msra.mxu0 0
      %256 = vmatprep.subr.bf16.mxu0 0
      %257 = vmatpush1.bf16.msra.mxu0 0
      %258 = vmatprep.subr.bf16.mxu0 0
      %259 = vmatpush1.bf16.msra.mxu0 0
      %260 = vmatprep.subr.bf16.mxu0 0
      %261 = vmatpush1.bf16.msra.mxu0 0
      %262 = vmatprep.subr.bf16.mxu0 0
      %263 = vmatpush1.bf16.msra.mxu0 0
      %264 = vmatprep.subr.bf16.mxu0 0
      %265 = vmatpush1.bf16.msra.mxu0 0
      %266 = vmatprep.subr.bf16.mxu0 0
      %267 = vmatpush1.bf16.msra.mxu0 0
      %268 = vmatprep.subr.bf16.mxu0 0
      %269 = vmatpush1.bf16.msra.mxu0 0
      %270 = vmatprep.subr.bf16.mxu0 0
      %271 = vmatpush1.bf16.msra.mxu0 0
      %272 = vmatprep.subr.bf16.mxu0 0
      %273 = vmatpush1.bf16.msra.mxu0 0
      %274 = vmatprep.subr.bf16.mxu0 0
      %275 = vmatpush1.bf16.msra.mxu0 0
      %276 = vmatprep.subr.bf16.mxu0 0
      %277 = vmatpush1.bf16.msra.mxu0 0
      %278 = vmatprep.mubr.bf16.mxu0 0
      %279 = vmatmul.mubr.bf16.gmra.mrb[0].mxu0 %v244
      %v280 = vpop.f32.mrb[0].mxu0
      %v281 = vadd.f32 0.0, %v280
      %v282 = vpop.f32.mrb[0].mxu0
      %v283 = vpop.f32.mrb[0].mxu0
      %v284 = vpop.f32.mrb[0].mxu0
      %285 = vdwg.mxu0
      %v290 = vunpack.c.l.b16 %v204
      %v291 = vunpack.c.l.b16 %v205
      %v292 = vunpack.c.l.b16 %v206
      %v293 = vunpack.c.l.b16 %v207
      %v294 = vpack.c.b16 %v291, %v290
      %v295 = vpack.c.b16 %v293, %v292
      %v298 = vsel %vm242, %v222, 0
      %300 = vmatprep.subr.bf16.mxu0 0
      %301 = vmatpush1.bf16.msra.mxu0 %v294
      %302 = vmatprep.subr.bf16.mxu0 0
      %303 = vmatpush1.bf16.msra.mxu0 %v295
      %304 = vmatprep.subr.bf16.mxu0 0
      %305 = vmatpush1.bf16.msra.mxu0 0
      %306 = vmatprep.subr.bf16.mxu0 0
      %307 = vmatpush1.bf16.msra.mxu0 0
      %308 = vmatprep.subr.bf16.mxu0 0
      %309 = vmatpush1.bf16.msra.mxu0 0
      %310 = vmatprep.subr.bf16.mxu0 0
      %311 = vmatpush1.bf16.msra.mxu0 0
      %312 = vmatprep.subr.bf16.mxu0 0
      %313 = vmatpush1.bf16.msra.mxu0 0
      %314 = vmatprep.subr.bf16.mxu0 0
      %315 = vmatpush1.bf16.msra.mxu0 0
      %316 = vmatprep.subr.bf16.mxu0 0
      %317 = vmatpush1.bf16.msra.mxu0 0
      %318 = vmatprep.subr.bf16.mxu0 0
      %319 = vmatpush1.bf16.msra.mxu0 0
      %320 = vmatprep.subr.bf16.mxu0 0
      %321 = vmatpush1.bf16.msra.mxu0 0
      %322 = vmatprep.subr.bf16.mxu0 0
      %323 = vmatpush1.bf16.msra.mxu0 0
      %324 = vmatprep.subr.bf16.mxu0 0
      %325 = vmatpush1.bf16.msra.mxu0 0
      %326 = vmatprep.subr.bf16.mxu0 0
      %327 = vmatpush1.bf16.msra.mxu0 0
      %328 = vmatprep.subr.bf16.mxu0 0
      %329 = vmatpush1.bf16.msra.mxu0 0
      %330 = vmatprep.subr.bf16.mxu0 0
      %331 = vmatpush1.bf16.msra.mxu0 0
      %332 = vmatprep.mubr.bf16.mxu0 0
      %333 = vmatmul.mubr.bf16.gmra.mrb[0].mxu0 %v298
      %v334 = vpop.f32.mrb[0].mxu0
      %v335 = vadd.f32 %v281, %v334
      %v336 = vpop.f32.mrb[0].mxu0
      %v337 = vpop.f32.mrb[0].mxu0
      %v338 = vpop.f32.mrb[0].mxu0
      %339 = vdwg.mxu0
      %v340 = vpack.c.bf16 %v200, %v200
      %v345 = vunpack.c.l.b16 %v212
      %v346 = vunpack.c.l.b16 %v213
      %v347 = vunpack.c.l.b16 %v214
      %v348 = vunpack.c.l.b16 %v215
      %v349 = vpack.c.b16 %v346, %v345
      %v350 = vpack.c.b16 %v348, %v347
      %v354 = vsel %vm242, %v340, 0
      %356 = vmatprep.subr.bf16.mxu0 0
      %357 = vmatpush1.bf16.msra.mxu0 %v349
      %358 = vmatprep.subr.bf16.mxu0 0
      %359 = vmatpush1.bf16.msra.mxu0 %v350
      %360 = vmatprep.subr.bf16.mxu0 0
      %361 = vmatpush1.bf16.msra.mxu0 0
      %362 = vmatprep.subr.bf16.mxu0 0
      %363 = vmatpush1.bf16.msra.mxu0 0
      %364 = vmatprep.subr.bf16.mxu0 0
      %365 = vmatpush1.bf16.msra.mxu0 0
      %366 = vmatprep.subr.bf16.mxu0 0
      %367 = vmatpush1.bf16.msra.mxu0 0
      %368 = vmatprep.subr.bf16.mxu0 0
      %369 = vmatpush1.bf16.msra.mxu0 0
      %370 = vmatprep.subr.bf16.mxu0 0
      %371 = vmatpush1.bf16.msra.mxu0 0
      %372 = vmatprep.subr.bf16.mxu0 0
      %373 = vmatpush1.bf16.msra.mxu0 0
      %374 = vmatprep.subr.bf16.mxu0 0
      %375 = vmatpush1.bf16.msra.mxu0 0
      %376 = vmatprep.subr.bf16.mxu0 0
      %377 = vmatpush1.bf16.msra.mxu0 0
      %378 = vmatprep.subr.bf16.mxu0 0
      %379 = vmatpush1.bf16.msra.mxu0 0
      %380 = vmatprep.subr.bf16.mxu0 0
      %381 = vmatpush1.bf16.msra.mxu0 0
      %382 = vmatprep.subr.bf16.mxu0 0
      %383 = vmatpush1.bf16.msra.mxu0 0
      %384 = vmatprep.subr.bf16.mxu0 0
      %385 = vmatpush1.bf16.msra.mxu0 0
      %386 = vmatprep.subr.bf16.mxu0 0
      %387 = vmatpush1.bf16.msra.mxu0 0
      %388 = vmatprep.mubr.bf16.mxu0 0
      %389 = vmatmul.mubr.bf16.gmra.mrb[0].mxu0 %v354
      %v390 = vpop.f32.mrb[0].mxu0
      %v391 = vadd.f32 0.0, %v390
      %v392 = vpop.f32.mrb[0].mxu0
      %v393 = vpop.f32.mrb[0].mxu0
      %v394 = vpop.f32.mrb[0].mxu0
      %395 = vdwg.mxu0
      %v396 = vadd.f32 %v335, %v391
      %v397 = vshrl.u32 %v340, 16
      %v399 = vshll.u32 %v340, 16
      %v401 = vrot.slane %v399, 1
      %v402 = vor.u32 %v397, %v401
      %v407 = vunpack.c.l.b16 %v216
      %v408 = vunpack.c.l.b16 %v217
      %v409 = vunpack.c.l.b16 %v218
      %v410 = vunpack.c.l.b16 %v219
      %v411 = vpack.c.b16 %v408, %v407
      %v412 = vpack.c.b16 %v410, %v409
      %v416 = vsel %vm242, %v402, 0
      %418 = vmatprep.subr.bf16.mxu0 0
      %419 = vmatpush1.bf16.msra.mxu0 %v411
      %420 = vmatprep.subr.bf16.mxu0 0
      %421 = vmatpush1.bf16.msra.mxu0 %v412
      %422 = vmatprep.subr.bf16.mxu0 0
      %423 = vmatpush1.bf16.msra.mxu0 0
      %424 = vmatprep.subr.bf16.mxu0 0
      %425 = vmatpush1.bf16.msra.mxu0 0
      %426 = vmatprep.subr.bf16.mxu0 0
      %427 = vmatpush1.bf16.msra.mxu0 0
      %428 = vmatprep.subr.bf16.mxu0 0
      %429 = vmatpush1.bf16.msra.mxu0 0
      %430 = vmatprep.subr.bf16.mxu0 0
      %431 = vmatpush1.bf16.msra.mxu0 0
      %432 = vmatprep.subr.bf16.mxu0 0
      %433 = vmatpush1.bf16.msra.mxu0 0
      %434 = vmatprep.subr.bf16.mxu0 0
      %435 = vmatpush1.bf16.msra.mxu0 0
      %436 = vmatprep.subr.bf16.mxu0 0
      %437 = vmatpush1.bf16.msra.mxu0 0
      %438 = vmatprep.subr.bf16.mxu0 0
      %439 = vmatpush1.bf16.msra.mxu0 0
      %440 = vmatprep.subr.bf16.mxu0 0
      %441 = vmatpush1.bf16.msra.mxu0 0
      %442 = vmatprep.subr.bf16.mxu0 0
      %443 = vmatpush1.bf16.msra.mxu0 0
      %444 = vmatprep.subr.bf16.mxu0 0
      %445 = vmatpush1.bf16.msra.mxu0 0
      %446 = vmatprep.subr.bf16.mxu0 0
      %447 = vmatpush1.bf16.msra.mxu0 0
      %448 = vmatprep.subr.bf16.mxu0 0
      %449 = vmatpush1.bf16.msra.mxu0 0
      %450 = vmatprep.mubr.bf16.mxu0 0
      %451 = vmatmul.mubr.bf16.gmra.mrb[0].mxu0 %v416
      %v452 = vpop.f32.mrb[0].mxu0
      %v453 = vadd.f32 0.0, %v452
      %v454 = vpop.f32.mrb[0].mxu0
      %v455 = vpop.f32.mrb[0].mxu0
      %v456 = vpop.f32.mrb[0].mxu0
      %457 = vdwg.mxu0
      %v458 = vadd.f32 %v396, %v453
      %v460 = vlaneseq
      %v461 = vshrl.u32 %v460, 7
      %v462 = vsub.s32 0, %v461
      %v463 = vrot.slane %v220, %v462
      %v465 = vmul.f32 %v458, %v463
      %v467 = vlaneseq
      %v468 = vshrl.u32 %v467, 7
      %v469 = vsub.s32 0, %v468
      %v470 = vrot.slane %v221, %v469
      %v472 = vadd.f32 %v465, %v470
      %v473 = vxor.u32 %v472, 2147483648
      %v474 = vmul.f32 %v473, 1.442695
      %v475 = vpow.pop %v474
      %v476 = vadd.f32 %v475, 1.0
      %v477 = vrcp.pop %v476
      %v478 = vmul.f32 1.0, %v477
      %v479 = vmul.f32 %v472, %v478
      %vm480 = vcmask 125952
      %481 = vst.msk [vmem:[%s197] sm:$0xf] %vm480, %v479
      %482 = vmatprep.subr.bf16.mxu0 0
      %483 = vmatpush1.bf16.msra.mxu0 %v238
      %484 = vmatprep.subr.bf16.mxu0 0
      %485 = vmatpush1.bf16.msra.mxu0 %v239
      %486 = vmatprep.subr.bf16.mxu0 0
      %487 = vmatpush1.bf16.msra.mxu0 0
      %488 = vmatprep.subr.bf16.mxu0 0
      %489 = vmatpush1.bf16.msra.mxu0 0
      %490 = vmatprep.subr.bf16.mxu0 0
      %491 = vmatpush1.bf16.msra.mxu0 0
      %492 = vmatprep.subr.bf16.mxu0 0
      %493 = vmatpush1.bf16.msra.mxu0 0
      %494 = vmatprep.subr.bf16.mxu0 0
      %495 = vmatpush1.bf16.msra.mxu0 0
      %496 = vmatprep.subr.bf16.mxu0 0
      %497 = vmatpush1.bf16.msra.mxu0 0
      %498 = vmatprep.subr.bf16.mxu0 0
      %499 = vmatpush1.bf16.msra.mxu0 0
      %500 = vmatprep.subr.bf16.mxu0 0
      %501 = vmatpush1.bf16.msra.mxu0 0
      %502 = vmatprep.subr.bf16.mxu0 0
      %503 = vmatpush1.bf16.msra.mxu0 0
      %504 = vmatprep.subr.bf16.mxu0 0
      %505 = vmatpush1.bf16.msra.mxu0 0
      %506 = vmatprep.subr.bf16.mxu0 0
      %507 = vmatpush1.bf16.msra.mxu0 0
      %508 = vmatprep.subr.bf16.mxu0 0
      %509 = vmatpush1.bf16.msra.mxu0 0
      %510 = vmatprep.subr.bf16.mxu0 0
      %511 = vmatpush1.bf16.msra.mxu0 0
      %512 = vmatprep.subr.bf16.mxu0 0
      %513 = vmatpush1.bf16.msra.mxu0 0
      %514 = vmatprep.mubr.bf16.mxu0 0
      %515 = vmatmul.mubr.bf16.gmra.mrb[0].mxu0 %v416
      %v516 = vpop.f32.mrb[0].mxu0
      %v517 = vadd.f32 0.0, %v516
      %v518 = vpop.f32.mrb[0].mxu0
      %v519 = vpop.f32.mrb[0].mxu0
      %v520 = vpop.f32.mrb[0].mxu0
      %521 = vdwg.mxu0
      %522 = vmatprep.subr.bf16.mxu0 0
      %523 = vmatpush1.bf16.msra.mxu0 %v294
      %524 = vmatprep.subr.bf16.mxu0 0
      %525 = vmatpush1.bf16.msra.mxu0 %v295
      %526 = vmatprep.subr.bf16.mxu0 0
      %527 = vmatpush1.bf16.msra.mxu0 0
      %528 = vmatprep.subr.bf16.mxu0 0
      %529 = vmatpush1.bf16.msra.mxu0 0
      %530 = vmatprep.subr.bf16.mxu0 0
      %531 = vmatpush1.bf16.msra.mxu0 0
      %532 = vmatprep.subr.bf16.mxu0 0
      %533 = vmatpush1.bf16.msra.mxu0 0
      %534 = vmatprep.subr.bf16.mxu0 0
      %535 = vmatpush1.bf16.msra.mxu0 0
      %536 = vmatprep.subr.bf16.mxu0 0
      %537 = vmatpush1.bf16.msra.mxu0 0
      %538 = vmatprep.subr.bf16.mxu0 0
      %539 = vmatpush1.bf16.msra.mxu0 0
      %540 = vmatprep.subr.bf16.mxu0 0
      %541 = vmatpush1.bf16.msra.mxu0 0
      %542 = vmatprep.subr.bf16.mxu0 0
      %543 = vmatpush1.bf16.msra.mxu0 0
      %544 = vmatprep.subr.bf16.mxu0 0
      %545 = vmatpush1.bf16.msra.mxu0 0
      %546 = vmatprep.subr.bf16.mxu0 0
      %547 = vmatpush1.bf16.msra.mxu0 0
      %548 = vmatprep.subr.bf16.mxu0 0
      %549 = vmatpush1.bf16.msra.mxu0 0
      %550 = vmatprep.subr.bf16.mxu0 0
      %551 = vmatpush1.bf16.msra.mxu0 0
      %552 = vmatprep.subr.bf16.mxu0 0
      %553 = vmatpush1.bf16.msra.mxu0 0
      %554 = vmatprep.mubr.bf16.mxu0 0
      %555 = vmatmul.mubr.bf16.gmra.mrb[0].mxu0 %v354
      %v556 = vpop.f32.mrb[0].mxu0
      %v557 = vadd.f32 %v517, %v556
      %v558 = vpop.f32.mrb[0].mxu0
      %v559 = vpop.f32.mrb[0].mxu0
      %v560 = vpop.f32.mrb[0].mxu0
      %561 = vdwg.mxu0
      %v562 = vpack.c.bf16 %v201, %v201
      %v564 = vsel %vm242, %v562, 0
      %566 = vmatprep.subr.bf16.mxu0 0
      %567 = vmatpush1.bf16.msra.mxu0 %v349
      %568 = vmatprep.subr.bf16.mxu0 0
      %569 = vmatpush1.bf16.msra.mxu0 %v350
      %570 = vmatprep.subr.bf16.mxu0 0
      %571 = vmatpush1.bf16.msra.mxu0 0
      %572 = vmatprep.subr.bf16.mxu0 0
      %573 = vmatpush1.bf16.msra.mxu0 0
      %574 = vmatprep.subr.bf16.mxu0 0
      %575 = vmatpush1.bf16.msra.mxu0 0
      %576 = vmatprep.subr.bf16.mxu0 0
      %577 = vmatpush1.bf16.msra.mxu0 0
      %578 = vmatprep.subr.bf16.mxu0 0
      %579 = vmatpush1.bf16.msra.mxu0 0
      %580 = vmatprep.subr.bf16.mxu0 0
      %581 = vmatpush1.bf16.msra.mxu0 0
      %582 = vmatprep.subr.bf16.mxu0 0
      %583 = vmatpush1.bf16.msra.mxu0 0
      %584 = vmatprep.subr.bf16.mxu0 0
      %585 = vmatpush1.bf16.msra.mxu0 0
      %586 = vmatprep.subr.bf16.mxu0 0
      %587 = vmatpush1.bf16.msra.mxu0 0
      %588 = vmatprep.subr.bf16.mxu0 0
      %589 = vmatpush1.bf16.msra.mxu0 0
      %590 = vmatprep.subr.bf16.mxu0 0
      %591 = vmatpush1.bf16.msra.mxu0 0
      %592 = vmatprep.subr.bf16.mxu0 0
      %593 = vmatpush1.bf16.msra.mxu0 0
      %594 = vmatprep.subr.bf16.mxu0 0
      %595 = vmatpush1.bf16.msra.mxu0 0
      %596 = vmatprep.subr.bf16.mxu0 0
      %597 = vmatpush1.bf16.msra.mxu0 0
      %598 = vmatprep.mubr.bf16.mxu0 0
      %599 = vmatmul.mubr.bf16.gmra.mrb[0].mxu0 %v564
      %v600 = vpop.f32.mrb[0].mxu0
      %v601 = vadd.f32 0.0, %v600
      %v602 = vpop.f32.mrb[0].mxu0
      %v603 = vpop.f32.mrb[0].mxu0
      %v604 = vpop.f32.mrb[0].mxu0
      %605 = vdwg.mxu0
      %v606 = vadd.f32 %v557, %v601
      %v607 = vshrl.u32 %v562, 16
      %v609 = vshll.u32 %v562, 16
      %v611 = vrot.slane %v609, 1
      %v612 = vor.u32 %v607, %v611
      %v614 = vsel %vm242, %v612, 0
      %616 = vmatprep.subr.bf16.mxu0 0
      %617 = vmatpush1.bf16.msra.mxu0 %v411
      %618 = vmatprep.subr.bf16.mxu0 0
      %619 = vmatpush1.bf16.msra.mxu0 %v412
      %620 = vmatprep.subr.bf16.mxu0 0
      %621 = vmatpush1.bf16.msra.mxu0 0
      %622 = vmatprep.subr.bf16.mxu0 0
      %623 = vmatpush1.bf16.msra.mxu0 0
      %624 = vmatprep.subr.bf16.mxu0 0
      %625 = vmatpush1.bf16.msra.mxu0 0
      %626 = vmatprep.subr.bf16.mxu0 0
      %627 = vmatpush1.bf16.msra.mxu0 0
      %628 = vmatprep.subr.bf16.mxu0 0
      %629 = vmatpush1.bf16.msra.mxu0 0
      %630 = vmatprep.subr.bf16.mxu0 0
      %631 = vmatpush1.bf16.msra.mxu0 0
      %632 = vmatprep.subr.bf16.mxu0 0
      %633 = vmatpush1.bf16.msra.mxu0 0
      %634 = vmatprep.subr.bf16.mxu0 0
      %635 = vmatpush1.bf16.msra.mxu0 0
      %636 = vmatprep.subr.bf16.mxu0 0
      %637 = vmatpush1.bf16.msra.mxu0 0
      %638 = vmatprep.subr.bf16.mxu0 0
      %639 = vmatpush1.bf16.msra.mxu0 0
      %640 = vmatprep.subr.bf16.mxu0 0
      %641 = vmatpush1.bf16.msra.mxu0 0
      %642 = vmatprep.subr.bf16.mxu0 0
      %643 = vmatpush1.bf16.msra.mxu0 0
      %644 = vmatprep.subr.bf16.mxu0 0
      %645 = vmatpush1.bf16.msra.mxu0 0
      %646 = vmatprep.subr.bf16.mxu0 0
      %647 = vmatpush1.bf16.msra.mxu0 0
      %648 = vmatprep.mubr.bf16.mxu0 0
      %649 = vmatmul.mubr.bf16.gmra.mrb[0].mxu0 %v614
      %v650 = vpop.f32.mrb[0].mxu0
      %v651 = vadd.f32 0.0, %v650
      %v652 = vpop.f32.mrb[0].mxu0
      %v653 = vpop.f32.mrb[0].mxu0
      %v654 = vpop.f32.mrb[0].mxu0
      %655 = vdwg.mxu0
      %v656 = vadd.f32 %v606, %v651
      %v657 = vmul.f32 %v656, %v463
      %v658 = vadd.f32 %v657, %v470
      %v659 = vxor.u32 %v658, 2147483648
      %v660 = vmul.f32 %v659, 1.442695
      %v661 = vpow.pop %v660
      %v662 = vadd.f32 %v661, 1.0
      %v663 = vrcp.pop %v662
      %v664 = vmul.f32 1.0, %v663
      %v665 = vmul.f32 %v658, %v664
      %s666 = scalar_lea.vmem %s197, 4
      %667 = vst.msk [vmem:[%s666] sm:$0xf] %vm480, %v665
      %668 = vmatprep.subr.bf16.mxu0 0
      %669 = vmatpush1.bf16.msra.mxu0 %v238
      %670 = vmatprep.subr.bf16.mxu0 0
      %671 = vmatpush1.bf16.msra.mxu0 %v239
      %672 = vmatprep.subr.bf16.mxu0 0
      %673 = vmatpush1.bf16.msra.mxu0 0
      %674 = vmatprep.subr.bf16.mxu0 0
      %675 = vmatpush1.bf16.msra.mxu0 0
      %676 = vmatprep.subr.bf16.mxu0 0
      %677 = vmatpush1.bf16.msra.mxu0 0
      %678 = vmatprep.subr.bf16.mxu0 0
      %679 = vmatpush1.bf16.msra.mxu0 0
      %680 = vmatprep.subr.bf16.mxu0 0
      %681 = vmatpush1.bf16.msra.mxu0 0
      %682 = vmatprep.subr.bf16.mxu0 0
      %683 = vmatpush1.bf16.msra.mxu0 0
      %684 = vmatprep.subr.bf16.mxu0 0
      %685 = vmatpush1.bf16.msra.mxu0 0
      %686 = vmatprep.subr.bf16.mxu0 0
      %687 = vmatpush1.bf16.msra.mxu0 0
      %688 = vmatprep.subr.bf16.mxu0 0
      %689 = vmatpush1.bf16.msra.mxu0 0
      %690 = vmatprep.subr.bf16.mxu0 0
      %691 = vmatpush1.bf16.msra.mxu0 0
      %692 = vmatprep.subr.bf16.mxu0 0
      %693 = vmatpush1.bf16.msra.mxu0 0
      %694 = vmatprep.subr.bf16.mxu0 0
      %695 = vmatpush1.bf16.msra.mxu0 0
      %696 = vmatprep.subr.bf16.mxu0 0
      %697 = vmatpush1.bf16.msra.mxu0 0
      %698 = vmatprep.subr.bf16.mxu0 0
      %699 = vmatpush1.bf16.msra.mxu0 0
      %700 = vmatprep.mubr.bf16.mxu0 0
      %701 = vmatmul.mubr.bf16.gmra.mrb[0].mxu0 %v614
      %v702 = vpop.f32.mrb[0].mxu0
      %v703 = vadd.f32 0.0, %v702
      %v704 = vpop.f32.mrb[0].mxu0
      %v705 = vpop.f32.mrb[0].mxu0
      %v706 = vpop.f32.mrb[0].mxu0
      %707 = vdwg.mxu0
      %708 = vmatprep.subr.bf16.mxu0 0
      %709 = vmatpush1.bf16.msra.mxu0 %v294
      %710 = vmatprep.subr.bf16.mxu0 0
      %711 = vmatpush1.bf16.msra.mxu0 %v295
      %712 = vmatprep.subr.bf16.mxu0 0
      %713 = vmatpush1.bf16.msra.mxu0 0
      %714 = vmatprep.subr.bf16.mxu0 0
      %715 = vmatpush1.bf16.msra.mxu0 0
      %716 = vmatprep.subr.bf16.mxu0 0
      %717 = vmatpush1.bf16.msra.mxu0 0
      %718 = vmatprep.subr.bf16.mxu0 0
      %719 = vmatpush1.bf16.msra.mxu0 0
      %720 = vmatprep.subr.bf16.mxu0 0
      %721 = vmatpush1.bf16.msra.mxu0 0
      %722 = vmatprep.subr.bf16.mxu0 0
      %723 = vmatpush1.bf16.msra.mxu0 0
      %724 = vmatprep.subr.bf16.mxu0 0
      %725 = vmatpush1.bf16.msra.mxu0 0
      %726 = vmatprep.subr.bf16.mxu0 0
      %727 = vmatpush1.bf16.msra.mxu0 0
      %728 = vmatprep.subr.bf16.mxu0 0
      %729 = vmatpush1.bf16.msra.mxu0 0
      %730 = vmatprep.subr.bf16.mxu0 0
      %731 = vmatpush1.bf16.msra.mxu0 0
      %732 = vmatprep.subr.bf16.mxu0 0
      %733 = vmatpush1.bf16.msra.mxu0 0
      %734 = vmatprep.subr.bf16.mxu0 0
      %735 = vmatpush1.bf16.msra.mxu0 0
      %736 = vmatprep.subr.bf16.mxu0 0
      %737 = vmatpush1.bf16.msra.mxu0 0
      %738 = vmatprep.subr.bf16.mxu0 0
      %739 = vmatpush1.bf16.msra.mxu0 0
      %740 = vmatprep.mubr.bf16.mxu0 0
      %741 = vmatmul.mubr.bf16.gmra.mrb[0].mxu0 %v564
      %v742 = vpop.f32.mrb[0].mxu0
      %v743 = vadd.f32 %v703, %v742
      %v744 = vpop.f32.mrb[0].mxu0
      %v745 = vpop.f32.mrb[0].mxu0
      %v746 = vpop.f32.mrb[0].mxu0
      %747 = vdwg.mxu0
      %v748 = vpack.c.bf16 %v202, %v202
      %v750 = vsel %vm242, %v748, 0
      %752 = vmatprep.subr.bf16.mxu0 0
      %753 = vmatpush1.bf16.msra.mxu0 %v349
      %754 = vmatprep.subr.bf16.mxu0 0
      %755 = vmatpush1.bf16.msra.mxu0 %v350
      %756 = vmatprep.subr.bf16.mxu0 0
      %757 = vmatpush1.bf16.msra.mxu0 0
      %758 = vmatprep.subr.bf16.mxu0 0
      %759 = vmatpush1.bf16.msra.mxu0 0
      %760 = vmatprep.subr.bf16.mxu0 0
      %761 = vmatpush1.bf16.msra.mxu0 0
      %762 = vmatprep.subr.bf16.mxu0 0
      %763 = vmatpush1.bf16.msra.mxu0 0
      %764 = vmatprep.subr.bf16.mxu0 0
      %765 = vmatpush1.bf16.msra.mxu0 0
      %766 = vmatprep.subr.bf16.mxu0 0
      %767 = vmatpush1.bf16.msra.mxu0 0
      %768 = vmatprep.subr.bf16.mxu0 0
      %769 = vmatpush1.bf16.msra.mxu0 0
      %770 = vmatprep.subr.bf16.mxu0 0
      %771 = vmatpush1.bf16.msra.mxu0 0
      %772 = vmatprep.subr.bf16.mxu0 0
      %773 = vmatpush1.bf16.msra.mxu0 0
      %774 = vmatprep.subr.bf16.mxu0 0
      %775 = vmatpush1.bf16.msra.mxu0 0
      %776 = vmatprep.subr.bf16.mxu0 0
      %777 = vmatpush1.bf16.msra.mxu0 0
      %778 = vmatprep.subr.bf16.mxu0 0
      %779 = vmatpush1.bf16.msra.mxu0 0
      %780 = vmatprep.subr.bf16.mxu0 0
      %781 = vmatpush1.bf16.msra.mxu0 0
      %782 = vmatprep.subr.bf16.mxu0 0
      %783 = vmatpush1.bf16.msra.mxu0 0
      %784 = vmatprep.mubr.bf16.mxu0 0
      %785 = vmatmul.mubr.bf16.gmra.mrb[0].mxu0 %v750
      %v786 = vpop.f32.mrb[0].mxu0
      %v787 = vadd.f32 0.0, %v786
      %v788 = vpop.f32.mrb[0].mxu0
      %v789 = vpop.f32.mrb[0].mxu0
      %v790 = vpop.f32.mrb[0].mxu0
      %791 = vdwg.mxu0
      %v792 = vadd.f32 %v743, %v787
      %v793 = vshrl.u32 %v748, 16
      %v795 = vshll.u32 %v748, 16
      %v797 = vrot.slane %v795, 1
      %v798 = vor.u32 %v793, %v797
      %v800 = vsel %vm242, %v798, 0
      %802 = vmatprep.subr.bf16.mxu0 0
      %803 = vmatpush1.bf16.msra.mxu0 %v411
      %804 = vmatprep.subr.bf16.mxu0 0
      %805 = vmatpush1.bf16.msra.mxu0 %v412
      %806 = vmatprep.subr.bf16.mxu0 0
      %807 = vmatpush1.bf16.msra.mxu0 0
      %808 = vmatprep.subr.bf16.mxu0 0
      %809 = vmatpush1.bf16.msra.mxu0 0
      %810 = vmatprep.subr.bf16.mxu0 0
      %811 = vmatpush1.bf16.msra.mxu0 0
      %812 = vmatprep.subr.bf16.mxu0 0
      %813 = vmatpush1.bf16.msra.mxu0 0
      %814 = vmatprep.subr.bf16.mxu0 0
      %815 = vmatpush1.bf16.msra.mxu0 0
      %816 = vmatprep.subr.bf16.mxu0 0
      %817 = vmatpush1.bf16.msra.mxu0 0
      %818 = vmatprep.subr.bf16.mxu0 0
      %819 = vmatpush1.bf16.msra.mxu0 0
      %820 = vmatprep.subr.bf16.mxu0 0
      %821 = vmatpush1.bf16.msra.mxu0 0
      %822 = vmatprep.subr.bf16.mxu0 0
      %823 = vmatpush1.bf16.msra.mxu0 0
      %824 = vmatprep.subr.bf16.mxu0 0
      %825 = vmatpush1.bf16.msra.mxu0 0
      %826 = vmatprep.subr.bf16.mxu0 0
      %827 = vmatpush1.bf16.msra.mxu0 0
      %828 = vmatprep.subr.bf16.mxu0 0
      %829 = vmatpush1.bf16.msra.mxu0 0
      %830 = vmatprep.subr.bf16.mxu0 0
      %831 = vmatpush1.bf16.msra.mxu0 0
      %832 = vmatprep.subr.bf16.mxu0 0
      %833 = vmatpush1.bf16.msra.mxu0 0
      %834 = vmatprep.mubr.bf16.mxu0 0
      %835 = vmatmul.mubr.bf16.gmra.mrb[0].mxu0 %v800
      %v836 = vpop.f32.mrb[0].mxu0
      %v837 = vadd.f32 0.0, %v836
      %v838 = vpop.f32.mrb[0].mxu0
      %v839 = vpop.f32.mrb[0].mxu0
      %v840 = vpop.f32.mrb[0].mxu0
      %841 = vdwg.mxu0
      %v842 = vadd.f32 %v792, %v837
      %v843 = vmul.f32 %v842, %v463
      %v844 = vadd.f32 %v843, %v470
      %v845 = vxor.u32 %v844, 2147483648
      %v846 = vmul.f32 %v845, 1.442695
      %v847 = vpow.pop %v846
      %v848 = vadd.f32 %v847, 1.0
      %v849 = vrcp.pop %v848
      %v850 = vmul.f32 1.0, %v849
      %v851 = vmul.f32 %v844, %v850
      %s852 = scalar_lea.vmem %s197, 8
      %853 = vst.msk [vmem:[%s852] sm:$0xf] %vm480, %v851
      %854 = vmatprep.subr.bf16.mxu0 0
      %855 = vmatpush1.bf16.msra.mxu0 %v238
      %856 = vmatprep.subr.bf16.mxu0 0
      %857 = vmatpush1.bf16.msra.mxu0 %v239
      %858 = vmatprep.subr.bf16.mxu0 0
      %859 = vmatpush1.bf16.msra.mxu0 0
      %860 = vmatprep.subr.bf16.mxu0 0
      %861 = vmatpush1.bf16.msra.mxu0 0
      %862 = vmatprep.subr.bf16.mxu0 0
      %863 = vmatpush1.bf16.msra.mxu0 0
      %864 = vmatprep.subr.bf16.mxu0 0
      %865 = vmatpush1.bf16.msra.mxu0 0
      %866 = vmatprep.subr.bf16.mxu0 0
      %867 = vmatpush1.bf16.msra.mxu0 0
      %868 = vmatprep.subr.bf16.mxu0 0
      %869 = vmatpush1.bf16.msra.mxu0 0
      %870 = vmatprep.subr.bf16.mxu0 0
      %871 = vmatpush1.bf16.msra.mxu0 0
      %872 = vmatprep.subr.bf16.mxu0 0
      %873 = vmatpush1.bf16.msra.mxu0 0
      %874 = vmatprep.subr.bf16.mxu0 0
      %875 = vmatpush1.bf16.msra.mxu0 0
      %876 = vmatprep.subr.bf16.mxu0 0
      %877 = vmatpush1.bf16.msra.mxu0 0
      %878 = vmatprep.subr.bf16.mxu0 0
      %879 = vmatpush1.bf16.msra.mxu0 0
      %880 = vmatprep.subr.bf16.mxu0 0
      %881 = vmatpush1.bf16.msra.mxu0 0
      %882 = vmatprep.subr.bf16.mxu0 0
      %883 = vmatpush1.bf16.msra.mxu0 0
      %884 = vmatprep.subr.bf16.mxu0 0
      %885 = vmatpush1.bf16.msra.mxu0 0
      %886 = vmatprep.mubr.bf16.mxu0 0
      %887 = vmatmul.mubr.bf16.gmra.mrb[0].mxu0 %v800
      %v888 = vpop.f32.mrb[0].mxu0
      %v889 = vadd.f32 0.0, %v888
      %v890 = vpop.f32.mrb[0].mxu0
      %v891 = vpop.f32.mrb[0].mxu0
      %v892 = vpop.f32.mrb[0].mxu0
      %893 = vdwg.mxu0
      %894 = vmatprep.subr.bf16.mxu0 0
      %895 = vmatpush1.bf16.msra.mxu0 %v294
      %896 = vmatprep.subr.bf16.mxu0 0
      %897 = vmatpush1.bf16.msra.mxu0 %v295
      %898 = vmatprep.subr.bf16.mxu0 0
      %899 = vmatpush1.bf16.msra.mxu0 0
      %900 = vmatprep.subr.bf16.mxu0 0
      %901 = vmatpush1.bf16.msra.mxu0 0
      %902 = vmatprep.subr.bf16.mxu0 0
      %903 = vmatpush1.bf16.msra.mxu0 0
      %904 = vmatprep.subr.bf16.mxu0 0
      %905 = vmatpush1.bf16.msra.mxu0 0
      %906 = vmatprep.subr.bf16.mxu0 0
      %907 = vmatpush1.bf16.msra.mxu0 0
      %908 = vmatprep.subr.bf16.mxu0 0
      %909 = vmatpush1.bf16.msra.mxu0 0
      %910 = vmatprep.subr.bf16.mxu0 0
      %911 = vmatpush1.bf16.msra.mxu0 0
      %912 = vmatprep.subr.bf16.mxu0 0
      %913 = vmatpush1.bf16.msra.mxu0 0
      %914 = vmatprep.subr.bf16.mxu0 0
      %915 = vmatpush1.bf16.msra.mxu0 0
      %916 = vmatprep.subr.bf16.mxu0 0
      %917 = vmatpush1.bf16.msra.mxu0 0
      %918 = vmatprep.subr.bf16.mxu0 0
      %919 = vmatpush1.bf16.msra.mxu0 0
      %920 = vmatprep.subr.bf16.mxu0 0
      %921 = vmatpush1.bf16.msra.mxu0 0
      %922 = vmatprep.subr.bf16.mxu0 0
      %923 = vmatpush1.bf16.msra.mxu0 0
      %924 = vmatprep.subr.bf16.mxu0 0
      %925 = vmatpush1.bf16.msra.mxu0 0
      %926 = vmatprep.mubr.bf16.mxu0 0
      %927 = vmatmul.mubr.bf16.gmra.mrb[0].mxu0 %v750
      %v928 = vpop.f32.mrb[0].mxu0
      %v929 = vadd.f32 %v889, %v928
      %v930 = vpop.f32.mrb[0].mxu0
      %v931 = vpop.f32.mrb[0].mxu0
      %v932 = vpop.f32.mrb[0].mxu0
      %933 = vdwg.mxu0
      %v934 = vpack.c.bf16 %v203, %v203
      %v936 = vsel %vm242, %v934, 0
      %938 = vmatprep.subr.bf16.mxu0 0
      %939 = vmatpush1.bf16.msra.mxu0 %v349
      %940 = vmatprep.subr.bf16.mxu0 0
      %941 = vmatpush1.bf16.msra.mxu0 %v350
      %942 = vmatprep.subr.bf16.mxu0 0
      %943 = vmatpush1.bf16.msra.mxu0 0
      %944 = vmatprep.subr.bf16.mxu0 0
      %945 = vmatpush1.bf16.msra.mxu0 0
      %946 = vmatprep.subr.bf16.mxu0 0
      %947 = vmatpush1.bf16.msra.mxu0 0
      %948 = vmatprep.subr.bf16.mxu0 0
      %949 = vmatpush1.bf16.msra.mxu0 0
      %950 = vmatprep.subr.bf16.mxu0 0
      %951 = vmatpush1.bf16.msra.mxu0 0
      %952 = vmatprep.subr.bf16.mxu0 0
      %953 = vmatpush1.bf16.msra.mxu0 0
      %954 = vmatprep.subr.bf16.mxu0 0
      %955 = vmatpush1.bf16.msra.mxu0 0
      %956 = vmatprep.subr.bf16.mxu0 0
      %957 = vmatpush1.bf16.msra.mxu0 0
      %958 = vmatprep.subr.bf16.mxu0 0
      %959 = vmatpush1.bf16.msra.mxu0 0
      %960 = vmatprep.subr.bf16.mxu0 0
      %961 = vmatpush1.bf16.msra.mxu0 0
      %962 = vmatprep.subr.bf16.mxu0 0
      %963 = vmatpush1.bf16.msra.mxu0 0
      %964 = vmatprep.subr.bf16.mxu0 0
      %965 = vmatpush1.bf16.msra.mxu0 0
      %966 = vmatprep.subr.bf16.mxu0 0
      %967 = vmatpush1.bf16.msra.mxu0 0
      %968 = vmatprep.subr.bf16.mxu0 0
      %969 = vmatpush1.bf16.msra.mxu0 0
      %970 = vmatprep.mubr.bf16.mxu0 0
      %971 = vmatmul.mubr.bf16.gmra.mrb[0].mxu0 %v936
      %v972 = vpop.f32.mrb[0].mxu0
      %v973 = vadd.f32 0.0, %v972
      %v974 = vpop.f32.mrb[0].mxu0
      %v975 = vpop.f32.mrb[0].mxu0
      %v976 = vpop.f32.mrb[0].mxu0
      %977 = vdwg.mxu0
      %v978 = vadd.f32 %v929, %v973
      %v979 = vshrl.u32 %v934, 16
      %v981 = vshll.u32 %v934, 16
      %v983 = vrot.slane %v981, 1
      %v984 = vor.u32 %v979, %v983
      %v986 = vsel %vm242, %v984, 0
      %988 = vmatprep.subr.bf16.mxu0 0
      %989 = vmatpush1.bf16.msra.mxu0 %v411
      %990 = vmatprep.subr.bf16.mxu0 0
      %991 = vmatpush1.bf16.msra.mxu0 %v412
      %992 = vmatprep.subr.bf16.mxu0 0
      %993 = vmatpush1.bf16.msra.mxu0 0
      %994 = vmatprep.subr.bf16.mxu0 0
      %995 = vmatpush1.bf16.msra.mxu0 0
      %996 = vmatprep.subr.bf16.mxu0 0
      %997 = vmatpush1.bf16.msra.mxu0 0
      %998 = vmatprep.subr.bf16.mxu0 0
      %999 = vmatpush1.bf16.msra.mxu0 0
      %1000 = vmatprep.subr.bf16.mxu0 0
      %1001 = vmatpush1.bf16.msra.mxu0 0
      %1002 = vmatprep.subr.bf16.mxu0 0
      %1003 = vmatpush1.bf16.msra.mxu0 0
      %1004 = vmatprep.subr.bf16.mxu0 0
      %1005 = vmatpush1.bf16.msra.mxu0 0
      %1006 = vmatprep.subr.bf16.mxu0 0
      %1007 = vmatpush1.bf16.msra.mxu0 0
      %1008 = vmatprep.subr.bf16.mxu0 0
      %1009 = vmatpush1.bf16.msra.mxu0 0
      %1010 = vmatprep.subr.bf16.mxu0 0
      %1011 = vmatpush1.bf16.msra.mxu0 0
      %1012 = vmatprep.subr.bf16.mxu0 0
      %1013 = vmatpush1.bf16.msra.mxu0 0
      %1014 = vmatprep.subr.bf16.mxu0 0
      %1015 = vmatpush1.bf16.msra.mxu0 0
      %1016 = vmatprep.subr.bf16.mxu0 0
      %1017 = vmatpush1.bf16.msra.mxu0 0
      %1018 = vmatprep.subr.bf16.mxu0 0
      %1019 = vmatpush1.bf16.msra.mxu0 0
      %1020 = vmatprep.mubr.bf16.mxu0 0
      %1021 = vmatmul.mubr.bf16.gmra.mrb[0].mxu0 %v986
      %v1022 = vpop.f32.mrb[0].mxu0
      %v1023 = vadd.f32 0.0, %v1022
      %v1024 = vpop.f32.mrb[0].mxu0
      %v1025 = vpop.f32.mrb[0].mxu0
      %v1026 = vpop.f32.mrb[0].mxu0
      %1027 = vdwg.mxu0
      %v1028 = vadd.f32 %v978, %v1023
      %v1029 = vmul.f32 %v1028, %v463
      %v1030 = vadd.f32 %v1029, %v470
      %v1031 = vxor.u32 %v1030, 2147483648
      %v1032 = vmul.f32 %v1031, 1.442695
      %v1033 = vpow.pop %v1032
      %v1034 = vadd.f32 %v1033, 1.0
      %v1035 = vrcp.pop %v1034
      %v1036 = vmul.f32 1.0, %v1035
      %v1037 = vmul.f32 %v1030, %v1036
      %s1038 = scalar_lea.vmem %s197, 12
      %1039 = vst.msk [vmem:[%s1038] sm:$0xf] %vm480, %v1037
      %p1040 = scmp.lt.s32.totalorder %s15, 1
      %s1041 = scalar_select %p1040, %s15, 1
      %s1042 = smul.addr %s1041, 4
      %s1043 = smul.addr %s1042, 4
      %s1044 = scalar_lea.vmem %s4, %s1043
      // Predicated region
      $region37: #{forward_pallas.7} parent=35 // pred_check
        %p1045 = pneg %p122
      $region38: #{forward_pallas.7} parent=35 // pred_check_branch
        %1047 = sbr.rel (%p1045) target = $region40
      $region39: #{forward_pallas.7} parent=35 // pred_region
        _
      $region40: #{forward_pallas.7} parent=35 // pred_fallthru
        _
    $region36: #{forward_pallas.7} parent=5 // pred_fallthru
      _
    %p1048 = scmp.le.s32.totalorder 2, %s10
    // Predicated region
    $region41: #{forward_pallas.7} parent=5 // pred_check
      %p1049 = pneg %p1048
    $region42: #{forward_pallas.7} parent=5 // pred_check_branch
      %1051 = sbr.rel (%p1049) target = $region44
    $region43: #{forward_pallas.7} parent=5 // pred_region
      %s1052 = ssub.s32 %s10, 2
      // Predicated region
      $region45: #{forward_pallas.7} parent=43 // pred_check
        %p1053 = pneg %p128
      $region46: #{forward_pallas.7} parent=43 // pred_check_branch
        %1055 = sbr.rel (%p1053) target = $region48
      $region47: #{forward_pallas.7} parent=43 // pred_region
        %p1056 = scmp.lt.s32.totalorder %s16, 1
        %s1057 = scalar_select %p1056, %s16, 1
        %s1058 = smul.addr %s1057, 4
        %s1059 = smul.addr %s1058, 4
        %s1060 = scalar_lea.vmem %s4, %s1059
      $region48: #{forward_pallas.7} parent=43 // pred_fallthru
        _
    $region44: #{forward_pallas.7} parent=5 // pred_fallthru
      _
  $region6: #{forward_pallas.7} parent=0 // loop_footer
    %s14 = sadd.s32 1, %s10
  $region7: #{forward_pallas.7} parent=0 // loop_footer_branch
    %9 = sbr.rel target = $region3
  $region8: #{forward_pallas.7} parent=0 // loop_exit
    _

// kernel: forward_pallas.6
$region0: #{forward_pallas.6}
  #allocation0 [shape = 'u32[]', space=smem, size = 0x4, offset = 0x4, fixed_abs, tag = 'smem constant byte address 0x4 - core index']
  #allocation1 [shape = 'u32[144,128]{1,0:T(1,128)}', space=vmem, size = 0x12000, scoped, tag = 'internal scratch']
  %s0 = inlined_call_operand.vmem [shape: f32[2,9,9,16], index: 0, kind: input, shape index: {}]
  %s1 = inlined_call_operand.vmem [shape: bf16[4,16,8], index: 1, kind: input, shape index: {}]
  %s2 = inlined_call_operand.vmem [shape: f32[1,8], index: 2, kind: input, shape index: {}]
  %s3 = inlined_call_operand.vmem [shape: f32[1,8], index: 3, kind: input, shape index: {}]
  %s4 = inlined_call_operand.vmem [shape: f32[2,8,8,8], index: 4, kind: output, shape index: {}]
  %s5 = sld [smem:[#allocation0]]
  $region49: #{forward_pallas.6} parent=0
    _
  %s7 = ssub.s32 1, %s5
  %s8 = scalar_select 0, %s7, %s5
  loop: start=0, step=1, limit=4
  $region2: #{forward_pallas.6} parent=0 // loop_pre_header
    _
  $region3: #{forward_pallas.6} parent=0 // loop_header
    %s10 = sphi 0, %s14
    %p11 = scmp.ge.s32.totalorder %s10, 4
    %s20 = sphi 0, %s22
    %s23 = sphi 0, %s20
    %s24 = sphi 0, %s23
    %s40 = sphi 0, %s24
    %s44 = sphi 0, %s44
    %s46 = sphi 0, %s44
    %s47 = sphi 0, %s46
    %s61 = sphi 0, %s47
    %s65 = sphi 0, %s65
    %s67 = sphi 0, %s65
    %s68 = sphi 0, %s67
    %s82 = sphi 0, %s68
    %s86 = sphi 0, %s86
    %s88 = sphi 0, %s86
    %s89 = sphi 0, %s88
    %s103 = sphi 0, %s89
    %s109 = sphi 0, %s111
    %s112 = sphi 0, %s109
    %s113 = sphi 0, %s112
    %s129 = sphi 0, %s113
  $region4: #{forward_pallas.6} parent=0 // loop_header_branch
    %13 = sbr.rel (%p11) target = $region8
  $region5: #{forward_pallas.6} parent=0 // loop_body
    %s15 = ssub.s32 %s10, 1
    %s16 = ssub.s32 %s10, 2
    %s17 = sadd.s32 %s10, 1
    %s18 = ssub.s32 %s10, %s17
    %p19 = scmp.eq.s32.totalorder %s18, 0
    %s21 = sadd.s32 %s20, 1
    %s22 = scalar_select %p19, %s20, %s21
    %p25 = pneg %p19
    %p26 = scmp.eq.s32.totalorder %s10, 1
    %p27 = por %p25, %p26
    %p28 = scmp.ne.s32.totalorder %s20, %s23
    %p29 = scmp.eq.s32.totalorder %s10, 0
    %p30 = por %p28, %p29
    %p31 = scmp.ne.s32.totalorder %s20, %s23
    %p32 = scmp.eq.s32.totalorder %s15, 1
    %p33 = por %p31, %p32
    %p34 = scmp.ne.s32.totalorder %s23, %s24
    %p35 = scmp.eq.s32.totalorder %s15, 0
    %p36 = por %p34, %p35
    %p37 = scmp.ne.s32.totalorder %s23, %s24
    %p38 = scmp.eq.s32.totalorder %s16, 1
    %p39 = por %p37, %p38
    %p41 = scmp.ne.s32.totalorder %s24, %s40
    %p42 = scmp.eq.s32.totalorder %s16, 0
    %p43 = por %p41, %p42
    %s45 = sadd.s32 %s44, 1
    %p48 = scmp.eq.s32.totalorder %s10, 1
    %p49 = scmp.ne.s32.totalorder %s44, %s46
    %p50 = scmp.eq.s32.totalorder %s10, 0
    %p51 = por %p49, %p50
    %p52 = scmp.ne.s32.totalorder %s44, %s46
    %p53 = scmp.eq.s32.totalorder %s15, 1
    %p54 = por %p52, %p53
    %p55 = scmp.ne.s32.totalorder %s46, %s47
    %p56 = scmp.eq.s32.totalorder %s15, 0
    %p57 = por %p55, %p56
    %p58 = scmp.ne.s32.totalorder %s46, %s47
    %p59 = scmp.eq.s32.totalorder %s16, 1
    %p60 = por %p58, %p59
    %p62 = scmp.ne.s32.totalorder %s47, %s61
    %p63 = scmp.eq.s32.totalorder %s16, 0
    %p64 = por %p62, %p63
    %s66 = sadd.s32 %s65, 1
    %p69 = scmp.eq.s32.totalorder %s10, 1
    %p70 = scmp.ne.s32.totalorder %s65, %s67
    %p71 = scmp.eq.s32.totalorder %s10, 0
    %p72 = por %p70, %p71
    %p73 = scmp.ne.s32.totalorder %s65, %s67
    %p74 = scmp.eq.s32.totalorder %s15, 1
    %p75 = por %p73, %p74
    %p76 = scmp.ne.s32.totalorder %s67, %s68
    %p77 = scmp.eq.s32.totalorder %s15, 0
    %p78 = por %p76, %p77
    %p79 = scmp.ne.s32.totalorder %s67, %s68
    %p80 = scmp.eq.s32.totalorder %s16, 1
    %p81 = por %p79, %p80
    %p83 = scmp.ne.s32.totalorder %s68, %s82
    %p84 = scmp.eq.s32.totalorder %s16, 0
    %p85 = por %p83, %p84
    %s87 = sadd.s32 %s86, 1
    %p90 = scmp.eq.s32.totalorder %s10, 1
    %p91 = scmp.ne.s32.totalorder %s86, %s88
    %p92 = scmp.eq.s32.totalorder %s10, 0
    %p93 = por %p91, %p92
    %p94 = scmp.ne.s32.totalorder %s86, %s88
    %p95 = scmp.eq.s32.totalorder %s15, 1
    %p96 = por %p94, %p95
    %p97 = scmp.ne.s32.totalorder %s88, %s89
    %p98 = scmp.eq.s32.totalorder %s15, 0
    %p99 = por %p97, %p98
    %p100 = scmp.ne.s32.totalorder %s88, %s89
    %p101 = scmp.eq.s32.totalorder %s16, 1
    %p102 = por %p100, %p101
    %p104 = scmp.ne.s32.totalorder %s89, %s103
    %p105 = scmp.eq.s32.totalorder %s16, 0
    %p106 = por %p104, %p105
    %s107 = ssub.s32 %s10, %s17
    %p108 = scmp.eq.s32.totalorder %s107, 0
    %s110 = sadd.s32 %s109, 1
    %s111 = scalar_select %p108, %s109, %s110
    %p114 = pneg %p108
    %p115 = scmp.eq.s32.totalorder %s10, 1
    %p116 = por %p114, %p115
    %p117 = scmp.ne.s32.totalorder %s109, %s112
    %p118 = scmp.eq.s32.totalorder %s10, 0
    %p119 = por %p117, %p118
    %p120 = scmp.ne.s32.totalorder %s109, %s112
    %p121 = scmp.eq.s32.totalorder %s15, 1
    %p122 = por %p120, %p121
    %p123 = scmp.ne.s32.totalorder %s112, %s113
    %p124 = scmp.eq.s32.totalorder %s15, 0
    %p125 = por %p123, %p124
    %p126 = scmp.ne.s32.totalorder %s112, %s113
    %p127 = scmp.eq.s32.totalorder %s16, 1
    %p128 = por %p126, %p127
    %p130 = scmp.ne.s32.totalorder %s113, %s129
    %p131 = scmp.eq.s32.totalorder %s16, 0
    %p132 = por %p130, %p131
    %p133 = scmp.le.s32.totalorder 1, %s10
    %p134 = scmp.lt.s32.totalorder %s10, 3
    %p135 = pnand %p133, %p134
    %p136 = pneg %p135
    // Predicated region
    $region9: #{forward_pallas.6} parent=5 // pred_check
      _
    $region10: #{forward_pallas.6} parent=5 // pred_check_branch
      %138 = sbr.rel (%p135) target = $region12
    $region11: #{forward_pallas.6} parent=5 // pred_region
      %s139 = ssub.s32 %s10, 1
      // Predicated region
      $region13: #{forward_pallas.6} parent=11 // pred_check
        %p140 = pneg %p57
      $region14: #{forward_pallas.6} parent=11 // pred_check_branch
        %142 = sbr.rel (%p140) target = $region16
      $region15: #{forward_pallas.6} parent=11 // pred_region
        _
      $region16: #{forward_pallas.6} parent=11 // pred_fallthru
        _
      // Predicated region
      $region17: #{forward_pallas.6} parent=11 // pred_check
        %p143 = pneg %p78
      $region18: #{forward_pallas.6} parent=11 // pred_check_branch
        %145 = sbr.rel (%p143) target = $region20
      $region19: #{forward_pallas.6} parent=11 // pred_region
        _
      $region20: #{forward_pallas.6} parent=11 // pred_fallthru
        _
      // Predicated region
      $region21: #{forward_pallas.6} parent=11 // pred_check
        %p146 = pneg %p99
      $region22: #{forward_pallas.6} parent=11 // pred_check_branch
        %148 = sbr.rel (%p146) target = $region24
      $region23: #{forward_pallas.6} parent=11 // pred_region
        _
      $region24: #{forward_pallas.6} parent=11 // pred_fallthru
        _
    $region12: #{forward_pallas.6} parent=5 // pred_fallthru
      _
    %p149 = scmp.lt.s32.totalorder %s10, 2
    // Predicated region
    $region25: #{forward_pallas.6} parent=5 // pred_check
      %p150 = pneg %p149
    $region26: #{forward_pallas.6} parent=5 // pred_check_branch
      %152 = sbr.rel (%p150) target = $region28
    $region27: #{forward_pallas.6} parent=5 // pred_region
      // Predicated region
      $region29: #{forward_pallas.6} parent=27 // pred_check
        %p153 = pneg %p30
      $region30: #{forward_pallas.6} parent=27 // pred_check_branch
        %155 = sbr.rel (%p153) target = $region32
      $region31: #{forward_pallas.6} parent=27 // pred_region
        %p156 = scmp.lt.s32.totalorder %s10, 1
        %s157 = scalar_select %p156, %s10, 1
        %s158 = smul.addr %s157, 18
        %s159 = smul.addr %s158, 8
        %s160 = scalar_lea.vmem %s0, %s159
      $region32: #{forward_pallas.6} parent=27 // pred_fallthru
        _
    $region28: #{forward_pallas.6} parent=5 // pred_fallthru
      _
    %p161 = scmp.le.s32.totalorder 1, %s10
    %p162 = scmp.lt.s32.totalorder %s10, 3
    %p163 = pnand %p161, %p162
    %p164 = pneg %p163
    // Predicated region
    $region33: #{forward_pallas.6} parent=5 // pred_check
      _
    $region34: #{forward_pallas.6} parent=5 // pred_check_branch
      %166 = sbr.rel (%p163) target = $region36
    $region35: #{forward_pallas.6} parent=5 // pred_region
      %s167 = ssub.s32 %s10, 1
      %p168 = scmp.lt.s32.totalorder %s15, 1
      %s169 = scalar_select %p168, %s15, 1
      %s170 = smul.addr %s169, 18
      %s171 = smul.addr %s170, 8
      %s172 = scalar_lea.vmem %s0, %s171
      %p173 = pneg %p36
      %p174 = pneg %p33
      %p175 = pneg %p57
      %p176 = pneg %p54
      %p177 = pneg %p78
      %p178 = pneg %p75
      %p179 = pneg %p99
      %p180 = pneg %p96
      %p181 = pneg %p125
      %p182 = pneg %p122
      %p183 = scmp.lt.s32.totalorder %s15, 1
      %s184 = scalar_select %p183, %s15, 1
      %s185 = smul.addr %s184, 8
      %s186 = smul.addr %s185, 8
      %s187 = scalar_lea.vmem %s4, %s186
      %p188 = scmp.lt.s32.totalorder %s15, 1
      %s189 = scalar_select %p188, %s15, 1
      %s190 = smul.addr %s189, 18
      %s191 = smul.addr %s190, 8
      %s192 = scalar_lea.vmem %s0, %s191
      %p193 = scmp.lt.s32.totalorder %s15, 1
      %s194 = scalar_select %p193, %s15, 1
      %s195 = smul.addr %s194, 8
      %s196 = smul.addr %s195, 8
      %s197 = scalar_lea.vmem %s4, %s196
      %v199 = vld [vmem:[%s192] sm:$0xff]
      %v200 = vld [vmem:[%s192 + $0x8] sm:$0x1]
      %v201 = vld [vmem:[%s192 + $0x10] sm:$0xff]
      %v202 = vld [vmem:[%s192 + $0x18] sm:$0x1]
      %v203 = vld [vmem:[%s192 + $0x20] sm:$0xff]
      %v204 = vld [vmem:[%s192 + $0x28] sm:$0x1]
      %v205 = vld [vmem:[%s192 + $0x30] sm:$0xff]
      %v206 = vld [vmem:[%s192 + $0x38] sm:$0x1]
      %v207 = vld [vmem:[%s192 + $0x40] sm:$0xff]
      %v208 = vld [vmem:[%s192 + $0x48] sm:$0x1]
      %v209 = vld [vmem:[%s192 + $0x50] sm:$0xff]
      %v210 = vld [vmem:[%s192 + $0x58] sm:$0x1]
      %v211 = vld [vmem:[%s192 + $0x60] sm:$0xff]
      %v212 = vld [vmem:[%s192 + $0x68] sm:$0x1]
      %v213 = vld [vmem:[%s192 + $0x70] sm:$0xff]
      %v214 = vld [vmem:[%s192 + $0x78] sm:$0x1]
      %v215 = vld [vmem:[%s192 + $0x80] sm:$0xff]
      %v216 = vld [vmem:[%s192 + $0x88] sm:$0x1]
      %v217 = vld [vmem:[%s1] sm:$0xf]
      %v218 = vld [vmem:[%s1 + $0x4] sm:$0xf]
      %v219 = vld [vmem:[%s1 + $0x8] sm:$0xf]
      %v220 = vld [vmem:[%s1 + $0xc] sm:$0xf]
      %v221 = vld [vmem:[%s1 + $0x10] sm:$0xf]
      %v222 = vld [vmem:[%s1 + $0x14] sm:$0xf]
      %v223 = vld [vmem:[%s1 + $0x18] sm:$0xf]
      %v224 = vld [vmem:[%s1 + $0x1c] sm:$0xf]
      %v225 = vld [vmem:[%s2] sm:$0x1]
      %v226 = vld [vmem:[%s3] sm:$0x1]
      %v227 = vpack.c.bf16 %v199, %v199
      %v228 = vpack.c.bf16 %v200, %v199
      %v230 = vshrl.u32 %v228, 16
      %v232 = vshll.u32 %v228, 16
      %v234 = vrot.slane %v232, 1
      %v235 = vor.u32 %v230, %v234
      %v238 = vunpack.c.l.b16 %v219
      %v239 = vunpack.c.l.b16 %v220
      %v240 = vpack.c.b16 %v239, %v238
      %vm242 = vcmask 130048
      %v244 = vsel %vm242, %v235, 0
      %246 = vmatprep.subr.bf16.mxu0 0
      %247 = vmatpush1.bf16.msra.mxu0 %v240
      %248 = vmatprep.subr.bf16.mxu0 0
      %249 = vmatpush1.bf16.msra.mxu0 0
      %250 = vmatprep.subr.bf16.mxu0 0
      %251 = vmatpush1.bf16.msra.mxu0 0
      %252 = vmatprep.subr.bf16.mxu0 0
      %253 = vmatpush1.bf16.msra.mxu0 0
      %254 = vmatprep.subr.bf16.mxu0 0
      %255 = vmatpush1.bf16.msra.mxu0 0
      %256 = vmatprep.subr.bf16.mxu0 0
      %257 = vmatpush1.bf16.msra.mxu0 0
      %258 = vmatprep.subr.bf16.mxu0 0
      %259 = vmatpush1.bf16.msra.mxu0 0
      %260 = vmatprep.subr.bf16.mxu0 0
      %261 = vmatpush1.bf16.msra.mxu0 0
      %262 = vmatprep.subr.bf16.mxu0 0
      %263 = vmatpush1.bf16.msra.mxu0 0
      %264 = vmatprep.subr.bf16.mxu0 0
      %265 = vmatpush1.bf16.msra.mxu0 0
      %266 = vmatprep.subr.bf16.mxu0 0
      %267 = vmatpush1.bf16.msra.mxu0 0
      %268 = vmatprep.subr.bf16.mxu0 0
      %269 = vmatpush1.bf16.msra.mxu0 0
      %270 = vmatprep.subr.bf16.mxu0 0
      %271 = vmatpush1.bf16.msra.mxu0 0
      %272 = vmatprep.subr.bf16.mxu0 0
      %273 = vmatpush1.bf16.msra.mxu0 0
      %274 = vmatprep.subr.bf16.mxu0 0
      %275 = vmatpush1.bf16.msra.mxu0 0
      %276 = vmatprep.subr.bf16.mxu0 0
      %277 = vmatpush1.bf16.msra.mxu0 0
      %278 = vmatprep.mubr.bf16.mxu0 0
      %279 = vmatmul.mubr.bf16.gmra.mrb[0].mxu0 %v244
      %v280 = vpop.f32.mrb[0].mxu0
      %v281 = vadd.f32 0.0, %v280
      %v282 = vpop.f32.mrb[0].mxu0
      %v283 = vpop.f32.mrb[0].mxu0
      %v284 = vpop.f32.mrb[0].mxu0
      %285 = vdwg.mxu0
      %v288 = vunpack.c.l.b16 %v217
      %v289 = vunpack.c.l.b16 %v218
      %v290 = vpack.c.b16 %v289, %v288
      %v293 = vsel %vm242, %v227, 0
      %295 = vmatprep.subr.bf16.mxu0 0
      %296 = vmatpush1.bf16.msra.mxu0 %v290
      %297 = vmatprep.subr.bf16.mxu0 0
      %298 = vmatpush1.bf16.msra.mxu0 0
      %299 = vmatprep.subr.bf16.mxu0 0
      %300 = vmatpush1.bf16.msra.mxu0 0
      %301 = vmatprep.subr.bf16.mxu0 0
      %302 = vmatpush1.bf16.msra.mxu0 0
      %303 = vmatprep.subr.bf16.mxu0 0
      %304 = vmatpush1.bf16.msra.mxu0 0
      %305 = vmatprep.subr.bf16.mxu0 0
      %306 = vmatpush1.bf16.msra.mxu0 0
      %307 = vmatprep.subr.bf16.mxu0 0
      %308 = vmatpush1.bf16.msra.mxu0 0
      %309 = vmatprep.subr.bf16.mxu0 0
      %310 = vmatpush1.bf16.msra.mxu0 0
      %311 = vmatprep.subr.bf16.mxu0 0
      %312 = vmatpush1.bf16.msra.mxu0 0
      %313 = vmatprep.subr.bf16.mxu0 0
      %314 = vmatpush1.bf16.msra.mxu0 0
      %315 = vmatprep.subr.bf16.mxu0 0
      %316 = vmatpush1.bf16.msra.mxu0 0
      %317 = vmatprep.subr.bf16.mxu0 0
      %318 = vmatpush1.bf16.msra.mxu0 0
      %319 = vmatprep.subr.bf16.mxu0 0
      %320 = vmatpush1.bf16.msra.mxu0 0
      %321 = vmatprep.subr.bf16.mxu0 0
      %322 = vmatpush1.bf16.msra.mxu0 0
      %323 = vmatprep.subr.bf16.mxu0 0
      %324 = vmatpush1.bf16.msra.mxu0 0
      %325 = vmatprep.subr.bf16.mxu0 0
      %326 = vmatpush1.bf16.msra.mxu0 0
      %327 = vmatprep.mubr.bf16.mxu0 0
      %328 = vmatmul.mubr.bf16.gmra.mrb[0].mxu0 %v293
      %v329 = vpop.f32.mrb[0].mxu0
      %v330 = vadd.f32 %v281, %v329
      %v331 = vpop.f32.mrb[0].mxu0
      %v332 = vpop.f32.mrb[0].mxu0
      %v333 = vpop.f32.mrb[0].mxu0
      %334 = vdwg.mxu0
      %v335 = vpack.c.bf16 %v201, %v201
      %v338 = vunpack.c.l.b16 %v221
      %v339 = vunpack.c.l.b16 %v222
      %v340 = vpack.c.b16 %v339, %v338
      %v343 = vsel %vm242, %v335, 0
      %345 = vmatprep.subr.bf16.mxu0 0
      %346 = vmatpush1.bf16.msra.mxu0 %v340
      %347 = vmatprep.subr.bf16.mxu0 0
      %348 = vmatpush1.bf16.msra.mxu0 0
      %349 = vmatprep.subr.bf16.mxu0 0
      %350 = vmatpush1.bf16.msra.mxu0 0
      %351 = vmatprep.subr.bf16.mxu0 0
      %352 = vmatpush1.bf16.msra.mxu0 0
      %353 = vmatprep.subr.bf16.mxu0 0
      %354 = vmatpush1.bf16.msra.mxu0 0
      %355 = vmatprep.subr.bf16.mxu0 0
      %356 = vmatpush1.bf16.msra.mxu0 0
      %357 = vmatprep.subr.bf16.mxu0 0
      %358 = vmatpush1.bf16.msra.mxu0 0
      %359 = vmatprep.subr.bf16.mxu0 0
      %360 = vmatpush1.bf16.msra.mxu0 0
      %361 = vmatprep.subr.bf16.mxu0 0
      %362 = vmatpush1.bf16.msra.mxu0 0
      %363 = vmatprep.subr.bf16.mxu0 0
      %364 = vmatpush1.bf16.msra.mxu0 0
      %365 = vmatprep.subr.bf16.mxu0 0
      %366 = vmatpush1.bf16.msra.mxu0 0
      %367 = vmatprep.subr.bf16.mxu0 0
      %368 = vmatpush1.bf16.msra.mxu0 0
      %369 = vmatprep.subr.bf16.mxu0 0
      %370 = vmatpush1.bf16.msra.mxu0 0
      %371 = vmatprep.subr.bf16.mxu0 0
      %372 = vmatpush1.bf16.msra.mxu0 0
      %373 = vmatprep.subr.bf16.mxu0 0
      %374 = vmatpush1.bf16.msra.mxu0 0
      %375 = vmatprep.subr.bf16.mxu0 0
      %376 = vmatpush1.bf16.msra.mxu0 0
      %377 = vmatprep.mubr.bf16.mxu0 0
      %378 = vmatmul.mubr.bf16.gmra.mrb[0].mxu0 %v343
      %v379 = vpop.f32.mrb[0].mxu0
      %v380 = vadd.f32 0.0, %v379
      %v381 = vpop.f32.mrb[0].mxu0
      %v382 = vpop.f32.mrb[0].mxu0
      %v383 = vpop.f32.mrb[0].mxu0
      %384 = vdwg.mxu0
      %v385 = vadd.f32 %v330, %v380
      %v386 = vpack.c.bf16 %v202, %v201
      %v388 = vshrl.u32 %v386, 16
      %v390 = vshll.u32 %v386, 16
      %v392 = vrot.slane %v390, 1
      %v393 = vor.u32 %v388, %v392
      %v396 = vunpack.c.l.b16 %v223
      %v397 = vunpack.c.l.b16 %v224
      %v398 = vpack.c.b16 %v397, %v396
      %v401 = vsel %vm242, %v393, 0
      %403 = vmatprep.subr.bf16.mxu0 0
      %404 = vmatpush1.bf16.msra.mxu0 %v398
      %405 = vmatprep.subr.bf16.mxu0 0
      %406 = vmatpush1.bf16.msra.mxu0 0
      %407 = vmatprep.subr.bf16.mxu0 0
      %408 = vmatpush1.bf16.msra.mxu0 0
      %409 = vmatprep.subr.bf16.mxu0 0
      %410 = vmatpush1.bf16.msra.mxu0 0
      %411 = vmatprep.subr.bf16.mxu0 0
      %412 = vmatpush1.bf16.msra.mxu0 0
      %413 = vmatprep.subr.bf16.mxu0 0
      %414 = vmatpush1.bf16.msra.mxu0 0
      %415 = vmatprep.subr.bf16.mxu0 0
      %416 = vmatpush1.bf16.msra.mxu0 0
      %417 = vmatprep.subr.bf16.mxu0 0
      %418 = vmatpush1.bf16.msra.mxu0 0
      %419 = vmatprep.subr.bf16.mxu0 0
      %420 = vmatpush1.bf16.msra.mxu0 0
      %421 = vmatprep.subr.bf16.mxu0 0
      %422 = vmatpush1.bf16.msra.mxu0 0
      %423 = vmatprep.subr.bf16.mxu0 0
      %424 = vmatpush1.bf16.msra.mxu0 0
      %425 = vmatprep.subr.bf16.mxu0 0
      %426 = vmatpush1.bf16.msra.mxu0 0
      %427 = vmatprep.subr.bf16.mxu0 0
      %428 = vmatpush1.bf16.msra.mxu0 0
      %429 = vmatprep.subr.bf16.mxu0 0
      %430 = vmatpush1.bf16.msra.mxu0 0
      %431 = vmatprep.subr.bf16.mxu0 0
      %432 = vmatpush1.bf16.msra.mxu0 0
      %433 = vmatprep.subr.bf16.mxu0 0
      %434 = vmatpush1.bf16.msra.mxu0 0
      %435 = vmatprep.mubr.bf16.mxu0 0
      %436 = vmatmul.mubr.bf16.gmra.mrb[0].mxu0 %v401
      %v437 = vpop.f32.mrb[0].mxu0
      %v438 = vadd.f32 0.0, %v437
      %v439 = vpop.f32.mrb[0].mxu0
      %v440 = vpop.f32.mrb[0].mxu0
      %v441 = vpop.f32.mrb[0].mxu0
      %442 = vdwg.mxu0
      %v443 = vadd.f32 %v385, %v438
      %v445 = vlaneseq
      %v446 = vshrl.u32 %v445, 7
      %v447 = vsub.s32 0, %v446
      %v448 = vrot.slane %v225, %v447
      %v450 = vmul.f32 %v443, %v448
      %v452 = vlaneseq
      %v453 = vshrl.u32 %v452, 7
      %v454 = vsub.s32 0, %v453
      %v455 = vrot.slane %v226, %v454
      %v457 = vadd.f32 %v450, %v455
      %v458 = vxor.u32 %v457, 2147483648
      %v459 = vmul.f32 %v458, 1.442695
      %v460 = vpow.pop %v459
      %v461 = vadd.f32 %v460, 1.0
      %v462 = vrcp.pop %v461
      %v463 = vmul.f32 1.0, %v462
      %v464 = vmul.f32 %v457, %v463
      %vm465 = vcmask 64512
      %466 = vst.msk [vmem:[%s197] sm:$0xff] %vm465, %v464
      %467 = vmatprep.subr.bf16.mxu0 0
      %468 = vmatpush1.bf16.msra.mxu0 %v240
      %469 = vmatprep.subr.bf16.mxu0 0
      %470 = vmatpush1.bf16.msra.mxu0 0
      %471 = vmatprep.subr.bf16.mxu0 0
      %472 = vmatpush1.bf16.msra.mxu0 0
      %473 = vmatprep.subr.bf16.mxu0 0
      %474 = vmatpush1.bf16.msra.mxu0 0
      %475 = vmatprep.subr.bf16.mxu0 0
      %476 = vmatpush1.bf16.msra.mxu0 0
      %477 = vmatprep.subr.bf16.mxu0 0
      %478 = vmatpush1.bf16.msra.mxu0 0
      %479 = vmatprep.subr.bf16.mxu0 0
      %480 = vmatpush1.bf16.msra.mxu0 0
      %481 = vmatprep.subr.bf16.mxu0 0
      %482 = vmatpush1.bf16.msra.mxu0 0
      %483 = vmatprep.subr.bf16.mxu0 0
      %484 = vmatpush1.bf16.msra.mxu0 0
      %485 = vmatprep.subr.bf16.mxu0 0
      %486 = vmatpush1.bf16.msra.mxu0 0
      %487 = vmatprep.subr.bf16.mxu0 0
      %488 = vmatpush1.bf16.msra.mxu0 0
      %489 = vmatprep.subr.bf16.mxu0 0
      %490 = vmatpush1.bf16.msra.mxu0 0
      %491 = vmatprep.subr.bf16.mxu0 0
      %492 = vmatpush1.bf16.msra.mxu0 0
      %493 = vmatprep.subr.bf16.mxu0 0
      %494 = vmatpush1.bf16.msra.mxu0 0
      %495 = vmatprep.subr.bf16.mxu0 0
      %496 = vmatpush1.bf16.msra.mxu0 0
      %497 = vmatprep.subr.bf16.mxu0 0
      %498 = vmatpush1.bf16.msra.mxu0 0
      %499 = vmatprep.mubr.bf16.mxu0 0
      %500 = vmatmul.mubr.bf16.gmra.mrb[0].mxu0 %v401
      %v501 = vpop.f32.mrb[0].mxu0
      %v502 = vadd.f32 0.0, %v501
      %v503 = vpop.f32.mrb[0].mxu0
      %v504 = vpop.f32.mrb[0].mxu0
      %v505 = vpop.f32.mrb[0].mxu0
      %506 = vdwg.mxu0
      %507 = vmatprep.subr.bf16.mxu0 0
      %508 = vmatpush1.bf16.msra.mxu0 %v290
      %509 = vmatprep.subr.bf16.mxu0 0
      %510 = vmatpush1.bf16.msra.mxu0 0
      %511 = vmatprep.subr.bf16.mxu0 0
      %512 = vmatpush1.bf16.msra.mxu0 0
      %513 = vmatprep.subr.bf16.mxu0 0
      %514 = vmatpush1.bf16.msra.mxu0 0
      %515 = vmatprep.subr.bf16.mxu0 0
      %516 = vmatpush1.bf16.msra.mxu0 0
      %517 = vmatprep.subr.bf16.mxu0 0
      %518 = vmatpush1.bf16.msra.mxu0 0
      %519 = vmatprep.subr.bf16.mxu0 0
      %520 = vmatpush1.bf16.msra.mxu0 0
      %521 = vmatprep.subr.bf16.mxu0 0
      %522 = vmatpush1.bf16.msra.mxu0 0
      %523 = vmatprep.subr.bf16.mxu0 0
      %524 = vmatpush1.bf16.msra.mxu0 0
      %525 = vmatprep.subr.bf16.mxu0 0
      %526 = vmatpush1.bf16.msra.mxu0 0
      %527 = vmatprep.subr.bf16.mxu0 0
      %528 = vmatpush1.bf16.msra.mxu0 0
      %529 = vmatprep.subr.bf16.mxu0 0
      %530 = vmatpush1.bf16.msra.mxu0 0
      %531 = vmatprep.subr.bf16.mxu0 0
      %532 = vmatpush1.bf16.msra.mxu0 0
      %533 = vmatprep.subr.bf16.mxu0 0
      %534 = vmatpush1.bf16.msra.mxu0 0
      %535 = vmatprep.subr.bf16.mxu0 0
      %536 = vmatpush1.bf16.msra.mxu0 0
      %537 = vmatprep.subr.bf16.mxu0 0
      %538 = vmatpush1.bf16.msra.mxu0 0
      %539 = vmatprep.mubr.bf16.mxu0 0
      %540 = vmatmul.mubr.bf16.gmra.mrb[0].mxu0 %v343
      %v541 = vpop.f32.mrb[0].mxu0
      %v542 = vadd.f32 %v502, %v541
      %v543 = vpop.f32.mrb[0].mxu0
      %v544 = vpop.f32.mrb[0].mxu0
      %v545 = vpop.f32.mrb[0].mxu0
      %546 = vdwg.mxu0
      %v547 = vpack.c.bf16 %v203, %v203
      %v549 = vsel %vm242, %v547, 0
      %551 = vmatprep.subr.bf16.mxu0 0
      %552 = vmatpush1.bf16.msra.mxu0 %v340
      %553 = vmatprep.subr.bf16.mxu0 0
      %554 = vmatpush1.bf16.msra.mxu0 0
      %555 = vmatprep.subr.bf16.mxu0 0
      %556 = vmatpush1.bf16.msra.mxu0 0
      %557 = vmatprep.subr.bf16.mxu0 0
      %558 = vmatpush1.bf16.msra.mxu0 0
      %559 = vmatprep.subr.bf16.mxu0 0
      %560 = vmatpush1.bf16.msra.mxu0 0
      %561 = vmatprep.subr.bf16.mxu0 0
      %562 = vmatpush1.bf16.msra.mxu0 0
      %563 = vmatprep.subr.bf16.mxu0 0
      %564 = vmatpush1.bf16.msra.mxu0 0
      %565 = vmatprep.subr.bf16.mxu0 0
      %566 = vmatpush1.bf16.msra.mxu0 0
      %567 = vmatprep.subr.bf16.mxu0 0
      %568 = vmatpush1.bf16.msra.mxu0 0
      %569 = vmatprep.subr.bf16.mxu0 0
      %570 = vmatpush1.bf16.msra.mxu0 0
      %571 = vmatprep.subr.bf16.mxu0 0
      %572 = vmatpush1.bf16.msra.mxu0 0
      %573 = vmatprep.subr.bf16.mxu0 0
      %574 = vmatpush1.bf16.msra.mxu0 0
      %575 = vmatprep.subr.bf16.mxu0 0
      %576 = vmatpush1.bf16.msra.mxu0 0
      %577 = vmatprep.subr.bf16.mxu0 0
      %578 = vmatpush1.bf16.msra.mxu0 0
      %579 = vmatprep.subr.bf16.mxu0 0
      %580 = vmatpush1.bf16.msra.mxu0 0
      %581 = vmatprep.subr.bf16.mxu0 0
      %582 = vmatpush1.bf16.msra.mxu0 0
      %583 = vmatprep.mubr.bf16.mxu0 0
      %584 = vmatmul.mubr.bf16.gmra.mrb[0].mxu0 %v549
      %v585 = vpop.f32.mrb[0].mxu0
      %v586 = vadd.f32 0.0, %v585
      %v587 = vpop.f32.mrb[0].mxu0
      %v588 = vpop.f32.mrb[0].mxu0
      %v589 = vpop.f32.mrb[0].mxu0
      %590 = vdwg.mxu0
      %v591 = vadd.f32 %v542, %v586
      %v592 = vpack.c.bf16 %v204, %v203
      %v594 = vshrl.u32 %v592, 16
      %v596 = vshll.u32 %v592, 16
      %v598 = vrot.slane %v596, 1
      %v599 = vor.u32 %v594, %v598
      %v601 = vsel %vm242, %v599, 0
      %603 = vmatprep.subr.bf16.mxu0 0
      %604 = vmatpush1.bf16.msra.mxu0 %v398
      %605 = vmatprep.subr.bf16.mxu0 0
      %606 = vmatpush1.bf16.msra.mxu0 0
      %607 = vmatprep.subr.bf16.mxu0 0
      %608 = vmatpush1.bf16.msra.mxu0 0
      %609 = vmatprep.subr.bf16.mxu0 0
      %610 = vmatpush1.bf16.msra.mxu0 0
      %611 = vmatprep.subr.bf16.mxu0 0
      %612 = vmatpush1.bf16.msra.mxu0 0
      %613 = vmatprep.subr.bf16.mxu0 0
      %614 = vmatpush1.bf16.msra.mxu0 0
      %615 = vmatprep.subr.bf16.mxu0 0
      %616 = vmatpush1.bf16.msra.mxu0 0
      %617 = vmatprep.subr.bf16.mxu0 0
      %618 = vmatpush1.bf16.msra.mxu0 0
      %619 = vmatprep.subr.bf16.mxu0 0
      %620 = vmatpush1.bf16.msra.mxu0 0
      %621 = vmatprep.subr.bf16.mxu0 0
      %622 = vmatpush1.bf16.msra.mxu0 0
      %623 = vmatprep.subr.bf16.mxu0 0
      %624 = vmatpush1.bf16.msra.mxu0 0
      %625 = vmatprep.subr.bf16.mxu0 0
      %626 = vmatpush1.bf16.msra.mxu0 0
      %627 = vmatprep.subr.bf16.mxu0 0
      %628 = vmatpush1.bf16.msra.mxu0 0
      %629 = vmatprep.subr.bf16.mxu0 0
      %630 = vmatpush1.bf16.msra.mxu0 0
      %631 = vmatprep.subr.bf16.mxu0 0
      %632 = vmatpush1.bf16.msra.mxu0 0
      %633 = vmatprep.subr.bf16.mxu0 0
      %634 = vmatpush1.bf16.msra.mxu0 0
      %635 = vmatprep.mubr.bf16.mxu0 0
      %636 = vmatmul.mubr.bf16.gmra.mrb[0].mxu0 %v601
      %v637 = vpop.f32.mrb[0].mxu0
      %v638 = vadd.f32 0.0, %v637
      %v639 = vpop.f32.mrb[0].mxu0
      %v640 = vpop.f32.mrb[0].mxu0
      %v641 = vpop.f32.mrb[0].mxu0
      %642 = vdwg.mxu0
      %v643 = vadd.f32 %v591, %v638
      %v644 = vmul.f32 %v643, %v448
      %v645 = vadd.f32 %v644, %v455
      %v646 = vxor.u32 %v645, 2147483648
      %v647 = vmul.f32 %v646, 1.442695
      %v648 = vpow.pop %v647
      %v649 = vadd.f32 %v648, 1.0
      %v650 = vrcp.pop %v649
      %v651 = vmul.f32 1.0, %v650
      %v652 = vmul.f32 %v645, %v651
      %s653 = scalar_lea.vmem %s197, 8
      %654 = vst.msk [vmem:[%s653] sm:$0xff] %vm465, %v652
      %655 = vmatprep.subr.bf16.mxu0 0
      %656 = vmatpush1.bf16.msra.mxu0 %v240
      %657 = vmatprep.subr.bf16.mxu0 0
      %658 = vmatpush1.bf16.msra.mxu0 0
      %659 = vmatprep.subr.bf16.mxu0 0
      %660 = vmatpush1.bf16.msra.mxu0 0
      %661 = vmatprep.subr.bf16.mxu0 0
      %662 = vmatpush1.bf16.msra.mxu0 0
      %663 = vmatprep.subr.bf16.mxu0 0
      %664 = vmatpush1.bf16.msra.mxu0 0
      %665 = vmatprep.subr.bf16.mxu0 0
      %666 = vmatpush1.bf16.msra.mxu0 0
      %667 = vmatprep.subr.bf16.mxu0 0
      %668 = vmatpush1.bf16.msra.mxu0 0
      %669 = vmatprep.subr.bf16.mxu0 0
      %670 = vmatpush1.bf16.msra.mxu0 0
      %671 = vmatprep.subr.bf16.mxu0 0
      %672 = vmatpush1.bf16.msra.mxu0 0
      %673 = vmatprep.subr.bf16.mxu0 0
      %674 = vmatpush1.bf16.msra.mxu0 0
      %675 = vmatprep.subr.bf16.mxu0 0
      %676 = vmatpush1.bf16.msra.mxu0 0
      %677 = vmatprep.subr.bf16.mxu0 0
      %678 = vmatpush1.bf16.msra.mxu0 0
      %679 = vmatprep.subr.bf16.mxu0 0
      %680 = vmatpush1.bf16.msra.mxu0 0
      %681 = vmatprep.subr.bf16.mxu0 0
      %682 = vmatpush1.bf16.msra.mxu0 0
      %683 = vmatprep.subr.bf16.mxu0 0
      %684 = vmatpush1.bf16.msra.mxu0 0
      %685 = vmatprep.subr.bf16.mxu0 0
      %686 = vmatpush1.bf16.msra.mxu0 0
      %687 = vmatprep.mubr.bf16.mxu0 0
      %688 = vmatmul.mubr.bf16.gmra.mrb[0].mxu0 %v601
      %v689 = vpop.f32.mrb[0].mxu0
      %v690 = vadd.f32 0.0, %v689
      %v691 = vpop.f32.mrb[0].mxu0
      %v692 = vpop.f32.mrb[0].mxu0
      %v693 = vpop.f32.mrb[0].mxu0
      %694 = vdwg.mxu0
      %695 = vmatprep.subr.bf16.mxu0 0
      %696 = vmatpush1.bf16.msra.mxu0 %v290
      %697 = vmatprep.subr.bf16.mxu0 0
      %698 = vmatpush1.bf16.msra.mxu0 0
      %699 = vmatprep.subr.bf16.mxu0 0
      %700 = vmatpush1.bf16.msra.mxu0 0
      %701 = vmatprep.subr.bf16.mxu0 0
      %702 = vmatpush1.bf16.msra.mxu0 0
      %703 = vmatprep.subr.bf16.mxu0 0
      %704 = vmatpush1.bf16.msra.mxu0 0
      %705 = vmatprep.subr.bf16.mxu0 0
      %706 = vmatpush1.bf16.msra.mxu0 0
      %707 = vmatprep.subr.bf16.mxu0 0
      %708 = vmatpush1.bf16.msra.mxu0 0
      %709 = vmatprep.subr.bf16.mxu0 0
      %710 = vmatpush1.bf16.msra.mxu0 0
      %711 = vmatprep.subr.bf16.mxu0 0
      %712 = vmatpush1.bf16.msra.mxu0 0
      %713 = vmatprep.subr.bf16.mxu0 0
      %714 = vmatpush1.bf16.msra.mxu0 0
      %715 = vmatprep.subr.bf16.mxu0 0
      %716 = vmatpush1.bf16.msra.mxu0 0
      %717 = vmatprep.subr.bf16.mxu0 0
      %718 = vmatpush1.bf16.msra.mxu0 0
      %719 = vmatprep.subr.bf16.mxu0 0
      %720 = vmatpush1.bf16.msra.mxu0 0
      %721 = vmatprep.subr.bf16.mxu0 0
      %722 = vmatpush1.bf16.msra.mxu0 0
      %723 = vmatprep.subr.bf16.mxu0 0
      %724 = vmatpush1.bf16.msra.mxu0 0
      %725 = vmatprep.subr.bf16.mxu0 0
      %726 = vmatpush1.bf16.msra.mxu0 0
      %727 = vmatprep.mubr.bf16.mxu0 0
      %728 = vmatmul.mubr.bf16.gmra.mrb[0].mxu0 %v549
      %v729 = vpop.f32.mrb[0].mxu0
      %v730 = vadd.f32 %v690, %v729
      %v731 = vpop.f32.mrb[0].mxu0
      %v732 = vpop.f32.mrb[0].mxu0
      %v733 = vpop.f32.mrb[0].mxu0
      %734 = vdwg.mxu0
      %v735 = vpack.c.bf16 %v205, %v205
      %v737 = vsel %vm242, %v735, 0
      %739 = vmatprep.subr.bf16.mxu0 0
      %740 = vmatpush1.bf16.msra.mxu0 %v340
      %741 = vmatprep.subr.bf16.mxu0 0
      %742 = vmatpush1.bf16.msra.mxu0 0
      %743 = vmatprep.subr.bf16.mxu0 0
      %744 = vmatpush1.bf16.msra.mxu0 0
      %745 = vmatprep.subr.bf16.mxu0 0
      %746 = vmatpush1.bf16.msra.mxu0 0
      %747 = vmatprep.subr.bf16.mxu0 0
      %748 = vmatpush1.bf16.msra.mxu0 0
      %749 = vmatprep.subr.bf16.mxu0 0
      %750 = vmatpush1.bf16.msra.mxu0 0
      %751 = vmatprep.subr.bf16.mxu0 0
      %752 = vmatpush1.bf16.msra.mxu0 0
      %753 = vmatprep.subr.bf16.mxu0 0
      %754 = vmatpush1.bf16.msra.mxu0 0
      %755 = vmatprep.subr.bf16.mxu0 0
      %756 = vmatpush1.bf16.msra.mxu0 0
      %757 = vmatprep.subr.bf16.mxu0 0
      %758 = vmatpush1.bf16.msra.mxu0 0
      %759 = vmatprep.subr.bf16.mxu0 0
      %760 = vmatpush1.bf16.msra.mxu0 0
      %761 = vmatprep.subr.bf16.mxu0 0
      %762 = vmatpush1.bf16.msra.mxu0 0
      %763 = vmatprep.subr.bf16.mxu0 0
      %764 = vmatpush1.bf16.msra.mxu0 0
      %765 = vmatprep.subr.bf16.mxu0 0
      %766 = vmatpush1.bf16.msra.mxu0 0
      %767 = vmatprep.subr.bf16.mxu0 0
      %768 = vmatpush1.bf16.msra.mxu0 0
      %769 = vmatprep.subr.bf16.mxu0 0
      %770 = vmatpush1.bf16.msra.mxu0 0
      %771 = vmatprep.mubr.bf16.mxu0 0
      %772 = vmatmul.mubr.bf16.gmra.mrb[0].mxu0 %v737
      %v773 = vpop.f32.mrb[0].mxu0
      %v774 = vadd.f32 0.0, %v773
      %v775 = vpop.f32.mrb[0].mxu0
      %v776 = vpop.f32.mrb[0].mxu0
      %v777 = vpop.f32.mrb[0].mxu0
      %778 = vdwg.mxu0
      %v779 = vadd.f32 %v730, %v774
      %v780 = vpack.c.bf16 %v206, %v205
      %v782 = vshrl.u32 %v780, 16
      %v784 = vshll.u32 %v780, 16
      %v786 = vrot.slane %v784, 1
      %v787 = vor.u32 %v782, %v786
      %v789 = vsel %vm242, %v787, 0
      %791 = vmatprep.subr.bf16.mxu0 0
      %792 = vmatpush1.bf16.msra.mxu0 %v398
      %793 = vmatprep.subr.bf16.mxu0 0
      %794 = vmatpush1.bf16.msra.mxu0 0
      %795 = vmatprep.subr.bf16.mxu0 0
      %796 = vmatpush1.bf16.msra.mxu0 0
      %797 = vmatprep.subr.bf16.mxu0 0
      %798 = vmatpush1.bf16.msra.mxu0 0
      %799 = vmatprep.subr.bf16.mxu0 0
      %800 = vmatpush1.bf16.msra.mxu0 0
      %801 = vmatprep.subr.bf16.mxu0 0
      %802 = vmatpush1.bf16.msra.mxu0 0
      %803 = vmatprep.subr.bf16.mxu0 0
      %804 = vmatpush1.bf16.msra.mxu0 0
      %805 = vmatprep.subr.bf16.mxu0 0
      %806 = vmatpush1.bf16.msra.mxu0 0
      %807 = vmatprep.subr.bf16.mxu0 0
      %808 = vmatpush1.bf16.msra.mxu0 0
      %809 = vmatprep.subr.bf16.mxu0 0
      %810 = vmatpush1.bf16.msra.mxu0 0
      %811 = vmatprep.subr.bf16.mxu0 0
      %812 = vmatpush1.bf16.msra.mxu0 0
      %813 = vmatprep.subr.bf16.mxu0 0
      %814 = vmatpush1.bf16.msra.mxu0 0
      %815 = vmatprep.subr.bf16.mxu0 0
      %816 = vmatpush1.bf16.msra.mxu0 0
      %817 = vmatprep.subr.bf16.mxu0 0
      %818 = vmatpush1.bf16.msra.mxu0 0
      %819 = vmatprep.subr.bf16.mxu0 0
      %820 = vmatpush1.bf16.msra.mxu0 0
      %821 = vmatprep.subr.bf16.mxu0 0
      %822 = vmatpush1.bf16.msra.mxu0 0
      %823 = vmatprep.mubr.bf16.mxu0 0
      %824 = vmatmul.mubr.bf16.gmra.mrb[0].mxu0 %v789
      %v825 = vpop.f32.mrb[0].mxu0
      %v826 = vadd.f32 0.0, %v825
      %v827 = vpop.f32.mrb[0].mxu0
      %v828 = vpop.f32.mrb[0].mxu0
      %v829 = vpop.f32.mrb[0].mxu0
      %830 = vdwg.mxu0
      %v831 = vadd.f32 %v779, %v826
      %v832 = vmul.f32 %v831, %v448
      %v833 = vadd.f32 %v832, %v455
      %v834 = vxor.u32 %v833, 2147483648
      %v835 = vmul.f32 %v834, 1.442695
      %v836 = vpow.pop %v835
      %v837 = vadd.f32 %v836, 1.0
      %v838 = vrcp.pop %v837
      %v839 = vmul.f32 1.0, %v838
      %v840 = vmul.f32 %v833, %v839
      %s841 = scalar_lea.vmem %s197, 16
      %842 = vst.msk [vmem:[%s841] sm:$0xff] %vm465, %v840
      %843 = vmatprep.subr.bf16.mxu0 0
      %844 = vmatpush1.bf16.msra.mxu0 %v240
      %845 = vmatprep.subr.bf16.mxu0 0
      %846 = vmatpush1.bf16.msra.mxu0 0
      %847 = vmatprep.subr.bf16.mxu0 0
      %848 = vmatpush1.bf16.msra.mxu0 0
      %849 = vmatprep.subr.bf16.mxu0 0
      %850 = vmatpush1.bf16.msra.mxu0 0
      %851 = vmatprep.subr.bf16.mxu0 0
      %852 = vmatpush1.bf16.msra.mxu0 0
      %853 = vmatprep.subr.bf16.mxu0 0
      %854 = vmatpush1.bf16.msra.mxu0 0
      %855 = vmatprep.subr.bf16.mxu0 0
      %856 = vmatpush1.bf16.msra.mxu0 0
      %857 = vmatprep.subr.bf16.mxu0 0
      %858 = vmatpush1.bf16.msra.mxu0 0
      %859 = vmatprep.subr.bf16.mxu0 0
      %860 = vmatpush1.bf16.msra.mxu0 0
      %861 = vmatprep.subr.bf16.mxu0 0
      %862 = vmatpush1.bf16.msra.mxu0 0
      %863 = vmatprep.subr.bf16.mxu0 0
      %864 = vmatpush1.bf16.msra.mxu0 0
      %865 = vmatprep.subr.bf16.mxu0 0
      %866 = vmatpush1.bf16.msra.mxu0 0
      %867 = vmatprep.subr.bf16.mxu0 0
      %868 = vmatpush1.bf16.msra.mxu0 0
      %869 = vmatprep.subr.bf16.mxu0 0
      %870 = vmatpush1.bf16.msra.mxu0 0
      %871 = vmatprep.subr.bf16.mxu0 0
      %872 = vmatpush1.bf16.msra.mxu0 0
      %873 = vmatprep.subr.bf16.mxu0 0
      %874 = vmatpush1.bf16.msra.mxu0 0
      %875 = vmatprep.mubr.bf16.mxu0 0
      %876 = vmatmul.mubr.bf16.gmra.mrb[0].mxu0 %v789
      %v877 = vpop.f32.mrb[0].mxu0
      %v878 = vadd.f32 0.0, %v877
      %v879 = vpop.f32.mrb[0].mxu0
      %v880 = vpop.f32.mrb[0].mxu0
      %v881 = vpop.f32.mrb[0].mxu0
      %882 = vdwg.mxu0
      %883 = vmatprep.subr.bf16.mxu0 0
      %884 = vmatpush1.bf16.msra.mxu0 %v290
      %885 = vmatprep.subr.bf16.mxu0 0
      %886 = vmatpush1.bf16.msra.mxu0 0
      %887 = vmatprep.subr.bf16.mxu0 0
      %888 = vmatpush1.bf16.msra.mxu0 0
      %889 = vmatprep.subr.bf16.mxu0 0
      %890 = vmatpush1.bf16.msra.mxu0 0
      %891 = vmatprep.subr.bf16.mxu0 0
      %892 = vmatpush1.bf16.msra.mxu0 0
      %893 = vmatprep.subr.bf16.mxu0 0
      %894 = vmatpush1.bf16.msra.mxu0 0
      %895 = vmatprep.subr.bf16.mxu0 0
      %896 = vmatpush1.bf16.msra.mxu0 0
      %897 = vmatprep.subr.bf16.mxu0 0
      %898 = vmatpush1.bf16.msra.mxu0 0
      %899 = vmatprep.subr.bf16.mxu0 0
      %900 = vmatpush1.bf16.msra.mxu0 0
      %901 = vmatprep.subr.bf16.mxu0 0
      %902 = vmatpush1.bf16.msra.mxu0 0
      %903 = vmatprep.subr.bf16.mxu0 0
      %904 = vmatpush1.bf16.msra.mxu0 0
      %905 = vmatprep.subr.bf16.mxu0 0
      %906 = vmatpush1.bf16.msra.mxu0 0
      %907 = vmatprep.subr.bf16.mxu0 0
      %908 = vmatpush1.bf16.msra.mxu0 0
      %909 = vmatprep.subr.bf16.mxu0 0
      %910 = vmatpush1.bf16.msra.mxu0 0
      %911 = vmatprep.subr.bf16.mxu0 0
      %912 = vmatpush1.bf16.msra.mxu0 0
      %913 = vmatprep.subr.bf16.mxu0 0
      %914 = vmatpush1.bf16.msra.mxu0 0
      %915 = vmatprep.mubr.bf16.mxu0 0
      %916 = vmatmul.mubr.bf16.gmra.mrb[0].mxu0 %v737
      %v917 = vpop.f32.mrb[0].mxu0
      %v918 = vadd.f32 %v878, %v917
      %v919 = vpop.f32.mrb[0].mxu0
      %v920 = vpop.f32.mrb[0].mxu0
      %v921 = vpop.f32.mrb[0].mxu0
      %922 = vdwg.mxu0
      %v923 = vpack.c.bf16 %v207, %v207
      %v925 = vsel %vm242, %v923, 0
      %927 = vmatprep.subr.bf16.mxu0 0
      %928 = vmatpush1.bf16.msra.mxu0 %v340
      %929 = vmatprep.subr.bf16.mxu0 0
      %930 = vmatpush1.bf16.msra.mxu0 0
      %931 = vmatprep.subr.bf16.mxu0 0
      %932 = vmatpush1.bf16.msra.mxu0 0
      %933 = vmatprep.subr.bf16.mxu0 0
      %934 = vmatpush1.bf16.msra.mxu0 0
      %935 = vmatprep.subr.bf16.mxu0 0
      %936 = vmatpush1.bf16.msra.mxu0 0
      %937 = vmatprep.subr.bf16.mxu0 0
      %938 = vmatpush1.bf16.msra.mxu0 0
      %939 = vmatprep.subr.bf16.mxu0 0
      %940 = vmatpush1.bf16.msra.mxu0 0
      %941 = vmatprep.subr.bf16.mxu0 0
      %942 = vmatpush1.bf16.msra.mxu0 0
      %943 = vmatprep.subr.bf16.mxu0 0
      %944 = vmatpush1.bf16.msra.mxu0 0
      %945 = vmatprep.subr.bf16.mxu0 0
      %946 = vmatpush1.bf16.msra.mxu0 0
      %947 = vmatprep.subr.bf16.mxu0 0
      %948 = vmatpush1.bf16.msra.mxu0 0
      %949 = vmatprep.subr.bf16.mxu0 0
      %950 = vmatpush1.bf16.msra.mxu0 0
      %951 = vmatprep.subr.bf16.mxu0 0
      %952 = vmatpush1.bf16.msra.mxu0 0
      %953 = vmatprep.subr.bf16.mxu0 0
      %954 = vmatpush1.bf16.msra.mxu0 0
      %955 = vmatprep.subr.bf16.mxu0 0
      %956 = vmatpush1.bf16.msra.mxu0 0
      %957 = vmatprep.subr.bf16.mxu0 0
      %958 = vmatpush1.bf16.msra.mxu0 0
      %959 = vmatprep.mubr.bf16.mxu0 0
      %960 = vmatmul.mubr.bf16.gmra.mrb[0].mxu0 %v925
      %v961 = vpop.f32.mrb[0].mxu0
      %v962 = vadd.f32 0.0, %v961
      %v963 = vpop.f32.mrb[0].mxu0
      %v964 = vpop.f32.mrb[0].mxu0
      %v965 = vpop.f32.mrb[0].mxu0
      %966 = vdwg.mxu0
      %v967 = vadd.f32 %v918, %v962
      %v968 = vpack.c.bf16 %v208, %v207
      %v970 = vshrl.u32 %v968, 16
      %v972 = vshll.u32 %v968, 16
      %v974 = vrot.slane %v972, 1
      %v975 = vor.u32 %v970, %v974
      %v977 = vsel %vm242, %v975, 0
      %979 = vmatprep.subr.bf16.mxu0 0
      %980 = vmatpush1.bf16.msra.mxu0 %v398
      %981 = vmatprep.subr.bf16.mxu0 0
      %982 = vmatpush1.bf16.msra.mxu0 0
      %983 = vmatprep.subr.bf16.mxu0 0
      %984 = vmatpush1.bf16.msra.mxu0 0
      %985 = vmatprep.subr.bf16.mxu0 0
      %986 = vmatpush1.bf16.msra.mxu0 0
      %987 = vmatprep.subr.bf16.mxu0 0
      %988 = vmatpush1.bf16.msra.mxu0 0
      %989 = vmatprep.subr.bf16.mxu0 0
      %990 = vmatpush1.bf16.msra.mxu0 0
      %991 = vmatprep.subr.bf16.mxu0 0
      %992 = vmatpush1.bf16.msra.mxu0 0
      %993 = vmatprep.subr.bf16.mxu0 0
      %994 = vmatpush1.bf16.msra.mxu0 0
      %995 = vmatprep.subr.bf16.mxu0 0
      %996 = vmatpush1.bf16.msra.mxu0 0
      %997 = vmatprep.subr.bf16.mxu0 0
      %998 = vmatpush1.bf16.msra.mxu0 0
      %999 = vmatprep.subr.bf16.mxu0 0
      %1000 = vmatpush1.bf16.msra.mxu0 0
      %1001 = vmatprep.subr.bf16.mxu0 0
      %1002 = vmatpush1.bf16.msra.mxu0 0
      %1003 = vmatprep.subr.bf16.mxu0 0
      %1004 = vmatpush1.bf16.msra.mxu0 0
      %1005 = vmatprep.subr.bf16.mxu0 0
      %1006 = vmatpush1.bf16.msra.mxu0 0
      %1007 = vmatprep.subr.bf16.mxu0 0
      %1008 = vmatpush1.bf16.msra.mxu0 0
      %1009 = vmatprep.subr.bf16.mxu0 0
      %1010 = vmatpush1.bf16.msra.mxu0 0
      %1011 = vmatprep.mubr.bf16.mxu0 0
      %1012 = vmatmul.mubr.bf16.gmra.mrb[0].mxu0 %v977
      %v1013 = vpop.f32.mrb[0].mxu0
      %v1014 = vadd.f32 0.0, %v1013
      %v1015 = vpop.f32.mrb[0].mxu0
      %v1016 = vpop.f32.mrb[0].mxu0
      %v1017 = vpop.f32.mrb[0].mxu0
      %1018 = vdwg.mxu0
      %v1019 = vadd.f32 %v967, %v1014
      %v1020 = vmul.f32 %v1019, %v448
      %v1021 = vadd.f32 %v1020, %v455
      %v1022 = vxor.u32 %v1021, 2147483648
      %v1023 = vmul.f32 %v1022, 1.442695
      %v1024 = vpow.pop %v1023
      %v1025 = vadd.f32 %v1024, 1.0
      %v1026 = vrcp.pop %v1025
      %v1027 = vmul.f32 1.0, %v1026
      %v1028 = vmul.f32 %v1021, %v1027
      %s1029 = scalar_lea.vmem %s197, 24
      %1030 = vst.msk [vmem:[%s1029] sm:$0xff] %vm465, %v1028
      %1031 = vmatprep.subr.bf16.mxu0 0
      %1032 = vmatpush1.bf16.msra.mxu0 %v240
      %1033 = vmatprep.subr.bf16.mxu0 0
      %1034 = vmatpush1.bf16.msra.mxu0 0
      %1035 = vmatprep.subr.bf16.mxu0 0
      %1036 = vmatpush1.bf16.msra.mxu0 0
      %1037 = vmatprep.subr.bf16.mxu0 0
      %1038 = vmatpush1.bf16.msra.mxu0 0
      %1039 = vmatprep.subr.bf16.mxu0 0
      %1040 = vmatpush1.bf16.msra.mxu0 0
      %1041 = vmatprep.subr.bf16.mxu0 0
      %1042 = vmatpush1.bf16.msra.mxu0 0
      %1043 = vmatprep.subr.bf16.mxu0 0
      %1044 = vmatpush1.bf16.msra.mxu0 0
      %1045 = vmatprep.subr.bf16.mxu0 0
      %1046 = vmatpush1.bf16.msra.mxu0 0
      %1047 = vmatprep.subr.bf16.mxu0 0
      %1048 = vmatpush1.bf16.msra.mxu0 0
      %1049 = vmatprep.subr.bf16.mxu0 0
      %1050 = vmatpush1.bf16.msra.mxu0 0
      %1051 = vmatprep.subr.bf16.mxu0 0
      %1052 = vmatpush1.bf16.msra.mxu0 0
      %1053 = vmatprep.subr.bf16.mxu0 0
      %1054 = vmatpush1.bf16.msra.mxu0 0
      %1055 = vmatprep.subr.bf16.mxu0 0
      %1056 = vmatpush1.bf16.msra.mxu0 0
      %1057 = vmatprep.subr.bf16.mxu0 0
      %1058 = vmatpush1.bf16.msra.mxu0 0
      %1059 = vmatprep.subr.bf16.mxu0 0
      %1060 = vmatpush1.bf16.msra.mxu0 0
      %1061 = vmatprep.subr.bf16.mxu0 0
      %1062 = vmatpush1.bf16.msra.mxu0 0
      %1063 = vmatprep.mubr.bf16.mxu0 0
      %1064 = vmatmul.mubr.bf16.gmra.mrb[0].mxu0 %v977
      %v1065 = vpop.f32.mrb[0].mxu0
      %v1066 = vadd.f32 0.0, %v1065
      %v1067 = vpop.f32.mrb[0].mxu0
      %v1068 = vpop.f32.mrb[0].mxu0
      %v1069 = vpop.f32.mrb[0].mxu0
      %1070 = vdwg.mxu0
      %1071 = vmatprep.subr.bf16.mxu0 0
      %1072 = vmatpush1.bf16.msra.mxu0 %v290
      %1073 = vmatprep.subr.bf16.mxu0 0
      %1074 = vmatpush1.bf16.msra.mxu0 0
      %1075 = vmatprep.subr.bf16.mxu0 0
      %1076 = vmatpush1.bf16.msra.mxu0 0
      %1077 = vmatprep.subr.bf16.mxu0 0
      %1078 = vmatpush1.bf16.msra.mxu0 0
      %1079 = vmatprep.subr.bf16.mxu0 0
      %1080 = vmatpush1.bf16.msra.mxu0 0
      %1081 = vmatprep.subr.bf16.mxu0 0
      %1082 = vmatpush1.bf16.msra.mxu0 0
      %1083 = vmatprep.subr.bf16.mxu0 0
      %1084 = vmatpush1.bf16.msra.mxu0 0
      %1085 = vmatprep.subr.bf16.mxu0 0
      %1086 = vmatpush1.bf16.msra.mxu0 0
      %1087 = vmatprep.subr.bf16.mxu0 0
      %1088 = vmatpush1.bf16.msra.mxu0 0
      %1089 = vmatprep.subr.bf16.mxu0 0
      %1090 = vmatpush1.bf16.msra.mxu0 0
      %1091 = vmatprep.subr.bf16.mxu0 0
      %1092 = vmatpush1.bf16.msra.mxu0 0
      %1093 = vmatprep.subr.bf16.mxu0 0
      %1094 = vmatpush1.bf16.msra.mxu0 0
      %1095 = vmatprep.subr.bf16.mxu0 0
      %1096 = vmatpush1.bf16.msra.mxu0 0
      %1097 = vmatprep.subr.bf16.mxu0 0
      %1098 = vmatpush1.bf16.msra.mxu0 0
      %1099 = vmatprep.subr.bf16.mxu0 0
      %1100 = vmatpush1.bf16.msra.mxu0 0
      %1101 = vmatprep.subr.bf16.mxu0 0
      %1102 = vmatpush1.bf16.msra.mxu0 0
      %1103 = vmatprep.mubr.bf16.mxu0 0
      %1104 = vmatmul.mubr.bf16.gmra.mrb[0].mxu0 %v925
      %v1105 = vpop.f32.mrb[0].mxu0
      %v1106 = vadd.f32 %v1066, %v1105
      %v1107 = vpop.f32.mrb[0].mxu0
      %v1108 = vpop.f32.mrb[0].mxu0
      %v1109 = vpop.f32.mrb[0].mxu0
      %1110 = vdwg.mxu0
      %v1111 = vpack.c.bf16 %v209, %v209
      %v1113 = vsel %vm242, %v1111, 0
      %1115 = vmatprep.subr.bf16.mxu0 0
      %1116 = vmatpush1.bf16.msra.mxu0 %v340
      %1117 = vmatprep.subr.bf16.mxu0 0
      %1118 = vmatpush1.bf16.msra.mxu0 0
      %1119 = vmatprep.subr.bf16.mxu0 0
      %1120 = vmatpush1.bf16.msra.mxu0 0
      %1121 = vmatprep.subr.bf16.mxu0 0
      %1122 = vmatpush1.bf16.msra.mxu0 0
      %1123 = vmatprep.subr.bf16.mxu0 0
      %1124 = vmatpush1.bf16.msra.mxu0 0
      %1125 = vmatprep.subr.bf16.mxu0 0
      %1126 = vmatpush1.bf16.msra.mxu0 0
      %1127 = vmatprep.subr.bf16.mxu0 0
      %1128 = vmatpush1.bf16.msra.mxu0 0
      %1129 = vmatprep.subr.bf16.mxu0 0
      %1130 = vmatpush1.bf16.msra.mxu0 0
      %1131 = vmatprep.subr.bf16.mxu0 0
      %1132 = vmatpush1.bf16.msra.mxu0 0
      %1133 = vmatprep.subr.bf16.mxu0 0
      %1134 = vmatpush1.bf16.msra.mxu0 0
      %1135 = vmatprep.subr.bf16.mxu0 0
      %1136 = vmatpush1.bf16.msra.mxu0 0
      %1137 = vmatprep.subr.bf16.mxu0 0
      %1138 = vmatpush1.bf16.msra.mxu0 0
      %1139 = vmatprep.subr.bf16.mxu0 0
      %1140 = vmatpush1.bf16.msra.mxu0 0
      %1141 = vmatprep.subr.bf16.mxu0 0
      %1142 = vmatpush1.bf16.msra.mxu0 0
      %1143 = vmatprep.subr.bf16.mxu0 0
      %1144 = vmatpush1.bf16.msra.mxu0 0
      %1145 = vmatprep.subr.bf16.mxu0 0
      %1146 = vmatpush1.bf16.msra.mxu0 0
      %1147 = vmatprep.mubr.bf16.mxu0 0
      %1148 = vmatmul.mubr.bf16.gmra.mrb[0].mxu0 %v1113
      %v1149 = vpop.f32.mrb[0].mxu0
      %v1150 = vadd.f32 0.0, %v1149
      %v1151 = vpop.f32.mrb[0].mxu0
      %v1152 = vpop.f32.mrb[0].mxu0
      %v1153 = vpop.f32.mrb[0].mxu0
      %1154 = vdwg.mxu0
      %v1155 = vadd.f32 %v1106, %v1150
      %v1156 = vpack.c.bf16 %v210, %v209
      %v1158 = vshrl.u32 %v1156, 16
      %v1160 = vshll.u32 %v1156, 16
      %v1162 = vrot.slane %v1160, 1
      %v1163 = vor.u32 %v1158, %v1162
      %v1165 = vsel %vm242, %v1163, 0
      %1167 = vmatprep.subr.bf16.mxu0 0
      %1168 = vmatpush1.bf16.msra.mxu0 %v398
      %1169 = vmatprep.subr.bf16.mxu0 0
      %1170 = vmatpush1.bf16.msra.mxu0 0
      %1171 = vmatprep.subr.bf16.mxu0 0
      %1172 = vmatpush1.bf16.msra.mxu0 0
      %1173 = vmatprep.subr.bf16.mxu0 0
      %1174 = vmatpush1.bf16.msra.mxu0 0
      %1175 = vmatprep.subr.bf16.mxu0 0
      %1176 = vmatpush1.bf16.msra.mxu0 0
      %1177 = vmatprep.subr.bf16.mxu0 0
      %1178 = vmatpush1.bf16.msra.mxu0 0
      %1179 = vmatprep.subr.bf16.mxu0 0
      %1180 = vmatpush1.bf16.msra.mxu0 0
      %1181 = vmatprep.subr.bf16.mxu0 0
      %1182 = vmatpush1.bf16.msra.mxu0 0
      %1183 = vmatprep.subr.bf16.mxu0 0
      %1184 = vmatpush1.bf16.msra.mxu0 0
      %1185 = vmatprep.subr.bf16.mxu0 0
      %1186 = vmatpush1.bf16.msra.mxu0 0
      %1187 = vmatprep.subr.bf16.mxu0 0
      %1188 = vmatpush1.bf16.msra.mxu0 0
      %1189 = vmatprep.subr.bf16.mxu0 0
      %1190 = vmatpush1.bf16.msra.mxu0 0
      %1191 = vmatprep.subr.bf16.mxu0 0
      %1192 = vmatpush1.bf16.msra.mxu0 0
      %1193 = vmatprep.subr.bf16.mxu0 0
      %1194 = vmatpush1.bf16.msra.mxu0 0
      %1195 = vmatprep.subr.bf16.mxu0 0
      %1196 = vmatpush1.bf16.msra.mxu0 0
      %1197 = vmatprep.subr.bf16.mxu0 0
      %1198 = vmatpush1.bf16.msra.mxu0 0
      %1199 = vmatprep.mubr.bf16.mxu0 0
      %1200 = vmatmul.mubr.bf16.gmra.mrb[0].mxu0 %v1165
      %v1201 = vpop.f32.mrb[0].mxu0
      %v1202 = vadd.f32 0.0, %v1201
      %v1203 = vpop.f32.mrb[0].mxu0
      %v1204 = vpop.f32.mrb[0].mxu0
      %v1205 = vpop.f32.mrb[0].mxu0
      %1206 = vdwg.mxu0
      %v1207 = vadd.f32 %v1155, %v1202
      %v1208 = vmul.f32 %v1207, %v448
      %v1209 = vadd.f32 %v1208, %v455
      %v1210 = vxor.u32 %v1209, 2147483648
      %v1211 = vmul.f32 %v1210, 1.442695
      %v1212 = vpow.pop %v1211
      %v1213 = vadd.f32 %v1212, 1.0
      %v1214 = vrcp.pop %v1213
      %v1215 = vmul.f32 1.0, %v1214
      %v1216 = vmul.f32 %v1209, %v1215
      %s1217 = scalar_lea.vmem %s197, 32
      %1218 = vst.msk [vmem:[%s1217] sm:$0xff] %vm465, %v1216
      %1219 = vmatprep.subr.bf16.mxu0 0
      %1220 = vmatpush1.bf16.msra.mxu0 %v240
      %1221 = vmatprep.subr.bf16.mxu0 0
      %1222 = vmatpush1.bf16.msra.mxu0 0
      %1223 = vmatprep.subr.bf16.mxu0 0
      %1224 = vmatpush1.bf16.msra.mxu0 0
      %1225 = vmatprep.subr.bf16.mxu0 0
      %1226 = vmatpush1.bf16.msra.mxu0 0
      %1227 = vmatprep.subr.bf16.mxu0 0
      %1228 = vmatpush1.bf16.msra.mxu0 0
      %1229 = vmatprep.subr.bf16.mxu0 0
      %1230 = vmatpush1.bf16.msra.mxu0 0
      %1231 = vmatprep.subr.bf16.mxu0 0
      %1232 = vmatpush1.bf16.msra.mxu0 0
      %1233 = vmatprep.subr.bf16.mxu0 0
      %1234 = vmatpush1.bf16.msra.mxu0 0
      %1235 = vmatprep.subr.bf16.mxu0 0
      %1236 = vmatpush1.bf16.msra.mxu0 0
      %1237 = vmatprep.subr.bf16.mxu0 0
      %1238 = vmatpush1.bf16.msra.mxu0 0
      %1239 = vmatprep.subr.bf16.mxu0 0
      %1240 = vmatpush1.bf16.msra.mxu0 0
      %1241 = vmatprep.subr.bf16.mxu0 0
      %1242 = vmatpush1.bf16.msra.mxu0 0
      %1243 = vmatprep.subr.bf16.mxu0 0
      %1244 = vmatpush1.bf16.msra.mxu0 0
      %1245 = vmatprep.subr.bf16.mxu0 0
      %1246 = vmatpush1.bf16.msra.mxu0 0
      %1247 = vmatprep.subr.bf16.mxu0 0
      %1248 = vmatpush1.bf16.msra.mxu0 0
      %1249 = vmatprep.subr.bf16.mxu0 0
      %1250 = vmatpush1.bf16.msra.mxu0 0
      %1251 = vmatprep.mubr.bf16.mxu0 0
      %1252 = vmatmul.mubr.bf16.gmra.mrb[0].mxu0 %v1165
      %v1253 = vpop.f32.mrb[0].mxu0
      %v1254 = vadd.f32 0.0, %v1253
      %v1255 = vpop.f32.mrb[0].mxu0
      %v1256 = vpop.f32.mrb[0].mxu0
      %v1257 = vpop.f32.mrb[0].mxu0
      %1258 = vdwg.mxu0
      %1259 = vmatprep.subr.bf16.mxu0 0
      %1260 = vmatpush1.bf16.msra.mxu0 %v290
      %1261 = vmatprep.subr.bf16.mxu0 0
      %1262 = vmatpush1.bf16.msra.mxu0 0
      %1263 = vmatprep.subr.bf16.mxu0 0
      %1264 = vmatpush1.bf16.msra.mxu0 0
      %1265 = vmatprep.subr.bf16.mxu0 0
      %1266 = vmatpush1.bf16.msra.mxu0 0
      %1267 = vmatprep.subr.bf16.mxu0 0
      %1268 = vmatpush1.bf16.msra.mxu0 0
      %1269 = vmatprep.subr.bf16.mxu0 0
      %1270 = vmatpush1.bf16.msra.mxu0 0
      %1271 = vmatprep.subr.bf16.mxu0 0
      %1272 = vmatpush1.bf16.msra.mxu0 0
      %1273 = vmatprep.subr.bf16.mxu0 0
      %1274 = vmatpush1.bf16.msra.mxu0 0
      %1275 = vmatprep.subr.bf16.mxu0 0
      %1276 = vmatpush1.bf16.msra.mxu0 0
      %1277 = vmatprep.subr.bf16.mxu0 0
      %1278 = vmatpush1.bf16.msra.mxu0 0
      %1279 = vmatprep.subr.bf16.mxu0 0
      %1280 = vmatpush1.bf16.msra.mxu0 0
      %1281 = vmatprep.subr.bf16.mxu0 0
      %1282 = vmatpush1.bf16.msra.mxu0 0
      %1283 = vmatprep.subr.bf16.mxu0 0
      %1284 = vmatpush1.bf16.msra.mxu0 0
      %1285 = vmatprep.subr.bf16.mxu0 0
      %1286 = vmatpush1.bf16.msra.mxu0 0
      %1287 = vmatprep.subr.bf16.mxu0 0
      %1288 = vmatpush1.bf16.msra.mxu0 0
      %1289 = vmatprep.subr.bf16.mxu0 0
      %1290 = vmatpush1.bf16.msra.mxu0 0
      %1291 = vmatprep.mubr.bf16.mxu0 0
      %1292 = vmatmul.mubr.bf16.gmra.mrb[0].mxu0 %v1113
      %v1293 = vpop.f32.mrb[0].mxu0
      %v1294 = vadd.f32 %v1254, %v1293
      %v1295 = vpop.f32.mrb[0].mxu0
      %v1296 = vpop.f32.mrb[0].mxu0
      %v1297 = vpop.f32.mrb[0].mxu0
      %1298 = vdwg.mxu0
      %v1299 = vpack.c.bf16 %v211, %v211
      %v1301 = vsel %vm242, %v1299, 0
      %1303 = vmatprep.subr.bf16.mxu0 0
      %1304 = vmatpush1.bf16.msra.mxu0 %v340
      %1305 = vmatprep.subr.bf16.mxu0 0
      %1306 = vmatpush1.bf16.msra.mxu0 0
      %1307 = vmatprep.subr.bf16.mxu0 0
      %1308 = vmatpush1.bf16.msra.mxu0 0
      %1309 = vmatprep.subr.bf16.mxu0 0
      %1310 = vmatpush1.bf16.msra.mxu0 0
      %1311 = vmatprep.subr.bf16.mxu0 0
      %1312 = vmatpush1.bf16.msra.mxu0 0
      %1313 = vmatprep.subr.bf16.mxu0 0
      %1314 = vmatpush1.bf16.msra.mxu0 0
      %1315 = vmatprep.subr.bf16.mxu0 0
      %1316 = vmatpush1.bf16.msra.mxu0 0
      %1317 = vmatprep.subr.bf16.mxu0 0
      %1318 = vmatpush1.bf16.msra.mxu0 0
      %1319 = vmatprep.subr.bf16.mxu0 0
      %1320 = vmatpush1.bf16.msra.mxu0 0
      %1321 = vmatprep.subr.bf16.mxu0 0
      %1322 = vmatpush1.bf16.msra.mxu0 0
      %1323 = vmatprep.subr.bf16.mxu0 0
      %1324 = vmatpush1.bf16.msra.mxu0 0
      %1325 = vmatprep.subr.bf16.mxu0 0
      %1326 = vmatpush1.bf16.msra.mxu0 0
      %1327 = vmatprep.subr.bf16.mxu0 0
      %1328 = vmatpush1.bf16.msra.mxu0 0
      %1329 = vmatprep.subr.bf16.mxu0 0
      %1330 = vmatpush1.bf16.msra.mxu0 0
      %1331 = vmatprep.subr.bf16.mxu0 0
      %1332 = vmatpush1.bf16.msra.mxu0 0
      %1333 = vmatprep.subr.bf16.mxu0 0
      %1334 = vmatpush1.bf16.msra.mxu0 0
      %1335 = vmatprep.mubr.bf16.mxu0 0
      %1336 = vmatmul.mubr.bf16.gmra.mrb[0].mxu0 %v1301
      %v1337 = vpop.f32.mrb[0].mxu0
      %v1338 = vadd.f32 0.0, %v1337
      %v1339 = vpop.f32.mrb[0].mxu0
      %v1340 = vpop.f32.mrb[0].mxu0
      %v1341 = vpop.f32.mrb[0].mxu0
      %1342 = vdwg.mxu0
      %v1343 = vadd.f32 %v1294, %v1338
      %v1344 = vpack.c.bf16 %v212, %v211
      %v1346 = vshrl.u32 %v1344, 16
      %v1348 = vshll.u32 %v1344, 16
      %v1350 = vrot.slane %v1348, 1
      %v1351 = vor.u32 %v1346, %v1350
      %v1353 = vsel %vm242, %v1351, 0
      %1355 = vmatprep.subr.bf16.mxu0 0
      %1356 = vmatpush1.bf16.msra.mxu0 %v398
      %1357 = vmatprep.subr.bf16.mxu0 0
      %1358 = vmatpush1.bf16.msra.mxu0 0
      %1359 = vmatprep.subr.bf16.mxu0 0
      %1360 = vmatpush1.bf16.msra.mxu0 0
      %1361 = vmatprep.subr.bf16.mxu0 0
      %1362 = vmatpush1.bf16.msra.mxu0 0
      %1363 = vmatprep.subr.bf16.mxu0 0
      %1364 = vmatpush1.bf16.msra.mxu0 0
      %1365 = vmatprep.subr.bf16.mxu0 0
      %1366 = vmatpush1.bf16.msra.mxu0 0
      %1367 = vmatprep.subr.bf16.mxu0 0
      %1368 = vmatpush1.bf16.msra.mxu0 0
      %1369 = vmatprep.subr.bf16.mxu0 0
      %1370 = vmatpush1.bf16.msra.mxu0 0
      %1371 = vmatprep.subr.bf16.mxu0 0
      %1372 = vmatpush1.bf16.msra.mxu0 0
      %1373 = vmatprep.subr.bf16.mxu0 0
      %1374 = vmatpush1.bf16.msra.mxu0 0
      %1375 = vmatprep.subr.bf16.mxu0 0
      %1376 = vmatpush1.bf16.msra.mxu0 0
      %1377 = vmatprep.subr.bf16.mxu0 0
      %1378 = vmatpush1.bf16.msra.mxu0 0
      %1379 = vmatprep.subr.bf16.mxu0 0
      %1380 = vmatpush1.bf16.msra.mxu0 0
      %1381 = vmatprep.subr.bf16.mxu0 0
      %1382 = vmatpush1.bf16.msra.mxu0 0
      %1383 = vmatprep.subr.bf16.mxu0 0
      %1384 = vmatpush1.bf16.msra.mxu0 0
      %1385 = vmatprep.subr.bf16.mxu0 0
      %1386 = vmatpush1.bf16.msra.mxu0 0
      %1387 = vmatprep.mubr.bf16.mxu0 0
      %1388 = vmatmul.mubr.bf16.gmra.mrb[0].mxu0 %v1353
      %v1389 = vpop.f32.mrb[0].mxu0
      %v1390 = vadd.f32 0.0, %v1389
      %v1391 = vpop.f32.mrb[0].mxu0
      %v1392 = vpop.f32.mrb[0].mxu0
      %v1393 = vpop.f32.mrb[0].mxu0
      %1394 = vdwg.mxu0
      %v1395 = vadd.f32 %v1343, %v1390
      %v1396 = vmul.f32 %v1395, %v448
      %v1397 = vadd.f32 %v1396, %v455
      %v1398 = vxor.u32 %v1397, 2147483648
      %v1399 = vmul.f32 %v1398, 1.442695
      %v1400 = vpow.pop %v1399
      %v1401 = vadd.f32 %v1400, 1.0
      %v1402 = vrcp.pop %v1401
      %v1403 = vmul.f32 1.0, %v1402
      %v1404 = vmul.f32 %v1397, %v1403
      %s1405 = scalar_lea.vmem %s197, 40
      %1406 = vst.msk [vmem:[%s1405] sm:$0xff] %vm465, %v1404
      %1407 = vmatprep.subr.bf16.mxu0 0
      %1408 = vmatpush1.bf16.msra.mxu0 %v240
      %1409 = vmatprep.subr.bf16.mxu0 0
      %1410 = vmatpush1.bf16.msra.mxu0 0
      %1411 = vmatprep.subr.bf16.mxu0 0
      %1412 = vmatpush1.bf16.msra.mxu0 0
      %1413 = vmatprep.subr.bf16.mxu0 0
      %1414 = vmatpush1.bf16.msra.mxu0 0
      %1415 = vmatprep.subr.bf16.mxu0 0
      %1416 = vmatpush1.bf16.msra.mxu0 0
      %1417 = vmatprep.subr.bf16.mxu0 0
      %1418 = vmatpush1.bf16.msra.mxu0 0
      %1419 = vmatprep.subr.bf16.mxu0 0
      %1420 = vmatpush1.bf16.msra.mxu0 0
      %1421 = vmatprep.subr.bf16.mxu0 0
      %1422 = vmatpush1.bf16.msra.mxu0 0
      %1423 = vmatprep.subr.bf16.mxu0 0
      %1424 = vmatpush1.bf16.msra.mxu0 0
      %1425 = vmatprep.subr.bf16.mxu0 0
      %1426 = vmatpush1.bf16.msra.mxu0 0
      %1427 = vmatprep.subr.bf16.mxu0 0
      %1428 = vmatpush1.bf16.msra.mxu0 0
      %1429 = vmatprep.subr.bf16.mxu0 0
      %1430 = vmatpush1.bf16.msra.mxu0 0
      %1431 = vmatprep.subr.bf16.mxu0 0
      %1432 = vmatpush1.bf16.msra.mxu0 0
      %1433 = vmatprep.subr.bf16.mxu0 0
      %1434 = vmatpush1.bf16.msra.mxu0 0
      %1435 = vmatprep.subr.bf16.mxu0 0
      %1436 = vmatpush1.bf16.msra.mxu0 0
      %1437 = vmatprep.subr.bf16.mxu0 0
      %1438 = vmatpush1.bf16.msra.mxu0 0
      %1439 = vmatprep.mubr.bf16.mxu0 0
      %1440 = vmatmul.mubr.bf16.gmra.mrb[0].mxu0 %v1353
      %v1441 = vpop.f32.mrb[0].mxu0
      %v1442 = vadd.f32 0.0, %v1441
      %v1443 = vpop.f32.mrb[0].mxu0
      %v1444 = vpop.f32.mrb[0].mxu0
      %v1445 = vpop.f32.mrb[0].mxu0
      %1446 = vdwg.mxu0
      %1447 = vmatprep.subr.bf16.mxu0 0
      %1448 = vmatpush1.bf16.msra.mxu0 %v290
      %1449 = vmatprep.subr.bf16.mxu0 0
      %1450 = vmatpush1.bf16.msra.mxu0 0
      %1451 = vmatprep.subr.bf16.mxu0 0
      %1452 = vmatpush1.bf16.msra.mxu0 0
      %1453 = vmatprep.subr.bf16.mxu0 0
      %1454 = vmatpush1.bf16.msra.mxu0 0
      %1455 = vmatprep.subr.bf16.mxu0 0
      %1456 = vmatpush1.bf16.msra.mxu0 0
      %1457 = vmatprep.subr.bf16.mxu0 0
      %1458 = vmatpush1.bf16.msra.mxu0 0
      %1459 = vmatprep.subr.bf16.mxu0 0
      %1460 = vmatpush1.bf16.msra.mxu0 0
      %1461 = vmatprep.subr.bf16.mxu0 0
      %1462 = vmatpush1.bf16.msra.mxu0 0
      %1463 = vmatprep.subr.bf16.mxu0 0
      %1464 = vmatpush1.bf16.msra.mxu0 0
      %1465 = vmatprep.subr.bf16.mxu0 0
      %1466 = vmatpush1.bf16.msra.mxu0 0
      %1467 = vmatprep.subr.bf16.mxu0 0
      %1468 = vmatpush1.bf16.msra.mxu0 0
      %1469 = vmatprep.subr.bf16.mxu0 0
      %1470 = vmatpush1.bf16.msra.mxu0 0
      %1471 = vmatprep.subr.bf16.mxu0 0
      %1472 = vmatpush1.bf16.msra.mxu0 0
      %1473 = vmatprep.subr.bf16.mxu0 0
      %1474 = vmatpush1.bf16.msra.mxu0 0
      %1475 = vmatprep.subr.bf16.mxu0 0
      %1476 = vmatpush1.bf16.msra.mxu0 0
      %1477 = vmatprep.subr.bf16.mxu0 0
      %1478 = vmatpush1.bf16.msra.mxu0 0
      %1479 = vmatprep.mubr.bf16.mxu0 0
      %1480 = vmatmul.mubr.bf16.gmra.mrb[0].mxu0 %v1301
      %v1481 = vpop.f32.mrb[0].mxu0
      %v1482 = vadd.f32 %v1442, %v1481
      %v1483 = vpop.f32.mrb[0].mxu0
      %v1484 = vpop.f32.mrb[0].mxu0
      %v1485 = vpop.f32.mrb[0].mxu0
      %1486 = vdwg.mxu0
      %v1487 = vpack.c.bf16 %v213, %v213
      %v1489 = vsel %vm242, %v1487, 0
      %1491 = vmatprep.subr.bf16.mxu0 0
      %1492 = vmatpush1.bf16.msra.mxu0 %v340
      %1493 = vmatprep.subr.bf16.mxu0 0
      %1494 = vmatpush1.bf16.msra.mxu0 0
      %1495 = vmatprep.subr.bf16.mxu0 0
      %1496 = vmatpush1.bf16.msra.mxu0 0
      %1497 = vmatprep.subr.bf16.mxu0 0
      %1498 = vmatpush1.bf16.msra.mxu0 0
      %1499 = vmatprep.subr.bf16.mxu0 0
      %1500 = vmatpush1.bf16.msra.mxu0 0
      %1501 = vmatprep.subr.bf16.mxu0 0
      %1502 = vmatpush1.bf16.msra.mxu0 0
      %1503 = vmatprep.subr.bf16.mxu0 0
      %1504 = vmatpush1.bf16.msra.mxu0 0
      %1505 = vmatprep.subr.bf16.mxu0 0
      %1506 = vmatpush1.bf16.msra.mxu0 0
      %1507 = vmatprep.subr.bf16.mxu0 0
      %1508 = vmatpush1.bf16.msra.mxu0 0
      %1509 = vmatprep.subr.bf16.mxu0 0
      %1510 = vmatpush1.bf16.msra.mxu0 0
      %1511 = vmatprep.subr.bf16.mxu0 0
      %1512 = vmatpush1.bf16.msra.mxu0 0
      %1513 = vmatprep.subr.bf16.mxu0 0
      %1514 = vmatpush1.bf16.msra.mxu0 0
      %1515 = vmatprep.subr.bf16.mxu0 0
      %1516 = vmatpush1.bf16.msra.mxu0 0
      %1517 = vmatprep.subr.bf16.mxu0 0
      %1518 = vmatpush1.bf16.msra.mxu0 0
      %1519 = vmatprep.subr.bf16.mxu0 0
      %1520 = vmatpush1.bf16.msra.mxu0 0
      %1521 = vmatprep.subr.bf16.mxu0 0
      %1522 = vmatpush1.bf16.msra.mxu0 0
      %1523 = vmatprep.mubr.bf16.mxu0 0
      %1524 = vmatmul.mubr.bf16.gmra.mrb[0].mxu0 %v1489
      %v1525 = vpop.f32.mrb[0].mxu0
      %v1526 = vadd.f32 0.0, %v1525
      %v1527 = vpop.f32.mrb[0].mxu0
      %v1528 = vpop.f32.mrb[0].mxu0
      %v1529 = vpop.f32.mrb[0].mxu0
      %1530 = vdwg.mxu0
      %v1531 = vadd.f32 %v1482, %v1526
      %v1532 = vpack.c.bf16 %v214, %v213
      %v1534 = vshrl.u32 %v1532, 16
      %v1536 = vshll.u32 %v1532, 16
      %v1538 = vrot.slane %v1536, 1
      %v1539 = vor.u32 %v1534, %v1538
      %v1541 = vsel %vm242, %v1539, 0
      %1543 = vmatprep.subr.bf16.mxu0 0
      %1544 = vmatpush1.bf16.msra.mxu0 %v398
      %1545 = vmatprep.subr.bf16.mxu0 0
      %1546 = vmatpush1.bf16.msra.mxu0 0
      %1547 = vmatprep.subr.bf16.mxu0 0
      %1548 = vmatpush1.bf16.msra.mxu0 0
      %1549 = vmatprep.subr.bf16.mxu0 0
      %1550 = vmatpush1.bf16.msra.mxu0 0
      %1551 = vmatprep.subr.bf16.mxu0 0
      %1552 = vmatpush1.bf16.msra.mxu0 0
      %1553 = vmatprep.subr.bf16.mxu0 0
      %1554 = vmatpush1.bf16.msra.mxu0 0
      %1555 = vmatprep.subr.bf16.mxu0 0
      %1556 = vmatpush1.bf16.msra.mxu0 0
      %1557 = vmatprep.subr.bf16.mxu0 0
      %1558 = vmatpush1.bf16.msra.mxu0 0
      %1559 = vmatprep.subr.bf16.mxu0 0
      %1560 = vmatpush1.bf16.msra.mxu0 0
      %1561 = vmatprep.subr.bf16.mxu0 0
      %1562 = vmatpush1.bf16.msra.mxu0 0
      %1563 = vmatprep.subr.bf16.mxu0 0
      %1564 = vmatpush1.bf16.msra.mxu0 0
      %1565 = vmatprep.subr.bf16.mxu0 0
      %1566 = vmatpush1.bf16.msra.mxu0 0
      %1567 = vmatprep.subr.bf16.mxu0 0
      %1568 = vmatpush1.bf16.msra.mxu0 0
      %1569 = vmatprep.subr.bf16.mxu0 0
      %1570 = vmatpush1.bf16.msra.mxu0 0
      %1571 = vmatprep.subr.bf16.mxu0 0
      %1572 = vmatpush1.bf16.msra.mxu0 0
      %1573 = vmatprep.subr.bf16.mxu0 0
      %1574 = vmatpush1.bf16.msra.mxu0 0
      %1575 = vmatprep.mubr.bf16.mxu0 0
      %1576 = vmatmul.mubr.bf16.gmra.mrb[0].mxu0 %v1541
      %v1577 = vpop.f32.mrb[0].mxu0
      %v1578 = vadd.f32 0.0, %v1577
      %v1579 = vpop.f32.mrb[0].mxu0
      %v1580 = vpop.f32.mrb[0].mxu0
      %v1581 = vpop.f32.mrb[0].mxu0
      %1582 = vdwg.mxu0
      %v1583 = vadd.f32 %v1531, %v1578
      %v1584 = vmul.f32 %v1583, %v448
      %v1585 = vadd.f32 %v1584, %v455
      %v1586 = vxor.u32 %v1585, 2147483648
      %v1587 = vmul.f32 %v1586, 1.442695
      %v1588 = vpow.pop %v1587
      %v1589 = vadd.f32 %v1588, 1.0
      %v1590 = vrcp.pop %v1589
      %v1591 = vmul.f32 1.0, %v1590
      %v1592 = vmul.f32 %v1585, %v1591
      %s1593 = scalar_lea.vmem %s197, 48
      %1594 = vst.msk [vmem:[%s1593] sm:$0xff] %vm465, %v1592
      %1595 = vmatprep.subr.bf16.mxu0 0
      %1596 = vmatpush1.bf16.msra.mxu0 %v240
      %1597 = vmatprep.subr.bf16.mxu0 0
      %1598 = vmatpush1.bf16.msra.mxu0 0
      %1599 = vmatprep.subr.bf16.mxu0 0
      %1600 = vmatpush1.bf16.msra.mxu0 0
      %1601 = vmatprep.subr.bf16.mxu0 0
      %1602 = vmatpush1.bf16.msra.mxu0 0
      %1603 = vmatprep.subr.bf16.mxu0 0
      %1604 = vmatpush1.bf16.msra.mxu0 0
      %1605 = vmatprep.subr.bf16.mxu0 0
      %1606 = vmatpush1.bf16.msra.mxu0 0
      %1607 = vmatprep.subr.bf16.mxu0 0
      %1608 = vmatpush1.bf16.msra.mxu0 0
      %1609 = vmatprep.subr.bf16.mxu0 0
      %1610 = vmatpush1.bf16.msra.mxu0 0
      %1611 = vmatprep.subr.bf16.mxu0 0
      %1612 = vmatpush1.bf16.msra.mxu0 0
      %1613 = vmatprep.subr.bf16.mxu0 0
      %1614 = vmatpush1.bf16.msra.mxu0 0
      %1615 = vmatprep.subr.bf16.mxu0 0
      %1616 = vmatpush1.bf16.msra.mxu0 0
      %1617 = vmatprep.subr.bf16.mxu0 0
      %1618 = vmatpush1.bf16.msra.mxu0 0
      %1619 = vmatprep.subr.bf16.mxu0 0
      %1620 = vmatpush1.bf16.msra.mxu0 0
      %1621 = vmatprep.subr.bf16.mxu0 0
      %1622 = vmatpush1.bf16.msra.mxu0 0
      %1623 = vmatprep.subr.bf16.mxu0 0
      %1624 = vmatpush1.bf16.msra.mxu0 0
      %1625 = vmatprep.subr.bf16.mxu0 0
      %1626 = vmatpush1.bf16.msra.mxu0 0
      %1627 = vmatprep.mubr.bf16.mxu0 0
      %1628 = vmatmul.mubr.bf16.gmra.mrb[0].mxu0 %v1541
      %v1629 = vpop.f32.mrb[0].mxu0
      %v1630 = vadd.f32 0.0, %v1629
      %v1631 = vpop.f32.mrb[0].mxu0
      %v1632 = vpop.f32.mrb[0].mxu0
      %v1633 = vpop.f32.mrb[0].mxu0
      %1634 = vdwg.mxu0
      %1635 = vmatprep.subr.bf16.mxu0 0
      %1636 = vmatpush1.bf16.msra.mxu0 %v290
      %1637 = vmatprep.subr.bf16.mxu0 0
      %1638 = vmatpush1.bf16.msra.mxu0 0
      %1639 = vmatprep.subr.bf16.mxu0 0
      %1640 = vmatpush1.bf16.msra.mxu0 0
      %1641 = vmatprep.subr.bf16.mxu0 0
      %1642 = vmatpush1.bf16.msra.mxu0 0
      %1643 = vmatprep.subr.bf16.mxu0 0
      %1644 = vmatpush1.bf16.msra.mxu0 0
      %1645 = vmatprep.subr.bf16.mxu0 0
      %1646 = vmatpush1.bf16.msra.mxu0 0
      %1647 = vmatprep.subr.bf16.mxu0 0
      %1648 = vmatpush1.bf16.msra.mxu0 0
      %1649 = vmatprep.subr.bf16.mxu0 0
      %1650 = vmatpush1.bf16.msra.mxu0 0
      %1651 = vmatprep.subr.bf16.mxu0 0
      %1652 = vmatpush1.bf16.msra.mxu0 0
      %1653 = vmatprep.subr.bf16.mxu0 0
      %1654 = vmatpush1.bf16.msra.mxu0 0
      %1655 = vmatprep.subr.bf16.mxu0 0
      %1656 = vmatpush1.bf16.msra.mxu0 0
      %1657 = vmatprep.subr.bf16.mxu0 0
      %1658 = vmatpush1.bf16.msra.mxu0 0
      %1659 = vmatprep.subr.bf16.mxu0 0
      %1660 = vmatpush1.bf16.msra.mxu0 0
      %1661 = vmatprep.subr.bf16.mxu0 0
      %1662 = vmatpush1.bf16.msra.mxu0 0
      %1663 = vmatprep.subr.bf16.mxu0 0
      %1664 = vmatpush1.bf16.msra.mxu0 0
      %1665 = vmatprep.subr.bf16.mxu0 0
      %1666 = vmatpush1.bf16.msra.mxu0 0
      %1667 = vmatprep.mubr.bf16.mxu0 0
      %1668 = vmatmul.mubr.bf16.gmra.mrb[0].mxu0 %v1489
      %v1669 = vpop.f32.mrb[0].mxu0
      %v1670 = vadd.f32 %v1630, %v1669
      %v1671 = vpop.f32.mrb[0].mxu0
      %v1672 = vpop.f32.mrb[0].mxu0
      %v1673 = vpop.f32.mrb[0].mxu0
      %1674 = vdwg.mxu0
      %v1675 = vpack.c.bf16 %v215, %v215
      %v1677 = vsel %vm242, %v1675, 0
      %1679 = vmatprep.subr.bf16.mxu0 0
      %1680 = vmatpush1.bf16.msra.mxu0 %v340
      %1681 = vmatprep.subr.bf16.mxu0 0
      %1682 = vmatpush1.bf16.msra.mxu0 0
      %1683 = vmatprep.subr.bf16.mxu0 0
      %1684 = vmatpush1.bf16.msra.mxu0 0
      %1685 = vmatprep.subr.bf16.mxu0 0
      %1686 = vmatpush1.bf16.msra.mxu0 0
      %1687 = vmatprep.subr.bf16.mxu0 0
      %1688 = vmatpush1.bf16.msra.mxu0 0
      %1689 = vmatprep.subr.bf16.mxu0 0
      %1690 = vmatpush1.bf16.msra.mxu0 0
      %1691 = vmatprep.subr.bf16.mxu0 0
      %1692 = vmatpush1.bf16.msra.mxu0 0
      %1693 = vmatprep.subr.bf16.mxu0 0
      %1694 = vmatpush1.bf16.msra.mxu0 0
      %1695 = vmatprep.subr.bf16.mxu0 0
      %1696 = vmatpush1.bf16.msra.mxu0 0
      %1697 = vmatprep.subr.bf16.mxu0 0
      %1698 = vmatpush1.bf16.msra.mxu0 0
      %1699 = vmatprep.subr.bf16.mxu0 0
      %1700 = vmatpush1.bf16.msra.mxu0 0
      %1701 = vmatprep.subr.bf16.mxu0 0
      %1702 = vmatpush1.bf16.msra.mxu0 0
      %1703 = vmatprep.subr.bf16.mxu0 0
      %1704 = vmatpush1.bf16.msra.mxu0 0
      %1705 = vmatprep.subr.bf16.mxu0 0
      %1706 = vmatpush1.bf16.msra.mxu0 0
      %1707 = vmatprep.subr.bf16.mxu0 0
      %1708 = vmatpush1.bf16.msra.mxu0 0
      %1709 = vmatprep.subr.bf16.mxu0 0
      %1710 = vmatpush1.bf16.msra.mxu0 0
      %1711 = vmatprep.mubr.bf16.mxu0 0
      %1712 = vmatmul.mubr.bf16.gmra.mrb[0].mxu0 %v1677
      %v1713 = vpop.f32.mrb[0].mxu0
      %v1714 = vadd.f32 0.0, %v1713
      %v1715 = vpop.f32.mrb[0].mxu0
      %v1716 = vpop.f32.mrb[0].mxu0
      %v1717 = vpop.f32.mrb[0].mxu0
      %1718 = vdwg.mxu0
      %v1719 = vadd.f32 %v1670, %v1714
      %v1720 = vpack.c.bf16 %v216, %v215
      %v1722 = vshrl.u32 %v1720, 16
      %v1724 = vshll.u32 %v1720, 16
      %v1726 = vrot.slane %v1724, 1
      %v1727 = vor.u32 %v1722, %v1726
      %v1729 = vsel %vm242, %v1727, 0
      %1731 = vmatprep.subr.bf16.mxu0 0
      %1732 = vmatpush1.bf16.msra.mxu0 %v398
      %1733 = vmatprep.subr.bf16.mxu0 0
      %1734 = vmatpush1.bf16.msra.mxu0 0
      %1735 = vmatprep.subr.bf16.mxu0 0
      %1736 = vmatpush1.bf16.msra.mxu0 0
      %1737 = vmatprep.subr.bf16.mxu0 0
      %1738 = vmatpush1.bf16.msra.mxu0 0
      %1739 = vmatprep.subr.bf16.mxu0 0
      %1740 = vmatpush1.bf16.msra.mxu0 0
      %1741 = vmatprep.subr.bf16.mxu0 0
      %1742 = vmatpush1.bf16.msra.mxu0 0
      %1743 = vmatprep.subr.bf16.mxu0 0
      %1744 = vmatpush1.bf16.msra.mxu0 0
      %1745 = vmatprep.subr.bf16.mxu0 0
      %1746 = vmatpush1.bf16.msra.mxu0 0
      %1747 = vmatprep.subr.bf16.mxu0 0
      %1748 = vmatpush1.bf16.msra.mxu0 0
      %1749 = vmatprep.subr.bf16.mxu0 0
      %1750 = vmatpush1.bf16.msra.mxu0 0
      %1751 = vmatprep.subr.bf16.mxu0 0
      %1752 = vmatpush1.bf16.msra.mxu0 0
      %1753 = vmatprep.subr.bf16.mxu0 0
      %1754 = vmatpush1.bf16.msra.mxu0 0
      %1755 = vmatprep.subr.bf16.mxu0 0
      %1756 = vmatpush1.bf16.msra.mxu0 0
      %1757 = vmatprep.subr.bf16.mxu0 0
      %1758 = vmatpush1.bf16.msra.mxu0 0
      %1759 = vmatprep.subr.bf16.mxu0 0
      %1760 = vmatpush1.bf16.msra.mxu0 0
      %1761 = vmatprep.subr.bf16.mxu0 0
      %1762 = vmatpush1.bf16.msra.mxu0 0
      %1763 = vmatprep.mubr.bf16.mxu0 0
      %1764 = vmatmul.mubr.bf16.gmra.mrb[0].mxu0 %v1729
      %v1765 = vpop.f32.mrb[0].mxu0
      %v1766 = vadd.f32 0.0, %v1765
      %v1767 = vpop.f32.mrb[0].mxu0
      %v1768 = vpop.f32.mrb[0].mxu0
      %v1769 = vpop.f32.mrb[0].mxu0
      %1770 = vdwg.mxu0
      %v1771 = vadd.f32 %v1719, %v1766
      %v1772 = vmul.f32 %v1771, %v448
      %v1773 = vadd.f32 %v1772, %v455
      %v1774 = vxor.u32 %v1773, 2147483648
      %v1775 = vmul.f32 %v1774, 1.442695
      %v1776 = vpow.pop %v1775
      %v1777 = vadd.f32 %v1776, 1.0
      %v1778 = vrcp.pop %v1777
      %v1779 = vmul.f32 1.0, %v1778
      %v1780 = vmul.f32 %v1773, %v1779
      %s1781 = scalar_lea.vmem %s197, 56
      %1782 = vst.msk [vmem:[%s1781] sm:$0xff] %vm465, %v1780
      %p1783 = scmp.lt.s32.totalorder %s15, 1
      %s1784 = scalar_select %p1783, %s15, 1
      %s1785 = smul.addr %s1784, 8
      %s1786 = smul.addr %s1785, 8
      %s1787 = scalar_lea.vmem %s4, %s1786
      // Predicated region
      $region37: #{forward_pallas.6} parent=35 // pred_check
        %p1788 = pneg %p122
      $region38: #{forward_pallas.6} parent=35 // pred_check_branch
        %1790 = sbr.rel (%p1788) target = $region40
      $region39: #{forward_pallas.6} parent=35 // pred_region
        _
      $region40: #{forward_pallas.6} parent=35 // pred_fallthru
        _
    $region36: #{forward_pallas.6} parent=5 // pred_fallthru
      _
    %p1791 = scmp.le.s32.totalorder 2, %s10
    // Predicated region
    $region41: #{forward_pallas.6} parent=5 // pred_check
      %p1792 = pneg %p1791
    $region42: #{forward_pallas.6} parent=5 // pred_check_branch
      %1794 = sbr.rel (%p1792) target = $region44
    $region43: #{forward_pallas.6} parent=5 // pred_region
      %s1795 = ssub.s32 %s10, 2
      // Predicated region
      $region45: #{forward_pallas.6} parent=43 // pred_check
        %p1796 = pneg %p128
      $region46: #{forward_pallas.6} parent=43 // pred_check_branch
        %1798 = sbr.rel (%p1796) target = $region48
      $region47: #{forward_pallas.6} parent=43 // pred_region
        %p1799 = scmp.lt.s32.totalorder %s16, 1
        %s1800 = scalar_select %p1799, %s16, 1
        %s1801 = smul.addr %s1800, 8
        %s1802 = smul.addr %s1801, 8
        %s1803 = scalar_lea.vmem %s4, %s1802
      $region48: #{forward_pallas.6} parent=43 // pred_fallthru
        _
    $region44: #{forward_pallas.6} parent=5 // pred_fallthru
      _
  $region6: #{forward_pallas.6} parent=0 // loop_footer
    %s14 = sadd.s32 1, %s10
  $region7: #{forward_pallas.6} parent=0 // loop_footer_branch
    %9 = sbr.rel target = $region3
  $region8: #{forward_pallas.6} parent=0 // loop_exit
    _

// kernel: forward_pallas.11
$region0: #{forward_pallas.11}
  #allocation0 [shape = 'u32[]', space=smem, size = 0x4, offset = 0x4, fixed_abs, tag = 'smem constant byte address 0x4 - core index']
  #allocation1 [shape = 'u32[144,128]{1,0:T(1,128)}', space=vmem, size = 0x12000, scoped, tag = 'internal scratch']
  %s0 = inlined_call_operand.vmem [shape: f32[8,32], index: 0, kind: input, shape index: {}]
  %s1 = inlined_call_operand.vmem [shape: bf16[32,27], index: 1, kind: input, shape index: {}]
  %s2 = inlined_call_operand.vmem [shape: f32[5,27], index: 2, kind: input, shape index: {}]
  %s3 = inlined_call_operand.vmem [shape: f32[8,27], index: 3, kind: output, shape index: {0}]
  %s4 = inlined_call_operand.vmem [shape: f32[8,27], index: 4, kind: output, shape index: {1}]
  %5 = xla_tuple %s3, %s4
  %s6 = sld [smem:[#allocation0]]
  $region30: #{forward_pallas.11} parent=0
    _
  %s8 = ssub.s32 1, %s6
  %s9 = scalar_select 0, %s8, %s6
  // Predicated region
  $region2: #{forward_pallas.11} parent=0 // pred_check
    _
  $region3: #{forward_pallas.11} parent=0 // pred_check_branch
    %11 = sbr.rel (0) target = $region5
  $region4: #{forward_pallas.11} parent=0 // pred_region
    _
  $region5: #{forward_pallas.11} parent=0 // pred_fallthru
    _
  // Predicated region
  $region6: #{forward_pallas.11} parent=0 // pred_check
    _
  $region7: #{forward_pallas.11} parent=0 // pred_check_branch
    %13 = sbr.rel (0) target = $region9
  $region8: #{forward_pallas.11} parent=0 // pred_region
    _
  $region9: #{forward_pallas.11} parent=0 // pred_fallthru
    _
  // Predicated region
  $region10: #{forward_pallas.11} parent=0 // pred_check
    _
  $region11: #{forward_pallas.11} parent=0 // pred_check_branch
    %15 = sbr.rel (0) target = $region13
  $region12: #{forward_pallas.11} parent=0 // pred_region
    _
  $region13: #{forward_pallas.11} parent=0 // pred_fallthru
    _
  %v17 = vld [vmem:[%s0] sm:$0xff]
  %v18 = vpack.c.bf16 %v17, %v17
  %v19 = vld [vmem:[%s1] sm:$0xf]
  %v20 = vld [vmem:[%s1 + $0x4] sm:$0xf]
  %v21 = vld [vmem:[%s1 + $0x8] sm:$0xf]
  %v22 = vld [vmem:[%s1 + $0xc] sm:$0xf]
  %v23 = vld [vmem:[%s2] sm:$0x1]
  %v24 = vlaneseq
  %v25 = vshrl.u32 %v24, 7
  %v26 = vsub.s32 0, %v25
  %v27 = vrot.slane %v23, %v26
  %v32 = vunpack.c.l.b16 %v19
  %v33 = vunpack.c.l.b16 %v20
  %v34 = vunpack.c.l.b16 %v21
  %v35 = vunpack.c.l.b16 %v22
  %v36 = vpack.c.b16 %v33, %v32
  %v37 = vpack.c.b16 %v35, %v34
  %vm40 = vcmask 261120
  %v42 = vsel %vm40, %v18, 0
  %44 = vmatprep.subr.bf16.mxu0 0
  %45 = vmatpush1.bf16.msra.mxu0 %v36
  %46 = vmatprep.subr.bf16.mxu0 0
  %47 = vmatpush1.bf16.msra.mxu0 %v37
  %48 = vmatprep.subr.bf16.mxu0 0
  %49 = vmatpush1.bf16.msra.mxu0 0
  %50 = vmatprep.subr.bf16.mxu0 0
  %51 = vmatpush1.bf16.msra.mxu0 0
  %52 = vmatprep.subr.bf16.mxu0 0
  %53 = vmatpush1.bf16.msra.mxu0 0
  %54 = vmatprep.subr.bf16.mxu0 0
  %55 = vmatpush1.bf16.msra.mxu0 0
  %56 = vmatprep.subr.bf16.mxu0 0
  %57 = vmatpush1.bf16.msra.mxu0 0
  %58 = vmatprep.subr.bf16.mxu0 0
  %59 = vmatpush1.bf16.msra.mxu0 0
  %60 = vmatprep.subr.bf16.mxu0 0
  %61 = vmatpush1.bf16.msra.mxu0 0
  %62 = vmatprep.subr.bf16.mxu0 0
  %63 = vmatpush1.bf16.msra.mxu0 0
  %64 = vmatprep.subr.bf16.mxu0 0
  %65 = vmatpush1.bf16.msra.mxu0 0
  %66 = vmatprep.subr.bf16.mxu0 0
  %67 = vmatpush1.bf16.msra.mxu0 0
  %68 = vmatprep.subr.bf16.mxu0 0
  %69 = vmatpush1.bf16.msra.mxu0 0
  %70 = vmatprep.subr.bf16.mxu0 0
  %71 = vmatpush1.bf16.msra.mxu0 0
  %72 = vmatprep.subr.bf16.mxu0 0
  %73 = vmatpush1.bf16.msra.mxu0 0
  %74 = vmatprep.subr.bf16.mxu0 0
  %75 = vmatpush1.bf16.msra.mxu0 0
  %76 = vmatprep.mubr.bf16.mxu0 0
  %77 = vmatmul.mubr.bf16.gmra.mrb[0].mxu0 %v42
  %v78 = vpop.f32.mrb[0].mxu0
  %v79 = vadd.f32 %v27, %v78
  %v80 = vpop.f32.mrb[0].mxu0
  %v81 = vpop.f32.mrb[0].mxu0
  %v82 = vpop.f32.mrb[0].mxu0
  %83 = vdwg.mxu0
  %vm84 = vcmask 220160
  %85 = vst.msk [vmem:[%s3] sm:$0xff] %vm84, %v79
  %v86 = vxor.u32 %v79, 2147483648
  %v87 = vmul.f32 %v86, 1.442695
  %v88 = vpow.pop %v87
  %v89 = vadd.f32 %v88, 1.0
  %v90 = vrcp.pop %v89
  %v91 = vmul.f32 1.0, %v90
  %v92 = vlaneseq
  %v93 = vshrl.u32 %v92, 7
  %s94 = smul.u32 0, 8
  %v95 = vstv %s94
  %v96 = vadd.s32 %v93, %v95
  %v97 = vand.u32 %v96, 3
  %v98 = vand.u32 %v97, 1
  %v99 = vcvt.s32.f32 %v98
  %v100 = vshra.s32 %v97, 1
  %v101 = vcvt.s32.f32 %v100
  %v102 = vld [vmem:[%s2 + $0x1] sm:$0x1]
  %v103 = vld [vmem:[%s2 + $0x2] sm:$0x1]
  %v104 = vld [vmem:[%s2 + $0x3] sm:$0x1]
  %v105 = vld [vmem:[%s2 + $0x4] sm:$0x1]
  %v106 = vadd.f32 %v102, %v103
  %v107 = vlaneseq
  %v108 = vshrl.u32 %v107, 7
  %v109 = vsub.s32 0, %v108
  %v110 = vrot.slane %v102, %v109
  %v111 = vmul.f32 %v110, %v99
  %v112 = vlaneseq
  %v113 = vshrl.u32 %v112, 7
  %v114 = vsub.s32 0, %v113
  %v115 = vrot.slane %v103, %v114
  %v116 = vmul.f32 %v115, %v101
  %v117 = vadd.f32 %v111, %v116
  %v118 = vmul.f32 %v106, 0.5
  %v119 = vlaneseq
  %v120 = vshrl.u32 %v119, 7
  %v121 = vsub.s32 0, %v120
  %v122 = vrot.slane %v118, %v121
  %v123 = vsub.f32 %v117, %v122
  %v124 = vmul.f32 %v91, 2.0
  %v125 = vadd.f32 %v124, %v123
  %v126 = vmul.f32 %v125, 8.0
  %v127 = vmul.f32 %v124, %v124
  %v128 = vlaneseq
  %v129 = vshrl.u32 %v128, 7
  %v130 = vsub.s32 0, %v129
  %v131 = vrot.slane %v105, %v130
  %v132 = vmul.f32 %v127, %v131
  %vm133 = vcmp.gt.f32.partialorder %v106, 0.5
  %vm134 = vcmp.gt.f32.partialorder %v104, 0.5
  %v135 = vsel %vm134, 1, 0
  %v136 = vlaneseq
  %v137 = vshrl.u32 %v136, 7
  %v138 = vsub.s32 0, %v137
  %v139 = vrot.slane %v135, %v138
  %vm140 = vcmp.eq.s32.totalorder %v139, 1
  %v141 = vsel %vm140, %v132, %v91
  %v142 = vsel %vm133, 1, 0
  %v143 = vlaneseq
  %v144 = vshrl.u32 %v143, 7
  %v145 = vsub.s32 0, %v144
  %v146 = vrot.slane %v142, %v145
  %vm147 = vcmp.eq.s32.totalorder %v146, 1
  %v148 = vsel %vm147, %v126, %v141
  %149 = vst.msk [vmem:[%s4] sm:$0xff] %vm84, %v148
  // Predicated region
  $region14: #{forward_pallas.11} parent=0 // pred_check
    _
  $region15: #{forward_pallas.11} parent=0 // pred_check_branch
    %151 = sbr.rel (0) target = $region17
  $region16: #{forward_pallas.11} parent=0 // pred_region
    _
  $region17: #{forward_pallas.11} parent=0 // pred_fallthru
    _
  // Predicated region
  $region18: #{forward_pallas.11} parent=0 // pred_check
    _
  $region19: #{forward_pallas.11} parent=0 // pred_check_branch
    %153 = sbr.rel (0) target = $region21
  $region20: #{forward_pallas.11} parent=0 // pred_region
    _
  $region21: #{forward_pallas.11} parent=0 // pred_fallthru
    _
  // Predicated region
  $region22: #{forward_pallas.11} parent=0 // pred_check
    _
  $region23: #{forward_pallas.11} parent=0 // pred_check_branch
    %155 = sbr.rel (0) target = $region25
  $region24: #{forward_pallas.11} parent=0 // pred_region
    _
  $region25: #{forward_pallas.11} parent=0 // pred_fallthru
    _
  // Predicated region
  $region26: #{forward_pallas.11} parent=0 // pred_check
    _
  $region27: #{forward_pallas.11} parent=0 // pred_check_branch
    %157 = sbr.rel (0) target = $region29
  $region28: #{forward_pallas.11} parent=0 // pred_region
    _
  $region29: #{forward_pallas.11} parent=0 // pred_fallthru
    _

// kernel: forward_pallas.8
$region0: #{forward_pallas.8}
  #allocation0 [shape = 'u32[]', space=smem, size = 0x4, offset = 0x4, fixed_abs, tag = 'smem constant byte address 0x4 - core index']
  #allocation1 [shape = 'u32[144,128]{1,0:T(1,128)}', space=vmem, size = 0x12000, scoped, tag = 'internal scratch']
  %s0 = inlined_call_operand.vmem [shape: f32[2,3,3,64], index: 0, kind: input, shape index: {}]
  %s1 = inlined_call_operand.vmem [shape: bf16[4,64,32], index: 1, kind: input, shape index: {}]
  %s2 = inlined_call_operand.vmem [shape: f32[1,32], index: 2, kind: input, shape index: {}]
  %s3 = inlined_call_operand.vmem [shape: f32[1,32], index: 3, kind: input, shape index: {}]
  %s4 = inlined_call_operand.vmem [shape: f32[2,2,2,32], index: 4, kind: output, shape index: {}]
  %s5 = sld [smem:[#allocation0]]
  $region49: #{forward_pallas.8} parent=0
    _
  %s7 = ssub.s32 1, %s5
  %s8 = scalar_select 0, %s7, %s5
  loop: start=0, step=1, limit=4
  $region2: #{forward_pallas.8} parent=0 // loop_pre_header
    _
  $region3: #{forward_pallas.8} parent=0 // loop_header
    %s10 = sphi 0, %s14
    %p11 = scmp.ge.s32.totalorder %s10, 4
    %s20 = sphi 0, %s22
    %s23 = sphi 0, %s20
    %s24 = sphi 0, %s23
    %s40 = sphi 0, %s24
    %s44 = sphi 0, %s44
    %s46 = sphi 0, %s44
    %s47 = sphi 0, %s46
    %s61 = sphi 0, %s47
    %s65 = sphi 0, %s65
    %s67 = sphi 0, %s65
    %s68 = sphi 0, %s67
    %s82 = sphi 0, %s68
    %s86 = sphi 0, %s86
    %s88 = sphi 0, %s86
    %s89 = sphi 0, %s88
    %s103 = sphi 0, %s89
    %s109 = sphi 0, %s111
    %s112 = sphi 0, %s109
    %s113 = sphi 0, %s112
    %s129 = sphi 0, %s113
  $region4: #{forward_pallas.8} parent=0 // loop_header_branch
    %13 = sbr.rel (%p11) target = $region8
  $region5: #{forward_pallas.8} parent=0 // loop_body
    %s15 = ssub.s32 %s10, 1
    %s16 = ssub.s32 %s10, 2
    %s17 = sadd.s32 %s10, 1
    %s18 = ssub.s32 %s10, %s17
    %p19 = scmp.eq.s32.totalorder %s18, 0
    %s21 = sadd.s32 %s20, 1
    %s22 = scalar_select %p19, %s20, %s21
    %p25 = pneg %p19
    %p26 = scmp.eq.s32.totalorder %s10, 1
    %p27 = por %p25, %p26
    %p28 = scmp.ne.s32.totalorder %s20, %s23
    %p29 = scmp.eq.s32.totalorder %s10, 0
    %p30 = por %p28, %p29
    %p31 = scmp.ne.s32.totalorder %s20, %s23
    %p32 = scmp.eq.s32.totalorder %s15, 1
    %p33 = por %p31, %p32
    %p34 = scmp.ne.s32.totalorder %s23, %s24
    %p35 = scmp.eq.s32.totalorder %s15, 0
    %p36 = por %p34, %p35
    %p37 = scmp.ne.s32.totalorder %s23, %s24
    %p38 = scmp.eq.s32.totalorder %s16, 1
    %p39 = por %p37, %p38
    %p41 = scmp.ne.s32.totalorder %s24, %s40
    %p42 = scmp.eq.s32.totalorder %s16, 0
    %p43 = por %p41, %p42
    %s45 = sadd.s32 %s44, 1
    %p48 = scmp.eq.s32.totalorder %s10, 1
    %p49 = scmp.ne.s32.totalorder %s44, %s46
    %p50 = scmp.eq.s32.totalorder %s10, 0
    %p51 = por %p49, %p50
    %p52 = scmp.ne.s32.totalorder %s44, %s46
    %p53 = scmp.eq.s32.totalorder %s15, 1
    %p54 = por %p52, %p53
    %p55 = scmp.ne.s32.totalorder %s46, %s47
    %p56 = scmp.eq.s32.totalorder %s15, 0
    %p57 = por %p55, %p56
    %p58 = scmp.ne.s32.totalorder %s46, %s47
    %p59 = scmp.eq.s32.totalorder %s16, 1
    %p60 = por %p58, %p59
    %p62 = scmp.ne.s32.totalorder %s47, %s61
    %p63 = scmp.eq.s32.totalorder %s16, 0
    %p64 = por %p62, %p63
    %s66 = sadd.s32 %s65, 1
    %p69 = scmp.eq.s32.totalorder %s10, 1
    %p70 = scmp.ne.s32.totalorder %s65, %s67
    %p71 = scmp.eq.s32.totalorder %s10, 0
    %p72 = por %p70, %p71
    %p73 = scmp.ne.s32.totalorder %s65, %s67
    %p74 = scmp.eq.s32.totalorder %s15, 1
    %p75 = por %p73, %p74
    %p76 = scmp.ne.s32.totalorder %s67, %s68
    %p77 = scmp.eq.s32.totalorder %s15, 0
    %p78 = por %p76, %p77
    %p79 = scmp.ne.s32.totalorder %s67, %s68
    %p80 = scmp.eq.s32.totalorder %s16, 1
    %p81 = por %p79, %p80
    %p83 = scmp.ne.s32.totalorder %s68, %s82
    %p84 = scmp.eq.s32.totalorder %s16, 0
    %p85 = por %p83, %p84
    %s87 = sadd.s32 %s86, 1
    %p90 = scmp.eq.s32.totalorder %s10, 1
    %p91 = scmp.ne.s32.totalorder %s86, %s88
    %p92 = scmp.eq.s32.totalorder %s10, 0
    %p93 = por %p91, %p92
    %p94 = scmp.ne.s32.totalorder %s86, %s88
    %p95 = scmp.eq.s32.totalorder %s15, 1
    %p96 = por %p94, %p95
    %p97 = scmp.ne.s32.totalorder %s88, %s89
    %p98 = scmp.eq.s32.totalorder %s15, 0
    %p99 = por %p97, %p98
    %p100 = scmp.ne.s32.totalorder %s88, %s89
    %p101 = scmp.eq.s32.totalorder %s16, 1
    %p102 = por %p100, %p101
    %p104 = scmp.ne.s32.totalorder %s89, %s103
    %p105 = scmp.eq.s32.totalorder %s16, 0
    %p106 = por %p104, %p105
    %s107 = ssub.s32 %s10, %s17
    %p108 = scmp.eq.s32.totalorder %s107, 0
    %s110 = sadd.s32 %s109, 1
    %s111 = scalar_select %p108, %s109, %s110
    %p114 = pneg %p108
    %p115 = scmp.eq.s32.totalorder %s10, 1
    %p116 = por %p114, %p115
    %p117 = scmp.ne.s32.totalorder %s109, %s112
    %p118 = scmp.eq.s32.totalorder %s10, 0
    %p119 = por %p117, %p118
    %p120 = scmp.ne.s32.totalorder %s109, %s112
    %p121 = scmp.eq.s32.totalorder %s15, 1
    %p122 = por %p120, %p121
    %p123 = scmp.ne.s32.totalorder %s112, %s113
    %p124 = scmp.eq.s32.totalorder %s15, 0
    %p125 = por %p123, %p124
    %p126 = scmp.ne.s32.totalorder %s112, %s113
    %p127 = scmp.eq.s32.totalorder %s16, 1
    %p128 = por %p126, %p127
    %p130 = scmp.ne.s32.totalorder %s113, %s129
    %p131 = scmp.eq.s32.totalorder %s16, 0
    %p132 = por %p130, %p131
    %p133 = scmp.le.s32.totalorder 1, %s10
    %p134 = scmp.lt.s32.totalorder %s10, 3
    %p135 = pnand %p133, %p134
    %p136 = pneg %p135
    // Predicated region
    $region9: #{forward_pallas.8} parent=5 // pred_check
      _
    $region10: #{forward_pallas.8} parent=5 // pred_check_branch
      %138 = sbr.rel (%p135) target = $region12
    $region11: #{forward_pallas.8} parent=5 // pred_region
      %s139 = ssub.s32 %s10, 1
      // Predicated region
      $region13: #{forward_pallas.8} parent=11 // pred_check
        %p140 = pneg %p57
      $region14: #{forward_pallas.8} parent=11 // pred_check_branch
        %142 = sbr.rel (%p140) target = $region16
      $region15: #{forward_pallas.8} parent=11 // pred_region
        _
      $region16: #{forward_pallas.8} parent=11 // pred_fallthru
        _
      // Predicated region
      $region17: #{forward_pallas.8} parent=11 // pred_check
        %p143 = pneg %p78
      $region18: #{forward_pallas.8} parent=11 // pred_check_branch
        %145 = sbr.rel (%p143) target = $region20
      $region19: #{forward_pallas.8} parent=11 // pred_region
        _
      $region20: #{forward_pallas.8} parent=11 // pred_fallthru
        _
      // Predicated region
      $region21: #{forward_pallas.8} parent=11 // pred_check
        %p146 = pneg %p99
      $region22: #{forward_pallas.8} parent=11 // pred_check_branch
        %148 = sbr.rel (%p146) target = $region24
      $region23: #{forward_pallas.8} parent=11 // pred_region
        _
      $region24: #{forward_pallas.8} parent=11 // pred_fallthru
        _
    $region12: #{forward_pallas.8} parent=5 // pred_fallthru
      _
    %p149 = scmp.lt.s32.totalorder %s10, 2
    // Predicated region
    $region25: #{forward_pallas.8} parent=5 // pred_check
      %p150 = pneg %p149
    $region26: #{forward_pallas.8} parent=5 // pred_check_branch
      %152 = sbr.rel (%p150) target = $region28
    $region27: #{forward_pallas.8} parent=5 // pred_region
      // Predicated region
      $region29: #{forward_pallas.8} parent=27 // pred_check
        %p153 = pneg %p30
      $region30: #{forward_pallas.8} parent=27 // pred_check_branch
        %155 = sbr.rel (%p153) target = $region32
      $region31: #{forward_pallas.8} parent=27 // pred_region
        %p156 = scmp.lt.s32.totalorder %s10, 1
        %s157 = scalar_select %p156, %s10, 1
        %s158 = smul.addr %s157, 3
        %s159 = smul.addr %s158, 4
        %s160 = scalar_lea.vmem %s0, %s159
      $region32: #{forward_pallas.8} parent=27 // pred_fallthru
        _
    $region28: #{forward_pallas.8} parent=5 // pred_fallthru
      _
    %p161 = scmp.le.s32.totalorder 1, %s10
    %p162 = scmp.lt.s32.totalorder %s10, 3
    %p163 = pnand %p161, %p162
    %p164 = pneg %p163
    // Predicated region
    $region33: #{forward_pallas.8} parent=5 // pred_check
      _
    $region34: #{forward_pallas.8} parent=5 // pred_check_branch
      %166 = sbr.rel (%p163) target = $region36
    $region35: #{forward_pallas.8} parent=5 // pred_region
      %s167 = ssub.s32 %s10, 1
      %p168 = scmp.lt.s32.totalorder %s15, 1
      %s169 = scalar_select %p168, %s15, 1
      %s170 = smul.addr %s169, 3
      %s171 = smul.addr %s170, 4
      %s172 = scalar_lea.vmem %s0, %s171
      %p173 = pneg %p36
      %p174 = pneg %p33
      %p175 = pneg %p57
      %p176 = pneg %p54
      %p177 = pneg %p78
      %p178 = pneg %p75
      %p179 = pneg %p99
      %p180 = pneg %p96
      %p181 = pneg %p125
      %p182 = pneg %p122
      %p183 = scmp.lt.s32.totalorder %s15, 1
      %s184 = scalar_select %p183, %s15, 1
      %s185 = smul.addr %s184, 2
      %s186 = smul.addr %s185, 2
      %s187 = scalar_lea.vmem %s4, %s186
      %p188 = scmp.lt.s32.totalorder %s15, 1
      %s189 = scalar_select %p188, %s15, 1
      %s190 = smul.addr %s189, 3
      %s191 = smul.addr %s190, 4
      %s192 = scalar_lea.vmem %s0, %s191
      %p193 = scmp.lt.s32.totalorder %s15, 1
      %s194 = scalar_select %p193, %s15, 1
      %s195 = smul.addr %s194, 2
      %s196 = smul.addr %s195, 2
      %s197 = scalar_lea.vmem %s4, %s196
      %v199 = vld [vmem:[%s192] sm:$0x7]
      %v200 = vld [vmem:[%s192 + $0x4] sm:$0x7]
      %v201 = vld [vmem:[%s192 + $0x8] sm:$0x7]
      %v202 = vld [vmem:[%s1] sm:$0xf]
      %v203 = vld [vmem:[%s1 + $0x4] sm:$0xf]
      %v204 = vld [vmem:[%s1 + $0x8] sm:$0xf]
      %v205 = vld [vmem:[%s1 + $0xc] sm:$0xf]
      %v206 = vld [vmem:[%s1 + $0x10] sm:$0xf]
      %v207 = vld [vmem:[%s1 + $0x14] sm:$0xf]
      %v208 = vld [vmem:[%s1 + $0x18] sm:$0xf]
      %v209 = vld [vmem:[%s1 + $0x1c] sm:$0xf]
      %v210 = vld [vmem:[%s1 + $0x20] sm:$0xf]
      %v211 = vld [vmem:[%s1 + $0x24] sm:$0xf]
      %v212 = vld [vmem:[%s1 + $0x28] sm:$0xf]
      %v213 = vld [vmem:[%s1 + $0x2c] sm:$0xf]
      %v214 = vld [vmem:[%s1 + $0x30] sm:$0xf]
      %v215 = vld [vmem:[%s1 + $0x34] sm:$0xf]
      %v216 = vld [vmem:[%s1 + $0x38] sm:$0xf]
      %v217 = vld [vmem:[%s1 + $0x3c] sm:$0xf]
      %v218 = vld [vmem:[%s1 + $0x40] sm:$0xf]
      %v219 = vld [vmem:[%s1 + $0x44] sm:$0xf]
      %v220 = vld [vmem:[%s1 + $0x48] sm:$0xf]
      %v221 = vld [vmem:[%s1 + $0x4c] sm:$0xf]
      %v222 = vld [vmem:[%s1 + $0x50] sm:$0xf]
      %v223 = vld [vmem:[%s1 + $0x54] sm:$0xf]
      %v224 = vld [vmem:[%s1 + $0x58] sm:$0xf]
      %v225 = vld [vmem:[%s1 + $0x5c] sm:$0xf]
      %v226 = vld [vmem:[%s1 + $0x60] sm:$0xf]
      %v227 = vld [vmem:[%s1 + $0x64] sm:$0xf]
      %v228 = vld [vmem:[%s1 + $0x68] sm:$0xf]
      %v229 = vld [vmem:[%s1 + $0x6c] sm:$0xf]
      %v230 = vld [vmem:[%s1 + $0x70] sm:$0xf]
      %v231 = vld [vmem:[%s1 + $0x74] sm:$0xf]
      %v232 = vld [vmem:[%s1 + $0x78] sm:$0xf]
      %v233 = vld [vmem:[%s1 + $0x7c] sm:$0xf]
      %v234 = vld [vmem:[%s2] sm:$0x1]
      %v235 = vld [vmem:[%s3] sm:$0x1]
      %v236 = vpack.c.bf16 %v199, %v199
      %v238 = vshrl.u32 %v236, 16
      %v240 = vshll.u32 %v236, 16
      %v242 = vrot.slane %v240, 1
      %v243 = vor.u32 %v238, %v242
      %v252 = vunpack.c.l.b16 %v210
      %v253 = vunpack.c.l.b16 %v211
      %v254 = vunpack.c.l.b16 %v212
      %v255 = vunpack.c.l.b16 %v213
      %v256 = vunpack.c.l.b16 %v214
      %v257 = vunpack.c.l.b16 %v215
      %v258 = vunpack.c.l.b16 %v216
      %v259 = vunpack.c.l.b16 %v217
      %v260 = vpack.c.b16 %v253, %v252
      %v261 = vpack.c.b16 %v255, %v254
      %v262 = vpack.c.b16 %v257, %v256
      %v263 = vpack.c.b16 %v259, %v258
      %vm268 = vcmask 523264
      %v270 = vsel %vm268, %v243, 0
      %272 = vmatprep.subr.bf16.mxu0 0
      %273 = vmatpush1.bf16.msra.mxu0 %v260
      %274 = vmatprep.subr.bf16.mxu0 0
      %275 = vmatpush1.bf16.msra.mxu0 %v261
      %276 = vmatprep.subr.bf16.mxu0 0
      %277 = vmatpush1.bf16.msra.mxu0 %v262
      %278 = vmatprep.subr.bf16.mxu0 0
      %279 = vmatpush1.bf16.msra.mxu0 %v263
      %280 = vmatprep.subr.bf16.mxu0 0
      %281 = vmatpush1.bf16.msra.mxu0 0
      %282 = vmatprep.subr.bf16.mxu0 0
      %283 = vmatpush1.bf16.msra.mxu0 0
      %284 = vmatprep.subr.bf16.mxu0 0
      %285 = vmatpush1.bf16.msra.mxu0 0
      %286 = vmatprep.subr.bf16.mxu0 0
      %287 = vmatpush1.bf16.msra.mxu0 0
      %288 = vmatprep.subr.bf16.mxu0 0
      %289 = vmatpush1.bf16.msra.mxu0 0
      %290 = vmatprep.subr.bf16.mxu0 0
      %291 = vmatpush1.bf16.msra.mxu0 0
      %292 = vmatprep.subr.bf16.mxu0 0
      %293 = vmatpush1.bf16.msra.mxu0 0
      %294 = vmatprep.subr.bf16.mxu0 0
      %295 = vmatpush1.bf16.msra.mxu0 0
      %296 = vmatprep.subr.bf16.mxu0 0
      %297 = vmatpush1.bf16.msra.mxu0 0
      %298 = vmatprep.subr.bf16.mxu0 0
      %299 = vmatpush1.bf16.msra.mxu0 0
      %300 = vmatprep.subr.bf16.mxu0 0
      %301 = vmatpush1.bf16.msra.mxu0 0
      %302 = vmatprep.subr.bf16.mxu0 0
      %303 = vmatpush1.bf16.msra.mxu0 0
      %304 = vmatprep.mubr.bf16.mxu0 0
      %305 = vmatmul.mubr.bf16.gmra.mrb[0].mxu0 %v270
      %v306 = vpop.f32.mrb[0].mxu0
      %v307 = vadd.f32 0.0, %v306
      %v308 = vpop.f32.mrb[0].mxu0
      %v309 = vpop.f32.mrb[0].mxu0
      %v310 = vpop.f32.mrb[0].mxu0
      %311 = vdwg.mxu0
      %v320 = vunpack.c.l.b16 %v202
      %v321 = vunpack.c.l.b16 %v203
      %v322 = vunpack.c.l.b16 %v204
      %v323 = vunpack.c.l.b16 %v205
      %v324 = vunpack.c.l.b16 %v206
      %v325 = vunpack.c.l.b16 %v207
      %v326 = vunpack.c.l.b16 %v208
      %v327 = vunpack.c.l.b16 %v209
      %v328 = vpack.c.b16 %v321, %v320
      %v329 = vpack.c.b16 %v323, %v322
      %v330 = vpack.c.b16 %v325, %v324
      %v331 = vpack.c.b16 %v327, %v326
      %v336 = vsel %vm268, %v236, 0
      %338 = vmatprep.subr.bf16.mxu0 0
      %339 = vmatpush1.bf16.msra.mxu0 %v328
      %340 = vmatprep.subr.bf16.mxu0 0
      %341 = vmatpush1.bf16.msra.mxu0 %v329
      %342 = vmatprep.subr.bf16.mxu0 0
      %343 = vmatpush1.bf16.msra.mxu0 %v330
      %344 = vmatprep.subr.bf16.mxu0 0
      %345 = vmatpush1.bf16.msra.mxu0 %v331
      %346 = vmatprep.subr.bf16.mxu0 0
      %347 = vmatpush1.bf16.msra.mxu0 0
      %348 = vmatprep.subr.bf16.mxu0 0
      %349 = vmatpush1.bf16.msra.mxu0 0
      %350 = vmatprep.subr.bf16.mxu0 0
      %351 = vmatpush1.bf16.msra.mxu0 0
      %352 = vmatprep.subr.bf16.mxu0 0
      %353 = vmatpush1.bf16.msra.mxu0 0
      %354 = vmatprep.subr.bf16.mxu0 0
      %355 = vmatpush1.bf16.msra.mxu0 0
      %356 = vmatprep.subr.bf16.mxu0 0
      %357 = vmatpush1.bf16.msra.mxu0 0
      %358 = vmatprep.subr.bf16.mxu0 0
      %359 = vmatpush1.bf16.msra.mxu0 0
      %360 = vmatprep.subr.bf16.mxu0 0
      %361 = vmatpush1.bf16.msra.mxu0 0
      %362 = vmatprep.subr.bf16.mxu0 0
      %363 = vmatpush1.bf16.msra.mxu0 0
      %364 = vmatprep.subr.bf16.mxu0 0
      %365 = vmatpush1.bf16.msra.mxu0 0
      %366 = vmatprep.subr.bf16.mxu0 0
      %367 = vmatpush1.bf16.msra.mxu0 0
      %368 = vmatprep.subr.bf16.mxu0 0
      %369 = vmatpush1.bf16.msra.mxu0 0
      %370 = vmatprep.mubr.bf16.mxu0 0
      %371 = vmatmul.mubr.bf16.gmra.mrb[0].mxu0 %v336
      %v372 = vpop.f32.mrb[0].mxu0
      %v373 = vadd.f32 %v307, %v372
      %v374 = vpop.f32.mrb[0].mxu0
      %v375 = vpop.f32.mrb[0].mxu0
      %v376 = vpop.f32.mrb[0].mxu0
      %377 = vdwg.mxu0
      %v378 = vpack.c.bf16 %v200, %v200
      %v387 = vunpack.c.l.b16 %v218
      %v388 = vunpack.c.l.b16 %v219
      %v389 = vunpack.c.l.b16 %v220
      %v390 = vunpack.c.l.b16 %v221
      %v391 = vunpack.c.l.b16 %v222
      %v392 = vunpack.c.l.b16 %v223
      %v393 = vunpack.c.l.b16 %v224
      %v394 = vunpack.c.l.b16 %v225
      %v395 = vpack.c.b16 %v388, %v387
      %v396 = vpack.c.b16 %v390, %v389
      %v397 = vpack.c.b16 %v392, %v391
      %v398 = vpack.c.b16 %v394, %v393
      %v404 = vsel %vm268, %v378, 0
      %406 = vmatprep.subr.bf16.mxu0 0
      %407 = vmatpush1.bf16.msra.mxu0 %v395
      %408 = vmatprep.subr.bf16.mxu0 0
      %409 = vmatpush1.bf16.msra.mxu0 %v396
      %410 = vmatprep.subr.bf16.mxu0 0
      %411 = vmatpush1.bf16.msra.mxu0 %v397
      %412 = vmatprep.subr.bf16.mxu0 0
      %413 = vmatpush1.bf16.msra.mxu0 %v398
      %414 = vmatprep.subr.bf16.mxu0 0
      %415 = vmatpush1.bf16.msra.mxu0 0
      %416 = vmatprep.subr.bf16.mxu0 0
      %417 = vmatpush1.bf16.msra.mxu0 0
      %418 = vmatprep.subr.bf16.mxu0 0
      %419 = vmatpush1.bf16.msra.mxu0 0
      %420 = vmatprep.subr.bf16.mxu0 0
      %421 = vmatpush1.bf16.msra.mxu0 0
      %422 = vmatprep.subr.bf16.mxu0 0
      %423 = vmatpush1.bf16.msra.mxu0 0
      %424 = vmatprep.subr.bf16.mxu0 0
      %425 = vmatpush1.bf16.msra.mxu0 0
      %426 = vmatprep.subr.bf16.mxu0 0
      %427 = vmatpush1.bf16.msra.mxu0 0
      %428 = vmatprep.subr.bf16.mxu0 0
      %429 = vmatpush1.bf16.msra.mxu0 0
      %430 = vmatprep.subr.bf16.mxu0 0
      %431 = vmatpush1.bf16.msra.mxu0 0
      %432 = vmatprep.subr.bf16.mxu0 0
      %433 = vmatpush1.bf16.msra.mxu0 0
      %434 = vmatprep.subr.bf16.mxu0 0
      %435 = vmatpush1.bf16.msra.mxu0 0
      %436 = vmatprep.subr.bf16.mxu0 0
      %437 = vmatpush1.bf16.msra.mxu0 0
      %438 = vmatprep.mubr.bf16.mxu0 0
      %439 = vmatmul.mubr.bf16.gmra.mrb[0].mxu0 %v404
      %v440 = vpop.f32.mrb[0].mxu0
      %v441 = vadd.f32 0.0, %v440
      %v442 = vpop.f32.mrb[0].mxu0
      %v443 = vpop.f32.mrb[0].mxu0
      %v444 = vpop.f32.mrb[0].mxu0
      %445 = vdwg.mxu0
      %v446 = vadd.f32 %v373, %v441
      %v447 = vshrl.u32 %v378, 16
      %v449 = vshll.u32 %v378, 16
      %v451 = vrot.slane %v449, 1
      %v452 = vor.u32 %v447, %v451
      %v461 = vunpack.c.l.b16 %v226
      %v462 = vunpack.c.l.b16 %v227
      %v463 = vunpack.c.l.b16 %v228
      %v464 = vunpack.c.l.b16 %v229
      %v465 = vunpack.c.l.b16 %v230
      %v466 = vunpack.c.l.b16 %v231
      %v467 = vunpack.c.l.b16 %v232
      %v468 = vunpack.c.l.b16 %v233
      %v469 = vpack.c.b16 %v462, %v461
      %v470 = vpack.c.b16 %v464, %v463
      %v471 = vpack.c.b16 %v466, %v465
      %v472 = vpack.c.b16 %v468, %v467
      %v478 = vsel %vm268, %v452, 0
      %480 = vmatprep.subr.bf16.mxu0 0
      %481 = vmatpush1.bf16.msra.mxu0 %v469
      %482 = vmatprep.subr.bf16.mxu0 0
      %483 = vmatpush1.bf16.msra.mxu0 %v470
      %484 = vmatprep.subr.bf16.mxu0 0
      %485 = vmatpush1.bf16.msra.mxu0 %v471
      %486 = vmatprep.subr.bf16.mxu0 0
      %487 = vmatpush1.bf16.msra.mxu0 %v472
      %488 = vmatprep.subr.bf16.mxu0 0
      %489 = vmatpush1.bf16.msra.mxu0 0
      %490 = vmatprep.subr.bf16.mxu0 0
      %491 = vmatpush1.bf16.msra.mxu0 0
      %492 = vmatprep.subr.bf16.mxu0 0
      %493 = vmatpush1.bf16.msra.mxu0 0
      %494 = vmatprep.subr.bf16.mxu0 0
      %495 = vmatpush1.bf16.msra.mxu0 0
      %496 = vmatprep.subr.bf16.mxu0 0
      %497 = vmatpush1.bf16.msra.mxu0 0
      %498 = vmatprep.subr.bf16.mxu0 0
      %499 = vmatpush1.bf16.msra.mxu0 0
      %500 = vmatprep.subr.bf16.mxu0 0
      %501 = vmatpush1.bf16.msra.mxu0 0
      %502 = vmatprep.subr.bf16.mxu0 0
      %503 = vmatpush1.bf16.msra.mxu0 0
      %504 = vmatprep.subr.bf16.mxu0 0
      %505 = vmatpush1.bf16.msra.mxu0 0
      %506 = vmatprep.subr.bf16.mxu0 0
      %507 = vmatpush1.bf16.msra.mxu0 0
      %508 = vmatprep.subr.bf16.mxu0 0
      %509 = vmatpush1.bf16.msra.mxu0 0
      %510 = vmatprep.subr.bf16.mxu0 0
      %511 = vmatpush1.bf16.msra.mxu0 0
      %512 = vmatprep.mubr.bf16.mxu0 0
      %513 = vmatmul.mubr.bf16.gmra.mrb[0].mxu0 %v478
      %v514 = vpop.f32.mrb[0].mxu0
      %v515 = vadd.f32 0.0, %v514
      %v516 = vpop.f32.mrb[0].mxu0
      %v517 = vpop.f32.mrb[0].mxu0
      %v518 = vpop.f32.mrb[0].mxu0
      %519 = vdwg.mxu0
      %v520 = vadd.f32 %v446, %v515
      %v522 = vlaneseq
      %v523 = vshrl.u32 %v522, 7
      %v524 = vsub.s32 0, %v523
      %v525 = vrot.slane %v234, %v524
      %v527 = vmul.f32 %v520, %v525
      %v529 = vlaneseq
      %v530 = vshrl.u32 %v529, 7
      %v531 = vsub.s32 0, %v530
      %v532 = vrot.slane %v235, %v531
      %v534 = vadd.f32 %v527, %v532
      %v535 = vxor.u32 %v534, 2147483648
      %v536 = vmul.f32 %v535, 1.442695
      %v537 = vpow.pop %v536
      %v538 = vadd.f32 %v537, 1.0
      %v539 = vrcp.pop %v538
      %v540 = vmul.f32 1.0, %v539
      %v541 = vmul.f32 %v534, %v540
      %vm542 = vcmask 254976
      %543 = vst.msk [vmem:[%s197] sm:$0x3] %vm542, %v541
      %544 = vmatprep.subr.bf16.mxu0 0
      %545 = vmatpush1.bf16.msra.mxu0 %v260
      %546 = vmatprep.subr.bf16.mxu0 0
      %547 = vmatpush1.bf16.msra.mxu0 %v261
      %548 = vmatprep.subr.bf16.mxu0 0
      %549 = vmatpush1.bf16.msra.mxu0 %v262
      %550 = vmatprep.subr.bf16.mxu0 0
      %551 = vmatpush1.bf16.msra.mxu0 %v263
      %552 = vmatprep.subr.bf16.mxu0 0
      %553 = vmatpush1.bf16.msra.mxu0 0
      %554 = vmatprep.subr.bf16.mxu0 0
      %555 = vmatpush1.bf16.msra.mxu0 0
      %556 = vmatprep.subr.bf16.mxu0 0
      %557 = vmatpush1.bf16.msra.mxu0 0
      %558 = vmatprep.subr.bf16.mxu0 0
      %559 = vmatpush1.bf16.msra.mxu0 0
      %560 = vmatprep.subr.bf16.mxu0 0
      %561 = vmatpush1.bf16.msra.mxu0 0
      %562 = vmatprep.subr.bf16.mxu0 0
      %563 = vmatpush1.bf16.msra.mxu0 0
      %564 = vmatprep.subr.bf16.mxu0 0
      %565 = vmatpush1.bf16.msra.mxu0 0
      %566 = vmatprep.subr.bf16.mxu0 0
      %567 = vmatpush1.bf16.msra.mxu0 0
      %568 = vmatprep.subr.bf16.mxu0 0
      %569 = vmatpush1.bf16.msra.mxu0 0
      %570 = vmatprep.subr.bf16.mxu0 0
      %571 = vmatpush1.bf16.msra.mxu0 0
      %572 = vmatprep.subr.bf16.mxu0 0
      %573 = vmatpush1.bf16.msra.mxu0 0
      %574 = vmatprep.subr.bf16.mxu0 0
      %575 = vmatpush1.bf16.msra.mxu0 0
      %576 = vmatprep.mubr.bf16.mxu0 0
      %577 = vmatmul.mubr.bf16.gmra.mrb[0].mxu0 %v478
      %v578 = vpop.f32.mrb[0].mxu0
      %v579 = vadd.f32 0.0, %v578
      %v580 = vpop.f32.mrb[0].mxu0
      %v581 = vpop.f32.mrb[0].mxu0
      %v582 = vpop.f32.mrb[0].mxu0
      %583 = vdwg.mxu0
      %584 = vmatprep.subr.bf16.mxu0 0
      %585 = vmatpush1.bf16.msra.mxu0 %v328
      %586 = vmatprep.subr.bf16.mxu0 0
      %587 = vmatpush1.bf16.msra.mxu0 %v329
      %588 = vmatprep.subr.bf16.mxu0 0
      %589 = vmatpush1.bf16.msra.mxu0 %v330
      %590 = vmatprep.subr.bf16.mxu0 0
      %591 = vmatpush1.bf16.msra.mxu0 %v331
      %592 = vmatprep.subr.bf16.mxu0 0
      %593 = vmatpush1.bf16.msra.mxu0 0
      %594 = vmatprep.subr.bf16.mxu0 0
      %595 = vmatpush1.bf16.msra.mxu0 0
      %596 = vmatprep.subr.bf16.mxu0 0
      %597 = vmatpush1.bf16.msra.mxu0 0
      %598 = vmatprep.subr.bf16.mxu0 0
      %599 = vmatpush1.bf16.msra.mxu0 0
      %600 = vmatprep.subr.bf16.mxu0 0
      %601 = vmatpush1.bf16.msra.mxu0 0
      %602 = vmatprep.subr.bf16.mxu0 0
      %603 = vmatpush1.bf16.msra.mxu0 0
      %604 = vmatprep.subr.bf16.mxu0 0
      %605 = vmatpush1.bf16.msra.mxu0 0
      %606 = vmatprep.subr.bf16.mxu0 0
      %607 = vmatpush1.bf16.msra.mxu0 0
      %608 = vmatprep.subr.bf16.mxu0 0
      %609 = vmatpush1.bf16.msra.mxu0 0
      %610 = vmatprep.subr.bf16.mxu0 0
      %611 = vmatpush1.bf16.msra.mxu0 0
      %612 = vmatprep.subr.bf16.mxu0 0
      %613 = vmatpush1.bf16.msra.mxu0 0
      %614 = vmatprep.subr.bf16.mxu0 0
      %615 = vmatpush1.bf16.msra.mxu0 0
      %616 = vmatprep.mubr.bf16.mxu0 0
      %617 = vmatmul.mubr.bf16.gmra.mrb[0].mxu0 %v404
      %v618 = vpop.f32.mrb[0].mxu0
      %v619 = vadd.f32 %v579, %v618
      %v620 = vpop.f32.mrb[0].mxu0
      %v621 = vpop.f32.mrb[0].mxu0
      %v622 = vpop.f32.mrb[0].mxu0
      %623 = vdwg.mxu0
      %v624 = vpack.c.bf16 %v201, %v201
      %v626 = vsel %vm268, %v624, 0
      %628 = vmatprep.subr.bf16.mxu0 0
      %629 = vmatpush1.bf16.msra.mxu0 %v395
      %630 = vmatprep.subr.bf16.mxu0 0
      %631 = vmatpush1.bf16.msra.mxu0 %v396
      %632 = vmatprep.subr.bf16.mxu0 0
      %633 = vmatpush1.bf16.msra.mxu0 %v397
      %634 = vmatprep.subr.bf16.mxu0 0
      %635 = vmatpush1.bf16.msra.mxu0 %v398
      %636 = vmatprep.subr.bf16.mxu0 0
      %637 = vmatpush1.bf16.msra.mxu0 0
      %638 = vmatprep.subr.bf16.mxu0 0
      %639 = vmatpush1.bf16.msra.mxu0 0
      %640 = vmatprep.subr.bf16.mxu0 0
      %641 = vmatpush1.bf16.msra.mxu0 0
      %642 = vmatprep.subr.bf16.mxu0 0
      %643 = vmatpush1.bf16.msra.mxu0 0
      %644 = vmatprep.subr.bf16.mxu0 0
      %645 = vmatpush1.bf16.msra.mxu0 0
      %646 = vmatprep.subr.bf16.mxu0 0
      %647 = vmatpush1.bf16.msra.mxu0 0
      %648 = vmatprep.subr.bf16.mxu0 0
      %649 = vmatpush1.bf16.msra.mxu0 0
      %650 = vmatprep.subr.bf16.mxu0 0
      %651 = vmatpush1.bf16.msra.mxu0 0
      %652 = vmatprep.subr.bf16.mxu0 0
      %653 = vmatpush1.bf16.msra.mxu0 0
      %654 = vmatprep.subr.bf16.mxu0 0
      %655 = vmatpush1.bf16.msra.mxu0 0
      %656 = vmatprep.subr.bf16.mxu0 0
      %657 = vmatpush1.bf16.msra.mxu0 0
      %658 = vmatprep.subr.bf16.mxu0 0
      %659 = vmatpush1.bf16.msra.mxu0 0
      %660 = vmatprep.mubr.bf16.mxu0 0
      %661 = vmatmul.mubr.bf16.gmra.mrb[0].mxu0 %v626
      %v662 = vpop.f32.mrb[0].mxu0
      %v663 = vadd.f32 0.0, %v662
      %v664 = vpop.f32.mrb[0].mxu0
      %v665 = vpop.f32.mrb[0].mxu0
      %v666 = vpop.f32.mrb[0].mxu0
      %667 = vdwg.mxu0
      %v668 = vadd.f32 %v619, %v663
      %v669 = vshrl.u32 %v624, 16
      %v671 = vshll.u32 %v624, 16
      %v673 = vrot.slane %v671, 1
      %v674 = vor.u32 %v669, %v673
      %v676 = vsel %vm268, %v674, 0
      %678 = vmatprep.subr.bf16.mxu0 0
      %679 = vmatpush1.bf16.msra.mxu0 %v469
      %680 = vmatprep.subr.bf16.mxu0 0
      %681 = vmatpush1.bf16.msra.mxu0 %v470
      %682 = vmatprep.subr.bf16.mxu0 0
      %683 = vmatpush1.bf16.msra.mxu0 %v471
      %684 = vmatprep.subr.bf16.mxu0 0
      %685 = vmatpush1.bf16.msra.mxu0 %v472
      %686 = vmatprep.subr.bf16.mxu0 0
      %687 = vmatpush1.bf16.msra.mxu0 0
      %688 = vmatprep.subr.bf16.mxu0 0
      %689 = vmatpush1.bf16.msra.mxu0 0
      %690 = vmatprep.subr.bf16.mxu0 0
      %691 = vmatpush1.bf16.msra.mxu0 0
      %692 = vmatprep.subr.bf16.mxu0 0
      %693 = vmatpush1.bf16.msra.mxu0 0
      %694 = vmatprep.subr.bf16.mxu0 0
      %695 = vmatpush1.bf16.msra.mxu0 0
      %696 = vmatprep.subr.bf16.mxu0 0
      %697 = vmatpush1.bf16.msra.mxu0 0
      %698 = vmatprep.subr.bf16.mxu0 0
      %699 = vmatpush1.bf16.msra.mxu0 0
      %700 = vmatprep.subr.bf16.mxu0 0
      %701 = vmatpush1.bf16.msra.mxu0 0
      %702 = vmatprep.subr.bf16.mxu0 0
      %703 = vmatpush1.bf16.msra.mxu0 0
      %704 = vmatprep.subr.bf16.mxu0 0
      %705 = vmatpush1.bf16.msra.mxu0 0
      %706 = vmatprep.subr.bf16.mxu0 0
      %707 = vmatpush1.bf16.msra.mxu0 0
      %708 = vmatprep.subr.bf16.mxu0 0
      %709 = vmatpush1.bf16.msra.mxu0 0
      %710 = vmatprep.mubr.bf16.mxu0 0
      %711 = vmatmul.mubr.bf16.gmra.mrb[0].mxu0 %v676
      %v712 = vpop.f32.mrb[0].mxu0
      %v713 = vadd.f32 0.0, %v712
      %v714 = vpop.f32.mrb[0].mxu0
      %v715 = vpop.f32.mrb[0].mxu0
      %v716 = vpop.f32.mrb[0].mxu0
      %717 = vdwg.mxu0
      %v718 = vadd.f32 %v668, %v713
      %v719 = vmul.f32 %v718, %v525
      %v720 = vadd.f32 %v719, %v532
      %v721 = vxor.u32 %v720, 2147483648
      %v722 = vmul.f32 %v721, 1.442695
      %v723 = vpow.pop %v722
      %v724 = vadd.f32 %v723, 1.0
      %v725 = vrcp.pop %v724
      %v726 = vmul.f32 1.0, %v725
      %v727 = vmul.f32 %v720, %v726
      %s728 = scalar_lea.vmem %s197, 2
      %729 = vst.msk [vmem:[%s728] sm:$0x3] %vm542, %v727
      %p730 = scmp.lt.s32.totalorder %s15, 1
      %s731 = scalar_select %p730, %s15, 1
      %s732 = smul.addr %s731, 2
      %s733 = smul.addr %s732, 2
      %s734 = scalar_lea.vmem %s4, %s733
      // Predicated region
      $region37: #{forward_pallas.8} parent=35 // pred_check
        %p735 = pneg %p122
      $region38: #{forward_pallas.8} parent=35 // pred_check_branch
        %737 = sbr.rel (%p735) target = $region40
      $region39: #{forward_pallas.8} parent=35 // pred_region
        _
      $region40: #{forward_pallas.8} parent=35 // pred_fallthru
        _
    $region36: #{forward_pallas.8} parent=5 // pred_fallthru
      _
    %p738 = scmp.le.s32.totalorder 2, %s10
    // Predicated region
    $region41: #{forward_pallas.8} parent=5 // pred_check
      %p739 = pneg %p738
    $region42: #{forward_pallas.8} parent=5 // pred_check_branch
      %741 = sbr.rel (%p739) target = $region44
    $region43: #{forward_pallas.8} parent=5 // pred_region
      %s742 = ssub.s32 %s10, 2
      // Predicated region
      $region45: #{forward_pallas.8} parent=43 // pred_check
        %p743 = pneg %p128
      $region46: #{forward_pallas.8} parent=43 // pred_check_branch
        %745 = sbr.rel (%p743) target = $region48
      $region47: #{forward_pallas.8} parent=43 // pred_region
        %p746 = scmp.lt.s32.totalorder %s16, 1
        %s747 = scalar_select %p746, %s16, 1
        %s748 = smul.addr %s747, 2
        %s749 = smul.addr %s748, 2
        %s750 = scalar_lea.vmem %s4, %s749
      $region48: #{forward_pallas.8} parent=43 // pred_fallthru
        _
    $region44: #{forward_pallas.8} parent=5 // pred_fallthru
      _
  $region6: #{forward_pallas.8} parent=0 // loop_footer
    %s14 = sadd.s32 1, %s10
  $region7: #{forward_pallas.8} parent=0 // loop_footer_branch
    %9 = sbr.rel target = $region3
  $region8: #{forward_pallas.8} parent=0 // loop_exit
    _

// kernel: forward_pallas.10
$region0: #{forward_pallas.10}
  #allocation0 [shape = 'u32[]', space=smem, size = 0x4, offset = 0x4, fixed_abs, tag = 'smem constant byte address 0x4 - core index']
  #allocation1 [shape = 'u32[144,128]{1,0:T(1,128)}', space=vmem, size = 0x12000, scoped, tag = 'internal scratch']
  %s0 = inlined_call_operand.vmem [shape: f32[32,16], index: 0, kind: input, shape index: {}]
  %s1 = inlined_call_operand.vmem [shape: bf16[16,27], index: 1, kind: input, shape index: {}]
  %s2 = inlined_call_operand.vmem [shape: f32[5,27], index: 2, kind: input, shape index: {}]
  %s3 = inlined_call_operand.vmem [shape: f32[32,27], index: 3, kind: output, shape index: {0}]
  %s4 = inlined_call_operand.vmem [shape: f32[32,27], index: 4, kind: output, shape index: {1}]
  %5 = xla_tuple %s3, %s4
  %s6 = sld [smem:[#allocation0]]
  $region30: #{forward_pallas.10} parent=0
    _
  %s8 = ssub.s32 1, %s6
  %s9 = scalar_select 0, %s8, %s6
  // Predicated region
  $region2: #{forward_pallas.10} parent=0 // pred_check
    _
  $region3: #{forward_pallas.10} parent=0 // pred_check_branch
    %11 = sbr.rel (0) target = $region5
  $region4: #{forward_pallas.10} parent=0 // pred_region
    _
  $region5: #{forward_pallas.10} parent=0 // pred_fallthru
    _
  // Predicated region
  $region6: #{forward_pallas.10} parent=0 // pred_check
    _
  $region7: #{forward_pallas.10} parent=0 // pred_check_branch
    %13 = sbr.rel (0) target = $region9
  $region8: #{forward_pallas.10} parent=0 // pred_region
    _
  $region9: #{forward_pallas.10} parent=0 // pred_fallthru
    _
  // Predicated region
  $region10: #{forward_pallas.10} parent=0 // pred_check
    _
  $region11: #{forward_pallas.10} parent=0 // pred_check_branch
    %15 = sbr.rel (0) target = $region13
  $region12: #{forward_pallas.10} parent=0 // pred_region
    _
  $region13: #{forward_pallas.10} parent=0 // pred_fallthru
    _
  %v17 = vld [vmem:[%s0] sm:$0xff]
  %v18 = vld [vmem:[%s0 + $0x8] sm:$0xff]
  %v19 = vld [vmem:[%s0 + $0x10] sm:$0xff]
  %v20 = vld [vmem:[%s0 + $0x18] sm:$0xff]
  %v21 = vpack.c.bf16 %v18, %v17
  %v22 = vpack.c.bf16 %v20, %v19
  %v23 = vld [vmem:[%s1] sm:$0xf]
  %v24 = vld [vmem:[%s1 + $0x4] sm:$0xf]
  %v25 = vld [vmem:[%s2] sm:$0x1]
  %v26 = vlaneseq
  %v27 = vshrl.u32 %v26, 7
  %v28 = vsub.s32 0, %v27
  %v29 = vrot.slane %v25, %v28
  %v32 = vunpack.c.l.b16 %v23
  %v33 = vunpack.c.l.b16 %v24
  %v34 = vpack.c.b16 %v33, %v32
  %vm36 = vcmask 130048
  %v38 = vsel %vm36, %v21, 0
  %v41 = vsel %vm36, %v22, 0
  %43 = vmatprep.subr.bf16.mxu0 0
  %44 = vmatpush1.bf16.msra.mxu0 %v34
  %45 = vmatprep.subr.bf16.mxu0 0
  %46 = vmatpush1.bf16.msra.mxu0 0
  %47 = vmatprep.subr.bf16.mxu0 0
  %48 = vmatpush1.bf16.msra.mxu0 0
  %49 = vmatprep.subr.bf16.mxu0 0
  %50 = vmatpush1.bf16.msra.mxu0 0
  %51 = vmatprep.subr.bf16.mxu0 0
  %52 = vmatpush1.bf16.msra.mxu0 0
  %53 = vmatprep.subr.bf16.mxu0 0
  %54 = vmatpush1.bf16.msra.mxu0 0
  %55 = vmatprep.subr.bf16.mxu0 0
  %56 = vmatpush1.bf16.msra.mxu0 0
  %57 = vmatprep.subr.bf16.mxu0 0
  %58 = vmatpush1.bf16.msra.mxu0 0
  %59 = vmatprep.subr.bf16.mxu0 0
  %60 = vmatpush1.bf16.msra.mxu0 0
  %61 = vmatprep.subr.bf16.mxu0 0
  %62 = vmatpush1.bf16.msra.mxu0 0
  %63 = vmatprep.subr.bf16.mxu0 0
  %64 = vmatpush1.bf16.msra.mxu0 0
  %65 = vmatprep.subr.bf16.mxu0 0
  %66 = vmatpush1.bf16.msra.mxu0 0
  %67 = vmatprep.subr.bf16.mxu0 0
  %68 = vmatpush1.bf16.msra.mxu0 0
  %69 = vmatprep.subr.bf16.mxu0 0
  %70 = vmatpush1.bf16.msra.mxu0 0
  %71 = vmatprep.subr.bf16.mxu0 0
  %72 = vmatpush1.bf16.msra.mxu0 0
  %73 = vmatprep.subr.bf16.mxu0 0
  %74 = vmatpush1.bf16.msra.mxu0 0
  %75 = vmatprep.mubr.bf16.mxu0 0
  %76 = vmatmul.mubr.bf16.gmra.mrb[0].mxu0 %v38
  %v77 = vpop.f32.mrb[0].mxu0
  %v78 = vadd.f32 %v29, %v77
  %v79 = vpop.f32.mrb[0].mxu0
  %v80 = vpop.f32.mrb[0].mxu0
  %v81 = vadd.f32 %v29, %v80
  %v82 = vpop.f32.mrb[0].mxu0
  %83 = vmatprep.mubr.bf16.mxu0 0
  %84 = vmatmul.mubr.bf16.gmra.mrb[0].mxu0 %v41
  %v85 = vpop.f32.mrb[0].mxu0
  %v86 = vadd.f32 %v29, %v85
  %v87 = vpop.f32.mrb[0].mxu0
  %v88 = vpop.f32.mrb[0].mxu0
  %v89 = vadd.f32 %v29, %v88
  %v90 = vpop.f32.mrb[0].mxu0
  %91 = vdwg.mxu0
  %vm92 = vcmask 220160
  %93 = vst.msk [vmem:[%s3] sm:$0xff] %vm92, %v78
  %94 = vst.msk [vmem:[%s3 + $0x8] sm:$0xff] %vm92, %v81
  %95 = vst.msk [vmem:[%s3 + $0x10] sm:$0xff] %vm92, %v86
  %96 = vst.msk [vmem:[%s3 + $0x18] sm:$0xff] %vm92, %v89
  %v97 = vxor.u32 %v78, 2147483648
  %v98 = vxor.u32 %v81, 2147483648
  %v99 = vxor.u32 %v86, 2147483648
  %v100 = vxor.u32 %v89, 2147483648
  %v101 = vmul.f32 %v97, 1.442695
  %v102 = vpow.pop %v101
  %v103 = vmul.f32 %v98, 1.442695
  %v104 = vpow.pop %v103
  %v105 = vmul.f32 %v99, 1.442695
  %v106 = vpow.pop %v105
  %v107 = vmul.f32 %v100, 1.442695
  %v108 = vpow.pop %v107
  %v109 = vadd.f32 %v102, 1.0
  %v110 = vadd.f32 %v104, 1.0
  %v111 = vadd.f32 %v106, 1.0
  %v112 = vadd.f32 %v108, 1.0
  %v113 = vrcp.pop %v109
  %v114 = vmul.f32 1.0, %v113
  %v115 = vrcp.pop %v110
  %v116 = vmul.f32 1.0, %v115
  %v117 = vrcp.pop %v111
  %v118 = vmul.f32 1.0, %v117
  %v119 = vrcp.pop %v112
  %v120 = vmul.f32 1.0, %v119
  %v121 = vlaneseq
  %v122 = vshrl.u32 %v121, 7
  %v123 = vadd.s32 %v122, 8
  %v124 = vadd.s32 %v122, 16
  %v125 = vadd.s32 %v122, 24
  %s126 = smul.u32 0, 32
  %v127 = vstv %s126
  %v128 = vadd.s32 %v122, %v127
  %v129 = vadd.s32 %v123, %v127
  %v130 = vadd.s32 %v124, %v127
  %v131 = vadd.s32 %v125, %v127
  %v132 = vand.u32 %v128, 15
  %v133 = vand.u32 %v129, 15
  %v134 = vand.u32 %v130, 15
  %v135 = vand.u32 %v131, 15
  %v136 = vand.u32 %v132, 3
  %v137 = vand.u32 %v133, 3
  %v138 = vand.u32 %v134, 3
  %v139 = vand.u32 %v135, 3
  %v140 = vcvt.s32.f32 %v136
  %v141 = vcvt.s32.f32 %v137
  %v142 = vcvt.s32.f32 %v138
  %v143 = vcvt.s32.f32 %v139
  %v144 = vshra.s32 %v132, 2
  %v145 = vshra.s32 %v133, 2
  %v146 = vshra.s32 %v134, 2
  %v147 = vshra.s32 %v135, 2
  %v148 = vcvt.s32.f32 %v144
  %v149 = vcvt.s32.f32 %v145
  %v150 = vcvt.s32.f32 %v146
  %v151 = vcvt.s32.f32 %v147
  %v152 = vld [vmem:[%s2 + $0x1] sm:$0x1]
  %v153 = vld [vmem:[%s2 + $0x2] sm:$0x1]
  %v154 = vld [vmem:[%s2 + $0x3] sm:$0x1]
  %v155 = vld [vmem:[%s2 + $0x4] sm:$0x1]
  %v156 = vadd.f32 %v152, %v153
  %v157 = vlaneseq
  %v158 = vshrl.u32 %v157, 7
  %v159 = vsub.s32 0, %v158
  %v160 = vrot.slane %v152, %v159
  %v161 = vmul.f32 %v160, %v140
  %v162 = vmul.f32 %v160, %v141
  %v163 = vmul.f32 %v160, %v142
  %v164 = vmul.f32 %v160, %v143
  %v165 = vlaneseq
  %v166 = vshrl.u32 %v165, 7
  %v167 = vsub.s32 0, %v166
  %v168 = vrot.slane %v153, %v167
  %v169 = vmul.f32 %v168, %v148
  %v170 = vmul.f32 %v168, %v149
  %v171 = vmul.f32 %v168, %v150
  %v172 = vmul.f32 %v168, %v151
  %v173 = vadd.f32 %v161, %v169
  %v174 = vadd.f32 %v162, %v170
  %v175 = vadd.f32 %v163, %v171
  %v176 = vadd.f32 %v164, %v172
  %v177 = vmul.f32 %v156, 0.5
  %v178 = vlaneseq
  %v179 = vshrl.u32 %v178, 7
  %v180 = vsub.s32 0, %v179
  %v181 = vrot.slane %v177, %v180
  %v182 = vsub.f32 %v173, %v181
  %v183 = vsub.f32 %v174, %v181
  %v184 = vsub.f32 %v175, %v181
  %v185 = vsub.f32 %v176, %v181
  %v186 = vmul.f32 %v114, 2.0
  %v187 = vmul.f32 %v116, 2.0
  %v188 = vmul.f32 %v118, 2.0
  %v189 = vmul.f32 %v120, 2.0
  %v190 = vadd.f32 %v186, %v182
  %v191 = vadd.f32 %v187, %v183
  %v192 = vadd.f32 %v188, %v184
  %v193 = vadd.f32 %v189, %v185
  %v194 = vmul.f32 %v190, 4.0
  %v195 = vmul.f32 %v191, 4.0
  %v196 = vmul.f32 %v192, 4.0
  %v197 = vmul.f32 %v193, 4.0
  %v198 = vmul.f32 %v186, %v186
  %v199 = vmul.f32 %v187, %v187
  %v200 = vmul.f32 %v188, %v188
  %v201 = vmul.f32 %v189, %v189
  %v202 = vlaneseq
  %v203 = vshrl.u32 %v202, 7
  %v204 = vsub.s32 0, %v203
  %v205 = vrot.slane %v155, %v204
  %v206 = vmul.f32 %v198, %v205
  %v207 = vmul.f32 %v199, %v205
  %v208 = vmul.f32 %v200, %v205
  %v209 = vmul.f32 %v201, %v205
  %vm210 = vcmp.gt.f32.partialorder %v156, 0.5
  %vm211 = vcmp.gt.f32.partialorder %v154, 0.5
  %v212 = vsel %vm211, 1, 0
  %v213 = vlaneseq
  %v214 = vshrl.u32 %v213, 7
  %v215 = vsub.s32 0, %v214
  %v216 = vrot.slane %v212, %v215
  %vm217 = vcmp.eq.s32.totalorder %v216, 1
  %v218 = vsel %vm217, %v206, %v114
  %v219 = vsel %vm217, %v207, %v116
  %v220 = vsel %vm217, %v208, %v118
  %v221 = vsel %vm217, %v209, %v120
  %v222 = vsel %vm210, 1, 0
  %v223 = vlaneseq
  %v224 = vshrl.u32 %v223, 7
  %v225 = vsub.s32 0, %v224
  %v226 = vrot.slane %v222, %v225
  %vm227 = vcmp.eq.s32.totalorder %v226, 1
  %v228 = vsel %vm227, %v194, %v218
  %v229 = vsel %vm227, %v195, %v219
  %v230 = vsel %vm227, %v196, %v220
  %v231 = vsel %vm227, %v197, %v221
  %232 = vst.msk [vmem:[%s4] sm:$0xff] %vm92, %v228
  %233 = vst.msk [vmem:[%s4 + $0x8] sm:$0xff] %vm92, %v229
  %234 = vst.msk [vmem:[%s4 + $0x10] sm:$0xff] %vm92, %v230
  %235 = vst.msk [vmem:[%s4 + $0x18] sm:$0xff] %vm92, %v231
  // Predicated region
  $region14: #{forward_pallas.10} parent=0 // pred_check
    _
  $region15: #{forward_pallas.10} parent=0 // pred_check_branch
    %237 = sbr.rel (0) target = $region17
  $region16: #{forward_pallas.10} parent=0 // pred_region
    _
  $region17: #{forward_pallas.10} parent=0 // pred_fallthru
    _
  // Predicated region
  $region18: #{forward_pallas.10} parent=0 // pred_check
    _
  $region19: #{forward_pallas.10} parent=0 // pred_check_branch
    %239 = sbr.rel (0) target = $region21
  $region20: #{forward_pallas.10} parent=0 // pred_region
    _
  $region21: #{forward_pallas.10} parent=0 // pred_fallthru
    _
  // Predicated region
  $region22: #{forward_pallas.10} parent=0 // pred_check
    _
  $region23: #{forward_pallas.10} parent=0 // pred_check_branch
    %241 = sbr.rel (0) target = $region25
  $region24: #{forward_pallas.10} parent=0 // pred_region
    _
  $region25: #{forward_pallas.10} parent=0 // pred_fallthru
    _
  // Predicated region
  $region26: #{forward_pallas.10} parent=0 // pred_check
    _
  $region27: #{forward_pallas.10} parent=0 // pred_check_branch
    %243 = sbr.rel (0) target = $region29
  $region28: #{forward_pallas.10} parent=0 // pred_region
    _
  $region29: #{forward_pallas.10} parent=0 // pred_fallthru
    _

// kernel: forward_pallas.9
$region0: #{forward_pallas.9}
  #allocation0 [shape = 'u32[]', space=smem, size = 0x4, offset = 0x4, fixed_abs, tag = 'smem constant byte address 0x4 - core index']
  #allocation1 [shape = 'u32[144,128]{1,0:T(1,128)}', space=vmem, size = 0x12000, scoped, tag = 'internal scratch']
  %s0 = inlined_call_operand.vmem [shape: f32[128,8], index: 0, kind: input, shape index: {}]
  %s1 = inlined_call_operand.vmem [shape: bf16[8,27], index: 1, kind: input, shape index: {}]
  %s2 = inlined_call_operand.vmem [shape: f32[5,27], index: 2, kind: input, shape index: {}]
  %s3 = inlined_call_operand.vmem [shape: f32[128,27], index: 3, kind: output, shape index: {0}]
  %s4 = inlined_call_operand.vmem [shape: f32[128,27], index: 4, kind: output, shape index: {1}]
  %5 = xla_tuple %s3, %s4
  %s6 = sld [smem:[#allocation0]]
  $region53: #{forward_pallas.9} parent=0
    _
  %s8 = ssub.s32 1, %s6
  %s9 = scalar_select 0, %s8, %s6
  loop: start=0, step=1, limit=4
  $region2: #{forward_pallas.9} parent=0 // loop_pre_header
    _
  $region3: #{forward_pallas.9} parent=0 // loop_header
    %s11 = sphi 0, %s15
    %p12 = scmp.ge.s32.totalorder %s11, 4
    %s21 = sphi 0, %s23
    %s24 = sphi 0, %s21
    %s25 = sphi 0, %s24
    %s41 = sphi 0, %s25
    %s45 = sphi 0, %s45
    %s47 = sphi 0, %s45
    %s48 = sphi 0, %s47
    %s62 = sphi 0, %s48
    %s66 = sphi 0, %s66
    %s68 = sphi 0, %s66
    %s69 = sphi 0, %s68
    %s83 = sphi 0, %s69
    %s89 = sphi 0, %s91
    %s92 = sphi 0, %s89
    %s93 = sphi 0, %s92
    %s109 = sphi 0, %s93
    %s115 = sphi 0, %s117
    %s118 = sphi 0, %s115
    %s119 = sphi 0, %s118
    %s135 = sphi 0, %s119
  $region4: #{forward_pallas.9} parent=0 // loop_header_branch
    %14 = sbr.rel (%p12) target = $region8
  $region5: #{forward_pallas.9} parent=0 // loop_body
    %s16 = ssub.s32 %s11, 1
    %s17 = ssub.s32 %s11, 2
    %s18 = sadd.s32 %s11, 1
    %s19 = ssub.s32 %s11, %s18
    %p20 = scmp.eq.s32.totalorder %s19, 0
    %s22 = sadd.s32 %s21, 1
    %s23 = scalar_select %p20, %s21, %s22
    %p26 = pneg %p20
    %p27 = scmp.eq.s32.totalorder %s11, 1
    %p28 = por %p26, %p27
    %p29 = scmp.ne.s32.totalorder %s21, %s24
    %p30 = scmp.eq.s32.totalorder %s11, 0
    %p31 = por %p29, %p30
    %p32 = scmp.ne.s32.totalorder %s21, %s24
    %p33 = scmp.eq.s32.totalorder %s16, 1
    %p34 = por %p32, %p33
    %p35 = scmp.ne.s32.totalorder %s24, %s25
    %p36 = scmp.eq.s32.totalorder %s16, 0
    %p37 = por %p35, %p36
    %p38 = scmp.ne.s32.totalorder %s24, %s25
    %p39 = scmp.eq.s32.totalorder %s17, 1
    %p40 = por %p38, %p39
    %p42 = scmp.ne.s32.totalorder %s25, %s41
    %p43 = scmp.eq.s32.totalorder %s17, 0
    %p44 = por %p42, %p43
    %s46 = sadd.s32 %s45, 1
    %p49 = scmp.eq.s32.totalorder %s11, 1
    %p50 = scmp.ne.s32.totalorder %s45, %s47
    %p51 = scmp.eq.s32.totalorder %s11, 0
    %p52 = por %p50, %p51
    %p53 = scmp.ne.s32.totalorder %s45, %s47
    %p54 = scmp.eq.s32.totalorder %s16, 1
    %p55 = por %p53, %p54
    %p56 = scmp.ne.s32.totalorder %s47, %s48
    %p57 = scmp.eq.s32.totalorder %s16, 0
    %p58 = por %p56, %p57
    %p59 = scmp.ne.s32.totalorder %s47, %s48
    %p60 = scmp.eq.s32.totalorder %s17, 1
    %p61 = por %p59, %p60
    %p63 = scmp.ne.s32.totalorder %s48, %s62
    %p64 = scmp.eq.s32.totalorder %s17, 0
    %p65 = por %p63, %p64
    %s67 = sadd.s32 %s66, 1
    %p70 = scmp.eq.s32.totalorder %s11, 1
    %p71 = scmp.ne.s32.totalorder %s66, %s68
    %p72 = scmp.eq.s32.totalorder %s11, 0
    %p73 = por %p71, %p72
    %p74 = scmp.ne.s32.totalorder %s66, %s68
    %p75 = scmp.eq.s32.totalorder %s16, 1
    %p76 = por %p74, %p75
    %p77 = scmp.ne.s32.totalorder %s68, %s69
    %p78 = scmp.eq.s32.totalorder %s16, 0
    %p79 = por %p77, %p78
    %p80 = scmp.ne.s32.totalorder %s68, %s69
    %p81 = scmp.eq.s32.totalorder %s17, 1
    %p82 = por %p80, %p81
    %p84 = scmp.ne.s32.totalorder %s69, %s83
    %p85 = scmp.eq.s32.totalorder %s17, 0
    %p86 = por %p84, %p85
    %s87 = ssub.s32 %s11, %s18
    %p88 = scmp.eq.s32.totalorder %s87, 0
    %s90 = sadd.s32 %s89, 1
    %s91 = scalar_select %p88, %s89, %s90
    %p94 = pneg %p88
    %p95 = scmp.eq.s32.totalorder %s11, 1
    %p96 = por %p94, %p95
    %p97 = scmp.ne.s32.totalorder %s89, %s92
    %p98 = scmp.eq.s32.totalorder %s11, 0
    %p99 = por %p97, %p98
    %p100 = scmp.ne.s32.totalorder %s89, %s92
    %p101 = scmp.eq.s32.totalorder %s16, 1
    %p102 = por %p100, %p101
    %p103 = scmp.ne.s32.totalorder %s92, %s93
    %p104 = scmp.eq.s32.totalorder %s16, 0
    %p105 = por %p103, %p104
    %p106 = scmp.ne.s32.totalorder %s92, %s93
    %p107 = scmp.eq.s32.totalorder %s17, 1
    %p108 = por %p106, %p107
    %p110 = scmp.ne.s32.totalorder %s93, %s109
    %p111 = scmp.eq.s32.totalorder %s17, 0
    %p112 = por %p110, %p111
    %s113 = ssub.s32 %s11, %s18
    %p114 = scmp.eq.s32.totalorder %s113, 0
    %s116 = sadd.s32 %s115, 1
    %s117 = scalar_select %p114, %s115, %s116
    %p120 = pneg %p114
    %p121 = scmp.eq.s32.totalorder %s11, 1
    %p122 = por %p120, %p121
    %p123 = scmp.ne.s32.totalorder %s115, %s118
    %p124 = scmp.eq.s32.totalorder %s11, 0
    %p125 = por %p123, %p124
    %p126 = scmp.ne.s32.totalorder %s115, %s118
    %p127 = scmp.eq.s32.totalorder %s16, 1
    %p128 = por %p126, %p127
    %p129 = scmp.ne.s32.totalorder %s118, %s119
    %p130 = scmp.eq.s32.totalorder %s16, 0
    %p131 = por %p129, %p130
    %p132 = scmp.ne.s32.totalorder %s118, %s119
    %p133 = scmp.eq.s32.totalorder %s17, 1
    %p134 = por %p132, %p133
    %p136 = scmp.ne.s32.totalorder %s119, %s135
    %p137 = scmp.eq.s32.totalorder %s17, 0
    %p138 = por %p136, %p137
    %p139 = scmp.le.s32.totalorder 1, %s11
    %p140 = scmp.lt.s32.totalorder %s11, 3
    %p141 = pnand %p139, %p140
    %p142 = pneg %p141
    // Predicated region
    $region9: #{forward_pallas.9} parent=5 // pred_check
      _
    $region10: #{forward_pallas.9} parent=5 // pred_check_branch
      %144 = sbr.rel (%p141) target = $region12
    $region11: #{forward_pallas.9} parent=5 // pred_region
      %s145 = ssub.s32 %s11, 1
      // Predicated region
      $region13: #{forward_pallas.9} parent=11 // pred_check
        %p146 = pneg %p58
      $region14: #{forward_pallas.9} parent=11 // pred_check_branch
        %148 = sbr.rel (%p146) target = $region16
      $region15: #{forward_pallas.9} parent=11 // pred_region
        _
      $region16: #{forward_pallas.9} parent=11 // pred_fallthru
        _
      // Predicated region
      $region17: #{forward_pallas.9} parent=11 // pred_check
        %p149 = pneg %p79
      $region18: #{forward_pallas.9} parent=11 // pred_check_branch
        %151 = sbr.rel (%p149) target = $region20
      $region19: #{forward_pallas.9} parent=11 // pred_region
        _
      $region20: #{forward_pallas.9} parent=11 // pred_fallthru
        _
    $region12: #{forward_pallas.9} parent=5 // pred_fallthru
      _
    %p152 = scmp.lt.s32.totalorder %s11, 2
    // Predicated region
    $region21: #{forward_pallas.9} parent=5 // pred_check
      %p153 = pneg %p152
    $region22: #{forward_pallas.9} parent=5 // pred_check_branch
      %155 = sbr.rel (%p153) target = $region24
    $region23: #{forward_pallas.9} parent=5 // pred_region
      // Predicated region
      $region25: #{forward_pallas.9} parent=23 // pred_check
        %p156 = pneg %p31
      $region26: #{forward_pallas.9} parent=23 // pred_check_branch
        %158 = sbr.rel (%p156) target = $region28
      $region27: #{forward_pallas.9} parent=23 // pred_region
        %s159 = smul.u32 8, %s11
        %p160 = scmp.lt.s32.totalorder %s159, 15
        %s161 = scalar_select %p160, %s159, 15
        %s162 = smul.addr %s161, 8
        %s163 = scalar_lea.vmem %s0, %s162
        %s164 = smul.u32 8, %s11
      $region28: #{forward_pallas.9} parent=23 // pred_fallthru
        _
    $region24: #{forward_pallas.9} parent=5 // pred_fallthru
      _
    %p165 = scmp.le.s32.totalorder 1, %s11
    %p166 = scmp.lt.s32.totalorder %s11, 3
    %p167 = pnand %p165, %p166
    %p168 = pneg %p167
    // Predicated region
    $region29: #{forward_pallas.9} parent=5 // pred_check
      _
    $region30: #{forward_pallas.9} parent=5 // pred_check_branch
      %170 = sbr.rel (%p167) target = $region32
    $region31: #{forward_pallas.9} parent=5 // pred_region
      %s171 = ssub.s32 %s11, 1
      %s172 = smul.u32 8, %s16
      %p173 = scmp.lt.s32.totalorder %s172, 15
      %s174 = scalar_select %p173, %s172, 15
      %s175 = smul.addr %s174, 8
      %s176 = scalar_lea.vmem %s0, %s175
      %p177 = pneg %p37
      %p178 = pneg %p34
      %p179 = pneg %p58
      %p180 = pneg %p55
      %p181 = pneg %p79
      %p182 = pneg %p76
      %p183 = pneg %p105
      %p184 = pneg %p102
      %s185 = smul.u32 8, %s16
      %p186 = scmp.lt.s32.totalorder %s185, 15
      %s187 = scalar_select %p186, %s185, 15
      %s188 = smul.addr %s187, 8
      %s189 = scalar_lea.vmem %s3, %s188
      %p190 = pneg %p131
      %p191 = pneg %p128
      %s192 = smul.u32 8, %s16
      %p193 = scmp.lt.s32.totalorder %s192, 15
      %s194 = scalar_select %p193, %s192, 15
      %s195 = smul.addr %s194, 8
      %s196 = scalar_lea.vmem %s4, %s195
      %s197 = smul.u32 8, %s16
      %p198 = scmp.lt.s32.totalorder %s197, 15
      %s199 = scalar_select %p198, %s197, 15
      %s200 = smul.addr %s199, 8
      %s201 = scalar_lea.vmem %s0, %s200
      %s202 = smul.u32 8, %s16
      %s203 = smul.u32 8, %s16
      %p204 = scmp.lt.s32.totalorder %s203, 15
      %s205 = scalar_select %p204, %s203, 15
      %s206 = smul.addr %s205, 8
      %s207 = scalar_lea.vmem %s3, %s206
      %s208 = smul.u32 8, %s16
      %s209 = smul.u32 8, %s16
      %p210 = scmp.lt.s32.totalorder %s209, 15
      %s211 = scalar_select %p210, %s209, 15
      %s212 = smul.addr %s211, 8
      %s213 = scalar_lea.vmem %s4, %s212
      %s214 = smul.u32 8, %s16
      %v216 = vld [vmem:[%s201] sm:$0xff]
      %v217 = vld [vmem:[%s201 + $0x8] sm:$0xff]
      %v218 = vld [vmem:[%s201 + $0x10] sm:$0xff]
      %v219 = vld [vmem:[%s201 + $0x18] sm:$0xff]
      %v220 = vld [vmem:[%s201 + $0x20] sm:$0xff]
      %v221 = vld [vmem:[%s201 + $0x28] sm:$0xff]
      %v222 = vld [vmem:[%s201 + $0x30] sm:$0xff]
      %v223 = vld [vmem:[%s201 + $0x38] sm:$0xff]
      %v224 = vpack.c.bf16 %v217, %v216
      %v225 = vpack.c.bf16 %v219, %v218
      %v226 = vpack.c.bf16 %v221, %v220
      %v227 = vpack.c.bf16 %v223, %v222
      %v228 = vld [vmem:[%s1] sm:$0xf]
      %v229 = vld [vmem:[%s2] sm:$0x1]
      %v230 = vlaneseq
      %v231 = vshrl.u32 %v230, 7
      %v232 = vsub.s32 0, %v231
      %v233 = vrot.slane %v229, %v232
      %vm234 = vcmask 64512
      %v236 = vsel %vm234, %v224, 0
      %v239 = vsel %vm234, %v225, 0
      %v242 = vsel %vm234, %v226, 0
      %v245 = vsel %vm234, %v227, 0
      %vm247 = vcmask 1043456
      %v249 = vsel %vm247, %v228, 0
      %251 = vmatprep.subr.bf16.mxu0 0
      %252 = vmatpush1.bf16.msra.mxu0 %v249
      %253 = vmatprep.subr.bf16.mxu0 0
      %254 = vmatpush1.bf16.msra.mxu0 0
      %255 = vmatprep.subr.bf16.mxu0 0
      %256 = vmatpush1.bf16.msra.mxu0 0
      %257 = vmatprep.subr.bf16.mxu0 0
      %258 = vmatpush1.bf16.msra.mxu0 0
      %259 = vmatprep.subr.bf16.mxu0 0
      %260 = vmatpush1.bf16.msra.mxu0 0
      %261 = vmatprep.subr.bf16.mxu0 0
      %262 = vmatpush1.bf16.msra.mxu0 0
      %263 = vmatprep.subr.bf16.mxu0 0
      %264 = vmatpush1.bf16.msra.mxu0 0
      %265 = vmatprep.subr.bf16.mxu0 0
      %266 = vmatpush1.bf16.msra.mxu0 0
      %267 = vmatprep.subr.bf16.mxu0 0
      %268 = vmatpush1.bf16.msra.mxu0 0
      %269 = vmatprep.subr.bf16.mxu0 0
      %270 = vmatpush1.bf16.msra.mxu0 0
      %271 = vmatprep.subr.bf16.mxu0 0
      %272 = vmatpush1.bf16.msra.mxu0 0
      %273 = vmatprep.subr.bf16.mxu0 0
      %274 = vmatpush1.bf16.msra.mxu0 0
      %275 = vmatprep.subr.bf16.mxu0 0
      %276 = vmatpush1.bf16.msra.mxu0 0
      %277 = vmatprep.subr.bf16.mxu0 0
      %278 = vmatpush1.bf16.msra.mxu0 0
      %279 = vmatprep.subr.bf16.mxu0 0
      %280 = vmatpush1.bf16.msra.mxu0 0
      %281 = vmatprep.subr.bf16.mxu0 0
      %282 = vmatpush1.bf16.msra.mxu0 0
      %283 = vmatprep.mubr.bf16.mxu0 0
      %284 = vmatmul.mubr.bf16.gmra.mrb[0].mxu0 %v236
      %v285 = vpop.f32.mrb[0].mxu0
      %v286 = vadd.f32 %v233, %v285
      %v287 = vpop.f32.mrb[0].mxu0
      %v288 = vpop.f32.mrb[0].mxu0
      %v289 = vadd.f32 %v233, %v288
      %v290 = vpop.f32.mrb[0].mxu0
      %291 = vmatprep.mubr.bf16.mxu0 0
      %292 = vmatmul.mubr.bf16.gmra.mrb[0].mxu0 %v239
      %v293 = vpop.f32.mrb[0].mxu0
      %v294 = vadd.f32 %v233, %v293
      %v295 = vpop.f32.mrb[0].mxu0
      %v296 = vpop.f32.mrb[0].mxu0
      %v297 = vadd.f32 %v233, %v296
      %v298 = vpop.f32.mrb[0].mxu0
      %299 = vmatprep.mubr.bf16.mxu0 0
      %300 = vmatmul.mubr.bf16.gmra.mrb[0].mxu0 %v242
      %v301 = vpop.f32.mrb[0].mxu0
      %v302 = vadd.f32 %v233, %v301
      %v303 = vpop.f32.mrb[0].mxu0
      %v304 = vpop.f32.mrb[0].mxu0
      %v305 = vadd.f32 %v233, %v304
      %v306 = vpop.f32.mrb[0].mxu0
      %307 = vmatprep.mubr.bf16.mxu0 0
      %308 = vmatmul.mubr.bf16.gmra.mrb[0].mxu0 %v245
      %v309 = vpop.f32.mrb[0].mxu0
      %v310 = vadd.f32 %v233, %v309
      %v311 = vpop.f32.mrb[0].mxu0
      %v312 = vpop.f32.mrb[0].mxu0
      %v313 = vadd.f32 %v233, %v312
      %v314 = vpop.f32.mrb[0].mxu0
      %315 = vdwg.mxu0
      %vm316 = vcmask 220160
      %317 = vst.msk [vmem:[%s207] sm:$0xff] %vm316, %v286
      %318 = vst.msk [vmem:[%s207 + $0x8] sm:$0xff] %vm316, %v289
      %319 = vst.msk [vmem:[%s207 + $0x10] sm:$0xff] %vm316, %v294
      %320 = vst.msk [vmem:[%s207 + $0x18] sm:$0xff] %vm316, %v297
      %321 = vst.msk [vmem:[%s207 + $0x20] sm:$0xff] %vm316, %v302
      %322 = vst.msk [vmem:[%s207 + $0x28] sm:$0xff] %vm316, %v305
      %323 = vst.msk [vmem:[%s207 + $0x30] sm:$0xff] %vm316, %v310
      %324 = vst.msk [vmem:[%s207 + $0x38] sm:$0xff] %vm316, %v313
      %v325 = vxor.u32 %v286, 2147483648
      %v326 = vxor.u32 %v289, 2147483648
      %v327 = vxor.u32 %v294, 2147483648
      %v328 = vxor.u32 %v297, 2147483648
      %v329 = vxor.u32 %v302, 2147483648
      %v330 = vxor.u32 %v305, 2147483648
      %v331 = vxor.u32 %v310, 2147483648
      %v332 = vxor.u32 %v313, 2147483648
      %v333 = vmul.f32 %v325, 1.442695
      %v334 = vpow.pop %v333
      %v335 = vmul.f32 %v326, 1.442695
      %v336 = vpow.pop %v335
      %v337 = vmul.f32 %v327, 1.442695
      %v338 = vpow.pop %v337
      %v339 = vmul.f32 %v328, 1.442695
      %v340 = vpow.pop %v339
      %v341 = vmul.f32 %v329, 1.442695
      %v342 = vpow.pop %v341
      %v343 = vmul.f32 %v330, 1.442695
      %v344 = vpow.pop %v343
      %v345 = vmul.f32 %v331, 1.442695
      %v346 = vpow.pop %v345
      %v347 = vmul.f32 %v332, 1.442695
      %v348 = vpow.pop %v347
      %v349 = vadd.f32 %v334, 1.0
      %v350 = vadd.f32 %v336, 1.0
      %v351 = vadd.f32 %v338, 1.0
      %v352 = vadd.f32 %v340, 1.0
      %v353 = vadd.f32 %v342, 1.0
      %v354 = vadd.f32 %v344, 1.0
      %v355 = vadd.f32 %v346, 1.0
      %v356 = vadd.f32 %v348, 1.0
      %v357 = vrcp.pop %v349
      %v358 = vmul.f32 1.0, %v357
      %v359 = vrcp.pop %v350
      %v360 = vmul.f32 1.0, %v359
      %v361 = vrcp.pop %v351
      %v362 = vmul.f32 1.0, %v361
      %v363 = vrcp.pop %v352
      %v364 = vmul.f32 1.0, %v363
      %v365 = vrcp.pop %v353
      %v366 = vmul.f32 1.0, %v365
      %v367 = vrcp.pop %v354
      %v368 = vmul.f32 1.0, %v367
      %v369 = vrcp.pop %v355
      %v370 = vmul.f32 1.0, %v369
      %v371 = vrcp.pop %v356
      %v372 = vmul.f32 1.0, %v371
      %v373 = vlaneseq
      %v374 = vshrl.u32 %v373, 7
      %v375 = vadd.s32 %v374, 8
      %v376 = vadd.s32 %v374, 16
      %v377 = vadd.s32 %v374, 24
      %v378 = vadd.s32 %v374, 32
      %v379 = vadd.s32 %v374, 40
      %v380 = vadd.s32 %v374, 48
      %v381 = vadd.s32 %v374, 56
      %s382 = smul.u32 %s16, 64
      %v383 = vstv %s382
      %v384 = vadd.s32 %v374, %v383
      %v385 = vadd.s32 %v375, %v383
      %v386 = vadd.s32 %v376, %v383
      %v387 = vadd.s32 %v377, %v383
      %v388 = vadd.s32 %v378, %v383
      %v389 = vadd.s32 %v379, %v383
      %v390 = vadd.s32 %v380, %v383
      %v391 = vadd.s32 %v381, %v383
      %v392 = vand.u32 %v384, 63
      %v393 = vand.u32 %v385, 63
      %v394 = vand.u32 %v386, 63
      %v395 = vand.u32 %v387, 63
      %v396 = vand.u32 %v388, 63
      %v397 = vand.u32 %v389, 63
      %v398 = vand.u32 %v390, 63
      %v399 = vand.u32 %v391, 63
      %v400 = vand.u32 %v392, 7
      %v401 = vand.u32 %v393, 7
      %v402 = vand.u32 %v394, 7
      %v403 = vand.u32 %v395, 7
      %v404 = vand.u32 %v396, 7
      %v405 = vand.u32 %v397, 7
      %v406 = vand.u32 %v398, 7
      %v407 = vand.u32 %v399, 7
      %v408 = vcvt.s32.f32 %v400
      %v409 = vcvt.s32.f32 %v401
      %v410 = vcvt.s32.f32 %v402
      %v411 = vcvt.s32.f32 %v403
      %v412 = vcvt.s32.f32 %v404
      %v413 = vcvt.s32.f32 %v405
      %v414 = vcvt.s32.f32 %v406
      %v415 = vcvt.s32.f32 %v407
      %v416 = vshra.s32 %v392, 3
      %v417 = vshra.s32 %v393, 3
      %v418 = vshra.s32 %v394, 3
      %v419 = vshra.s32 %v395, 3
      %v420 = vshra.s32 %v396, 3
      %v421 = vshra.s32 %v397, 3
      %v422 = vshra.s32 %v398, 3
      %v423 = vshra.s32 %v399, 3
      %v424 = vcvt.s32.f32 %v416
      %v425 = vcvt.s32.f32 %v417
      %v426 = vcvt.s32.f32 %v418
      %v427 = vcvt.s32.f32 %v419
      %v428 = vcvt.s32.f32 %v420
      %v429 = vcvt.s32.f32 %v421
      %v430 = vcvt.s32.f32 %v422
      %v431 = vcvt.s32.f32 %v423
      %v432 = vld [vmem:[%s2 + $0x1] sm:$0x1]
      %v433 = vld [vmem:[%s2 + $0x2] sm:$0x1]
      %v434 = vld [vmem:[%s2 + $0x3] sm:$0x1]
      %v435 = vld [vmem:[%s2 + $0x4] sm:$0x1]
      %v436 = vadd.f32 %v432, %v433
      %v437 = vlaneseq
      %v438 = vshrl.u32 %v437, 7
      %v439 = vsub.s32 0, %v438
      %v440 = vrot.slane %v432, %v439
      %v441 = vmul.f32 %v440, %v408
      %v442 = vmul.f32 %v440, %v409
      %v443 = vmul.f32 %v440, %v410
      %v444 = vmul.f32 %v440, %v411
      %v445 = vmul.f32 %v440, %v412
      %v446 = vmul.f32 %v440, %v413
      %v447 = vmul.f32 %v440, %v414
      %v448 = vmul.f32 %v440, %v415
      %v449 = vlaneseq
      %v450 = vshrl.u32 %v449, 7
      %v451 = vsub.s32 0, %v450
      %v452 = vrot.slane %v433, %v451
      %v453 = vmul.f32 %v452, %v424
      %v454 = vmul.f32 %v452, %v425
      %v455 = vmul.f32 %v452, %v426
      %v456 = vmul.f32 %v452, %v427
      %v457 = vmul.f32 %v452, %v428
      %v458 = vmul.f32 %v452, %v429
      %v459 = vmul.f32 %v452, %v430
      %v460 = vmul.f32 %v452, %v431
      %v461 = vadd.f32 %v441, %v453
      %v462 = vadd.f32 %v442, %v454
      %v463 = vadd.f32 %v443, %v455
      %v464 = vadd.f32 %v444, %v456
      %v465 = vadd.f32 %v445, %v457
      %v466 = vadd.f32 %v446, %v458
      %v467 = vadd.f32 %v447, %v459
      %v468 = vadd.f32 %v448, %v460
      %v469 = vmul.f32 %v436, 0.5
      %v470 = vlaneseq
      %v471 = vshrl.u32 %v470, 7
      %v472 = vsub.s32 0, %v471
      %v473 = vrot.slane %v469, %v472
      %v474 = vsub.f32 %v461, %v473
      %v475 = vsub.f32 %v462, %v473
      %v476 = vsub.f32 %v463, %v473
      %v477 = vsub.f32 %v464, %v473
      %v478 = vsub.f32 %v465, %v473
      %v479 = vsub.f32 %v466, %v473
      %v480 = vsub.f32 %v467, %v473
      %v481 = vsub.f32 %v468, %v473
      %v482 = vmul.f32 %v358, 2.0
      %v483 = vmul.f32 %v360, 2.0
      %v484 = vmul.f32 %v362, 2.0
      %v485 = vmul.f32 %v364, 2.0
      %v486 = vmul.f32 %v366, 2.0
      %v487 = vmul.f32 %v368, 2.0
      %v488 = vmul.f32 %v370, 2.0
      %v489 = vmul.f32 %v372, 2.0
      %v490 = vadd.f32 %v482, %v474
      %v491 = vadd.f32 %v483, %v475
      %v492 = vadd.f32 %v484, %v476
      %v493 = vadd.f32 %v485, %v477
      %v494 = vadd.f32 %v486, %v478
      %v495 = vadd.f32 %v487, %v479
      %v496 = vadd.f32 %v488, %v480
      %v497 = vadd.f32 %v489, %v481
      %v498 = vmul.f32 %v490, 2.0
      %v499 = vmul.f32 %v491, 2.0
      %v500 = vmul.f32 %v492, 2.0
      %v501 = vmul.f32 %v493, 2.0
      %v502 = vmul.f32 %v494, 2.0
      %v503 = vmul.f32 %v495, 2.0
      %v504 = vmul.f32 %v496, 2.0
      %v505 = vmul.f32 %v497, 2.0
      %v506 = vmul.f32 %v482, %v482
      %v507 = vmul.f32 %v483, %v483
      %v508 = vmul.f32 %v484, %v484
      %v509 = vmul.f32 %v485, %v485
      %v510 = vmul.f32 %v486, %v486
      %v511 = vmul.f32 %v487, %v487
      %v512 = vmul.f32 %v488, %v488
      %v513 = vmul.f32 %v489, %v489
      %v514 = vlaneseq
      %v515 = vshrl.u32 %v514, 7
      %v516 = vsub.s32 0, %v515
      %v517 = vrot.slane %v435, %v516
      %v518 = vmul.f32 %v506, %v517
      %v519 = vmul.f32 %v507, %v517
      %v520 = vmul.f32 %v508, %v517
      %v521 = vmul.f32 %v509, %v517
      %v522 = vmul.f32 %v510, %v517
      %v523 = vmul.f32 %v511, %v517
      %v524 = vmul.f32 %v512, %v517
      %v525 = vmul.f32 %v513, %v517
      %vm526 = vcmp.gt.f32.partialorder %v436, 0.5
      %vm527 = vcmp.gt.f32.partialorder %v434, 0.5
      %v528 = vsel %vm527, 1, 0
      %v529 = vlaneseq
      %v530 = vshrl.u32 %v529, 7
      %v531 = vsub.s32 0, %v530
      %v532 = vrot.slane %v528, %v531
      %vm533 = vcmp.eq.s32.totalorder %v532, 1
      %v534 = vsel %vm533, %v518, %v358
      %v535 = vsel %vm533, %v519, %v360
      %v536 = vsel %vm533, %v520, %v362
      %v537 = vsel %vm533, %v521, %v364
      %v538 = vsel %vm533, %v522, %v366
      %v539 = vsel %vm533, %v523, %v368
      %v540 = vsel %vm533, %v524, %v370
      %v541 = vsel %vm533, %v525, %v372
      %v542 = vsel %vm526, 1, 0
      %v543 = vlaneseq
      %v544 = vshrl.u32 %v543, 7
      %v545 = vsub.s32 0, %v544
      %v546 = vrot.slane %v542, %v545
      %vm547 = vcmp.eq.s32.totalorder %v546, 1
      %v548 = vsel %vm547, %v498, %v534
      %v549 = vsel %vm547, %v499, %v535
      %v550 = vsel %vm547, %v500, %v536
      %v551 = vsel %vm547, %v501, %v537
      %v552 = vsel %vm547, %v502, %v538
      %v553 = vsel %vm547, %v503, %v539
      %v554 = vsel %vm547, %v504, %v540
      %v555 = vsel %vm547, %v505, %v541
      %556 = vst.msk [vmem:[%s213] sm:$0xff] %vm316, %v548
      %557 = vst.msk [vmem:[%s213 + $0x8] sm:$0xff] %vm316, %v549
      %558 = vst.msk [vmem:[%s213 + $0x10] sm:$0xff] %vm316, %v550
      %559 = vst.msk [vmem:[%s213 + $0x18] sm:$0xff] %vm316, %v551
      %560 = vst.msk [vmem:[%s213 + $0x20] sm:$0xff] %vm316, %v552
      %561 = vst.msk [vmem:[%s213 + $0x28] sm:$0xff] %vm316, %v553
      %562 = vst.msk [vmem:[%s213 + $0x30] sm:$0xff] %vm316, %v554
      %563 = vst.msk [vmem:[%s213 + $0x38] sm:$0xff] %vm316, %v555
      %s564 = smul.u32 8, %s16
      %p565 = scmp.lt.s32.totalorder %s564, 15
      %s566 = scalar_select %p565, %s564, 15
      %s567 = smul.addr %s566, 8
      %s568 = scalar_lea.vmem %s3, %s567
      %s569 = smul.u32 8, %s16
      %p570 = scmp.lt.s32.totalorder %s569, 15
      %s571 = scalar_select %p570, %s569, 15
      %s572 = smul.addr %s571, 8
      %s573 = scalar_lea.vmem %s4, %s572
      // Predicated region
      $region33: #{forward_pallas.9} parent=31 // pred_check
        %p574 = pneg %p102
      $region34: #{forward_pallas.9} parent=31 // pred_check_branch
        %576 = sbr.rel (%p574) target = $region36
      $region35: #{forward_pallas.9} parent=31 // pred_region
        %s577 = smul.u32 8, %s16
      $region36: #{forward_pallas.9} parent=31 // pred_fallthru
        _
      // Predicated region
      $region37: #{forward_pallas.9} parent=31 // pred_check
        %p578 = pneg %p128
      $region38: #{forward_pallas.9} parent=31 // pred_check_branch
        %580 = sbr.rel (%p578) target = $region40
      $region39: #{forward_pallas.9} parent=31 // pred_region
        %s581 = smul.u32 8, %s16
      $region40: #{forward_pallas.9} parent=31 // pred_fallthru
        _
    $region32: #{forward_pallas.9} parent=5 // pred_fallthru
      _
    %p582 = scmp.le.s32.totalorder 2, %s11
    // Predicated region
    $region41: #{forward_pallas.9} parent=5 // pred_check
      %p583 = pneg %p582
    $region42: #{forward_pallas.9} parent=5 // pred_check_branch
      %585 = sbr.rel (%p583) target = $region44
    $region43: #{forward_pallas.9} parent=5 // pred_region
      %s586 = ssub.s32 %s11, 2
      // Predicated region
      $region45: #{forward_pallas.9} parent=43 // pred_check
        %p587 = pneg %p108
      $region46: #{forward_pallas.9} parent=43 // pred_check_branch
        %589 = sbr.rel (%p587) target = $region48
      $region47: #{forward_pallas.9} parent=43 // pred_region
        %s590 = smul.u32 8, %s17
        %p591 = scmp.lt.s32.totalorder %s590, 15
        %s592 = scalar_select %p591, %s590, 15
        %s593 = smul.addr %s592, 8
        %s594 = scalar_lea.vmem %s3, %s593
      $region48: #{forward_pallas.9} parent=43 // pred_fallthru
        _
      // Predicated region
      $region49: #{forward_pallas.9} parent=43 // pred_check
        %p595 = pneg %p134
      $region50: #{forward_pallas.9} parent=43 // pred_check_branch
        %597 = sbr.rel (%p595) target = $region52
      $region51: #{forward_pallas.9} parent=43 // pred_region
        %s598 = smul.u32 8, %s17
        %p599 = scmp.lt.s32.totalorder %s598, 15
        %s600 = scalar_select %p599, %s598, 15
        %s601 = smul.addr %s600, 8
        %s602 = scalar_lea.vmem %s4, %s601
      $region52: #{forward_pallas.9} parent=43 // pred_fallthru
        _
    $region44: #{forward_pallas.9} parent=5 // pred_fallthru
      _
  $region6: #{forward_pallas.9} parent=0 // loop_footer
    %s15 = sadd.s32 1, %s11
  $region7: #{forward_pallas.9} parent=0 // loop_footer_branch
    %10 = sbr.rel target = $region3
  $region8: #{forward_pallas.9} parent=0 // loop_exit
    _

</llo_original>
